<compile_context>
chip_gen: v7x
topology: tpu7x:2x2x1
jax: 0.10.0
libtpu: 0.0.40
codegen_flags: <defaults>
</compile_context>

<pallas_src>
import functools

import numpy as np
import jax
import jax.numpy as jnp
from jax import lax
from jax.experimental import pallas as pl
from jax.experimental.pallas import tpu as pltpu

LEAKY_SLOPE = 0.01                    # nn.LeakyReLU() default negative_slope
COMPUTE_DTYPE = jnp.bfloat16          # MXU operand / activation carry dtype
VMEM_LIMIT_BYTES = 32 * 1024 * 1024   # scoped VMEM limit (safe on v5e/v6e/v7x)
LANE = 128


def _round_up(v, m):
    return ((v + m - 1) // m) * m


# ----------------------------------------------------------------------------
# Kernel 1: Conv2d(3x3, stride=2, pad=1) + LeakyReLU — `bblk` batch elems / step
# ----------------------------------------------------------------------------
def _conv3x3s2_lrelu_kernel(xph_ref, w_ref, b_ref, o_ref, patch_ref, *,
                            bblk, oh, ow, slope):
    """xph_ref  : (bblk, 4, (OH+1)*(OW+1), Cp) bf16 — stride-2 phases, flattened
       w_ref    : (9*Cp, OC) bf16, tap-major K                 [grid-resident]
       b_ref    : (1, OC)    f32                               [grid-resident]
       o_ref    : (bblk*OH*OW, OC)
       patch_ref: (bblk*OH*OW, 9*Cp) bf16 scratch (K-concat im2col slab)."""
    cp = xph_ref.shape[-1]
    pw = ow + 1
    # Gather the 9 stride-2 taps into one (M, 9*Cp) slab.  All copies are
    # contiguous (ow, Cp) row slabs with static offsets; the lane offset k*Cp is
    # a multiple of 128 by construction, so stores are full-width / unmasked.
    for bb in range(bblk):
        for r in range(oh):
            m0 = bb * (oh * ow) + r * ow
            for kh in range(3):
                dh = kh // 2
                for kw in range(3):
                    dw = kw // 2
                    k = kh * 3 + kw
                    p = (kh % 2) * 2 + (kw % 2)
                    src = xph_ref[bb, p,
                                  (dh + r) * pw + dw:(dh + r) * pw + dw + ow, :]
                    patch_ref[m0:m0 + ow, k * cp:(k + 1) * cp] = src
    # One MXU matmul over K = 9*Cp: accumulation stays inside the MXU pipeline
    # (no per-tap VMEM read-modify-write of an (M, OC) f32 accumulator).
    acc = jnp.dot(patch_ref[...], w_ref[...], preferred_element_type=jnp.float32)
    acc = acc + b_ref[...]
    acc = jnp.where(acc >= 0.0, acc, slope * acc)          # LeakyReLU, f32 epilogue
    o_ref[...] = acc.astype(o_ref.dtype)


def conv3x3_s2_lrelu(x_nhwc, w_oihw, b, *, out_dtype=COMPUTE_DTYPE):
    """Conv2d(kernel=3, stride=2, padding=1) + LeakyReLU(0.01). NHWC activations."""
    B, H, W, C = x_nhwc.shape
    OC = w_oihw.shape[0]
    OH, OW = H // 2, W // 2
    P = (OH + 1) * (OW + 1)
    Cp = C if C % LANE == 0 else _round_up(C, LANE)   # lane-aligned per-tap stride

    # Single equal-volume rearrangement (fused by XLA under jit), all in bf16:
    # xph[b, pr*2+pc, i*(OW+1)+j, c] = pad(x)[b, 2*i + pr, 2*j + pc, c]
    xq = x_nhwc.astype(COMPUTE_DTYPE)
    xp = jnp.pad(xq, ((0, 0), (1, 1), (1, 1), (0, Cp - C)))
    xp = xp.reshape(B, OH + 1, 2, OW + 1, 2, Cp)
    xph = jnp.transpose(xp, (0, 2, 4, 1, 3, 5)).reshape(B, 4, P, Cp)

    # PyTorch OIHW -> (kh, kw, IC, OC) -> zero-pad IC to Cp -> (9*Cp, OC), bf16.
    w_t = jnp.transpose(w_oihw, (2, 3, 1, 0)).reshape(9, C, OC)
    if Cp != C:
        w_t = jnp.pad(w_t, ((0, 0), (0, Cp - C), (0, 0)))
    w_k = w_t.reshape(9 * Cp, OC).astype(COMPUTE_DTYPE)
    b2 = b.reshape(1, OC).astype(jnp.float32)

    # Batch-block small-spatial layers so M = bblk*OH*OW stays near >= 128.
    m_tile = OH * OW
    if m_tile >= 128 or B == 1:
        bblk = 1
    else:
        cap = min(B, max(1, 128 // m_tile))
        bblk = max(d for d in range(1, cap + 1) if B % d == 0)
    M = bblk * m_tile
    grid = (B // bblk,)

    kernel = functools.partial(_conv3x3s2_lrelu_kernel,
                               bblk=bblk, oh=OH, ow=OW, slope=LEAKY_SLOPE)
    out = pl.pallas_call(
        kernel,
        out_shape=jax.ShapeDtypeStruct((B * OH * OW, OC), out_dtype),
        grid=grid,
        in_specs=[
            pl.BlockSpec((bblk, 4, P, Cp), lambda gi: (gi, 0, 0, 0)),
            pl.BlockSpec((9 * Cp, OC), lambda gi: (0, 0)),    # resident weights
            pl.BlockSpec((1, OC), lambda gi: (0, 0)),         # resident bias
        ],
        out_specs=pl.BlockSpec((M, OC), lambda gi: (gi, 0)),  # lane-dense output
        scratch_shapes=[pltpu.VMEM((M, 9 * Cp), COMPUTE_DTYPE)],
        compiler_params=pltpu.CompilerParams(
            dimension_semantics=("parallel",),   # megacore-shard the batch grid
            vmem_limit_bytes=VMEM_LIMIT_BYTES,
        ),
    )(xph, w_k, b2)
    return out.reshape(B, OH, OW, OC)              # free row-major reinterpretation


# ----------------------------------------------------------------------------
# Kernel 2: fused tail — final conv (2x2 -> 1x1) + LeakyReLU + EqualLinear
# ----------------------------------------------------------------------------
def _tail_conv_linear_kernel(x_ref, wc_ref, bc_ref, wl_ref, bl_ref, o_ref, *, slope):
    h = jnp.dot(x_ref[...], wc_ref[...], preferred_element_type=jnp.float32)
    h = h + bc_ref[...]
    h = jnp.where(h >= 0.0, h, slope * h)                  # LeakyReLU
    y = jnp.dot(h.astype(wl_ref.dtype), wl_ref[...],
                preferred_element_type=jnp.float32)
    o_ref[...] = (y + bl_ref[...]).astype(o_ref.dtype)


def tail_conv_lrelu_equal_linear(x_nhwc_2x2, w_conv, b_conv, lin_w, lin_b):
    """x: (B, 2, 2, C) NHWC.  Row-tiled over the batch; weights stay resident."""
    B, H, W, C = x_nhwc_2x2.shape
    assert H == 2 and W == 2, (H, W)
    OC = w_conv.shape[0]
    out_dim, in_dim = lin_w.shape

    x_flat = x_nhwc_2x2.reshape(B, 4 * C).astype(COMPUTE_DTYPE)
    # For the 1x1 output pixel only taps (kh,kw) in {1,2}x{1,2} see real data
    # (the rest hit the zero padding), so the conv is exactly a (4*C, OC) matmul.
    wc = jnp.transpose(w_conv[:, :, 1:3, 1:3], (2, 3, 1, 0)).reshape(4 * C, OC)
    wc = wc.astype(COMPUTE_DTYPE)
    bc = b_conv.reshape(1, OC).astype(jnp.float32)
    # EqualLinear(lr_mul=1): y = x @ (W * 1/sqrt(in_dim)).T + bias
    wl = (lin_w * float(1.0 / np.sqrt(in_dim))).T.astype(COMPUTE_DTYPE)
    bl = lin_b.reshape(1, out_dim).astype(jnp.float32)

    rb = B if B <= 512 else 512
    kernel = functools.partial(_tail_conv_linear_kernel, slope=LEAKY_SLOPE)
    return pl.pallas_call(
        kernel,
        out_shape=jax.ShapeDtypeStruct((B, out_dim), jnp.float32),
        grid=(pl.cdiv(B, rb),),
        in_specs=[
            pl.BlockSpec((rb, 4 * C), lambda i: (i, 0)),
            pl.BlockSpec((4 * C, OC), lambda i: (0, 0)),
            pl.BlockSpec((1, OC), lambda i: (0, 0)),
            pl.BlockSpec((in_dim, out_dim), lambda i: (0, 0)),
            pl.BlockSpec((1, out_dim), lambda i: (0, 0)),
        ],
        out_specs=pl.BlockSpec((rb, out_dim), lambda i: (i, 0)),
        compiler_params=pltpu.CompilerParams(
            dimension_semantics=("parallel",),
            vmem_limit_bytes=VMEM_LIMIT_BYTES),
    )(x_flat, wc, bc, wl, bl)


# ----------------------------------------------------------------------------
# SubBlock forward (jitted end-to-end: glue + all pallas_calls in one program)
# ----------------------------------------------------------------------------
@jax.jit
def subblock_forward(x_nchw, conv_params, lin_w, lin_b):
    assert len(conv_params) >= 1
    x = jnp.transpose(x_nchw, (0, 2, 3, 1))       # NCHW -> NHWC
    for w, b in conv_params[:-1]:                 # all convs down to spatial 2
        x = conv3x3_s2_lrelu(x, w, b)             # bf16 intermediates
    w_last, b_last = conv_params[-1]              # fused 2x2->1x1 conv + linear
    return tail_conv_lrelu_equal_linear(x, w_last, b_last, lin_w, lin_b)


# ----------------------------------------------------------------------------
# Deterministic parameter init (shapes from SubBlock.__init__)
# ----------------------------------------------------------------------------
def init_params(key, in_c, out_c, spatial):
    num_pools = int(np.log2(spatial))
    conv_params = []
    c_in = in_c
    for _ in range(num_pools):
        key, kw_, kb_ = jax.random.split(key, 3)
        w = jax.random.normal(kw_, (out_c, c_in, 3, 3), jnp.float32) * 0.05
        b = jax.random.normal(kb_, (out_c,), jnp.float32) * 0.05
        conv_params.append((w, b))
        c_in = out_c
    key, kw_ = jax.random.split(key)
    lin_w = jax.random.normal(kw_, (out_c, out_c), jnp.float32)  # EqualLinear: randn / lr_mul (=1)
    lin_b = jnp.zeros((out_c,), jnp.float32)                     # EqualLinear bias init = 0
    return conv_params, lin_w, lin_b


# ----------------------------------------------------------------------------
# Pure-JAX reference (f32) for correctness check
# ----------------------------------------------------------------------------
def ref_forward(x_nchw, conv_params, lin_w, lin_b):
    x = x_nchw
    for w, b in conv_params:
        x = lax.conv_general_dilated(
            x, w, window_strides=(2, 2), padding=((1, 1), (1, 1)),
            dimension_numbers=("NCHW", "OIHW", "NCHW"))
        x = x + b.reshape(1, -1, 1, 1)
        x = jnp.where(x >= 0, x, LEAKY_SLOPE * x)
    out_dim, in_dim = lin_w.shape
    x = x.reshape(-1, out_dim)
    scale = 1.0 / np.sqrt(in_dim)
    return x @ (lin_w * scale).T + lin_b


if __name__ == "__main__":
    # num_pools = log2(16) = 4 convs: 16 -> 8 -> 4 -> 2 -> 1
    batch, in_c, out_c, spatial = 2, 8, 128, 16   # out_c multiple of 128 -> lane-dense stores

    key = jax.random.PRNGKey(0)
    key, kx = jax.random.split(key)
    x = jax.random.normal(kx, (batch, in_c, spatial, spatial), jnp.float32)

    conv_params, lin_w, lin_b = init_params(key, in_c, out_c, spatial)

    out = jax.block_until_ready(subblock_forward(x, conv_params, lin_w, lin_b))
    ref = jax.block_until_ready(ref_forward(x, conv_params, lin_w, lin_b))

    # bf16 activations / MXU feed (f32 accumulate) -> loosened tolerance vs f32 ref.
    np.testing.assert_allclose(np.asarray(out), np.asarray(ref), rtol=5e-2, atol=5e-2)
    assert out.shape == (batch, out_c)

    print("KERNEL_OK")
</pallas_src>

<mosaic_0001>
module attributes {stable_mosaic.version = 11 : i64} {
  func.func @_conv3x3s2_lrelu_kernel(%arg0: i32, %arg1: memref<2x4x81x128xbf16, #tpu.memory_space<vmem>>, %arg2: memref<1152x128xbf16, #tpu.memory_space<vmem>>, %arg3: memref<1x128xf32, #tpu.memory_space<vmem>>, %arg4: memref<128x128xbf16, #tpu.memory_space<vmem>>, %arg5: memref<128x1152xbf16, #tpu.memory_space<vmem>>) attributes {dimension_semantics = [#tpu.dimension_semantics<parallel>], iteration_bounds = array<i64: 1>, scalar_prefetch = 0 : i64, scratch_operands = 1 : i64, tpu.core_type = #tpu.core_type<tc>, window_params = [{transform_indices = @transform_0, window_bounds = array<i64: 2, 4, 81, 128>}, {pipeline_mode = #tpu.pipeline_mode<synchronous>, transform_indices = @transform_1, window_bounds = array<i64: 1152, 128>}, {pipeline_mode = #tpu.pipeline_mode<synchronous>, transform_indices = @transform_2, window_bounds = array<i64: 1, 128>}, {transform_indices = @transform_3, window_bounds = array<i64: 128, 128>}]} {
    %c0 = arith.constant 0 : index
    %c0_0 = arith.constant 0 : index
    %c0_1 = arith.constant 0 : index
    %c0_2 = arith.constant 0 : index
    %0 = vector.load %arg1[%c0, %c0_0, %c0_1, %c0_2] : memref<2x4x81x128xbf16, #tpu.memory_space<vmem>>, vector<1x1x8x128xbf16>
    %1 = vector.shape_cast %0 : vector<1x1x8x128xbf16> to vector<8x128xbf16>
    %c0_3 = arith.constant 0 : index
    %c0_4 = arith.constant 0 : index
    %2 = vector.load %arg5[%c0_3, %c0_4] : memref<128x1152xbf16, #tpu.memory_space<vmem>>, vector<8x128xbf16>
    tpu.vector_store %arg5[%c0_3, %c0_4], %1 {strides = array<i32>} : memref<128x1152xbf16, #tpu.memory_space<vmem>>, vector<8x128xbf16>,
    %c0_5 = arith.constant 0 : index
    %c1 = arith.constant 1 : index
    %c0_6 = arith.constant 0 : index
    %c0_7 = arith.constant 0 : index
    %3 = vector.load %arg1[%c0_5, %c1, %c0_6, %c0_7] : memref<2x4x81x128xbf16, #tpu.memory_space<vmem>>, vector<1x1x8x128xbf16>
    %4 = vector.shape_cast %3 : vector<1x1x8x128xbf16> to vector<8x128xbf16>
    %c0_8 = arith.constant 0 : index
    %c128 = arith.constant 128 : index
    %5 = vector.load %arg5[%c0_8, %c128] : memref<128x1152xbf16, #tpu.memory_space<vmem>>, vector<8x128xbf16>
    tpu.vector_store %arg5[%c0_8, %c128], %4 {strides = array<i32>} : memref<128x1152xbf16, #tpu.memory_space<vmem>>, vector<8x128xbf16>,
    %c0_9 = arith.constant 0 : index
    %c0_10 = arith.constant 0 : index
    %c1_11 = arith.constant 1 : index
    %c0_12 = arith.constant 0 : index
    %6 = vector.load %arg1[%c0_9, %c0_10, %c1_11, %c0_12] : memref<2x4x81x128xbf16, #tpu.memory_space<vmem>>, vector<1x1x8x128xbf16>
    %7 = vector.shape_cast %6 : vector<1x1x8x128xbf16> to vector<8x128xbf16>
    %c0_13 = arith.constant 0 : index
    %c256 = arith.constant 256 : index
    %8 = vector.load %arg5[%c0_13, %c256] : memref<128x1152xbf16, #tpu.memory_space<vmem>>, vector<8x128xbf16>
    tpu.vector_store %arg5[%c0_13, %c256], %7 {strides = array<i32>} : memref<128x1152xbf16, #tpu.memory_space<vmem>>, vector<8x128xbf16>,
    %c0_14 = arith.constant 0 : index
    %c2 = arith.constant 2 : index
    %c0_15 = arith.constant 0 : index
    %c0_16 = arith.constant 0 : index
    %9 = vector.load %arg1[%c0_14, %c2, %c0_15, %c0_16] : memref<2x4x81x128xbf16, #tpu.memory_space<vmem>>, vector<1x1x8x128xbf16>
    %10 = vector.shape_cast %9 : vector<1x1x8x128xbf16> to vector<8x128xbf16>
    %c0_17 = arith.constant 0 : index
    %c384 = arith.constant 384 : index
    %11 = vector.load %arg5[%c0_17, %c384] : memref<128x1152xbf16, #tpu.memory_space<vmem>>, vector<8x128xbf16>
    tpu.vector_store %arg5[%c0_17, %c384], %10 {strides = array<i32>} : memref<128x1152xbf16, #tpu.memory_space<vmem>>, vector<8x128xbf16>,
    %c0_18 = arith.constant 0 : index
    %c3 = arith.constant 3 : index
    %c0_19 = arith.constant 0 : index
    %c0_20 = arith.constant 0 : index
    %12 = vector.load %arg1[%c0_18, %c3, %c0_19, %c0_20] : memref<2x4x81x128xbf16, #tpu.memory_space<vmem>>, vector<1x1x8x128xbf16>
    %13 = vector.shape_cast %12 : vector<1x1x8x128xbf16> to vector<8x128xbf16>
    %c0_21 = arith.constant 0 : index
    %c512 = arith.constant 512 : index
    %14 = vector.load %arg5[%c0_21, %c512] : memref<128x1152xbf16, #tpu.memory_space<vmem>>, vector<8x128xbf16>
    tpu.vector_store %arg5[%c0_21, %c512], %13 {strides = array<i32>} : memref<128x1152xbf16, #tpu.memory_space<vmem>>, vector<8x128xbf16>,
    %c0_22 = arith.constant 0 : index
    %c2_23 = arith.constant 2 : index
    %c1_24 = arith.constant 1 : index
    %c0_25 = arith.constant 0 : index
    %15 = vector.load %arg1[%c0_22, %c2_23, %c1_24, %c0_25] : memref<2x4x81x128xbf16, #tpu.memory_space<vmem>>, vector<1x1x8x128xbf16>
    %16 = vector.shape_cast %15 : vector<1x1x8x128xbf16> to vector<8x128xbf16>
    %c0_26 = arith.constant 0 : index
    %c640 = arith.constant 640 : index
    %17 = vector.load %arg5[%c0_26, %c640] : memref<128x1152xbf16, #tpu.memory_space<vmem>>, vector<8x128xbf16>
    tpu.vector_store %arg5[%c0_26, %c640], %16 {strides = array<i32>} : memref<128x1152xbf16, #tpu.memory_space<vmem>>, vector<8x128xbf16>,
    %c0_27 = arith.constant 0 : index
    %c0_28 = arith.constant 0 : index
    %c9 = arith.constant 9 : index
    %c0_29 = arith.constant 0 : index
    %18 = vector.load %arg1[%c0_27, %c0_28, %c9, %c0_29] : memref<2x4x81x128xbf16, #tpu.memory_space<vmem>>, vector<1x1x8x128xbf16>
    %19 = vector.shape_cast %18 : vector<1x1x8x128xbf16> to vector<8x128xbf16>
    %c0_30 = arith.constant 0 : index
    %c768 = arith.constant 768 : index
    %20 = vector.load %arg5[%c0_30, %c768] : memref<128x1152xbf16, #tpu.memory_space<vmem>>, vector<8x128xbf16>
    tpu.vector_store %arg5[%c0_30, %c768], %19 {strides = array<i32>} : memref<128x1152xbf16, #tpu.memory_space<vmem>>, vector<8x128xbf16>,
    %c0_31 = arith.constant 0 : index
    %c1_32 = arith.constant 1 : index
    %c9_33 = arith.constant 9 : index
    %c0_34 = arith.constant 0 : index
    %21 = vector.load %arg1[%c0_31, %c1_32, %c9_33, %c0_34] : memref<2x4x81x128xbf16, #tpu.memory_space<vmem>>, vector<1x1x8x128xbf16>
    %22 = vector.shape_cast %21 : vector<1x1x8x128xbf16> to vector<8x128xbf16>
    %c0_35 = arith.constant 0 : index
    %c896 = arith.constant 896 : index
    %23 = vector.load %arg5[%c0_35, %c896] : memref<128x1152xbf16, #tpu.memory_space<vmem>>, vector<8x128xbf16>
    tpu.vector_store %arg5[%c0_35, %c896], %22 {strides = array<i32>} : memref<128x1152xbf16, #tpu.memory_space<vmem>>, vector<8x128xbf16>,
    %c0_36 = arith.constant 0 : index
    %c0_37 = arith.constant 0 : index
    %c10 = arith.constant 10 : index
    %c0_38 = arith.constant 0 : index
    %24 = vector.load %arg1[%c0_36, %c0_37, %c10, %c0_38] : memref<2x4x81x128xbf16, #tpu.memory_space<vmem>>, vector<1x1x8x128xbf16>
    %25 = vector.shape_cast %24 : vector<1x1x8x128xbf16> to vector<8x128xbf16>
    %c0_39 = arith.constant 0 : index
    %c1024 = arith.constant 1024 : index
    %26 = vector.load %arg5[%c0_39, %c1024] : memref<128x1152xbf16, #tpu.memory_space<vmem>>, vector<8x128xbf16>
    tpu.vector_store %arg5[%c0_39, %c1024], %25 {strides = array<i32>} : memref<128x1152xbf16, #tpu.memory_space<vmem>>, vector<8x128xbf16>,
    %c0_40 = arith.constant 0 : index
    %c0_41 = arith.constant 0 : index
    %c9_42 = arith.constant 9 : index
    %c0_43 = arith.constant 0 : index
    %27 = vector.load %arg1[%c0_40, %c0_41, %c9_42, %c0_43] : memref<2x4x81x128xbf16, #tpu.memory_space<vmem>>, vector<1x1x8x128xbf16>
    %28 = vector.shape_cast %27 : vector<1x1x8x128xbf16> to vector<8x128xbf16>
    %c8 = arith.constant 8 : index
    %c0_44 = arith.constant 0 : index
    %29 = vector.load %arg5[%c8, %c0_44] : memref<128x1152xbf16, #tpu.memory_space<vmem>>, vector<8x128xbf16>
    tpu.vector_store %arg5[%c8, %c0_44], %28 {strides = array<i32>} : memref<128x1152xbf16, #tpu.memory_space<vmem>>, vector<8x128xbf16>,
    %c0_45 = arith.constant 0 : index
    %c1_46 = arith.constant 1 : index
    %c9_47 = arith.constant 9 : index
    %c0_48 = arith.constant 0 : index
    %30 = vector.load %arg1[%c0_45, %c1_46, %c9_47, %c0_48] : memref<2x4x81x128xbf16, #tpu.memory_space<vmem>>, vector<1x1x8x128xbf16>
    %31 = vector.shape_cast %30 : vector<1x1x8x128xbf16> to vector<8x128xbf16>
    %c8_49 = arith.constant 8 : index
    %c128_50 = arith.constant 128 : index
    %32 = vector.load %arg5[%c8_49, %c128_50] : memref<128x1152xbf16, #tpu.memory_space<vmem>>, vector<8x128xbf16>
    tpu.vector_store %arg5[%c8_49, %c128_50], %31 {strides = array<i32>} : memref<128x1152xbf16, #tpu.memory_space<vmem>>, vector<8x128xbf16>,
    %c0_51 = arith.constant 0 : index
    %c0_52 = arith.constant 0 : index
    %c10_53 = arith.constant 10 : index
    %c0_54 = arith.constant 0 : index
    %33 = vector.load %arg1[%c0_51, %c0_52, %c10_53, %c0_54] : memref<2x4x81x128xbf16, #tpu.memory_space<vmem>>, vector<1x1x8x128xbf16>
    %34 = vector.shape_cast %33 : vector<1x1x8x128xbf16> to vector<8x128xbf16>
    %c8_55 = arith.constant 8 : index
    %c256_56 = arith.constant 256 : index
    %35 = vector.load %arg5[%c8_55, %c256_56] : memref<128x1152xbf16, #tpu.memory_space<vmem>>, vector<8x128xbf16>
    tpu.vector_store %arg5[%c8_55, %c256_56], %34 {strides = array<i32>} : memref<128x1152xbf16, #tpu.memory_space<vmem>>, vector<8x128xbf16>,
    %c0_57 = arith.constant 0 : index
    %c2_58 = arith.constant 2 : index
    %c9_59 = arith.constant 9 : index
    %c0_60 = arith.constant 0 : index
    %36 = vector.load %arg1[%c0_57, %c2_58, %c9_59, %c0_60] : memref<2x4x81x128xbf16, #tpu.memory_space<vmem>>, vector<1x1x8x128xbf16>
    %37 = vector.shape_cast %36 : vector<1x1x8x128xbf16> to vector<8x128xbf16>
    %c8_61 = arith.constant 8 : index
    %c384_62 = arith.constant 384 : index
    %38 = vector.load %arg5[%c8_61, %c384_62] : memref<128x1152xbf16, #tpu.memory_space<vmem>>, vector<8x128xbf16>
    tpu.vector_store %arg5[%c8_61, %c384_62], %37 {strides = array<i32>} : memref<128x1152xbf16, #tpu.memory_space<vmem>>, vector<8x128xbf16>,
    %c0_63 = arith.constant 0 : index
    %c3_64 = arith.constant 3 : index
    %c9_65 = arith.constant 9 : index
    %c0_66 = arith.constant 0 : index
    %39 = vector.load %arg1[%c0_63, %c3_64, %c9_65, %c0_66] : memref<2x4x81x128xbf16, #tpu.memory_space<vmem>>, vector<1x1x8x128xbf16>
    %40 = vector.shape_cast %39 : vector<1x1x8x128xbf16> to vector<8x128xbf16>
    %c8_67 = arith.constant 8 : index
    %c512_68 = arith.constant 512 : index
    %41 = vector.load %arg5[%c8_67, %c512_68] : memref<128x1152xbf16, #tpu.memory_space<vmem>>, vector<8x128xbf16>
    tpu.vector_store %arg5[%c8_67, %c512_68], %40 {strides = array<i32>} : memref<128x1152xbf16, #tpu.memory_space<vmem>>, vector<8x128xbf16>,
    %c0_69 = arith.constant 0 : index
    %c2_70 = arith.constant 2 : index
    %c10_71 = arith.constant 10 : index
    %c0_72 = arith.constant 0 : index
    %42 = vector.load %arg1[%c0_69, %c2_70, %c10_71, %c0_72] : memref<2x4x81x128xbf16, #tpu.memory_space<vmem>>, vector<1x1x8x128xbf16>
    %43 = vector.shape_cast %42 : vector<1x1x8x128xbf16> to vector<8x128xbf16>
    %c8_73 = arith.constant 8 : index
    %c640_74 = arith.constant 640 : index
    %44 = vector.load %arg5[%c8_73, %c640_74] : memref<128x1152xbf16, #tpu.memory_space<vmem>>, vector<8x128xbf16>
    tpu.vector_store %arg5[%c8_73, %c640_74], %43 {strides = array<i32>} : memref<128x1152xbf16, #tpu.memory_space<vmem>>, vector<8x128xbf16>,
    %c0_75 = arith.constant 0 : index
    %c0_76 = arith.constant 0 : index
    %c18 = arith.constant 18 : index
    %c0_77 = arith.constant 0 : index
    %45 = vector.load %arg1[%c0_75, %c0_76, %c18, %c0_77] : memref<2x4x81x128xbf16, #tpu.memory_space<vmem>>, vector<1x1x8x128xbf16>
    %46 = vector.shape_cast %45 : vector<1x1x8x128xbf16> to vector<8x128xbf16>
    %c8_78 = arith.constant 8 : index
    %c768_79 = arith.constant 768 : index
    %47 = vector.load %arg5[%c8_78, %c768_79] : memref<128x1152xbf16, #tpu.memory_space<vmem>>, vector<8x128xbf16>
    tpu.vector_store %arg5[%c8_78, %c768_79], %46 {strides = array<i32>} : memref<128x1152xbf16, #tpu.memory_space<vmem>>, vector<8x128xbf16>,
    %c0_80 = arith.constant 0 : index
    %c1_81 = arith.constant 1 : index
    %c18_82 = arith.constant 18 : index
    %c0_83 = arith.constant 0 : index
    %48 = vector.load %arg1[%c0_80, %c1_81, %c18_82, %c0_83] : memref<2x4x81x128xbf16, #tpu.memory_space<vmem>>, vector<1x1x8x128xbf16>
    %49 = vector.shape_cast %48 : vector<1x1x8x128xbf16> to vector<8x128xbf16>
    %c8_84 = arith.constant 8 : index
    %c896_85 = arith.constant 896 : index
    %50 = vector.load %arg5[%c8_84, %c896_85] : memref<128x1152xbf16, #tpu.memory_space<vmem>>, vector<8x128xbf16>
    tpu.vector_store %arg5[%c8_84, %c896_85], %49 {strides = array<i32>} : memref<128x1152xbf16, #tpu.memory_space<vmem>>, vector<8x128xbf16>,
    %c0_86 = arith.constant 0 : index
    %c0_87 = arith.constant 0 : index
    %c19 = arith.constant 19 : index
    %c0_88 = arith.constant 0 : index
    %51 = vector.load %arg1[%c0_86, %c0_87, %c19, %c0_88] : memref<2x4x81x128xbf16, #tpu.memory_space<vmem>>, vector<1x1x8x128xbf16>
    %52 = vector.shape_cast %51 : vector<1x1x8x128xbf16> to vector<8x128xbf16>
    %c8_89 = arith.constant 8 : index
    %c1024_90 = arith.constant 1024 : index
    %53 = vector.load %arg5[%c8_89, %c1024_90] : memref<128x1152xbf16, #tpu.memory_space<vmem>>, vector<8x128xbf16>
    tpu.vector_store %arg5[%c8_89, %c1024_90], %52 {strides = array<i32>} : memref<128x1152xbf16, #tpu.memory_space<vmem>>, vector<8x128xbf16>,
    %c0_91 = arith.constant 0 : index
    %c0_92 = arith.constant 0 : index
    %c18_93 = arith.constant 18 : index
    %c0_94 = arith.constant 0 : index
    %54 = vector.load %arg1[%c0_91, %c0_92, %c18_93, %c0_94] : memref<2x4x81x128xbf16, #tpu.memory_space<vmem>>, vector<1x1x8x128xbf16>
    %55 = vector.shape_cast %54 : vector<1x1x8x128xbf16> to vector<8x128xbf16>
    %c16 = arith.constant 16 : index
    %c0_95 = arith.constant 0 : index
    %56 = vector.load %arg5[%c16, %c0_95] : memref<128x1152xbf16, #tpu.memory_space<vmem>>, vector<8x128xbf16>
    tpu.vector_store %arg5[%c16, %c0_95], %55 {strides = array<i32>} : memref<128x1152xbf16, #tpu.memory_space<vmem>>, vector<8x128xbf16>,
    %c0_96 = arith.constant 0 : index
    %c1_97 = arith.constant 1 : index
    %c18_98 = arith.constant 18 : index
    %c0_99 = arith.constant 0 : index
    %57 = vector.load %arg1[%c0_96, %c1_97, %c18_98, %c0_99] : memref<2x4x81x128xbf16, #tpu.memory_space<vmem>>, vector<1x1x8x128xbf16>
    %58 = vector.shape_cast %57 : vector<1x1x8x128xbf16> to vector<8x128xbf16>
    %c16_100 = arith.constant 16 : index
    %c128_101 = arith.constant 128 : index
    %59 = vector.load %arg5[%c16_100, %c128_101] : memref<128x1152xbf16, #tpu.memory_space<vmem>>, vector<8x128xbf16>
    tpu.vector_store %arg5[%c16_100, %c128_101], %58 {strides = array<i32>} : memref<128x1152xbf16, #tpu.memory_space<vmem>>, vector<8x128xbf16>,
    %c0_102 = arith.constant 0 : index
    %c0_103 = arith.constant 0 : index
    %c19_104 = arith.constant 19 : index
    %c0_105 = arith.constant 0 : index
    %60 = vector.load %arg1[%c0_102, %c0_103, %c19_104, %c0_105] : memref<2x4x81x128xbf16, #tpu.memory_space<vmem>>, vector<1x1x8x128xbf16>
    %61 = vector.shape_cast %60 : vector<1x1x8x128xbf16> to vector<8x128xbf16>
    %c16_106 = arith.constant 16 : index
    %c256_107 = arith.constant 256 : index
    %62 = vector.load %arg5[%c16_106, %c256_107] : memref<128x1152xbf16, #tpu.memory_space<vmem>>, vector<8x128xbf16>
    tpu.vector_store %arg5[%c16_106, %c256_107], %61 {strides = array<i32>} : memref<128x1152xbf16, #tpu.memory_space<vmem>>, vector<8x128xbf16>,
    %c0_108 = arith.constant 0 : index
    %c2_109 = arith.constant 2 : index
    %c18_110 = arith.constant 18 : index
    %c0_111 = arith.constant 0 : index
    %63 = vector.load %arg1[%c0_108, %c2_109, %c18_110, %c0_111] : memref<2x4x81x128xbf16, #tpu.memory_space<vmem>>, vector<1x1x8x128xbf16>
    %64 = vector.shape_cast %63 : vector<1x1x8x128xbf16> to vector<8x128xbf16>
    %c16_112 = arith.constant 16 : index
    %c384_113 = arith.constant 384 : index
    %65 = vector.load %arg5[%c16_112, %c384_113] : memref<128x1152xbf16, #tpu.memory_space<vmem>>, vector<8x128xbf16>
    tpu.vector_store %arg5[%c16_112, %c384_113], %64 {strides = array<i32>} : memref<128x1152xbf16, #tpu.memory_space<vmem>>, vector<8x128xbf16>,
    %c0_114 = arith.constant 0 : index
    %c3_115 = arith.constant 3 : index
    %c18_116 = arith.constant 18 : index
    %c0_117 = arith.constant 0 : index
    %66 = vector.load %arg1[%c0_114, %c3_115, %c18_116, %c0_117] : memref<2x4x81x128xbf16, #tpu.memory_space<vmem>>, vector<1x1x8x128xbf16>
    %67 = vector.shape_cast %66 : vector<1x1x8x128xbf16> to vector<8x128xbf16>
    %c16_118 = arith.constant 16 : index
    %c512_119 = arith.constant 512 : index
    %68 = vector.load %arg5[%c16_118, %c512_119] : memref<128x1152xbf16, #tpu.memory_space<vmem>>, vector<8x128xbf16>
    tpu.vector_store %arg5[%c16_118, %c512_119], %67 {strides = array<i32>} : memref<128x1152xbf16, #tpu.memory_space<vmem>>, vector<8x128xbf16>,
    %c0_120 = arith.constant 0 : index
    %c2_121 = arith.constant 2 : index
    %c19_122 = arith.constant 19 : index
    %c0_123 = arith.constant 0 : index
    %69 = vector.load %arg1[%c0_120, %c2_121, %c19_122, %c0_123] : memref<2x4x81x128xbf16, #tpu.memory_space<vmem>>, vector<1x1x8x128xbf16>
    %70 = vector.shape_cast %69 : vector<1x1x8x128xbf16> to vector<8x128xbf16>
    %c16_124 = arith.constant 16 : index
    %c640_125 = arith.constant 640 : index
    %71 = vector.load %arg5[%c16_124, %c640_125] : memref<128x1152xbf16, #tpu.memory_space<vmem>>, vector<8x128xbf16>
    tpu.vector_store %arg5[%c16_124, %c640_125], %70 {strides = array<i32>} : memref<128x1152xbf16, #tpu.memory_space<vmem>>, vector<8x128xbf16>,
    %c0_126 = arith.constant 0 : index
    %c0_127 = arith.constant 0 : index
    %c27 = arith.constant 27 : index
    %c0_128 = arith.constant 0 : index
    %72 = vector.load %arg1[%c0_126, %c0_127, %c27, %c0_128] : memref<2x4x81x128xbf16, #tpu.memory_space<vmem>>, vector<1x1x8x128xbf16>
    %73 = vector.shape_cast %72 : vector<1x1x8x128xbf16> to vector<8x128xbf16>
    %c16_129 = arith.constant 16 : index
    %c768_130 = arith.constant 768 : index
    %74 = vector.load %arg5[%c16_129, %c768_130] : memref<128x1152xbf16, #tpu.memory_space<vmem>>, vector<8x128xbf16>
    tpu.vector_store %arg5[%c16_129, %c768_130], %73 {strides = array<i32>} : memref<128x1152xbf16, #tpu.memory_space<vmem>>, vector<8x128xbf16>,
    %c0_131 = arith.constant 0 : index
    %c1_132 = arith.constant 1 : index
    %c27_133 = arith.constant 27 : index
    %c0_134 = arith.constant 0 : index
    %75 = vector.load %arg1[%c0_131, %c1_132, %c27_133, %c0_134] : memref<2x4x81x128xbf16, #tpu.memory_space<vmem>>, vector<1x1x8x128xbf16>
    %76 = vector.shape_cast %75 : vector<1x1x8x128xbf16> to vector<8x128xbf16>
    %c16_135 = arith.constant 16 : index
    %c896_136 = arith.constant 896 : index
    %77 = vector.load %arg5[%c16_135, %c896_136] : memref<128x1152xbf16, #tpu.memory_space<vmem>>, vector<8x128xbf16>
    tpu.vector_store %arg5[%c16_135, %c896_136], %76 {strides = array<i32>} : memref<128x1152xbf16, #tpu.memory_space<vmem>>, vector<8x128xbf16>,
    %c0_137 = arith.constant 0 : index
    %c0_138 = arith.constant 0 : index
    %c28 = arith.constant 28 : index
    %c0_139 = arith.constant 0 : index
    %78 = vector.load %arg1[%c0_137, %c0_138, %c28, %c0_139] : memref<2x4x81x128xbf16, #tpu.memory_space<vmem>>, vector<1x1x8x128xbf16>
    %79 = vector.shape_cast %78 : vector<1x1x8x128xbf16> to vector<8x128xbf16>
    %c16_140 = arith.constant 16 : index
    %c1024_141 = arith.constant 1024 : index
    %80 = vector.load %arg5[%c16_140, %c1024_141] : memref<128x1152xbf16, #tpu.memory_space<vmem>>, vector<8x128xbf16>
    tpu.vector_store %arg5[%c16_140, %c1024_141], %79 {strides = array<i32>} : memref<128x1152xbf16, #tpu.memory_space<vmem>>, vector<8x128xbf16>,
    %c0_142 = arith.constant 0 : index
    %c0_143 = arith.constant 0 : index
    %c27_144 = arith.constant 27 : index
    %c0_145 = arith.constant 0 : index
    %81 = vector.load %arg1[%c0_142, %c0_143, %c27_144, %c0_145] : memref<2x4x81x128xbf16, #tpu.memory_space<vmem>>, vector<1x1x8x128xbf16>
    %82 = vector.shape_cast %81 : vector<1x1x8x128xbf16> to vector<8x128xbf16>
    %c24 = arith.constant 24 : index
    %c0_146 = arith.constant 0 : index
    %83 = vector.load %arg5[%c24, %c0_146] : memref<128x1152xbf16, #tpu.memory_space<vmem>>, vector<8x128xbf16>
    tpu.vector_store %arg5[%c24, %c0_146], %82 {strides = array<i32>} : memref<128x1152xbf16, #tpu.memory_space<vmem>>, vector<8x128xbf16>,
    %c0_147 = arith.constant 0 : index
    %c1_148 = arith.constant 1 : index
    %c27_149 = arith.constant 27 : index
    %c0_150 = arith.constant 0 : index
    %84 = vector.load %arg1[%c0_147, %c1_148, %c27_149, %c0_150] : memref<2x4x81x128xbf16, #tpu.memory_space<vmem>>, vector<1x1x8x128xbf16>
    %85 = vector.shape_cast %84 : vector<1x1x8x128xbf16> to vector<8x128xbf16>
    %c24_151 = arith.constant 24 : index
    %c128_152 = arith.constant 128 : index
    %86 = vector.load %arg5[%c24_151, %c128_152] : memref<128x1152xbf16, #tpu.memory_space<vmem>>, vector<8x128xbf16>
    tpu.vector_store %arg5[%c24_151, %c128_152], %85 {strides = array<i32>} : memref<128x1152xbf16, #tpu.memory_space<vmem>>, vector<8x128xbf16>,
    %c0_153 = arith.constant 0 : index
    %c0_154 = arith.constant 0 : index
    %c28_155 = arith.constant 28 : index
    %c0_156 = arith.constant 0 : index
    %87 = vector.load %arg1[%c0_153, %c0_154, %c28_155, %c0_156] : memref<2x4x81x128xbf16, #tpu.memory_space<vmem>>, vector<1x1x8x128xbf16>
    %88 = vector.shape_cast %87 : vector<1x1x8x128xbf16> to vector<8x128xbf16>
    %c24_157 = arith.constant 24 : index
    %c256_158 = arith.constant 256 : index
    %89 = vector.load %arg5[%c24_157, %c256_158] : memref<128x1152xbf16, #tpu.memory_space<vmem>>, vector<8x128xbf16>
    tpu.vector_store %arg5[%c24_157, %c256_158], %88 {strides = array<i32>} : memref<128x1152xbf16, #tpu.memory_space<vmem>>, vector<8x128xbf16>,
    %c0_159 = arith.constant 0 : index
    %c2_160 = arith.constant 2 : index
    %c27_161 = arith.constant 27 : index
    %c0_162 = arith.constant 0 : index
    %90 = vector.load %arg1[%c0_159, %c2_160, %c27_161, %c0_162] : memref<2x4x81x128xbf16, #tpu.memory_space<vmem>>, vector<1x1x8x128xbf16>
    %91 = vector.shape_cast %90 : vector<1x1x8x128xbf16> to vector<8x128xbf16>
    %c24_163 = arith.constant 24 : index
    %c384_164 = arith.constant 384 : index
    %92 = vector.load %arg5[%c24_163, %c384_164] : memref<128x1152xbf16, #tpu.memory_space<vmem>>, vector<8x128xbf16>
    tpu.vector_store %arg5[%c24_163, %c384_164], %91 {strides = array<i32>} : memref<128x1152xbf16, #tpu.memory_space<vmem>>, vector<8x128xbf16>,
    %c0_165 = arith.constant 0 : index
    %c3_166 = arith.constant 3 : index
    %c27_167 = arith.constant 27 : index
    %c0_168 = arith.constant 0 : index
    %93 = vector.load %arg1[%c0_165, %c3_166, %c27_167, %c0_168] : memref<2x4x81x128xbf16, #tpu.memory_space<vmem>>, vector<1x1x8x128xbf16>
    %94 = vector.shape_cast %93 : vector<1x1x8x128xbf16> to vector<8x128xbf16>
    %c24_169 = arith.constant 24 : index
    %c512_170 = arith.constant 512 : index
    %95 = vector.load %arg5[%c24_169, %c512_170] : memref<128x1152xbf16, #tpu.memory_space<vmem>>, vector<8x128xbf16>
    tpu.vector_store %arg5[%c24_169, %c512_170], %94 {strides = array<i32>} : memref<128x1152xbf16, #tpu.memory_space<vmem>>, vector<8x128xbf16>,
    %c0_171 = arith.constant 0 : index
    %c2_172 = arith.constant 2 : index
    %c28_173 = arith.constant 28 : index
    %c0_174 = arith.constant 0 : index
    %96 = vector.load %arg1[%c0_171, %c2_172, %c28_173, %c0_174] : memref<2x4x81x128xbf16, #tpu.memory_space<vmem>>, vector<1x1x8x128xbf16>
    %97 = vector.shape_cast %96 : vector<1x1x8x128xbf16> to vector<8x128xbf16>
    %c24_175 = arith.constant 24 : index
    %c640_176 = arith.constant 640 : index
    %98 = vector.load %arg5[%c24_175, %c640_176] : memref<128x1152xbf16, #tpu.memory_space<vmem>>, vector<8x128xbf16>
    tpu.vector_store %arg5[%c24_175, %c640_176], %97 {strides = array<i32>} : memref<128x1152xbf16, #tpu.memory_space<vmem>>, vector<8x128xbf16>,
    %c0_177 = arith.constant 0 : index
    %c0_178 = arith.constant 0 : index
    %c36 = arith.constant 36 : index
    %c0_179 = arith.constant 0 : index
    %99 = vector.load %arg1[%c0_177, %c0_178, %c36, %c0_179] : memref<2x4x81x128xbf16, #tpu.memory_space<vmem>>, vector<1x1x8x128xbf16>
    %100 = vector.shape_cast %99 : vector<1x1x8x128xbf16> to vector<8x128xbf16>
    %c24_180 = arith.constant 24 : index
    %c768_181 = arith.constant 768 : index
    %101 = vector.load %arg5[%c24_180, %c768_181] : memref<128x1152xbf16, #tpu.memory_space<vmem>>, vector<8x128xbf16>
    tpu.vector_store %arg5[%c24_180, %c768_181], %100 {strides = array<i32>} : memref<128x1152xbf16, #tpu.memory_space<vmem>>, vector<8x128xbf16>,
    %c0_182 = arith.constant 0 : index
    %c1_183 = arith.constant 1 : index
    %c36_184 = arith.constant 36 : index
    %c0_185 = arith.constant 0 : index
    %102 = vector.load %arg1[%c0_182, %c1_183, %c36_184, %c0_185] : memref<2x4x81x128xbf16, #tpu.memory_space<vmem>>, vector<1x1x8x128xbf16>
    %103 = vector.shape_cast %102 : vector<1x1x8x128xbf16> to vector<8x128xbf16>
    %c24_186 = arith.constant 24 : index
    %c896_187 = arith.constant 896 : index
    %104 = vector.load %arg5[%c24_186, %c896_187] : memref<128x1152xbf16, #tpu.memory_space<vmem>>, vector<8x128xbf16>
    tpu.vector_store %arg5[%c24_186, %c896_187], %103 {strides = array<i32>} : memref<128x1152xbf16, #tpu.memory_space<vmem>>, vector<8x128xbf16>,
    %c0_188 = arith.constant 0 : index
    %c0_189 = arith.constant 0 : index
    %c37 = arith.constant 37 : index
    %c0_190 = arith.constant 0 : index
    %105 = vector.load %arg1[%c0_188, %c0_189, %c37, %c0_190] : memref<2x4x81x128xbf16, #tpu.memory_space<vmem>>, vector<1x1x8x128xbf16>
    %106 = vector.shape_cast %105 : vector<1x1x8x128xbf16> to vector<8x128xbf16>
    %c24_191 = arith.constant 24 : index
    %c1024_192 = arith.constant 1024 : index
    %107 = vector.load %arg5[%c24_191, %c1024_192] : memref<128x1152xbf16, #tpu.memory_space<vmem>>, vector<8x128xbf16>
    tpu.vector_store %arg5[%c24_191, %c1024_192], %106 {strides = array<i32>} : memref<128x1152xbf16, #tpu.memory_space<vmem>>, vector<8x128xbf16>,
    %c0_193 = arith.constant 0 : index
    %c0_194 = arith.constant 0 : index
    %c36_195 = arith.constant 36 : index
    %c0_196 = arith.constant 0 : index
    %108 = vector.load %arg1[%c0_193, %c0_194, %c36_195, %c0_196] : memref<2x4x81x128xbf16, #tpu.memory_space<vmem>>, vector<1x1x8x128xbf16>
    %109 = vector.shape_cast %108 : vector<1x1x8x128xbf16> to vector<8x128xbf16>
    %c32 = arith.constant 32 : index
    %c0_197 = arith.constant 0 : index
    %110 = vector.load %arg5[%c32, %c0_197] : memref<128x1152xbf16, #tpu.memory_space<vmem>>, vector<8x128xbf16>
    tpu.vector_store %arg5[%c32, %c0_197], %109 {strides = array<i32>} : memref<128x1152xbf16, #tpu.memory_space<vmem>>, vector<8x128xbf16>,
    %c0_198 = arith.constant 0 : index
    %c1_199 = arith.constant 1 : index
    %c36_200 = arith.constant 36 : index
    %c0_201 = arith.constant 0 : index
    %111 = vector.load %arg1[%c0_198, %c1_199, %c36_200, %c0_201] : memref<2x4x81x128xbf16, #tpu.memory_space<vmem>>, vector<1x1x8x128xbf16>
    %112 = vector.shape_cast %111 : vector<1x1x8x128xbf16> to vector<8x128xbf16>
    %c32_202 = arith.constant 32 : index
    %c128_203 = arith.constant 128 : index
    %113 = vector.load %arg5[%c32_202, %c128_203] : memref<128x1152xbf16, #tpu.memory_space<vmem>>, vector<8x128xbf16>
    tpu.vector_store %arg5[%c32_202, %c128_203], %112 {strides = array<i32>} : memref<128x1152xbf16, #tpu.memory_space<vmem>>, vector<8x128xbf16>,
    %c0_204 = arith.constant 0 : index
    %c0_205 = arith.constant 0 : index
    %c37_206 = arith.constant 37 : index
    %c0_207 = arith.constant 0 : index
    %114 = vector.load %arg1[%c0_204, %c0_205, %c37_206, %c0_207] : memref<2x4x81x128xbf16, #tpu.memory_space<vmem>>, vector<1x1x8x128xbf16>
    %115 = vector.shape_cast %114 : vector<1x1x8x128xbf16> to vector<8x128xbf16>
    %c32_208 = arith.constant 32 : index
    %c256_209 = arith.constant 256 : index
    %116 = vector.load %arg5[%c32_208, %c256_209] : memref<128x1152xbf16, #tpu.memory_space<vmem>>, vector<8x128xbf16>
    tpu.vector_store %arg5[%c32_208, %c256_209], %115 {strides = array<i32>} : memref<128x1152xbf16, #tpu.memory_space<vmem>>, vector<8x128xbf16>,
    %c0_210 = arith.constant 0 : index
    %c2_211 = arith.constant 2 : index
    %c36_212 = arith.constant 36 : index
    %c0_213 = arith.constant 0 : index
    %117 = vector.load %arg1[%c0_210, %c2_211, %c36_212, %c0_213] : memref<2x4x81x128xbf16, #tpu.memory_space<vmem>>, vector<1x1x8x128xbf16>
    %118 = vector.shape_cast %117 : vector<1x1x8x128xbf16> to vector<8x128xbf16>
    %c32_214 = arith.constant 32 : index
    %c384_215 = arith.constant 384 : index
    %119 = vector.load %arg5[%c32_214, %c384_215] : memref<128x1152xbf16, #tpu.memory_space<vmem>>, vector<8x128xbf16>
    tpu.vector_store %arg5[%c32_214, %c384_215], %118 {strides = array<i32>} : memref<128x1152xbf16, #tpu.memory_space<vmem>>, vector<8x128xbf16>,
    %c0_216 = arith.constant 0 : index
    %c3_217 = arith.constant 3 : index
    %c36_218 = arith.constant 36 : index
    %c0_219 = arith.constant 0 : index
    %120 = vector.load %arg1[%c0_216, %c3_217, %c36_218, %c0_219] : memref<2x4x81x128xbf16, #tpu.memory_space<vmem>>, vector<1x1x8x128xbf16>
    %121 = vector.shape_cast %120 : vector<1x1x8x128xbf16> to vector<8x128xbf16>
    %c32_220 = arith.constant 32 : index
    %c512_221 = arith.constant 512 : index
    %122 = vector.load %arg5[%c32_220, %c512_221] : memref<128x1152xbf16, #tpu.memory_space<vmem>>, vector<8x128xbf16>
    tpu.vector_store %arg5[%c32_220, %c512_221], %121 {strides = array<i32>} : memref<128x1152xbf16, #tpu.memory_space<vmem>>, vector<8x128xbf16>,
    %c0_222 = arith.constant 0 : index
    %c2_223 = arith.constant 2 : index
    %c37_224 = arith.constant 37 : index
    %c0_225 = arith.constant 0 : index
    %123 = vector.load %arg1[%c0_222, %c2_223, %c37_224, %c0_225] : memref<2x4x81x128xbf16, #tpu.memory_space<vmem>>, vector<1x1x8x128xbf16>
    %124 = vector.shape_cast %123 : vector<1x1x8x128xbf16> to vector<8x128xbf16>
    %c32_226 = arith.constant 32 : index
    %c640_227 = arith.constant 640 : index
    %125 = vector.load %arg5[%c32_226, %c640_227] : memref<128x1152xbf16, #tpu.memory_space<vmem>>, vector<8x128xbf16>
    tpu.vector_store %arg5[%c32_226, %c640_227], %124 {strides = array<i32>} : memref<128x1152xbf16, #tpu.memory_space<vmem>>, vector<8x128xbf16>,
    %c0_228 = arith.constant 0 : index
    %c0_229 = arith.constant 0 : index
    %c45 = arith.constant 45 : index
    %c0_230 = arith.constant 0 : index
    %126 = vector.load %arg1[%c0_228, %c0_229, %c45, %c0_230] : memref<2x4x81x128xbf16, #tpu.memory_space<vmem>>, vector<1x1x8x128xbf16>
    %127 = vector.shape_cast %126 : vector<1x1x8x128xbf16> to vector<8x128xbf16>
    %c32_231 = arith.constant 32 : index
    %c768_232 = arith.constant 768 : index
    %128 = vector.load %arg5[%c32_231, %c768_232] : memref<128x1152xbf16, #tpu.memory_space<vmem>>, vector<8x128xbf16>
    tpu.vector_store %arg5[%c32_231, %c768_232], %127 {strides = array<i32>} : memref<128x1152xbf16, #tpu.memory_space<vmem>>, vector<8x128xbf16>,
    %c0_233 = arith.constant 0 : index
    %c1_234 = arith.constant 1 : index
    %c45_235 = arith.constant 45 : index
    %c0_236 = arith.constant 0 : index
    %129 = vector.load %arg1[%c0_233, %c1_234, %c45_235, %c0_236] : memref<2x4x81x128xbf16, #tpu.memory_space<vmem>>, vector<1x1x8x128xbf16>
    %130 = vector.shape_cast %129 : vector<1x1x8x128xbf16> to vector<8x128xbf16>
    %c32_237 = arith.constant 32 : index
    %c896_238 = arith.constant 896 : index
    %131 = vector.load %arg5[%c32_237, %c896_238] : memref<128x1152xbf16, #tpu.memory_space<vmem>>, vector<8x128xbf16>
    tpu.vector_store %arg5[%c32_237, %c896_238], %130 {strides = array<i32>} : memref<128x1152xbf16, #tpu.memory_space<vmem>>, vector<8x128xbf16>,
    %c0_239 = arith.constant 0 : index
    %c0_240 = arith.constant 0 : index
    %c46 = arith.constant 46 : index
    %c0_241 = arith.constant 0 : index
    %132 = vector.load %arg1[%c0_239, %c0_240, %c46, %c0_241] : memref<2x4x81x128xbf16, #tpu.memory_space<vmem>>, vector<1x1x8x128xbf16>
    %133 = vector.shape_cast %132 : vector<1x1x8x128xbf16> to vector<8x128xbf16>
    %c32_242 = arith.constant 32 : index
    %c1024_243 = arith.constant 1024 : index
    %134 = vector.load %arg5[%c32_242, %c1024_243] : memref<128x1152xbf16, #tpu.memory_space<vmem>>, vector<8x128xbf16>
    tpu.vector_store %arg5[%c32_242, %c1024_243], %133 {strides = array<i32>} : memref<128x1152xbf16, #tpu.memory_space<vmem>>, vector<8x128xbf16>,
    %c0_244 = arith.constant 0 : index
    %c0_245 = arith.constant 0 : index
    %c45_246 = arith.constant 45 : index
    %c0_247 = arith.constant 0 : index
    %135 = vector.load %arg1[%c0_244, %c0_245, %c45_246, %c0_247] : memref<2x4x81x128xbf16, #tpu.memory_space<vmem>>, vector<1x1x8x128xbf16>
    %136 = vector.shape_cast %135 : vector<1x1x8x128xbf16> to vector<8x128xbf16>
    %c40 = arith.constant 40 : index
    %c0_248 = arith.constant 0 : index
    %137 = vector.load %arg5[%c40, %c0_248] : memref<128x1152xbf16, #tpu.memory_space<vmem>>, vector<8x128xbf16>
    tpu.vector_store %arg5[%c40, %c0_248], %136 {strides = array<i32>} : memref<128x1152xbf16, #tpu.memory_space<vmem>>, vector<8x128xbf16>,
    %c0_249 = arith.constant 0 : index
    %c1_250 = arith.constant 1 : index
    %c45_251 = arith.constant 45 : index
    %c0_252 = arith.constant 0 : index
    %138 = vector.load %arg1[%c0_249, %c1_250, %c45_251, %c0_252] : memref<2x4x81x128xbf16, #tpu.memory_space<vmem>>, vector<1x1x8x128xbf16>
    %139 = vector.shape_cast %138 : vector<1x1x8x128xbf16> to vector<8x128xbf16>
    %c40_253 = arith.constant 40 : index
    %c128_254 = arith.constant 128 : index
    %140 = vector.load %arg5[%c40_253, %c128_254] : memref<128x1152xbf16, #tpu.memory_space<vmem>>, vector<8x128xbf16>
    tpu.vector_store %arg5[%c40_253, %c128_254], %139 {strides = array<i32>} : memref<128x1152xbf16, #tpu.memory_space<vmem>>, vector<8x128xbf16>,
    %c0_255 = arith.constant 0 : index
    %c0_256 = arith.constant 0 : index
    %c46_257 = arith.constant 46 : index
    %c0_258 = arith.constant 0 : index
    %141 = vector.load %arg1[%c0_255, %c0_256, %c46_257, %c0_258] : memref<2x4x81x128xbf16, #tpu.memory_space<vmem>>, vector<1x1x8x128xbf16>
    %142 = vector.shape_cast %141 : vector<1x1x8x128xbf16> to vector<8x128xbf16>
    %c40_259 = arith.constant 40 : index
    %c256_260 = arith.constant 256 : index
    %143 = vector.load %arg5[%c40_259, %c256_260] : memref<128x1152xbf16, #tpu.memory_space<vmem>>, vector<8x128xbf16>
    tpu.vector_store %arg5[%c40_259, %c256_260], %142 {strides = array<i32>} : memref<128x1152xbf16, #tpu.memory_space<vmem>>, vector<8x128xbf16>,
    %c0_261 = arith.constant 0 : index
    %c2_262 = arith.constant 2 : index
    %c45_263 = arith.constant 45 : index
    %c0_264 = arith.constant 0 : index
    %144 = vector.load %arg1[%c0_261, %c2_262, %c45_263, %c0_264] : memref<2x4x81x128xbf16, #tpu.memory_space<vmem>>, vector<1x1x8x128xbf16>
    %145 = vector.shape_cast %144 : vector<1x1x8x128xbf16> to vector<8x128xbf16>
    %c40_265 = arith.constant 40 : index
    %c384_266 = arith.constant 384 : index
    %146 = vector.load %arg5[%c40_265, %c384_266] : memref<128x1152xbf16, #tpu.memory_space<vmem>>, vector<8x128xbf16>
    tpu.vector_store %arg5[%c40_265, %c384_266], %145 {strides = array<i32>} : memref<128x1152xbf16, #tpu.memory_space<vmem>>, vector<8x128xbf16>,
    %c0_267 = arith.constant 0 : index
    %c3_268 = arith.constant 3 : index
    %c45_269 = arith.constant 45 : index
    %c0_270 = arith.constant 0 : index
    %147 = vector.load %arg1[%c0_267, %c3_268, %c45_269, %c0_270] : memref<2x4x81x128xbf16, #tpu.memory_space<vmem>>, vector<1x1x8x128xbf16>
    %148 = vector.shape_cast %147 : vector<1x1x8x128xbf16> to vector<8x128xbf16>
    %c40_271 = arith.constant 40 : index
    %c512_272 = arith.constant 512 : index
    %149 = vector.load %arg5[%c40_271, %c512_272] : memref<128x1152xbf16, #tpu.memory_space<vmem>>, vector<8x128xbf16>
    tpu.vector_store %arg5[%c40_271, %c512_272], %148 {strides = array<i32>} : memref<128x1152xbf16, #tpu.memory_space<vmem>>, vector<8x128xbf16>,
    %c0_273 = arith.constant 0 : index
    %c2_274 = arith.constant 2 : index
    %c46_275 = arith.constant 46 : index
    %c0_276 = arith.constant 0 : index
    %150 = vector.load %arg1[%c0_273, %c2_274, %c46_275, %c0_276] : memref<2x4x81x128xbf16, #tpu.memory_space<vmem>>, vector<1x1x8x128xbf16>
    %151 = vector.shape_cast %150 : vector<1x1x8x128xbf16> to vector<8x128xbf16>
    %c40_277 = arith.constant 40 : index
    %c640_278 = arith.constant 640 : index
    %152 = vector.load %arg5[%c40_277, %c640_278] : memref<128x1152xbf16, #tpu.memory_space<vmem>>, vector<8x128xbf16>
    tpu.vector_store %arg5[%c40_277, %c640_278], %151 {strides = array<i32>} : memref<128x1152xbf16, #tpu.memory_space<vmem>>, vector<8x128xbf16>,
    %c0_279 = arith.constant 0 : index
    %c0_280 = arith.constant 0 : index
    %c54 = arith.constant 54 : index
    %c0_281 = arith.constant 0 : index
    %153 = vector.load %arg1[%c0_279, %c0_280, %c54, %c0_281] : memref<2x4x81x128xbf16, #tpu.memory_space<vmem>>, vector<1x1x8x128xbf16>
    %154 = vector.shape_cast %153 : vector<1x1x8x128xbf16> to vector<8x128xbf16>
    %c40_282 = arith.constant 40 : index
    %c768_283 = arith.constant 768 : index
    %155 = vector.load %arg5[%c40_282, %c768_283] : memref<128x1152xbf16, #tpu.memory_space<vmem>>, vector<8x128xbf16>
    tpu.vector_store %arg5[%c40_282, %c768_283], %154 {strides = array<i32>} : memref<128x1152xbf16, #tpu.memory_space<vmem>>, vector<8x128xbf16>,
    %c0_284 = arith.constant 0 : index
    %c1_285 = arith.constant 1 : index
    %c54_286 = arith.constant 54 : index
    %c0_287 = arith.constant 0 : index
    %156 = vector.load %arg1[%c0_284, %c1_285, %c54_286, %c0_287] : memref<2x4x81x128xbf16, #tpu.memory_space<vmem>>, vector<1x1x8x128xbf16>
    %157 = vector.shape_cast %156 : vector<1x1x8x128xbf16> to vector<8x128xbf16>
    %c40_288 = arith.constant 40 : index
    %c896_289 = arith.constant 896 : index
    %158 = vector.load %arg5[%c40_288, %c896_289] : memref<128x1152xbf16, #tpu.memory_space<vmem>>, vector<8x128xbf16>
    tpu.vector_store %arg5[%c40_288, %c896_289], %157 {strides = array<i32>} : memref<128x1152xbf16, #tpu.memory_space<vmem>>, vector<8x128xbf16>,
    %c0_290 = arith.constant 0 : index
    %c0_291 = arith.constant 0 : index
    %c55 = arith.constant 55 : index
    %c0_292 = arith.constant 0 : index
    %159 = vector.load %arg1[%c0_290, %c0_291, %c55, %c0_292] : memref<2x4x81x128xbf16, #tpu.memory_space<vmem>>, vector<1x1x8x128xbf16>
    %160 = vector.shape_cast %159 : vector<1x1x8x128xbf16> to vector<8x128xbf16>
    %c40_293 = arith.constant 40 : index
    %c1024_294 = arith.constant 1024 : index
    %161 = vector.load %arg5[%c40_293, %c1024_294] : memref<128x1152xbf16, #tpu.memory_space<vmem>>, vector<8x128xbf16>
    tpu.vector_store %arg5[%c40_293, %c1024_294], %160 {strides = array<i32>} : memref<128x1152xbf16, #tpu.memory_space<vmem>>, vector<8x128xbf16>,
    %c0_295 = arith.constant 0 : index
    %c0_296 = arith.constant 0 : index
    %c54_297 = arith.constant 54 : index
    %c0_298 = arith.constant 0 : index
    %162 = vector.load %arg1[%c0_295, %c0_296, %c54_297, %c0_298] : memref<2x4x81x128xbf16, #tpu.memory_space<vmem>>, vector<1x1x8x128xbf16>
    %163 = vector.shape_cast %162 : vector<1x1x8x128xbf16> to vector<8x128xbf16>
    %c48 = arith.constant 48 : index
    %c0_299 = arith.constant 0 : index
    %164 = vector.load %arg5[%c48, %c0_299] : memref<128x1152xbf16, #tpu.memory_space<vmem>>, vector<8x128xbf16>
    tpu.vector_store %arg5[%c48, %c0_299], %163 {strides = array<i32>} : memref<128x1152xbf16, #tpu.memory_space<vmem>>, vector<8x128xbf16>,
    %c0_300 = arith.constant 0 : index
    %c1_301 = arith.constant 1 : index
    %c54_302 = arith.constant 54 : index
    %c0_303 = arith.constant 0 : index
    %165 = vector.load %arg1[%c0_300, %c1_301, %c54_302, %c0_303] : memref<2x4x81x128xbf16, #tpu.memory_space<vmem>>, vector<1x1x8x128xbf16>
    %166 = vector.shape_cast %165 : vector<1x1x8x128xbf16> to vector<8x128xbf16>
    %c48_304 = arith.constant 48 : index
    %c128_305 = arith.constant 128 : index
    %167 = vector.load %arg5[%c48_304, %c128_305] : memref<128x1152xbf16, #tpu.memory_space<vmem>>, vector<8x128xbf16>
    tpu.vector_store %arg5[%c48_304, %c128_305], %166 {strides = array<i32>} : memref<128x1152xbf16, #tpu.memory_space<vmem>>, vector<8x128xbf16>,
    %c0_306 = arith.constant 0 : index
    %c0_307 = arith.constant 0 : index
    %c55_308 = arith.constant 55 : index
    %c0_309 = arith.constant 0 : index
    %168 = vector.load %arg1[%c0_306, %c0_307, %c55_308, %c0_309] : memref<2x4x81x128xbf16, #tpu.memory_space<vmem>>, vector<1x1x8x128xbf16>
    %169 = vector.shape_cast %168 : vector<1x1x8x128xbf16> to vector<8x128xbf16>
    %c48_310 = arith.constant 48 : index
    %c256_311 = arith.constant 256 : index
    %170 = vector.load %arg5[%c48_310, %c256_311] : memref<128x1152xbf16, #tpu.memory_space<vmem>>, vector<8x128xbf16>
    tpu.vector_store %arg5[%c48_310, %c256_311], %169 {strides = array<i32>} : memref<128x1152xbf16, #tpu.memory_space<vmem>>, vector<8x128xbf16>,
    %c0_312 = arith.constant 0 : index
    %c2_313 = arith.constant 2 : index
    %c54_314 = arith.constant 54 : index
    %c0_315 = arith.constant 0 : index
    %171 = vector.load %arg1[%c0_312, %c2_313, %c54_314, %c0_315] : memref<2x4x81x128xbf16, #tpu.memory_space<vmem>>, vector<1x1x8x128xbf16>
    %172 = vector.shape_cast %171 : vector<1x1x8x128xbf16> to vector<8x128xbf16>
    %c48_316 = arith.constant 48 : index
    %c384_317 = arith.constant 384 : index
    %173 = vector.load %arg5[%c48_316, %c384_317] : memref<128x1152xbf16, #tpu.memory_space<vmem>>, vector<8x128xbf16>
    tpu.vector_store %arg5[%c48_316, %c384_317], %172 {strides = array<i32>} : memref<128x1152xbf16, #tpu.memory_space<vmem>>, vector<8x128xbf16>,
    %c0_318 = arith.constant 0 : index
    %c3_319 = arith.constant 3 : index
    %c54_320 = arith.constant 54 : index
    %c0_321 = arith.constant 0 : index
    %174 = vector.load %arg1[%c0_318, %c3_319, %c54_320, %c0_321] : memref<2x4x81x128xbf16, #tpu.memory_space<vmem>>, vector<1x1x8x128xbf16>
    %175 = vector.shape_cast %174 : vector<1x1x8x128xbf16> to vector<8x128xbf16>
    %c48_322 = arith.constant 48 : index
    %c512_323 = arith.constant 512 : index
    %176 = vector.load %arg5[%c48_322, %c512_323] : memref<128x1152xbf16, #tpu.memory_space<vmem>>, vector<8x128xbf16>
    tpu.vector_store %arg5[%c48_322, %c512_323], %175 {strides = array<i32>} : memref<128x1152xbf16, #tpu.memory_space<vmem>>, vector<8x128xbf16>,
    %c0_324 = arith.constant 0 : index
    %c2_325 = arith.constant 2 : index
    %c55_326 = arith.constant 55 : index
    %c0_327 = arith.constant 0 : index
    %177 = vector.load %arg1[%c0_324, %c2_325, %c55_326, %c0_327] : memref<2x4x81x128xbf16, #tpu.memory_space<vmem>>, vector<1x1x8x128xbf16>
    %178 = vector.shape_cast %177 : vector<1x1x8x128xbf16> to vector<8x128xbf16>
    %c48_328 = arith.constant 48 : index
    %c640_329 = arith.constant 640 : index
    %179 = vector.load %arg5[%c48_328, %c640_329] : memref<128x1152xbf16, #tpu.memory_space<vmem>>, vector<8x128xbf16>
    tpu.vector_store %arg5[%c48_328, %c640_329], %178 {strides = array<i32>} : memref<128x1152xbf16, #tpu.memory_space<vmem>>, vector<8x128xbf16>,
    %c0_330 = arith.constant 0 : index
    %c0_331 = arith.constant 0 : index
    %c63 = arith.constant 63 : index
    %c0_332 = arith.constant 0 : index
    %180 = vector.load %arg1[%c0_330, %c0_331, %c63, %c0_332] : memref<2x4x81x128xbf16, #tpu.memory_space<vmem>>, vector<1x1x8x128xbf16>
    %181 = vector.shape_cast %180 : vector<1x1x8x128xbf16> to vector<8x128xbf16>
    %c48_333 = arith.constant 48 : index
    %c768_334 = arith.constant 768 : index
    %182 = vector.load %arg5[%c48_333, %c768_334] : memref<128x1152xbf16, #tpu.memory_space<vmem>>, vector<8x128xbf16>
    tpu.vector_store %arg5[%c48_333, %c768_334], %181 {strides = array<i32>} : memref<128x1152xbf16, #tpu.memory_space<vmem>>, vector<8x128xbf16>,
    %c0_335 = arith.constant 0 : index
    %c1_336 = arith.constant 1 : index
    %c63_337 = arith.constant 63 : index
    %c0_338 = arith.constant 0 : index
    %183 = vector.load %arg1[%c0_335, %c1_336, %c63_337, %c0_338] : memref<2x4x81x128xbf16, #tpu.memory_space<vmem>>, vector<1x1x8x128xbf16>
    %184 = vector.shape_cast %183 : vector<1x1x8x128xbf16> to vector<8x128xbf16>
    %c48_339 = arith.constant 48 : index
    %c896_340 = arith.constant 896 : index
    %185 = vector.load %arg5[%c48_339, %c896_340] : memref<128x1152xbf16, #tpu.memory_space<vmem>>, vector<8x128xbf16>
    tpu.vector_store %arg5[%c48_339, %c896_340], %184 {strides = array<i32>} : memref<128x1152xbf16, #tpu.memory_space<vmem>>, vector<8x128xbf16>,
    %c0_341 = arith.constant 0 : index
    %c0_342 = arith.constant 0 : index
    %c64 = arith.constant 64 : index
    %c0_343 = arith.constant 0 : index
    %186 = vector.load %arg1[%c0_341, %c0_342, %c64, %c0_343] : memref<2x4x81x128xbf16, #tpu.memory_space<vmem>>, vector<1x1x8x128xbf16>
    %187 = vector.shape_cast %186 : vector<1x1x8x128xbf16> to vector<8x128xbf16>
    %c48_344 = arith.constant 48 : index
    %c1024_345 = arith.constant 1024 : index
    %188 = vector.load %arg5[%c48_344, %c1024_345] : memref<128x1152xbf16, #tpu.memory_space<vmem>>, vector<8x128xbf16>
    tpu.vector_store %arg5[%c48_344, %c1024_345], %187 {strides = array<i32>} : memref<128x1152xbf16, #tpu.memory_space<vmem>>, vector<8x128xbf16>,
    %c0_346 = arith.constant 0 : index
    %c0_347 = arith.constant 0 : index
    %c63_348 = arith.constant 63 : index
    %c0_349 = arith.constant 0 : index
    %189 = vector.load %arg1[%c0_346, %c0_347, %c63_348, %c0_349] : memref<2x4x81x128xbf16, #tpu.memory_space<vmem>>, vector<1x1x8x128xbf16>
    %190 = vector.shape_cast %189 : vector<1x1x8x128xbf16> to vector<8x128xbf16>
    %c56 = arith.constant 56 : index
    %c0_350 = arith.constant 0 : index
    %191 = vector.load %arg5[%c56, %c0_350] : memref<128x1152xbf16, #tpu.memory_space<vmem>>, vector<8x128xbf16>
    tpu.vector_store %arg5[%c56, %c0_350], %190 {strides = array<i32>} : memref<128x1152xbf16, #tpu.memory_space<vmem>>, vector<8x128xbf16>,
    %c0_351 = arith.constant 0 : index
    %c1_352 = arith.constant 1 : index
    %c63_353 = arith.constant 63 : index
    %c0_354 = arith.constant 0 : index
    %192 = vector.load %arg1[%c0_351, %c1_352, %c63_353, %c0_354] : memref<2x4x81x128xbf16, #tpu.memory_space<vmem>>, vector<1x1x8x128xbf16>
    %193 = vector.shape_cast %192 : vector<1x1x8x128xbf16> to vector<8x128xbf16>
    %c56_355 = arith.constant 56 : index
    %c128_356 = arith.constant 128 : index
    %194 = vector.load %arg5[%c56_355, %c128_356] : memref<128x1152xbf16, #tpu.memory_space<vmem>>, vector<8x128xbf16>
    tpu.vector_store %arg5[%c56_355, %c128_356], %193 {strides = array<i32>} : memref<128x1152xbf16, #tpu.memory_space<vmem>>, vector<8x128xbf16>,
    %c0_357 = arith.constant 0 : index
    %c0_358 = arith.constant 0 : index
    %c64_359 = arith.constant 64 : index
    %c0_360 = arith.constant 0 : index
    %195 = vector.load %arg1[%c0_357, %c0_358, %c64_359, %c0_360] : memref<2x4x81x128xbf16, #tpu.memory_space<vmem>>, vector<1x1x8x128xbf16>
    %196 = vector.shape_cast %195 : vector<1x1x8x128xbf16> to vector<8x128xbf16>
    %c56_361 = arith.constant 56 : index
    %c256_362 = arith.constant 256 : index
    %197 = vector.load %arg5[%c56_361, %c256_362] : memref<128x1152xbf16, #tpu.memory_space<vmem>>, vector<8x128xbf16>
    tpu.vector_store %arg5[%c56_361, %c256_362], %196 {strides = array<i32>} : memref<128x1152xbf16, #tpu.memory_space<vmem>>, vector<8x128xbf16>,
    %c0_363 = arith.constant 0 : index
    %c2_364 = arith.constant 2 : index
    %c63_365 = arith.constant 63 : index
    %c0_366 = arith.constant 0 : index
    %198 = vector.load %arg1[%c0_363, %c2_364, %c63_365, %c0_366] : memref<2x4x81x128xbf16, #tpu.memory_space<vmem>>, vector<1x1x8x128xbf16>
    %199 = vector.shape_cast %198 : vector<1x1x8x128xbf16> to vector<8x128xbf16>
    %c56_367 = arith.constant 56 : index
    %c384_368 = arith.constant 384 : index
    %200 = vector.load %arg5[%c56_367, %c384_368] : memref<128x1152xbf16, #tpu.memory_space<vmem>>, vector<8x128xbf16>
    tpu.vector_store %arg5[%c56_367, %c384_368], %199 {strides = array<i32>} : memref<128x1152xbf16, #tpu.memory_space<vmem>>, vector<8x128xbf16>,
    %c0_369 = arith.constant 0 : index
    %c3_370 = arith.constant 3 : index
    %c63_371 = arith.constant 63 : index
    %c0_372 = arith.constant 0 : index
    %201 = vector.load %arg1[%c0_369, %c3_370, %c63_371, %c0_372] : memref<2x4x81x128xbf16, #tpu.memory_space<vmem>>, vector<1x1x8x128xbf16>
    %202 = vector.shape_cast %201 : vector<1x1x8x128xbf16> to vector<8x128xbf16>
    %c56_373 = arith.constant 56 : index
    %c512_374 = arith.constant 512 : index
    %203 = vector.load %arg5[%c56_373, %c512_374] : memref<128x1152xbf16, #tpu.memory_space<vmem>>, vector<8x128xbf16>
    tpu.vector_store %arg5[%c56_373, %c512_374], %202 {strides = array<i32>} : memref<128x1152xbf16, #tpu.memory_space<vmem>>, vector<8x128xbf16>,
    %c0_375 = arith.constant 0 : index
    %c2_376 = arith.constant 2 : index
    %c64_377 = arith.constant 64 : index
    %c0_378 = arith.constant 0 : index
    %204 = vector.load %arg1[%c0_375, %c2_376, %c64_377, %c0_378] : memref<2x4x81x128xbf16, #tpu.memory_space<vmem>>, vector<1x1x8x128xbf16>
    %205 = vector.shape_cast %204 : vector<1x1x8x128xbf16> to vector<8x128xbf16>
    %c56_379 = arith.constant 56 : index
    %c640_380 = arith.constant 640 : index
    %206 = vector.load %arg5[%c56_379, %c640_380] : memref<128x1152xbf16, #tpu.memory_space<vmem>>, vector<8x128xbf16>
    tpu.vector_store %arg5[%c56_379, %c640_380], %205 {strides = array<i32>} : memref<128x1152xbf16, #tpu.memory_space<vmem>>, vector<8x128xbf16>,
    %c0_381 = arith.constant 0 : index
    %c0_382 = arith.constant 0 : index
    %c72 = arith.constant 72 : index
    %c0_383 = arith.constant 0 : index
    %207 = vector.load %arg1[%c0_381, %c0_382, %c72, %c0_383] : memref<2x4x81x128xbf16, #tpu.memory_space<vmem>>, vector<1x1x8x128xbf16>
    %208 = vector.shape_cast %207 : vector<1x1x8x128xbf16> to vector<8x128xbf16>
    %c56_384 = arith.constant 56 : index
    %c768_385 = arith.constant 768 : index
    %209 = vector.load %arg5[%c56_384, %c768_385] : memref<128x1152xbf16, #tpu.memory_space<vmem>>, vector<8x128xbf16>
    tpu.vector_store %arg5[%c56_384, %c768_385], %208 {strides = array<i32>} : memref<128x1152xbf16, #tpu.memory_space<vmem>>, vector<8x128xbf16>,
    %c0_386 = arith.constant 0 : index
    %c1_387 = arith.constant 1 : index
    %c72_388 = arith.constant 72 : index
    %c0_389 = arith.constant 0 : index
    %210 = vector.load %arg1[%c0_386, %c1_387, %c72_388, %c0_389] : memref<2x4x81x128xbf16, #tpu.memory_space<vmem>>, vector<1x1x8x128xbf16>
    %211 = vector.shape_cast %210 : vector<1x1x8x128xbf16> to vector<8x128xbf16>
    %c56_390 = arith.constant 56 : index
    %c896_391 = arith.constant 896 : index
    %212 = vector.load %arg5[%c56_390, %c896_391] : memref<128x1152xbf16, #tpu.memory_space<vmem>>, vector<8x128xbf16>
    tpu.vector_store %arg5[%c56_390, %c896_391], %211 {strides = array<i32>} : memref<128x1152xbf16, #tpu.memory_space<vmem>>, vector<8x128xbf16>,
    %c0_392 = arith.constant 0 : index
    %c0_393 = arith.constant 0 : index
    %c73 = arith.constant 73 : index
    %c0_394 = arith.constant 0 : index
    %213 = vector.load %arg1[%c0_392, %c0_393, %c73, %c0_394] : memref<2x4x81x128xbf16, #tpu.memory_space<vmem>>, vector<1x1x8x128xbf16>
    %214 = vector.shape_cast %213 : vector<1x1x8x128xbf16> to vector<8x128xbf16>
    %c56_395 = arith.constant 56 : index
    %c1024_396 = arith.constant 1024 : index
    %215 = vector.load %arg5[%c56_395, %c1024_396] : memref<128x1152xbf16, #tpu.memory_space<vmem>>, vector<8x128xbf16>
    tpu.vector_store %arg5[%c56_395, %c1024_396], %214 {strides = array<i32>} : memref<128x1152xbf16, #tpu.memory_space<vmem>>, vector<8x128xbf16>,
    %c1_397 = arith.constant 1 : index
    %c0_398 = arith.constant 0 : index
    %c0_399 = arith.constant 0 : index
    %c0_400 = arith.constant 0 : index
    %216 = vector.load %arg1[%c1_397, %c0_398, %c0_399, %c0_400] : memref<2x4x81x128xbf16, #tpu.memory_space<vmem>>, vector<1x1x8x128xbf16>
    %217 = vector.shape_cast %216 : vector<1x1x8x128xbf16> to vector<8x128xbf16>
    %c64_401 = arith.constant 64 : index
    %c0_402 = arith.constant 0 : index
    %218 = vector.load %arg5[%c64_401, %c0_402] : memref<128x1152xbf16, #tpu.memory_space<vmem>>, vector<8x128xbf16>
    tpu.vector_store %arg5[%c64_401, %c0_402], %217 {strides = array<i32>} : memref<128x1152xbf16, #tpu.memory_space<vmem>>, vector<8x128xbf16>,
    %c1_403 = arith.constant 1 : index
    %c1_404 = arith.constant 1 : index
    %c0_405 = arith.constant 0 : index
    %c0_406 = arith.constant 0 : index
    %219 = vector.load %arg1[%c1_403, %c1_404, %c0_405, %c0_406] : memref<2x4x81x128xbf16, #tpu.memory_space<vmem>>, vector<1x1x8x128xbf16>
    %220 = vector.shape_cast %219 : vector<1x1x8x128xbf16> to vector<8x128xbf16>
    %c64_407 = arith.constant 64 : index
    %c128_408 = arith.constant 128 : index
    %221 = vector.load %arg5[%c64_407, %c128_408] : memref<128x1152xbf16, #tpu.memory_space<vmem>>, vector<8x128xbf16>
    tpu.vector_store %arg5[%c64_407, %c128_408], %220 {strides = array<i32>} : memref<128x1152xbf16, #tpu.memory_space<vmem>>, vector<8x128xbf16>,
    %c1_409 = arith.constant 1 : index
    %c0_410 = arith.constant 0 : index
    %c1_411 = arith.constant 1 : index
    %c0_412 = arith.constant 0 : index
    %222 = vector.load %arg1[%c1_409, %c0_410, %c1_411, %c0_412] : memref<2x4x81x128xbf16, #tpu.memory_space<vmem>>, vector<1x1x8x128xbf16>
    %223 = vector.shape_cast %222 : vector<1x1x8x128xbf16> to vector<8x128xbf16>
    %c64_413 = arith.constant 64 : index
    %c256_414 = arith.constant 256 : index
    %224 = vector.load %arg5[%c64_413, %c256_414] : memref<128x1152xbf16, #tpu.memory_space<vmem>>, vector<8x128xbf16>
    tpu.vector_store %arg5[%c64_413, %c256_414], %223 {strides = array<i32>} : memref<128x1152xbf16, #tpu.memory_space<vmem>>, vector<8x128xbf16>,
    %c1_415 = arith.constant 1 : index
    %c2_416 = arith.constant 2 : index
    %c0_417 = arith.constant 0 : index
    %c0_418 = arith.constant 0 : index
    %225 = vector.load %arg1[%c1_415, %c2_416, %c0_417, %c0_418] : memref<2x4x81x128xbf16, #tpu.memory_space<vmem>>, vector<1x1x8x128xbf16>
    %226 = vector.shape_cast %225 : vector<1x1x8x128xbf16> to vector<8x128xbf16>
    %c64_419 = arith.constant 64 : index
    %c384_420 = arith.constant 384 : index
    %227 = vector.load %arg5[%c64_419, %c384_420] : memref<128x1152xbf16, #tpu.memory_space<vmem>>, vector<8x128xbf16>
    tpu.vector_store %arg5[%c64_419, %c384_420], %226 {strides = array<i32>} : memref<128x1152xbf16, #tpu.memory_space<vmem>>, vector<8x128xbf16>,
    %c1_421 = arith.constant 1 : index
    %c3_422 = arith.constant 3 : index
    %c0_423 = arith.constant 0 : index
    %c0_424 = arith.constant 0 : index
    %228 = vector.load %arg1[%c1_421, %c3_422, %c0_423, %c0_424] : memref<2x4x81x128xbf16, #tpu.memory_space<vmem>>, vector<1x1x8x128xbf16>
    %229 = vector.shape_cast %228 : vector<1x1x8x128xbf16> to vector<8x128xbf16>
    %c64_425 = arith.constant 64 : index
    %c512_426 = arith.constant 512 : index
    %230 = vector.load %arg5[%c64_425, %c512_426] : memref<128x1152xbf16, #tpu.memory_space<vmem>>, vector<8x128xbf16>
    tpu.vector_store %arg5[%c64_425, %c512_426], %229 {strides = array<i32>} : memref<128x1152xbf16, #tpu.memory_space<vmem>>, vector<8x128xbf16>,
    %c1_427 = arith.constant 1 : index
    %c2_428 = arith.constant 2 : index
    %c1_429 = arith.constant 1 : index
    %c0_430 = arith.constant 0 : index
    %231 = vector.load %arg1[%c1_427, %c2_428, %c1_429, %c0_430] : memref<2x4x81x128xbf16, #tpu.memory_space<vmem>>, vector<1x1x8x128xbf16>
    %232 = vector.shape_cast %231 : vector<1x1x8x128xbf16> to vector<8x128xbf16>
    %c64_431 = arith.constant 64 : index
    %c640_432 = arith.constant 640 : index
    %233 = vector.load %arg5[%c64_431, %c640_432] : memref<128x1152xbf16, #tpu.memory_space<vmem>>, vector<8x128xbf16>
    tpu.vector_store %arg5[%c64_431, %c640_432], %232 {strides = array<i32>} : memref<128x1152xbf16, #tpu.memory_space<vmem>>, vector<8x128xbf16>,
    %c1_433 = arith.constant 1 : index
    %c0_434 = arith.constant 0 : index
    %c9_435 = arith.constant 9 : index
    %c0_436 = arith.constant 0 : index
    %234 = vector.load %arg1[%c1_433, %c0_434, %c9_435, %c0_436] : memref<2x4x81x128xbf16, #tpu.memory_space<vmem>>, vector<1x1x8x128xbf16>
    %235 = vector.shape_cast %234 : vector<1x1x8x128xbf16> to vector<8x128xbf16>
    %c64_437 = arith.constant 64 : index
    %c768_438 = arith.constant 768 : index
    %236 = vector.load %arg5[%c64_437, %c768_438] : memref<128x1152xbf16, #tpu.memory_space<vmem>>, vector<8x128xbf16>
    tpu.vector_store %arg5[%c64_437, %c768_438], %235 {strides = array<i32>} : memref<128x1152xbf16, #tpu.memory_space<vmem>>, vector<8x128xbf16>,
    %c1_439 = arith.constant 1 : index
    %c1_440 = arith.constant 1 : index
    %c9_441 = arith.constant 9 : index
    %c0_442 = arith.constant 0 : index
    %237 = vector.load %arg1[%c1_439, %c1_440, %c9_441, %c0_442] : memref<2x4x81x128xbf16, #tpu.memory_space<vmem>>, vector<1x1x8x128xbf16>
    %238 = vector.shape_cast %237 : vector<1x1x8x128xbf16> to vector<8x128xbf16>
    %c64_443 = arith.constant 64 : index
    %c896_444 = arith.constant 896 : index
    %239 = vector.load %arg5[%c64_443, %c896_444] : memref<128x1152xbf16, #tpu.memory_space<vmem>>, vector<8x128xbf16>
    tpu.vector_store %arg5[%c64_443, %c896_444], %238 {strides = array<i32>} : memref<128x1152xbf16, #tpu.memory_space<vmem>>, vector<8x128xbf16>,
    %c1_445 = arith.constant 1 : index
    %c0_446 = arith.constant 0 : index
    %c10_447 = arith.constant 10 : index
    %c0_448 = arith.constant 0 : index
    %240 = vector.load %arg1[%c1_445, %c0_446, %c10_447, %c0_448] : memref<2x4x81x128xbf16, #tpu.memory_space<vmem>>, vector<1x1x8x128xbf16>
    %241 = vector.shape_cast %240 : vector<1x1x8x128xbf16> to vector<8x128xbf16>
    %c64_449 = arith.constant 64 : index
    %c1024_450 = arith.constant 1024 : index
    %242 = vector.load %arg5[%c64_449, %c1024_450] : memref<128x1152xbf16, #tpu.memory_space<vmem>>, vector<8x128xbf16>
    tpu.vector_store %arg5[%c64_449, %c1024_450], %241 {strides = array<i32>} : memref<128x1152xbf16, #tpu.memory_space<vmem>>, vector<8x128xbf16>,
    %c1_451 = arith.constant 1 : index
    %c0_452 = arith.constant 0 : index
    %c9_453 = arith.constant 9 : index
    %c0_454 = arith.constant 0 : index
    %243 = vector.load %arg1[%c1_451, %c0_452, %c9_453, %c0_454] : memref<2x4x81x128xbf16, #tpu.memory_space<vmem>>, vector<1x1x8x128xbf16>
    %244 = vector.shape_cast %243 : vector<1x1x8x128xbf16> to vector<8x128xbf16>
    %c72_455 = arith.constant 72 : index
    %c0_456 = arith.constant 0 : index
    %245 = vector.load %arg5[%c72_455, %c0_456] : memref<128x1152xbf16, #tpu.memory_space<vmem>>, vector<8x128xbf16>
    tpu.vector_store %arg5[%c72_455, %c0_456], %244 {strides = array<i32>} : memref<128x1152xbf16, #tpu.memory_space<vmem>>, vector<8x128xbf16>,
    %c1_457 = arith.constant 1 : index
    %c1_458 = arith.constant 1 : index
    %c9_459 = arith.constant 9 : index
    %c0_460 = arith.constant 0 : index
    %246 = vector.load %arg1[%c1_457, %c1_458, %c9_459, %c0_460] : memref<2x4x81x128xbf16, #tpu.memory_space<vmem>>, vector<1x1x8x128xbf16>
    %247 = vector.shape_cast %246 : vector<1x1x8x128xbf16> to vector<8x128xbf16>
    %c72_461 = arith.constant 72 : index
    %c128_462 = arith.constant 128 : index
    %248 = vector.load %arg5[%c72_461, %c128_462] : memref<128x1152xbf16, #tpu.memory_space<vmem>>, vector<8x128xbf16>
    tpu.vector_store %arg5[%c72_461, %c128_462], %247 {strides = array<i32>} : memref<128x1152xbf16, #tpu.memory_space<vmem>>, vector<8x128xbf16>,
    %c1_463 = arith.constant 1 : index
    %c0_464 = arith.constant 0 : index
    %c10_465 = arith.constant 10 : index
    %c0_466 = arith.constant 0 : index
    %249 = vector.load %arg1[%c1_463, %c0_464, %c10_465, %c0_466] : memref<2x4x81x128xbf16, #tpu.memory_space<vmem>>, vector<1x1x8x128xbf16>
    %250 = vector.shape_cast %249 : vector<1x1x8x128xbf16> to vector<8x128xbf16>
    %c72_467 = arith.constant 72 : index
    %c256_468 = arith.constant 256 : index
    %251 = vector.load %arg5[%c72_467, %c256_468] : memref<128x1152xbf16, #tpu.memory_space<vmem>>, vector<8x128xbf16>
    tpu.vector_store %arg5[%c72_467, %c256_468], %250 {strides = array<i32>} : memref<128x1152xbf16, #tpu.memory_space<vmem>>, vector<8x128xbf16>,
    %c1_469 = arith.constant 1 : index
    %c2_470 = arith.constant 2 : index
    %c9_471 = arith.constant 9 : index
    %c0_472 = arith.constant 0 : index
    %252 = vector.load %arg1[%c1_469, %c2_470, %c9_471, %c0_472] : memref<2x4x81x128xbf16, #tpu.memory_space<vmem>>, vector<1x1x8x128xbf16>
    %253 = vector.shape_cast %252 : vector<1x1x8x128xbf16> to vector<8x128xbf16>
    %c72_473 = arith.constant 72 : index
    %c384_474 = arith.constant 384 : index
    %254 = vector.load %arg5[%c72_473, %c384_474] : memref<128x1152xbf16, #tpu.memory_space<vmem>>, vector<8x128xbf16>
    tpu.vector_store %arg5[%c72_473, %c384_474], %253 {strides = array<i32>} : memref<128x1152xbf16, #tpu.memory_space<vmem>>, vector<8x128xbf16>,
    %c1_475 = arith.constant 1 : index
    %c3_476 = arith.constant 3 : index
    %c9_477 = arith.constant 9 : index
    %c0_478 = arith.constant 0 : index
    %255 = vector.load %arg1[%c1_475, %c3_476, %c9_477, %c0_478] : memref<2x4x81x128xbf16, #tpu.memory_space<vmem>>, vector<1x1x8x128xbf16>
    %256 = vector.shape_cast %255 : vector<1x1x8x128xbf16> to vector<8x128xbf16>
    %c72_479 = arith.constant 72 : index
    %c512_480 = arith.constant 512 : index
    %257 = vector.load %arg5[%c72_479, %c512_480] : memref<128x1152xbf16, #tpu.memory_space<vmem>>, vector<8x128xbf16>
    tpu.vector_store %arg5[%c72_479, %c512_480], %256 {strides = array<i32>} : memref<128x1152xbf16, #tpu.memory_space<vmem>>, vector<8x128xbf16>,
    %c1_481 = arith.constant 1 : index
    %c2_482 = arith.constant 2 : index
    %c10_483 = arith.constant 10 : index
    %c0_484 = arith.constant 0 : index
    %258 = vector.load %arg1[%c1_481, %c2_482, %c10_483, %c0_484] : memref<2x4x81x128xbf16, #tpu.memory_space<vmem>>, vector<1x1x8x128xbf16>
    %259 = vector.shape_cast %258 : vector<1x1x8x128xbf16> to vector<8x128xbf16>
    %c72_485 = arith.constant 72 : index
    %c640_486 = arith.constant 640 : index
    %260 = vector.load %arg5[%c72_485, %c640_486] : memref<128x1152xbf16, #tpu.memory_space<vmem>>, vector<8x128xbf16>
    tpu.vector_store %arg5[%c72_485, %c640_486], %259 {strides = array<i32>} : memref<128x1152xbf16, #tpu.memory_space<vmem>>, vector<8x128xbf16>,
    %c1_487 = arith.constant 1 : index
    %c0_488 = arith.constant 0 : index
    %c18_489 = arith.constant 18 : index
    %c0_490 = arith.constant 0 : index
    %261 = vector.load %arg1[%c1_487, %c0_488, %c18_489, %c0_490] : memref<2x4x81x128xbf16, #tpu.memory_space<vmem>>, vector<1x1x8x128xbf16>
    %262 = vector.shape_cast %261 : vector<1x1x8x128xbf16> to vector<8x128xbf16>
    %c72_491 = arith.constant 72 : index
    %c768_492 = arith.constant 768 : index
    %263 = vector.load %arg5[%c72_491, %c768_492] : memref<128x1152xbf16, #tpu.memory_space<vmem>>, vector<8x128xbf16>
    tpu.vector_store %arg5[%c72_491, %c768_492], %262 {strides = array<i32>} : memref<128x1152xbf16, #tpu.memory_space<vmem>>, vector<8x128xbf16>,
    %c1_493 = arith.constant 1 : index
    %c1_494 = arith.constant 1 : index
    %c18_495 = arith.constant 18 : index
    %c0_496 = arith.constant 0 : index
    %264 = vector.load %arg1[%c1_493, %c1_494, %c18_495, %c0_496] : memref<2x4x81x128xbf16, #tpu.memory_space<vmem>>, vector<1x1x8x128xbf16>
    %265 = vector.shape_cast %264 : vector<1x1x8x128xbf16> to vector<8x128xbf16>
    %c72_497 = arith.constant 72 : index
    %c896_498 = arith.constant 896 : index
    %266 = vector.load %arg5[%c72_497, %c896_498] : memref<128x1152xbf16, #tpu.memory_space<vmem>>, vector<8x128xbf16>
    tpu.vector_store %arg5[%c72_497, %c896_498], %265 {strides = array<i32>} : memref<128x1152xbf16, #tpu.memory_space<vmem>>, vector<8x128xbf16>,
    %c1_499 = arith.constant 1 : index
    %c0_500 = arith.constant 0 : index
    %c19_501 = arith.constant 19 : index
    %c0_502 = arith.constant 0 : index
    %267 = vector.load %arg1[%c1_499, %c0_500, %c19_501, %c0_502] : memref<2x4x81x128xbf16, #tpu.memory_space<vmem>>, vector<1x1x8x128xbf16>
    %268 = vector.shape_cast %267 : vector<1x1x8x128xbf16> to vector<8x128xbf16>
    %c72_503 = arith.constant 72 : index
    %c1024_504 = arith.constant 1024 : index
    %269 = vector.load %arg5[%c72_503, %c1024_504] : memref<128x1152xbf16, #tpu.memory_space<vmem>>, vector<8x128xbf16>
    tpu.vector_store %arg5[%c72_503, %c1024_504], %268 {strides = array<i32>} : memref<128x1152xbf16, #tpu.memory_space<vmem>>, vector<8x128xbf16>,
    %c1_505 = arith.constant 1 : index
    %c0_506 = arith.constant 0 : index
    %c18_507 = arith.constant 18 : index
    %c0_508 = arith.constant 0 : index
    %270 = vector.load %arg1[%c1_505, %c0_506, %c18_507, %c0_508] : memref<2x4x81x128xbf16, #tpu.memory_space<vmem>>, vector<1x1x8x128xbf16>
    %271 = vector.shape_cast %270 : vector<1x1x8x128xbf16> to vector<8x128xbf16>
    %c80 = arith.constant 80 : index
    %c0_509 = arith.constant 0 : index
    %272 = vector.load %arg5[%c80, %c0_509] : memref<128x1152xbf16, #tpu.memory_space<vmem>>, vector<8x128xbf16>
    tpu.vector_store %arg5[%c80, %c0_509], %271 {strides = array<i32>} : memref<128x1152xbf16, #tpu.memory_space<vmem>>, vector<8x128xbf16>,
    %c1_510 = arith.constant 1 : index
    %c1_511 = arith.constant 1 : index
    %c18_512 = arith.constant 18 : index
    %c0_513 = arith.constant 0 : index
    %273 = vector.load %arg1[%c1_510, %c1_511, %c18_512, %c0_513] : memref<2x4x81x128xbf16, #tpu.memory_space<vmem>>, vector<1x1x8x128xbf16>
    %274 = vector.shape_cast %273 : vector<1x1x8x128xbf16> to vector<8x128xbf16>
    %c80_514 = arith.constant 80 : index
    %c128_515 = arith.constant 128 : index
    %275 = vector.load %arg5[%c80_514, %c128_515] : memref<128x1152xbf16, #tpu.memory_space<vmem>>, vector<8x128xbf16>
    tpu.vector_store %arg5[%c80_514, %c128_515], %274 {strides = array<i32>} : memref<128x1152xbf16, #tpu.memory_space<vmem>>, vector<8x128xbf16>,
    %c1_516 = arith.constant 1 : index
    %c0_517 = arith.constant 0 : index
    %c19_518 = arith.constant 19 : index
    %c0_519 = arith.constant 0 : index
    %276 = vector.load %arg1[%c1_516, %c0_517, %c19_518, %c0_519] : memref<2x4x81x128xbf16, #tpu.memory_space<vmem>>, vector<1x1x8x128xbf16>
    %277 = vector.shape_cast %276 : vector<1x1x8x128xbf16> to vector<8x128xbf16>
    %c80_520 = arith.constant 80 : index
    %c256_521 = arith.constant 256 : index
    %278 = vector.load %arg5[%c80_520, %c256_521] : memref<128x1152xbf16, #tpu.memory_space<vmem>>, vector<8x128xbf16>
    tpu.vector_store %arg5[%c80_520, %c256_521], %277 {strides = array<i32>} : memref<128x1152xbf16, #tpu.memory_space<vmem>>, vector<8x128xbf16>,
    %c1_522 = arith.constant 1 : index
    %c2_523 = arith.constant 2 : index
    %c18_524 = arith.constant 18 : index
    %c0_525 = arith.constant 0 : index
    %279 = vector.load %arg1[%c1_522, %c2_523, %c18_524, %c0_525] : memref<2x4x81x128xbf16, #tpu.memory_space<vmem>>, vector<1x1x8x128xbf16>
    %280 = vector.shape_cast %279 : vector<1x1x8x128xbf16> to vector<8x128xbf16>
    %c80_526 = arith.constant 80 : index
    %c384_527 = arith.constant 384 : index
    %281 = vector.load %arg5[%c80_526, %c384_527] : memref<128x1152xbf16, #tpu.memory_space<vmem>>, vector<8x128xbf16>
    tpu.vector_store %arg5[%c80_526, %c384_527], %280 {strides = array<i32>} : memref<128x1152xbf16, #tpu.memory_space<vmem>>, vector<8x128xbf16>,
    %c1_528 = arith.constant 1 : index
    %c3_529 = arith.constant 3 : index
    %c18_530 = arith.constant 18 : index
    %c0_531 = arith.constant 0 : index
    %282 = vector.load %arg1[%c1_528, %c3_529, %c18_530, %c0_531] : memref<2x4x81x128xbf16, #tpu.memory_space<vmem>>, vector<1x1x8x128xbf16>
    %283 = vector.shape_cast %282 : vector<1x1x8x128xbf16> to vector<8x128xbf16>
    %c80_532 = arith.constant 80 : index
    %c512_533 = arith.constant 512 : index
    %284 = vector.load %arg5[%c80_532, %c512_533] : memref<128x1152xbf16, #tpu.memory_space<vmem>>, vector<8x128xbf16>
    tpu.vector_store %arg5[%c80_532, %c512_533], %283 {strides = array<i32>} : memref<128x1152xbf16, #tpu.memory_space<vmem>>, vector<8x128xbf16>,
    %c1_534 = arith.constant 1 : index
    %c2_535 = arith.constant 2 : index
    %c19_536 = arith.constant 19 : index
    %c0_537 = arith.constant 0 : index
    %285 = vector.load %arg1[%c1_534, %c2_535, %c19_536, %c0_537] : memref<2x4x81x128xbf16, #tpu.memory_space<vmem>>, vector<1x1x8x128xbf16>
    %286 = vector.shape_cast %285 : vector<1x1x8x128xbf16> to vector<8x128xbf16>
    %c80_538 = arith.constant 80 : index
    %c640_539 = arith.constant 640 : index
    %287 = vector.load %arg5[%c80_538, %c640_539] : memref<128x1152xbf16, #tpu.memory_space<vmem>>, vector<8x128xbf16>
    tpu.vector_store %arg5[%c80_538, %c640_539], %286 {strides = array<i32>} : memref<128x1152xbf16, #tpu.memory_space<vmem>>, vector<8x128xbf16>,
    %c1_540 = arith.constant 1 : index
    %c0_541 = arith.constant 0 : index
    %c27_542 = arith.constant 27 : index
    %c0_543 = arith.constant 0 : index
    %288 = vector.load %arg1[%c1_540, %c0_541, %c27_542, %c0_543] : memref<2x4x81x128xbf16, #tpu.memory_space<vmem>>, vector<1x1x8x128xbf16>
    %289 = vector.shape_cast %288 : vector<1x1x8x128xbf16> to vector<8x128xbf16>
    %c80_544 = arith.constant 80 : index
    %c768_545 = arith.constant 768 : index
    %290 = vector.load %arg5[%c80_544, %c768_545] : memref<128x1152xbf16, #tpu.memory_space<vmem>>, vector<8x128xbf16>
    tpu.vector_store %arg5[%c80_544, %c768_545], %289 {strides = array<i32>} : memref<128x1152xbf16, #tpu.memory_space<vmem>>, vector<8x128xbf16>,
    %c1_546 = arith.constant 1 : index
    %c1_547 = arith.constant 1 : index
    %c27_548 = arith.constant 27 : index
    %c0_549 = arith.constant 0 : index
    %291 = vector.load %arg1[%c1_546, %c1_547, %c27_548, %c0_549] : memref<2x4x81x128xbf16, #tpu.memory_space<vmem>>, vector<1x1x8x128xbf16>
    %292 = vector.shape_cast %291 : vector<1x1x8x128xbf16> to vector<8x128xbf16>
    %c80_550 = arith.constant 80 : index
    %c896_551 = arith.constant 896 : index
    %293 = vector.load %arg5[%c80_550, %c896_551] : memref<128x1152xbf16, #tpu.memory_space<vmem>>, vector<8x128xbf16>
    tpu.vector_store %arg5[%c80_550, %c896_551], %292 {strides = array<i32>} : memref<128x1152xbf16, #tpu.memory_space<vmem>>, vector<8x128xbf16>,
    %c1_552 = arith.constant 1 : index
    %c0_553 = arith.constant 0 : index
    %c28_554 = arith.constant 28 : index
    %c0_555 = arith.constant 0 : index
    %294 = vector.load %arg1[%c1_552, %c0_553, %c28_554, %c0_555] : memref<2x4x81x128xbf16, #tpu.memory_space<vmem>>, vector<1x1x8x128xbf16>
    %295 = vector.shape_cast %294 : vector<1x1x8x128xbf16> to vector<8x128xbf16>
    %c80_556 = arith.constant 80 : index
    %c1024_557 = arith.constant 1024 : index
    %296 = vector.load %arg5[%c80_556, %c1024_557] : memref<128x1152xbf16, #tpu.memory_space<vmem>>, vector<8x128xbf16>
    tpu.vector_store %arg5[%c80_556, %c1024_557], %295 {strides = array<i32>} : memref<128x1152xbf16, #tpu.memory_space<vmem>>, vector<8x128xbf16>,
    %c1_558 = arith.constant 1 : index
    %c0_559 = arith.constant 0 : index
    %c27_560 = arith.constant 27 : index
    %c0_561 = arith.constant 0 : index
    %297 = vector.load %arg1[%c1_558, %c0_559, %c27_560, %c0_561] : memref<2x4x81x128xbf16, #tpu.memory_space<vmem>>, vector<1x1x8x128xbf16>
    %298 = vector.shape_cast %297 : vector<1x1x8x128xbf16> to vector<8x128xbf16>
    %c88 = arith.constant 88 : index
    %c0_562 = arith.constant 0 : index
    %299 = vector.load %arg5[%c88, %c0_562] : memref<128x1152xbf16, #tpu.memory_space<vmem>>, vector<8x128xbf16>
    tpu.vector_store %arg5[%c88, %c0_562], %298 {strides = array<i32>} : memref<128x1152xbf16, #tpu.memory_space<vmem>>, vector<8x128xbf16>,
    %c1_563 = arith.constant 1 : index
    %c1_564 = arith.constant 1 : index
    %c27_565 = arith.constant 27 : index
    %c0_566 = arith.constant 0 : index
    %300 = vector.load %arg1[%c1_563, %c1_564, %c27_565, %c0_566] : memref<2x4x81x128xbf16, #tpu.memory_space<vmem>>, vector<1x1x8x128xbf16>
    %301 = vector.shape_cast %300 : vector<1x1x8x128xbf16> to vector<8x128xbf16>
    %c88_567 = arith.constant 88 : index
    %c128_568 = arith.constant 128 : index
    %302 = vector.load %arg5[%c88_567, %c128_568] : memref<128x1152xbf16, #tpu.memory_space<vmem>>, vector<8x128xbf16>
    tpu.vector_store %arg5[%c88_567, %c128_568], %301 {strides = array<i32>} : memref<128x1152xbf16, #tpu.memory_space<vmem>>, vector<8x128xbf16>,
    %c1_569 = arith.constant 1 : index
    %c0_570 = arith.constant 0 : index
    %c28_571 = arith.constant 28 : index
    %c0_572 = arith.constant 0 : index
    %303 = vector.load %arg1[%c1_569, %c0_570, %c28_571, %c0_572] : memref<2x4x81x128xbf16, #tpu.memory_space<vmem>>, vector<1x1x8x128xbf16>
    %304 = vector.shape_cast %303 : vector<1x1x8x128xbf16> to vector<8x128xbf16>
    %c88_573 = arith.constant 88 : index
    %c256_574 = arith.constant 256 : index
    %305 = vector.load %arg5[%c88_573, %c256_574] : memref<128x1152xbf16, #tpu.memory_space<vmem>>, vector<8x128xbf16>
    tpu.vector_store %arg5[%c88_573, %c256_574], %304 {strides = array<i32>} : memref<128x1152xbf16, #tpu.memory_space<vmem>>, vector<8x128xbf16>,
    %c1_575 = arith.constant 1 : index
    %c2_576 = arith.constant 2 : index
    %c27_577 = arith.constant 27 : index
    %c0_578 = arith.constant 0 : index
    %306 = vector.load %arg1[%c1_575, %c2_576, %c27_577, %c0_578] : memref<2x4x81x128xbf16, #tpu.memory_space<vmem>>, vector<1x1x8x128xbf16>
    %307 = vector.shape_cast %306 : vector<1x1x8x128xbf16> to vector<8x128xbf16>
    %c88_579 = arith.constant 88 : index
    %c384_580 = arith.constant 384 : index
    %308 = vector.load %arg5[%c88_579, %c384_580] : memref<128x1152xbf16, #tpu.memory_space<vmem>>, vector<8x128xbf16>
    tpu.vector_store %arg5[%c88_579, %c384_580], %307 {strides = array<i32>} : memref<128x1152xbf16, #tpu.memory_space<vmem>>, vector<8x128xbf16>,
    %c1_581 = arith.constant 1 : index
    %c3_582 = arith.constant 3 : index
    %c27_583 = arith.constant 27 : index
    %c0_584 = arith.constant 0 : index
    %309 = vector.load %arg1[%c1_581, %c3_582, %c27_583, %c0_584] : memref<2x4x81x128xbf16, #tpu.memory_space<vmem>>, vector<1x1x8x128xbf16>
    %310 = vector.shape_cast %309 : vector<1x1x8x128xbf16> to vector<8x128xbf16>
    %c88_585 = arith.constant 88 : index
    %c512_586 = arith.constant 512 : index
    %311 = vector.load %arg5[%c88_585, %c512_586] : memref<128x1152xbf16, #tpu.memory_space<vmem>>, vector<8x128xbf16>
    tpu.vector_store %arg5[%c88_585, %c512_586], %310 {strides = array<i32>} : memref<128x1152xbf16, #tpu.memory_space<vmem>>, vector<8x128xbf16>,
    %c1_587 = arith.constant 1 : index
    %c2_588 = arith.constant 2 : index
    %c28_589 = arith.constant 28 : index
    %c0_590 = arith.constant 0 : index
    %312 = vector.load %arg1[%c1_587, %c2_588, %c28_589, %c0_590] : memref<2x4x81x128xbf16, #tpu.memory_space<vmem>>, vector<1x1x8x128xbf16>
    %313 = vector.shape_cast %312 : vector<1x1x8x128xbf16> to vector<8x128xbf16>
    %c88_591 = arith.constant 88 : index
    %c640_592 = arith.constant 640 : index
    %314 = vector.load %arg5[%c88_591, %c640_592] : memref<128x1152xbf16, #tpu.memory_space<vmem>>, vector<8x128xbf16>
    tpu.vector_store %arg5[%c88_591, %c640_592], %313 {strides = array<i32>} : memref<128x1152xbf16, #tpu.memory_space<vmem>>, vector<8x128xbf16>,
    %c1_593 = arith.constant 1 : index
    %c0_594 = arith.constant 0 : index
    %c36_595 = arith.constant 36 : index
    %c0_596 = arith.constant 0 : index
    %315 = vector.load %arg1[%c1_593, %c0_594, %c36_595, %c0_596] : memref<2x4x81x128xbf16, #tpu.memory_space<vmem>>, vector<1x1x8x128xbf16>
    %316 = vector.shape_cast %315 : vector<1x1x8x128xbf16> to vector<8x128xbf16>
    %c88_597 = arith.constant 88 : index
    %c768_598 = arith.constant 768 : index
    %317 = vector.load %arg5[%c88_597, %c768_598] : memref<128x1152xbf16, #tpu.memory_space<vmem>>, vector<8x128xbf16>
    tpu.vector_store %arg5[%c88_597, %c768_598], %316 {strides = array<i32>} : memref<128x1152xbf16, #tpu.memory_space<vmem>>, vector<8x128xbf16>,
    %c1_599 = arith.constant 1 : index
    %c1_600 = arith.constant 1 : index
    %c36_601 = arith.constant 36 : index
    %c0_602 = arith.constant 0 : index
    %318 = vector.load %arg1[%c1_599, %c1_600, %c36_601, %c0_602] : memref<2x4x81x128xbf16, #tpu.memory_space<vmem>>, vector<1x1x8x128xbf16>
    %319 = vector.shape_cast %318 : vector<1x1x8x128xbf16> to vector<8x128xbf16>
    %c88_603 = arith.constant 88 : index
    %c896_604 = arith.constant 896 : index
    %320 = vector.load %arg5[%c88_603, %c896_604] : memref<128x1152xbf16, #tpu.memory_space<vmem>>, vector<8x128xbf16>
    tpu.vector_store %arg5[%c88_603, %c896_604], %319 {strides = array<i32>} : memref<128x1152xbf16, #tpu.memory_space<vmem>>, vector<8x128xbf16>,
    %c1_605 = arith.constant 1 : index
    %c0_606 = arith.constant 0 : index
    %c37_607 = arith.constant 37 : index
    %c0_608 = arith.constant 0 : index
    %321 = vector.load %arg1[%c1_605, %c0_606, %c37_607, %c0_608] : memref<2x4x81x128xbf16, #tpu.memory_space<vmem>>, vector<1x1x8x128xbf16>
    %322 = vector.shape_cast %321 : vector<1x1x8x128xbf16> to vector<8x128xbf16>
    %c88_609 = arith.constant 88 : index
    %c1024_610 = arith.constant 1024 : index
    %323 = vector.load %arg5[%c88_609, %c1024_610] : memref<128x1152xbf16, #tpu.memory_space<vmem>>, vector<8x128xbf16>
    tpu.vector_store %arg5[%c88_609, %c1024_610], %322 {strides = array<i32>} : memref<128x1152xbf16, #tpu.memory_space<vmem>>, vector<8x128xbf16>,
    %c1_611 = arith.constant 1 : index
    %c0_612 = arith.constant 0 : index
    %c36_613 = arith.constant 36 : index
    %c0_614 = arith.constant 0 : index
    %324 = vector.load %arg1[%c1_611, %c0_612, %c36_613, %c0_614] : memref<2x4x81x128xbf16, #tpu.memory_space<vmem>>, vector<1x1x8x128xbf16>
    %325 = vector.shape_cast %324 : vector<1x1x8x128xbf16> to vector<8x128xbf16>
    %c96 = arith.constant 96 : index
    %c0_615 = arith.constant 0 : index
    %326 = vector.load %arg5[%c96, %c0_615] : memref<128x1152xbf16, #tpu.memory_space<vmem>>, vector<8x128xbf16>
    tpu.vector_store %arg5[%c96, %c0_615], %325 {strides = array<i32>} : memref<128x1152xbf16, #tpu.memory_space<vmem>>, vector<8x128xbf16>,
    %c1_616 = arith.constant 1 : index
    %c1_617 = arith.constant 1 : index
    %c36_618 = arith.constant 36 : index
    %c0_619 = arith.constant 0 : index
    %327 = vector.load %arg1[%c1_616, %c1_617, %c36_618, %c0_619] : memref<2x4x81x128xbf16, #tpu.memory_space<vmem>>, vector<1x1x8x128xbf16>
    %328 = vector.shape_cast %327 : vector<1x1x8x128xbf16> to vector<8x128xbf16>
    %c96_620 = arith.constant 96 : index
    %c128_621 = arith.constant 128 : index
    %329 = vector.load %arg5[%c96_620, %c128_621] : memref<128x1152xbf16, #tpu.memory_space<vmem>>, vector<8x128xbf16>
    tpu.vector_store %arg5[%c96_620, %c128_621], %328 {strides = array<i32>} : memref<128x1152xbf16, #tpu.memory_space<vmem>>, vector<8x128xbf16>,
    %c1_622 = arith.constant 1 : index
    %c0_623 = arith.constant 0 : index
    %c37_624 = arith.constant 37 : index
    %c0_625 = arith.constant 0 : index
    %330 = vector.load %arg1[%c1_622, %c0_623, %c37_624, %c0_625] : memref<2x4x81x128xbf16, #tpu.memory_space<vmem>>, vector<1x1x8x128xbf16>
    %331 = vector.shape_cast %330 : vector<1x1x8x128xbf16> to vector<8x128xbf16>
    %c96_626 = arith.constant 96 : index
    %c256_627 = arith.constant 256 : index
    %332 = vector.load %arg5[%c96_626, %c256_627] : memref<128x1152xbf16, #tpu.memory_space<vmem>>, vector<8x128xbf16>
    tpu.vector_store %arg5[%c96_626, %c256_627], %331 {strides = array<i32>} : memref<128x1152xbf16, #tpu.memory_space<vmem>>, vector<8x128xbf16>,
    %c1_628 = arith.constant 1 : index
    %c2_629 = arith.constant 2 : index
    %c36_630 = arith.constant 36 : index
    %c0_631 = arith.constant 0 : index
    %333 = vector.load %arg1[%c1_628, %c2_629, %c36_630, %c0_631] : memref<2x4x81x128xbf16, #tpu.memory_space<vmem>>, vector<1x1x8x128xbf16>
    %334 = vector.shape_cast %333 : vector<1x1x8x128xbf16> to vector<8x128xbf16>
    %c96_632 = arith.constant 96 : index
    %c384_633 = arith.constant 384 : index
    %335 = vector.load %arg5[%c96_632, %c384_633] : memref<128x1152xbf16, #tpu.memory_space<vmem>>, vector<8x128xbf16>
    tpu.vector_store %arg5[%c96_632, %c384_633], %334 {strides = array<i32>} : memref<128x1152xbf16, #tpu.memory_space<vmem>>, vector<8x128xbf16>,
    %c1_634 = arith.constant 1 : index
    %c3_635 = arith.constant 3 : index
    %c36_636 = arith.constant 36 : index
    %c0_637 = arith.constant 0 : index
    %336 = vector.load %arg1[%c1_634, %c3_635, %c36_636, %c0_637] : memref<2x4x81x128xbf16, #tpu.memory_space<vmem>>, vector<1x1x8x128xbf16>
    %337 = vector.shape_cast %336 : vector<1x1x8x128xbf16> to vector<8x128xbf16>
    %c96_638 = arith.constant 96 : index
    %c512_639 = arith.constant 512 : index
    %338 = vector.load %arg5[%c96_638, %c512_639] : memref<128x1152xbf16, #tpu.memory_space<vmem>>, vector<8x128xbf16>
    tpu.vector_store %arg5[%c96_638, %c512_639], %337 {strides = array<i32>} : memref<128x1152xbf16, #tpu.memory_space<vmem>>, vector<8x128xbf16>,
    %c1_640 = arith.constant 1 : index
    %c2_641 = arith.constant 2 : index
    %c37_642 = arith.constant 37 : index
    %c0_643 = arith.constant 0 : index
    %339 = vector.load %arg1[%c1_640, %c2_641, %c37_642, %c0_643] : memref<2x4x81x128xbf16, #tpu.memory_space<vmem>>, vector<1x1x8x128xbf16>
    %340 = vector.shape_cast %339 : vector<1x1x8x128xbf16> to vector<8x128xbf16>
    %c96_644 = arith.constant 96 : index
    %c640_645 = arith.constant 640 : index
    %341 = vector.load %arg5[%c96_644, %c640_645] : memref<128x1152xbf16, #tpu.memory_space<vmem>>, vector<8x128xbf16>
    tpu.vector_store %arg5[%c96_644, %c640_645], %340 {strides = array<i32>} : memref<128x1152xbf16, #tpu.memory_space<vmem>>, vector<8x128xbf16>,
    %c1_646 = arith.constant 1 : index
    %c0_647 = arith.constant 0 : index
    %c45_648 = arith.constant 45 : index
    %c0_649 = arith.constant 0 : index
    %342 = vector.load %arg1[%c1_646, %c0_647, %c45_648, %c0_649] : memref<2x4x81x128xbf16, #tpu.memory_space<vmem>>, vector<1x1x8x128xbf16>
    %343 = vector.shape_cast %342 : vector<1x1x8x128xbf16> to vector<8x128xbf16>
    %c96_650 = arith.constant 96 : index
    %c768_651 = arith.constant 768 : index
    %344 = vector.load %arg5[%c96_650, %c768_651] : memref<128x1152xbf16, #tpu.memory_space<vmem>>, vector<8x128xbf16>
    tpu.vector_store %arg5[%c96_650, %c768_651], %343 {strides = array<i32>} : memref<128x1152xbf16, #tpu.memory_space<vmem>>, vector<8x128xbf16>,
    %c1_652 = arith.constant 1 : index
    %c1_653 = arith.constant 1 : index
    %c45_654 = arith.constant 45 : index
    %c0_655 = arith.constant 0 : index
    %345 = vector.load %arg1[%c1_652, %c1_653, %c45_654, %c0_655] : memref<2x4x81x128xbf16, #tpu.memory_space<vmem>>, vector<1x1x8x128xbf16>
    %346 = vector.shape_cast %345 : vector<1x1x8x128xbf16> to vector<8x128xbf16>
    %c96_656 = arith.constant 96 : index
    %c896_657 = arith.constant 896 : index
    %347 = vector.load %arg5[%c96_656, %c896_657] : memref<128x1152xbf16, #tpu.memory_space<vmem>>, vector<8x128xbf16>
    tpu.vector_store %arg5[%c96_656, %c896_657], %346 {strides = array<i32>} : memref<128x1152xbf16, #tpu.memory_space<vmem>>, vector<8x128xbf16>,
    %c1_658 = arith.constant 1 : index
    %c0_659 = arith.constant 0 : index
    %c46_660 = arith.constant 46 : index
    %c0_661 = arith.constant 0 : index
    %348 = vector.load %arg1[%c1_658, %c0_659, %c46_660, %c0_661] : memref<2x4x81x128xbf16, #tpu.memory_space<vmem>>, vector<1x1x8x128xbf16>
    %349 = vector.shape_cast %348 : vector<1x1x8x128xbf16> to vector<8x128xbf16>
    %c96_662 = arith.constant 96 : index
    %c1024_663 = arith.constant 1024 : index
    %350 = vector.load %arg5[%c96_662, %c1024_663] : memref<128x1152xbf16, #tpu.memory_space<vmem>>, vector<8x128xbf16>
    tpu.vector_store %arg5[%c96_662, %c1024_663], %349 {strides = array<i32>} : memref<128x1152xbf16, #tpu.memory_space<vmem>>, vector<8x128xbf16>,
    %c1_664 = arith.constant 1 : index
    %c0_665 = arith.constant 0 : index
    %c45_666 = arith.constant 45 : index
    %c0_667 = arith.constant 0 : index
    %351 = vector.load %arg1[%c1_664, %c0_665, %c45_666, %c0_667] : memref<2x4x81x128xbf16, #tpu.memory_space<vmem>>, vector<1x1x8x128xbf16>
    %352 = vector.shape_cast %351 : vector<1x1x8x128xbf16> to vector<8x128xbf16>
    %c104 = arith.constant 104 : index
    %c0_668 = arith.constant 0 : index
    %353 = vector.load %arg5[%c104, %c0_668] : memref<128x1152xbf16, #tpu.memory_space<vmem>>, vector<8x128xbf16>
    tpu.vector_store %arg5[%c104, %c0_668], %352 {strides = array<i32>} : memref<128x1152xbf16, #tpu.memory_space<vmem>>, vector<8x128xbf16>,
    %c1_669 = arith.constant 1 : index
    %c1_670 = arith.constant 1 : index
    %c45_671 = arith.constant 45 : index
    %c0_672 = arith.constant 0 : index
    %354 = vector.load %arg1[%c1_669, %c1_670, %c45_671, %c0_672] : memref<2x4x81x128xbf16, #tpu.memory_space<vmem>>, vector<1x1x8x128xbf16>
    %355 = vector.shape_cast %354 : vector<1x1x8x128xbf16> to vector<8x128xbf16>
    %c104_673 = arith.constant 104 : index
    %c128_674 = arith.constant 128 : index
    %356 = vector.load %arg5[%c104_673, %c128_674] : memref<128x1152xbf16, #tpu.memory_space<vmem>>, vector<8x128xbf16>
    tpu.vector_store %arg5[%c104_673, %c128_674], %355 {strides = array<i32>} : memref<128x1152xbf16, #tpu.memory_space<vmem>>, vector<8x128xbf16>,
    %c1_675 = arith.constant 1 : index
    %c0_676 = arith.constant 0 : index
    %c46_677 = arith.constant 46 : index
    %c0_678 = arith.constant 0 : index
    %357 = vector.load %arg1[%c1_675, %c0_676, %c46_677, %c0_678] : memref<2x4x81x128xbf16, #tpu.memory_space<vmem>>, vector<1x1x8x128xbf16>
    %358 = vector.shape_cast %357 : vector<1x1x8x128xbf16> to vector<8x128xbf16>
    %c104_679 = arith.constant 104 : index
    %c256_680 = arith.constant 256 : index
    %359 = vector.load %arg5[%c104_679, %c256_680] : memref<128x1152xbf16, #tpu.memory_space<vmem>>, vector<8x128xbf16>
    tpu.vector_store %arg5[%c104_679, %c256_680], %358 {strides = array<i32>} : memref<128x1152xbf16, #tpu.memory_space<vmem>>, vector<8x128xbf16>,
    %c1_681 = arith.constant 1 : index
    %c2_682 = arith.constant 2 : index
    %c45_683 = arith.constant 45 : index
    %c0_684 = arith.constant 0 : index
    %360 = vector.load %arg1[%c1_681, %c2_682, %c45_683, %c0_684] : memref<2x4x81x128xbf16, #tpu.memory_space<vmem>>, vector<1x1x8x128xbf16>
    %361 = vector.shape_cast %360 : vector<1x1x8x128xbf16> to vector<8x128xbf16>
    %c104_685 = arith.constant 104 : index
    %c384_686 = arith.constant 384 : index
    %362 = vector.load %arg5[%c104_685, %c384_686] : memref<128x1152xbf16, #tpu.memory_space<vmem>>, vector<8x128xbf16>
    tpu.vector_store %arg5[%c104_685, %c384_686], %361 {strides = array<i32>} : memref<128x1152xbf16, #tpu.memory_space<vmem>>, vector<8x128xbf16>,
    %c1_687 = arith.constant 1 : index
    %c3_688 = arith.constant 3 : index
    %c45_689 = arith.constant 45 : index
    %c0_690 = arith.constant 0 : index
    %363 = vector.load %arg1[%c1_687, %c3_688, %c45_689, %c0_690] : memref<2x4x81x128xbf16, #tpu.memory_space<vmem>>, vector<1x1x8x128xbf16>
    %364 = vector.shape_cast %363 : vector<1x1x8x128xbf16> to vector<8x128xbf16>
    %c104_691 = arith.constant 104 : index
    %c512_692 = arith.constant 512 : index
    %365 = vector.load %arg5[%c104_691, %c512_692] : memref<128x1152xbf16, #tpu.memory_space<vmem>>, vector<8x128xbf16>
    tpu.vector_store %arg5[%c104_691, %c512_692], %364 {strides = array<i32>} : memref<128x1152xbf16, #tpu.memory_space<vmem>>, vector<8x128xbf16>,
    %c1_693 = arith.constant 1 : index
    %c2_694 = arith.constant 2 : index
    %c46_695 = arith.constant 46 : index
    %c0_696 = arith.constant 0 : index
    %366 = vector.load %arg1[%c1_693, %c2_694, %c46_695, %c0_696] : memref<2x4x81x128xbf16, #tpu.memory_space<vmem>>, vector<1x1x8x128xbf16>
    %367 = vector.shape_cast %366 : vector<1x1x8x128xbf16> to vector<8x128xbf16>
    %c104_697 = arith.constant 104 : index
    %c640_698 = arith.constant 640 : index
    %368 = vector.load %arg5[%c104_697, %c640_698] : memref<128x1152xbf16, #tpu.memory_space<vmem>>, vector<8x128xbf16>
    tpu.vector_store %arg5[%c104_697, %c640_698], %367 {strides = array<i32>} : memref<128x1152xbf16, #tpu.memory_space<vmem>>, vector<8x128xbf16>,
    %c1_699 = arith.constant 1 : index
    %c0_700 = arith.constant 0 : index
    %c54_701 = arith.constant 54 : index
    %c0_702 = arith.constant 0 : index
    %369 = vector.load %arg1[%c1_699, %c0_700, %c54_701, %c0_702] : memref<2x4x81x128xbf16, #tpu.memory_space<vmem>>, vector<1x1x8x128xbf16>
    %370 = vector.shape_cast %369 : vector<1x1x8x128xbf16> to vector<8x128xbf16>
    %c104_703 = arith.constant 104 : index
    %c768_704 = arith.constant 768 : index
    %371 = vector.load %arg5[%c104_703, %c768_704] : memref<128x1152xbf16, #tpu.memory_space<vmem>>, vector<8x128xbf16>
    tpu.vector_store %arg5[%c104_703, %c768_704], %370 {strides = array<i32>} : memref<128x1152xbf16, #tpu.memory_space<vmem>>, vector<8x128xbf16>,
    %c1_705 = arith.constant 1 : index
    %c1_706 = arith.constant 1 : index
    %c54_707 = arith.constant 54 : index
    %c0_708 = arith.constant 0 : index
    %372 = vector.load %arg1[%c1_705, %c1_706, %c54_707, %c0_708] : memref<2x4x81x128xbf16, #tpu.memory_space<vmem>>, vector<1x1x8x128xbf16>
    %373 = vector.shape_cast %372 : vector<1x1x8x128xbf16> to vector<8x128xbf16>
    %c104_709 = arith.constant 104 : index
    %c896_710 = arith.constant 896 : index
    %374 = vector.load %arg5[%c104_709, %c896_710] : memref<128x1152xbf16, #tpu.memory_space<vmem>>, vector<8x128xbf16>
    tpu.vector_store %arg5[%c104_709, %c896_710], %373 {strides = array<i32>} : memref<128x1152xbf16, #tpu.memory_space<vmem>>, vector<8x128xbf16>,
    %c1_711 = arith.constant 1 : index
    %c0_712 = arith.constant 0 : index
    %c55_713 = arith.constant 55 : index
    %c0_714 = arith.constant 0 : index
    %375 = vector.load %arg1[%c1_711, %c0_712, %c55_713, %c0_714] : memref<2x4x81x128xbf16, #tpu.memory_space<vmem>>, vector<1x1x8x128xbf16>
    %376 = vector.shape_cast %375 : vector<1x1x8x128xbf16> to vector<8x128xbf16>
    %c104_715 = arith.constant 104 : index
    %c1024_716 = arith.constant 1024 : index
    %377 = vector.load %arg5[%c104_715, %c1024_716] : memref<128x1152xbf16, #tpu.memory_space<vmem>>, vector<8x128xbf16>
    tpu.vector_store %arg5[%c104_715, %c1024_716], %376 {strides = array<i32>} : memref<128x1152xbf16, #tpu.memory_space<vmem>>, vector<8x128xbf16>,
    %c1_717 = arith.constant 1 : index
    %c0_718 = arith.constant 0 : index
    %c54_719 = arith.constant 54 : index
    %c0_720 = arith.constant 0 : index
    %378 = vector.load %arg1[%c1_717, %c0_718, %c54_719, %c0_720] : memref<2x4x81x128xbf16, #tpu.memory_space<vmem>>, vector<1x1x8x128xbf16>
    %379 = vector.shape_cast %378 : vector<1x1x8x128xbf16> to vector<8x128xbf16>
    %c112 = arith.constant 112 : index
    %c0_721 = arith.constant 0 : index
    %380 = vector.load %arg5[%c112, %c0_721] : memref<128x1152xbf16, #tpu.memory_space<vmem>>, vector<8x128xbf16>
    tpu.vector_store %arg5[%c112, %c0_721], %379 {strides = array<i32>} : memref<128x1152xbf16, #tpu.memory_space<vmem>>, vector<8x128xbf16>,
    %c1_722 = arith.constant 1 : index
    %c1_723 = arith.constant 1 : index
    %c54_724 = arith.constant 54 : index
    %c0_725 = arith.constant 0 : index
    %381 = vector.load %arg1[%c1_722, %c1_723, %c54_724, %c0_725] : memref<2x4x81x128xbf16, #tpu.memory_space<vmem>>, vector<1x1x8x128xbf16>
    %382 = vector.shape_cast %381 : vector<1x1x8x128xbf16> to vector<8x128xbf16>
    %c112_726 = arith.constant 112 : index
    %c128_727 = arith.constant 128 : index
    %383 = vector.load %arg5[%c112_726, %c128_727] : memref<128x1152xbf16, #tpu.memory_space<vmem>>, vector<8x128xbf16>
    tpu.vector_store %arg5[%c112_726, %c128_727], %382 {strides = array<i32>} : memref<128x1152xbf16, #tpu.memory_space<vmem>>, vector<8x128xbf16>,
    %c1_728 = arith.constant 1 : index
    %c0_729 = arith.constant 0 : index
    %c55_730 = arith.constant 55 : index
    %c0_731 = arith.constant 0 : index
    %384 = vector.load %arg1[%c1_728, %c0_729, %c55_730, %c0_731] : memref<2x4x81x128xbf16, #tpu.memory_space<vmem>>, vector<1x1x8x128xbf16>
    %385 = vector.shape_cast %384 : vector<1x1x8x128xbf16> to vector<8x128xbf16>
    %c112_732 = arith.constant 112 : index
    %c256_733 = arith.constant 256 : index
    %386 = vector.load %arg5[%c112_732, %c256_733] : memref<128x1152xbf16, #tpu.memory_space<vmem>>, vector<8x128xbf16>
    tpu.vector_store %arg5[%c112_732, %c256_733], %385 {strides = array<i32>} : memref<128x1152xbf16, #tpu.memory_space<vmem>>, vector<8x128xbf16>,
    %c1_734 = arith.constant 1 : index
    %c2_735 = arith.constant 2 : index
    %c54_736 = arith.constant 54 : index
    %c0_737 = arith.constant 0 : index
    %387 = vector.load %arg1[%c1_734, %c2_735, %c54_736, %c0_737] : memref<2x4x81x128xbf16, #tpu.memory_space<vmem>>, vector<1x1x8x128xbf16>
    %388 = vector.shape_cast %387 : vector<1x1x8x128xbf16> to vector<8x128xbf16>
    %c112_738 = arith.constant 112 : index
    %c384_739 = arith.constant 384 : index
    %389 = vector.load %arg5[%c112_738, %c384_739] : memref<128x1152xbf16, #tpu.memory_space<vmem>>, vector<8x128xbf16>
    tpu.vector_store %arg5[%c112_738, %c384_739], %388 {strides = array<i32>} : memref<128x1152xbf16, #tpu.memory_space<vmem>>, vector<8x128xbf16>,
    %c1_740 = arith.constant 1 : index
    %c3_741 = arith.constant 3 : index
    %c54_742 = arith.constant 54 : index
    %c0_743 = arith.constant 0 : index
    %390 = vector.load %arg1[%c1_740, %c3_741, %c54_742, %c0_743] : memref<2x4x81x128xbf16, #tpu.memory_space<vmem>>, vector<1x1x8x128xbf16>
    %391 = vector.shape_cast %390 : vector<1x1x8x128xbf16> to vector<8x128xbf16>
    %c112_744 = arith.constant 112 : index
    %c512_745 = arith.constant 512 : index
    %392 = vector.load %arg5[%c112_744, %c512_745] : memref<128x1152xbf16, #tpu.memory_space<vmem>>, vector<8x128xbf16>
    tpu.vector_store %arg5[%c112_744, %c512_745], %391 {strides = array<i32>} : memref<128x1152xbf16, #tpu.memory_space<vmem>>, vector<8x128xbf16>,
    %c1_746 = arith.constant 1 : index
    %c2_747 = arith.constant 2 : index
    %c55_748 = arith.constant 55 : index
    %c0_749 = arith.constant 0 : index
    %393 = vector.load %arg1[%c1_746, %c2_747, %c55_748, %c0_749] : memref<2x4x81x128xbf16, #tpu.memory_space<vmem>>, vector<1x1x8x128xbf16>
    %394 = vector.shape_cast %393 : vector<1x1x8x128xbf16> to vector<8x128xbf16>
    %c112_750 = arith.constant 112 : index
    %c640_751 = arith.constant 640 : index
    %395 = vector.load %arg5[%c112_750, %c640_751] : memref<128x1152xbf16, #tpu.memory_space<vmem>>, vector<8x128xbf16>
    tpu.vector_store %arg5[%c112_750, %c640_751], %394 {strides = array<i32>} : memref<128x1152xbf16, #tpu.memory_space<vmem>>, vector<8x128xbf16>,
    %c1_752 = arith.constant 1 : index
    %c0_753 = arith.constant 0 : index
    %c63_754 = arith.constant 63 : index
    %c0_755 = arith.constant 0 : index
    %396 = vector.load %arg1[%c1_752, %c0_753, %c63_754, %c0_755] : memref<2x4x81x128xbf16, #tpu.memory_space<vmem>>, vector<1x1x8x128xbf16>
    %397 = vector.shape_cast %396 : vector<1x1x8x128xbf16> to vector<8x128xbf16>
    %c112_756 = arith.constant 112 : index
    %c768_757 = arith.constant 768 : index
    %398 = vector.load %arg5[%c112_756, %c768_757] : memref<128x1152xbf16, #tpu.memory_space<vmem>>, vector<8x128xbf16>
    tpu.vector_store %arg5[%c112_756, %c768_757], %397 {strides = array<i32>} : memref<128x1152xbf16, #tpu.memory_space<vmem>>, vector<8x128xbf16>,
    %c1_758 = arith.constant 1 : index
    %c1_759 = arith.constant 1 : index
    %c63_760 = arith.constant 63 : index
    %c0_761 = arith.constant 0 : index
    %399 = vector.load %arg1[%c1_758, %c1_759, %c63_760, %c0_761] : memref<2x4x81x128xbf16, #tpu.memory_space<vmem>>, vector<1x1x8x128xbf16>
    %400 = vector.shape_cast %399 : vector<1x1x8x128xbf16> to vector<8x128xbf16>
    %c112_762 = arith.constant 112 : index
    %c896_763 = arith.constant 896 : index
    %401 = vector.load %arg5[%c112_762, %c896_763] : memref<128x1152xbf16, #tpu.memory_space<vmem>>, vector<8x128xbf16>
    tpu.vector_store %arg5[%c112_762, %c896_763], %400 {strides = array<i32>} : memref<128x1152xbf16, #tpu.memory_space<vmem>>, vector<8x128xbf16>,
    %c1_764 = arith.constant 1 : index
    %c0_765 = arith.constant 0 : index
    %c64_766 = arith.constant 64 : index
    %c0_767 = arith.constant 0 : index
    %402 = vector.load %arg1[%c1_764, %c0_765, %c64_766, %c0_767] : memref<2x4x81x128xbf16, #tpu.memory_space<vmem>>, vector<1x1x8x128xbf16>
    %403 = vector.shape_cast %402 : vector<1x1x8x128xbf16> to vector<8x128xbf16>
    %c112_768 = arith.constant 112 : index
    %c1024_769 = arith.constant 1024 : index
    %404 = vector.load %arg5[%c112_768, %c1024_769] : memref<128x1152xbf16, #tpu.memory_space<vmem>>, vector<8x128xbf16>
    tpu.vector_store %arg5[%c112_768, %c1024_769], %403 {strides = array<i32>} : memref<128x1152xbf16, #tpu.memory_space<vmem>>, vector<8x128xbf16>,
    %c1_770 = arith.constant 1 : index
    %c0_771 = arith.constant 0 : index
    %c63_772 = arith.constant 63 : index
    %c0_773 = arith.constant 0 : index
    %405 = vector.load %arg1[%c1_770, %c0_771, %c63_772, %c0_773] : memref<2x4x81x128xbf16, #tpu.memory_space<vmem>>, vector<1x1x8x128xbf16>
    %406 = vector.shape_cast %405 : vector<1x1x8x128xbf16> to vector<8x128xbf16>
    %c120 = arith.constant 120 : index
    %c0_774 = arith.constant 0 : index
    %407 = vector.load %arg5[%c120, %c0_774] : memref<128x1152xbf16, #tpu.memory_space<vmem>>, vector<8x128xbf16>
    tpu.vector_store %arg5[%c120, %c0_774], %406 {strides = array<i32>} : memref<128x1152xbf16, #tpu.memory_space<vmem>>, vector<8x128xbf16>,
    %c1_775 = arith.constant 1 : index
    %c1_776 = arith.constant 1 : index
    %c63_777 = arith.constant 63 : index
    %c0_778 = arith.constant 0 : index
    %408 = vector.load %arg1[%c1_775, %c1_776, %c63_777, %c0_778] : memref<2x4x81x128xbf16, #tpu.memory_space<vmem>>, vector<1x1x8x128xbf16>
    %409 = vector.shape_cast %408 : vector<1x1x8x128xbf16> to vector<8x128xbf16>
    %c120_779 = arith.constant 120 : index
    %c128_780 = arith.constant 128 : index
    %410 = vector.load %arg5[%c120_779, %c128_780] : memref<128x1152xbf16, #tpu.memory_space<vmem>>, vector<8x128xbf16>
    tpu.vector_store %arg5[%c120_779, %c128_780], %409 {strides = array<i32>} : memref<128x1152xbf16, #tpu.memory_space<vmem>>, vector<8x128xbf16>,
    %c1_781 = arith.constant 1 : index
    %c0_782 = arith.constant 0 : index
    %c64_783 = arith.constant 64 : index
    %c0_784 = arith.constant 0 : index
    %411 = vector.load %arg1[%c1_781, %c0_782, %c64_783, %c0_784] : memref<2x4x81x128xbf16, #tpu.memory_space<vmem>>, vector<1x1x8x128xbf16>
    %412 = vector.shape_cast %411 : vector<1x1x8x128xbf16> to vector<8x128xbf16>
    %c120_785 = arith.constant 120 : index
    %c256_786 = arith.constant 256 : index
    %413 = vector.load %arg5[%c120_785, %c256_786] : memref<128x1152xbf16, #tpu.memory_space<vmem>>, vector<8x128xbf16>
    tpu.vector_store %arg5[%c120_785, %c256_786], %412 {strides = array<i32>} : memref<128x1152xbf16, #tpu.memory_space<vmem>>, vector<8x128xbf16>,
    %c1_787 = arith.constant 1 : index
    %c2_788 = arith.constant 2 : index
    %c63_789 = arith.constant 63 : index
    %c0_790 = arith.constant 0 : index
    %414 = vector.load %arg1[%c1_787, %c2_788, %c63_789, %c0_790] : memref<2x4x81x128xbf16, #tpu.memory_space<vmem>>, vector<1x1x8x128xbf16>
    %415 = vector.shape_cast %414 : vector<1x1x8x128xbf16> to vector<8x128xbf16>
    %c120_791 = arith.constant 120 : index
    %c384_792 = arith.constant 384 : index
    %416 = vector.load %arg5[%c120_791, %c384_792] : memref<128x1152xbf16, #tpu.memory_space<vmem>>, vector<8x128xbf16>
    tpu.vector_store %arg5[%c120_791, %c384_792], %415 {strides = array<i32>} : memref<128x1152xbf16, #tpu.memory_space<vmem>>, vector<8x128xbf16>,
    %c1_793 = arith.constant 1 : index
    %c3_794 = arith.constant 3 : index
    %c63_795 = arith.constant 63 : index
    %c0_796 = arith.constant 0 : index
    %417 = vector.load %arg1[%c1_793, %c3_794, %c63_795, %c0_796] : memref<2x4x81x128xbf16, #tpu.memory_space<vmem>>, vector<1x1x8x128xbf16>
    %418 = vector.shape_cast %417 : vector<1x1x8x128xbf16> to vector<8x128xbf16>
    %c120_797 = arith.constant 120 : index
    %c512_798 = arith.constant 512 : index
    %419 = vector.load %arg5[%c120_797, %c512_798] : memref<128x1152xbf16, #tpu.memory_space<vmem>>, vector<8x128xbf16>
    tpu.vector_store %arg5[%c120_797, %c512_798], %418 {strides = array<i32>} : memref<128x1152xbf16, #tpu.memory_space<vmem>>, vector<8x128xbf16>,
    %c1_799 = arith.constant 1 : index
    %c2_800 = arith.constant 2 : index
    %c64_801 = arith.constant 64 : index
    %c0_802 = arith.constant 0 : index
    %420 = vector.load %arg1[%c1_799, %c2_800, %c64_801, %c0_802] : memref<2x4x81x128xbf16, #tpu.memory_space<vmem>>, vector<1x1x8x128xbf16>
    %421 = vector.shape_cast %420 : vector<1x1x8x128xbf16> to vector<8x128xbf16>
    %c120_803 = arith.constant 120 : index
    %c640_804 = arith.constant 640 : index
    %422 = vector.load %arg5[%c120_803, %c640_804] : memref<128x1152xbf16, #tpu.memory_space<vmem>>, vector<8x128xbf16>
    tpu.vector_store %arg5[%c120_803, %c640_804], %421 {strides = array<i32>} : memref<128x1152xbf16, #tpu.memory_space<vmem>>, vector<8x128xbf16>,
    %c1_805 = arith.constant 1 : index
    %c0_806 = arith.constant 0 : index
    %c72_807 = arith.constant 72 : index
    %c0_808 = arith.constant 0 : index
    %423 = vector.load %arg1[%c1_805, %c0_806, %c72_807, %c0_808] : memref<2x4x81x128xbf16, #tpu.memory_space<vmem>>, vector<1x1x8x128xbf16>
    %424 = vector.shape_cast %423 : vector<1x1x8x128xbf16> to vector<8x128xbf16>
    %c120_809 = arith.constant 120 : index
    %c768_810 = arith.constant 768 : index
    %425 = vector.load %arg5[%c120_809, %c768_810] : memref<128x1152xbf16, #tpu.memory_space<vmem>>, vector<8x128xbf16>
    tpu.vector_store %arg5[%c120_809, %c768_810], %424 {strides = array<i32>} : memref<128x1152xbf16, #tpu.memory_space<vmem>>, vector<8x128xbf16>,
    %c1_811 = arith.constant 1 : index
    %c1_812 = arith.constant 1 : index
    %c72_813 = arith.constant 72 : index
    %c0_814 = arith.constant 0 : index
    %426 = vector.load %arg1[%c1_811, %c1_812, %c72_813, %c0_814] : memref<2x4x81x128xbf16, #tpu.memory_space<vmem>>, vector<1x1x8x128xbf16>
    %427 = vector.shape_cast %426 : vector<1x1x8x128xbf16> to vector<8x128xbf16>
    %c120_815 = arith.constant 120 : index
    %c896_816 = arith.constant 896 : index
    %428 = vector.load %arg5[%c120_815, %c896_816] : memref<128x1152xbf16, #tpu.memory_space<vmem>>, vector<8x128xbf16>
    tpu.vector_store %arg5[%c120_815, %c896_816], %427 {strides = array<i32>} : memref<128x1152xbf16, #tpu.memory_space<vmem>>, vector<8x128xbf16>,
    %c1_817 = arith.constant 1 : index
    %c0_818 = arith.constant 0 : index
    %c73_819 = arith.constant 73 : index
    %c0_820 = arith.constant 0 : index
    %429 = vector.load %arg1[%c1_817, %c0_818, %c73_819, %c0_820] : memref<2x4x81x128xbf16, #tpu.memory_space<vmem>>, vector<1x1x8x128xbf16>
    %430 = vector.shape_cast %429 : vector<1x1x8x128xbf16> to vector<8x128xbf16>
    %c120_821 = arith.constant 120 : index
    %c1024_822 = arith.constant 1024 : index
    %431 = vector.load %arg5[%c120_821, %c1024_822] : memref<128x1152xbf16, #tpu.memory_space<vmem>>, vector<8x128xbf16>
    tpu.vector_store %arg5[%c120_821, %c1024_822], %430 {strides = array<i32>} : memref<128x1152xbf16, #tpu.memory_space<vmem>>, vector<8x128xbf16>,
    %c0_823 = arith.constant 0 : index
    %c0_824 = arith.constant 0 : index
    %432 = vector.load %arg5[%c0_823, %c0_824] : memref<128x1152xbf16, #tpu.memory_space<vmem>>, vector<128x1152xbf16>
    %c0_825 = arith.constant 0 : index
    %c0_826 = arith.constant 0 : index
    %433 = vector.load %arg2[%c0_825, %c0_826] : memref<1152x128xbf16, #tpu.memory_space<vmem>>, vector<1152x128xbf16>
    %cst = arith.constant dense<0.000000e+00> : vector<128x128xf32>
    %434 = tpu.matmul %432, %433, %cst {dimension_numbers = #tpu.dot_dimension_numbers<[1], [0], [0], [1], [0, 0, 1, 1], [], []>} : vector<128x1152xbf16>, vector<1152x128xbf16>, vector<128x128xf32> -> vector<128x128xf32>
    %c0_827 = arith.constant 0 : index
    %c0_828 = arith.constant 0 : index
    %435 = vector.load %arg3[%c0_827, %c0_828] : memref<1x128xf32, #tpu.memory_space<vmem>>, vector<1x128xf32>
    %436 = vector.broadcast %435 : vector<1x128xf32> to vector<128x128xf32>
    %437 = arith.addf %434, %436 : vector<128x128xf32>
    %cst_829 = arith.constant 0.000000e+00 : f32
    %438 = vector.broadcast %cst_829 : f32 to vector<128x128xf32>
    %439 = arith.cmpf oge, %437, %438 : vector<128x128xf32>
    %cst_830 = arith.constant 0.00999999977 : f32
    %440 = vector.broadcast %cst_830 : f32 to vector<128x128xf32>
    %441 = arith.mulf %440, %437 : vector<128x128xf32>
    %442 = arith.select %439, %437, %441 : vector<128x128xi1>, vector<128x128xf32>
    %443 = arith.truncf %442 : vector<128x128xf32> to vector<128x128xbf16>
    %c0_831 = arith.constant 0 : index
    %c0_832 = arith.constant 0 : index
    %444 = vector.load %arg4[%c0_831, %c0_832] : memref<128x128xbf16, #tpu.memory_space<vmem>>, vector<128x128xbf16>
    tpu.vector_store %arg4[%c0_831, %c0_832], %443 {strides = array<i32>} : memref<128x128xbf16, #tpu.memory_space<vmem>>, vector<128x128xbf16>,
    return
  }
  func.func @transform_0(%arg0: i32) -> (i32, i32, i32, i32) {
    %c0_i32 = arith.constant 0 : i32
    %c0_i32_0 = arith.constant 0 : i32
    %c0_i32_1 = arith.constant 0 : i32
    %c0_i32_2 = arith.constant 0 : i32
    return %arg0, %c0_i32, %c0_i32_0, %c0_i32_1 : i32, i32, i32, i32
  }
  func.func @transform_1(%arg0: i32) -> (i32, i32) {
    %c0_i32 = arith.constant 0 : i32
    %c0_i32_0 = arith.constant 0 : i32
    %c0_i32_1 = arith.constant 0 : i32
    return %c0_i32, %c0_i32_0 : i32, i32
  }
  func.func @transform_2(%arg0: i32) -> (i32, i32) {
    %c0_i32 = arith.constant 0 : i32
    %c0_i32_0 = arith.constant 0 : i32
    %c0_i32_1 = arith.constant 0 : i32
    return %c0_i32, %c0_i32_0 : i32, i32
  }
  func.func @transform_3(%arg0: i32) -> (i32, i32) {
    %c0_i32 = arith.constant 0 : i32
    %c0_i32_0 = arith.constant 0 : i32
    return %arg0, %c0_i32 : i32, i32
  }
}

module attributes {stable_mosaic.version = 11 : i64} {
  func.func @_conv3x3s2_lrelu_kernel(%arg0: i32, %arg1: memref<2x4x25x128xbf16, #tpu.memory_space<vmem>>, %arg2: memref<1152x128xbf16, #tpu.memory_space<vmem>>, %arg3: memref<1x128xf32, #tpu.memory_space<vmem>>, %arg4: memref<32x128xbf16, #tpu.memory_space<vmem>>, %arg5: memref<32x1152xbf16, #tpu.memory_space<vmem>>) attributes {dimension_semantics = [#tpu.dimension_semantics<parallel>], iteration_bounds = array<i64: 1>, scalar_prefetch = 0 : i64, scratch_operands = 1 : i64, tpu.core_type = #tpu.core_type<tc>, window_params = [{transform_indices = @transform_0, window_bounds = array<i64: 2, 4, 25, 128>}, {pipeline_mode = #tpu.pipeline_mode<synchronous>, transform_indices = @transform_1, window_bounds = array<i64: 1152, 128>}, {pipeline_mode = #tpu.pipeline_mode<synchronous>, transform_indices = @transform_2, window_bounds = array<i64: 1, 128>}, {transform_indices = @transform_3, window_bounds = array<i64: 32, 128>}]} {
    %c0 = arith.constant 0 : index
    %c0_0 = arith.constant 0 : index
    %c0_1 = arith.constant 0 : index
    %c0_2 = arith.constant 0 : index
    %0 = vector.load %arg1[%c0, %c0_0, %c0_1, %c0_2] : memref<2x4x25x128xbf16, #tpu.memory_space<vmem>>, vector<1x1x4x128xbf16>
    %1 = vector.shape_cast %0 : vector<1x1x4x128xbf16> to vector<4x128xbf16>
    %c0_3 = arith.constant 0 : index
    %c0_4 = arith.constant 0 : index
    %2 = vector.load %arg5[%c0_3, %c0_4] : memref<32x1152xbf16, #tpu.memory_space<vmem>>, vector<4x128xbf16>
    tpu.vector_store %arg5[%c0_3, %c0_4], %1 {strides = array<i32>} : memref<32x1152xbf16, #tpu.memory_space<vmem>>, vector<4x128xbf16>,
    %c0_5 = arith.constant 0 : index
    %c1 = arith.constant 1 : index
    %c0_6 = arith.constant 0 : index
    %c0_7 = arith.constant 0 : index
    %3 = vector.load %arg1[%c0_5, %c1, %c0_6, %c0_7] : memref<2x4x25x128xbf16, #tpu.memory_space<vmem>>, vector<1x1x4x128xbf16>
    %4 = vector.shape_cast %3 : vector<1x1x4x128xbf16> to vector<4x128xbf16>
    %c0_8 = arith.constant 0 : index
    %c128 = arith.constant 128 : index
    %5 = vector.load %arg5[%c0_8, %c128] : memref<32x1152xbf16, #tpu.memory_space<vmem>>, vector<4x128xbf16>
    tpu.vector_store %arg5[%c0_8, %c128], %4 {strides = array<i32>} : memref<32x1152xbf16, #tpu.memory_space<vmem>>, vector<4x128xbf16>,
    %c0_9 = arith.constant 0 : index
    %c0_10 = arith.constant 0 : index
    %c1_11 = arith.constant 1 : index
    %c0_12 = arith.constant 0 : index
    %6 = vector.load %arg1[%c0_9, %c0_10, %c1_11, %c0_12] : memref<2x4x25x128xbf16, #tpu.memory_space<vmem>>, vector<1x1x4x128xbf16>
    %7 = vector.shape_cast %6 : vector<1x1x4x128xbf16> to vector<4x128xbf16>
    %c0_13 = arith.constant 0 : index
    %c256 = arith.constant 256 : index
    %8 = vector.load %arg5[%c0_13, %c256] : memref<32x1152xbf16, #tpu.memory_space<vmem>>, vector<4x128xbf16>
    tpu.vector_store %arg5[%c0_13, %c256], %7 {strides = array<i32>} : memref<32x1152xbf16, #tpu.memory_space<vmem>>, vector<4x128xbf16>,
    %c0_14 = arith.constant 0 : index
    %c2 = arith.constant 2 : index
    %c0_15 = arith.constant 0 : index
    %c0_16 = arith.constant 0 : index
    %9 = vector.load %arg1[%c0_14, %c2, %c0_15, %c0_16] : memref<2x4x25x128xbf16, #tpu.memory_space<vmem>>, vector<1x1x4x128xbf16>
    %10 = vector.shape_cast %9 : vector<1x1x4x128xbf16> to vector<4x128xbf16>
    %c0_17 = arith.constant 0 : index
    %c384 = arith.constant 384 : index
    %11 = vector.load %arg5[%c0_17, %c384] : memref<32x1152xbf16, #tpu.memory_space<vmem>>, vector<4x128xbf16>
    tpu.vector_store %arg5[%c0_17, %c384], %10 {strides = array<i32>} : memref<32x1152xbf16, #tpu.memory_space<vmem>>, vector<4x128xbf16>,
    %c0_18 = arith.constant 0 : index
    %c3 = arith.constant 3 : index
    %c0_19 = arith.constant 0 : index
    %c0_20 = arith.constant 0 : index
    %12 = vector.load %arg1[%c0_18, %c3, %c0_19, %c0_20] : memref<2x4x25x128xbf16, #tpu.memory_space<vmem>>, vector<1x1x4x128xbf16>
    %13 = vector.shape_cast %12 : vector<1x1x4x128xbf16> to vector<4x128xbf16>
    %c0_21 = arith.constant 0 : index
    %c512 = arith.constant 512 : index
    %14 = vector.load %arg5[%c0_21, %c512] : memref<32x1152xbf16, #tpu.memory_space<vmem>>, vector<4x128xbf16>
    tpu.vector_store %arg5[%c0_21, %c512], %13 {strides = array<i32>} : memref<32x1152xbf16, #tpu.memory_space<vmem>>, vector<4x128xbf16>,
    %c0_22 = arith.constant 0 : index
    %c2_23 = arith.constant 2 : index
    %c1_24 = arith.constant 1 : index
    %c0_25 = arith.constant 0 : index
    %15 = vector.load %arg1[%c0_22, %c2_23, %c1_24, %c0_25] : memref<2x4x25x128xbf16, #tpu.memory_space<vmem>>, vector<1x1x4x128xbf16>
    %16 = vector.shape_cast %15 : vector<1x1x4x128xbf16> to vector<4x128xbf16>
    %c0_26 = arith.constant 0 : index
    %c640 = arith.constant 640 : index
    %17 = vector.load %arg5[%c0_26, %c640] : memref<32x1152xbf16, #tpu.memory_space<vmem>>, vector<4x128xbf16>
    tpu.vector_store %arg5[%c0_26, %c640], %16 {strides = array<i32>} : memref<32x1152xbf16, #tpu.memory_space<vmem>>, vector<4x128xbf16>,
    %c0_27 = arith.constant 0 : index
    %c0_28 = arith.constant 0 : index
    %c5 = arith.constant 5 : index
    %c0_29 = arith.constant 0 : index
    %18 = vector.load %arg1[%c0_27, %c0_28, %c5, %c0_29] : memref<2x4x25x128xbf16, #tpu.memory_space<vmem>>, vector<1x1x4x128xbf16>
    %19 = vector.shape_cast %18 : vector<1x1x4x128xbf16> to vector<4x128xbf16>
    %c0_30 = arith.constant 0 : index
    %c768 = arith.constant 768 : index
    %20 = vector.load %arg5[%c0_30, %c768] : memref<32x1152xbf16, #tpu.memory_space<vmem>>, vector<4x128xbf16>
    tpu.vector_store %arg5[%c0_30, %c768], %19 {strides = array<i32>} : memref<32x1152xbf16, #tpu.memory_space<vmem>>, vector<4x128xbf16>,
    %c0_31 = arith.constant 0 : index
    %c1_32 = arith.constant 1 : index
    %c5_33 = arith.constant 5 : index
    %c0_34 = arith.constant 0 : index
    %21 = vector.load %arg1[%c0_31, %c1_32, %c5_33, %c0_34] : memref<2x4x25x128xbf16, #tpu.memory_space<vmem>>, vector<1x1x4x128xbf16>
    %22 = vector.shape_cast %21 : vector<1x1x4x128xbf16> to vector<4x128xbf16>
    %c0_35 = arith.constant 0 : index
    %c896 = arith.constant 896 : index
    %23 = vector.load %arg5[%c0_35, %c896] : memref<32x1152xbf16, #tpu.memory_space<vmem>>, vector<4x128xbf16>
    tpu.vector_store %arg5[%c0_35, %c896], %22 {strides = array<i32>} : memref<32x1152xbf16, #tpu.memory_space<vmem>>, vector<4x128xbf16>,
    %c0_36 = arith.constant 0 : index
    %c0_37 = arith.constant 0 : index
    %c6 = arith.constant 6 : index
    %c0_38 = arith.constant 0 : index
    %24 = vector.load %arg1[%c0_36, %c0_37, %c6, %c0_38] : memref<2x4x25x128xbf16, #tpu.memory_space<vmem>>, vector<1x1x4x128xbf16>
    %25 = vector.shape_cast %24 : vector<1x1x4x128xbf16> to vector<4x128xbf16>
    %c0_39 = arith.constant 0 : index
    %c1024 = arith.constant 1024 : index
    %26 = vector.load %arg5[%c0_39, %c1024] : memref<32x1152xbf16, #tpu.memory_space<vmem>>, vector<4x128xbf16>
    tpu.vector_store %arg5[%c0_39, %c1024], %25 {strides = array<i32>} : memref<32x1152xbf16, #tpu.memory_space<vmem>>, vector<4x128xbf16>,
    %c0_40 = arith.constant 0 : index
    %c0_41 = arith.constant 0 : index
    %c5_42 = arith.constant 5 : index
    %c0_43 = arith.constant 0 : index
    %27 = vector.load %arg1[%c0_40, %c0_41, %c5_42, %c0_43] : memref<2x4x25x128xbf16, #tpu.memory_space<vmem>>, vector<1x1x4x128xbf16>
    %28 = vector.shape_cast %27 : vector<1x1x4x128xbf16> to vector<4x128xbf16>
    %c4 = arith.constant 4 : index
    %c0_44 = arith.constant 0 : index
    %29 = vector.load %arg5[%c4, %c0_44] : memref<32x1152xbf16, #tpu.memory_space<vmem>>, vector<4x128xbf16>
    tpu.vector_store %arg5[%c4, %c0_44], %28 {strides = array<i32>} : memref<32x1152xbf16, #tpu.memory_space<vmem>>, vector<4x128xbf16>,
    %c0_45 = arith.constant 0 : index
    %c1_46 = arith.constant 1 : index
    %c5_47 = arith.constant 5 : index
    %c0_48 = arith.constant 0 : index
    %30 = vector.load %arg1[%c0_45, %c1_46, %c5_47, %c0_48] : memref<2x4x25x128xbf16, #tpu.memory_space<vmem>>, vector<1x1x4x128xbf16>
    %31 = vector.shape_cast %30 : vector<1x1x4x128xbf16> to vector<4x128xbf16>
    %c4_49 = arith.constant 4 : index
    %c128_50 = arith.constant 128 : index
    %32 = vector.load %arg5[%c4_49, %c128_50] : memref<32x1152xbf16, #tpu.memory_space<vmem>>, vector<4x128xbf16>
    tpu.vector_store %arg5[%c4_49, %c128_50], %31 {strides = array<i32>} : memref<32x1152xbf16, #tpu.memory_space<vmem>>, vector<4x128xbf16>,
    %c0_51 = arith.constant 0 : index
    %c0_52 = arith.constant 0 : index
    %c6_53 = arith.constant 6 : index
    %c0_54 = arith.constant 0 : index
    %33 = vector.load %arg1[%c0_51, %c0_52, %c6_53, %c0_54] : memref<2x4x25x128xbf16, #tpu.memory_space<vmem>>, vector<1x1x4x128xbf16>
    %34 = vector.shape_cast %33 : vector<1x1x4x128xbf16> to vector<4x128xbf16>
    %c4_55 = arith.constant 4 : index
    %c256_56 = arith.constant 256 : index
    %35 = vector.load %arg5[%c4_55, %c256_56] : memref<32x1152xbf16, #tpu.memory_space<vmem>>, vector<4x128xbf16>
    tpu.vector_store %arg5[%c4_55, %c256_56], %34 {strides = array<i32>} : memref<32x1152xbf16, #tpu.memory_space<vmem>>, vector<4x128xbf16>,
    %c0_57 = arith.constant 0 : index
    %c2_58 = arith.constant 2 : index
    %c5_59 = arith.constant 5 : index
    %c0_60 = arith.constant 0 : index
    %36 = vector.load %arg1[%c0_57, %c2_58, %c5_59, %c0_60] : memref<2x4x25x128xbf16, #tpu.memory_space<vmem>>, vector<1x1x4x128xbf16>
    %37 = vector.shape_cast %36 : vector<1x1x4x128xbf16> to vector<4x128xbf16>
    %c4_61 = arith.constant 4 : index
    %c384_62 = arith.constant 384 : index
    %38 = vector.load %arg5[%c4_61, %c384_62] : memref<32x1152xbf16, #tpu.memory_space<vmem>>, vector<4x128xbf16>
    tpu.vector_store %arg5[%c4_61, %c384_62], %37 {strides = array<i32>} : memref<32x1152xbf16, #tpu.memory_space<vmem>>, vector<4x128xbf16>,
    %c0_63 = arith.constant 0 : index
    %c3_64 = arith.constant 3 : index
    %c5_65 = arith.constant 5 : index
    %c0_66 = arith.constant 0 : index
    %39 = vector.load %arg1[%c0_63, %c3_64, %c5_65, %c0_66] : memref<2x4x25x128xbf16, #tpu.memory_space<vmem>>, vector<1x1x4x128xbf16>
    %40 = vector.shape_cast %39 : vector<1x1x4x128xbf16> to vector<4x128xbf16>
    %c4_67 = arith.constant 4 : index
    %c512_68 = arith.constant 512 : index
    %41 = vector.load %arg5[%c4_67, %c512_68] : memref<32x1152xbf16, #tpu.memory_space<vmem>>, vector<4x128xbf16>
    tpu.vector_store %arg5[%c4_67, %c512_68], %40 {strides = array<i32>} : memref<32x1152xbf16, #tpu.memory_space<vmem>>, vector<4x128xbf16>,
    %c0_69 = arith.constant 0 : index
    %c2_70 = arith.constant 2 : index
    %c6_71 = arith.constant 6 : index
    %c0_72 = arith.constant 0 : index
    %42 = vector.load %arg1[%c0_69, %c2_70, %c6_71, %c0_72] : memref<2x4x25x128xbf16, #tpu.memory_space<vmem>>, vector<1x1x4x128xbf16>
    %43 = vector.shape_cast %42 : vector<1x1x4x128xbf16> to vector<4x128xbf16>
    %c4_73 = arith.constant 4 : index
    %c640_74 = arith.constant 640 : index
    %44 = vector.load %arg5[%c4_73, %c640_74] : memref<32x1152xbf16, #tpu.memory_space<vmem>>, vector<4x128xbf16>
    tpu.vector_store %arg5[%c4_73, %c640_74], %43 {strides = array<i32>} : memref<32x1152xbf16, #tpu.memory_space<vmem>>, vector<4x128xbf16>,
    %c0_75 = arith.constant 0 : index
    %c0_76 = arith.constant 0 : index
    %c10 = arith.constant 10 : index
    %c0_77 = arith.constant 0 : index
    %45 = vector.load %arg1[%c0_75, %c0_76, %c10, %c0_77] : memref<2x4x25x128xbf16, #tpu.memory_space<vmem>>, vector<1x1x4x128xbf16>
    %46 = vector.shape_cast %45 : vector<1x1x4x128xbf16> to vector<4x128xbf16>
    %c4_78 = arith.constant 4 : index
    %c768_79 = arith.constant 768 : index
    %47 = vector.load %arg5[%c4_78, %c768_79] : memref<32x1152xbf16, #tpu.memory_space<vmem>>, vector<4x128xbf16>
    tpu.vector_store %arg5[%c4_78, %c768_79], %46 {strides = array<i32>} : memref<32x1152xbf16, #tpu.memory_space<vmem>>, vector<4x128xbf16>,
    %c0_80 = arith.constant 0 : index
    %c1_81 = arith.constant 1 : index
    %c10_82 = arith.constant 10 : index
    %c0_83 = arith.constant 0 : index
    %48 = vector.load %arg1[%c0_80, %c1_81, %c10_82, %c0_83] : memref<2x4x25x128xbf16, #tpu.memory_space<vmem>>, vector<1x1x4x128xbf16>
    %49 = vector.shape_cast %48 : vector<1x1x4x128xbf16> to vector<4x128xbf16>
    %c4_84 = arith.constant 4 : index
    %c896_85 = arith.constant 896 : index
    %50 = vector.load %arg5[%c4_84, %c896_85] : memref<32x1152xbf16, #tpu.memory_space<vmem>>, vector<4x128xbf16>
    tpu.vector_store %arg5[%c4_84, %c896_85], %49 {strides = array<i32>} : memref<32x1152xbf16, #tpu.memory_space<vmem>>, vector<4x128xbf16>,
    %c0_86 = arith.constant 0 : index
    %c0_87 = arith.constant 0 : index
    %c11 = arith.constant 11 : index
    %c0_88 = arith.constant 0 : index
    %51 = vector.load %arg1[%c0_86, %c0_87, %c11, %c0_88] : memref<2x4x25x128xbf16, #tpu.memory_space<vmem>>, vector<1x1x4x128xbf16>
    %52 = vector.shape_cast %51 : vector<1x1x4x128xbf16> to vector<4x128xbf16>
    %c4_89 = arith.constant 4 : index
    %c1024_90 = arith.constant 1024 : index
    %53 = vector.load %arg5[%c4_89, %c1024_90] : memref<32x1152xbf16, #tpu.memory_space<vmem>>, vector<4x128xbf16>
    tpu.vector_store %arg5[%c4_89, %c1024_90], %52 {strides = array<i32>} : memref<32x1152xbf16, #tpu.memory_space<vmem>>, vector<4x128xbf16>,
    %c0_91 = arith.constant 0 : index
    %c0_92 = arith.constant 0 : index
    %c10_93 = arith.constant 10 : index
    %c0_94 = arith.constant 0 : index
    %54 = vector.load %arg1[%c0_91, %c0_92, %c10_93, %c0_94] : memref<2x4x25x128xbf16, #tpu.memory_space<vmem>>, vector<1x1x4x128xbf16>
    %55 = vector.shape_cast %54 : vector<1x1x4x128xbf16> to vector<4x128xbf16>
    %c8 = arith.constant 8 : index
    %c0_95 = arith.constant 0 : index
    %56 = vector.load %arg5[%c8, %c0_95] : memref<32x1152xbf16, #tpu.memory_space<vmem>>, vector<4x128xbf16>
    tpu.vector_store %arg5[%c8, %c0_95], %55 {strides = array<i32>} : memref<32x1152xbf16, #tpu.memory_space<vmem>>, vector<4x128xbf16>,
    %c0_96 = arith.constant 0 : index
    %c1_97 = arith.constant 1 : index
    %c10_98 = arith.constant 10 : index
    %c0_99 = arith.constant 0 : index
    %57 = vector.load %arg1[%c0_96, %c1_97, %c10_98, %c0_99] : memref<2x4x25x128xbf16, #tpu.memory_space<vmem>>, vector<1x1x4x128xbf16>
    %58 = vector.shape_cast %57 : vector<1x1x4x128xbf16> to vector<4x128xbf16>
    %c8_100 = arith.constant 8 : index
    %c128_101 = arith.constant 128 : index
    %59 = vector.load %arg5[%c8_100, %c128_101] : memref<32x1152xbf16, #tpu.memory_space<vmem>>, vector<4x128xbf16>
    tpu.vector_store %arg5[%c8_100, %c128_101], %58 {strides = array<i32>} : memref<32x1152xbf16, #tpu.memory_space<vmem>>, vector<4x128xbf16>,
    %c0_102 = arith.constant 0 : index
    %c0_103 = arith.constant 0 : index
    %c11_104 = arith.constant 11 : index
    %c0_105 = arith.constant 0 : index
    %60 = vector.load %arg1[%c0_102, %c0_103, %c11_104, %c0_105] : memref<2x4x25x128xbf16, #tpu.memory_space<vmem>>, vector<1x1x4x128xbf16>
    %61 = vector.shape_cast %60 : vector<1x1x4x128xbf16> to vector<4x128xbf16>
    %c8_106 = arith.constant 8 : index
    %c256_107 = arith.constant 256 : index
    %62 = vector.load %arg5[%c8_106, %c256_107] : memref<32x1152xbf16, #tpu.memory_space<vmem>>, vector<4x128xbf16>
    tpu.vector_store %arg5[%c8_106, %c256_107], %61 {strides = array<i32>} : memref<32x1152xbf16, #tpu.memory_space<vmem>>, vector<4x128xbf16>,
    %c0_108 = arith.constant 0 : index
    %c2_109 = arith.constant 2 : index
    %c10_110 = arith.constant 10 : index
    %c0_111 = arith.constant 0 : index
    %63 = vector.load %arg1[%c0_108, %c2_109, %c10_110, %c0_111] : memref<2x4x25x128xbf16, #tpu.memory_space<vmem>>, vector<1x1x4x128xbf16>
    %64 = vector.shape_cast %63 : vector<1x1x4x128xbf16> to vector<4x128xbf16>
    %c8_112 = arith.constant 8 : index
    %c384_113 = arith.constant 384 : index
    %65 = vector.load %arg5[%c8_112, %c384_113] : memref<32x1152xbf16, #tpu.memory_space<vmem>>, vector<4x128xbf16>
    tpu.vector_store %arg5[%c8_112, %c384_113], %64 {strides = array<i32>} : memref<32x1152xbf16, #tpu.memory_space<vmem>>, vector<4x128xbf16>,
    %c0_114 = arith.constant 0 : index
    %c3_115 = arith.constant 3 : index
    %c10_116 = arith.constant 10 : index
    %c0_117 = arith.constant 0 : index
    %66 = vector.load %arg1[%c0_114, %c3_115, %c10_116, %c0_117] : memref<2x4x25x128xbf16, #tpu.memory_space<vmem>>, vector<1x1x4x128xbf16>
    %67 = vector.shape_cast %66 : vector<1x1x4x128xbf16> to vector<4x128xbf16>
    %c8_118 = arith.constant 8 : index
    %c512_119 = arith.constant 512 : index
    %68 = vector.load %arg5[%c8_118, %c512_119] : memref<32x1152xbf16, #tpu.memory_space<vmem>>, vector<4x128xbf16>
    tpu.vector_store %arg5[%c8_118, %c512_119], %67 {strides = array<i32>} : memref<32x1152xbf16, #tpu.memory_space<vmem>>, vector<4x128xbf16>,
    %c0_120 = arith.constant 0 : index
    %c2_121 = arith.constant 2 : index
    %c11_122 = arith.constant 11 : index
    %c0_123 = arith.constant 0 : index
    %69 = vector.load %arg1[%c0_120, %c2_121, %c11_122, %c0_123] : memref<2x4x25x128xbf16, #tpu.memory_space<vmem>>, vector<1x1x4x128xbf16>
    %70 = vector.shape_cast %69 : vector<1x1x4x128xbf16> to vector<4x128xbf16>
    %c8_124 = arith.constant 8 : index
    %c640_125 = arith.constant 640 : index
    %71 = vector.load %arg5[%c8_124, %c640_125] : memref<32x1152xbf16, #tpu.memory_space<vmem>>, vector<4x128xbf16>
    tpu.vector_store %arg5[%c8_124, %c640_125], %70 {strides = array<i32>} : memref<32x1152xbf16, #tpu.memory_space<vmem>>, vector<4x128xbf16>,
    %c0_126 = arith.constant 0 : index
    %c0_127 = arith.constant 0 : index
    %c15 = arith.constant 15 : index
    %c0_128 = arith.constant 0 : index
    %72 = vector.load %arg1[%c0_126, %c0_127, %c15, %c0_128] : memref<2x4x25x128xbf16, #tpu.memory_space<vmem>>, vector<1x1x4x128xbf16>
    %73 = vector.shape_cast %72 : vector<1x1x4x128xbf16> to vector<4x128xbf16>
    %c8_129 = arith.constant 8 : index
    %c768_130 = arith.constant 768 : index
    %74 = vector.load %arg5[%c8_129, %c768_130] : memref<32x1152xbf16, #tpu.memory_space<vmem>>, vector<4x128xbf16>
    tpu.vector_store %arg5[%c8_129, %c768_130], %73 {strides = array<i32>} : memref<32x1152xbf16, #tpu.memory_space<vmem>>, vector<4x128xbf16>,
    %c0_131 = arith.constant 0 : index
    %c1_132 = arith.constant 1 : index
    %c15_133 = arith.constant 15 : index
    %c0_134 = arith.constant 0 : index
    %75 = vector.load %arg1[%c0_131, %c1_132, %c15_133, %c0_134] : memref<2x4x25x128xbf16, #tpu.memory_space<vmem>>, vector<1x1x4x128xbf16>
    %76 = vector.shape_cast %75 : vector<1x1x4x128xbf16> to vector<4x128xbf16>
    %c8_135 = arith.constant 8 : index
    %c896_136 = arith.constant 896 : index
    %77 = vector.load %arg5[%c8_135, %c896_136] : memref<32x1152xbf16, #tpu.memory_space<vmem>>, vector<4x128xbf16>
    tpu.vector_store %arg5[%c8_135, %c896_136], %76 {strides = array<i32>} : memref<32x1152xbf16, #tpu.memory_space<vmem>>, vector<4x128xbf16>,
    %c0_137 = arith.constant 0 : index
    %c0_138 = arith.constant 0 : index
    %c16 = arith.constant 16 : index
    %c0_139 = arith.constant 0 : index
    %78 = vector.load %arg1[%c0_137, %c0_138, %c16, %c0_139] : memref<2x4x25x128xbf16, #tpu.memory_space<vmem>>, vector<1x1x4x128xbf16>
    %79 = vector.shape_cast %78 : vector<1x1x4x128xbf16> to vector<4x128xbf16>
    %c8_140 = arith.constant 8 : index
    %c1024_141 = arith.constant 1024 : index
    %80 = vector.load %arg5[%c8_140, %c1024_141] : memref<32x1152xbf16, #tpu.memory_space<vmem>>, vector<4x128xbf16>
    tpu.vector_store %arg5[%c8_140, %c1024_141], %79 {strides = array<i32>} : memref<32x1152xbf16, #tpu.memory_space<vmem>>, vector<4x128xbf16>,
    %c0_142 = arith.constant 0 : index
    %c0_143 = arith.constant 0 : index
    %c15_144 = arith.constant 15 : index
    %c0_145 = arith.constant 0 : index
    %81 = vector.load %arg1[%c0_142, %c0_143, %c15_144, %c0_145] : memref<2x4x25x128xbf16, #tpu.memory_space<vmem>>, vector<1x1x4x128xbf16>
    %82 = vector.shape_cast %81 : vector<1x1x4x128xbf16> to vector<4x128xbf16>
    %c12 = arith.constant 12 : index
    %c0_146 = arith.constant 0 : index
    %83 = vector.load %arg5[%c12, %c0_146] : memref<32x1152xbf16, #tpu.memory_space<vmem>>, vector<4x128xbf16>
    tpu.vector_store %arg5[%c12, %c0_146], %82 {strides = array<i32>} : memref<32x1152xbf16, #tpu.memory_space<vmem>>, vector<4x128xbf16>,
    %c0_147 = arith.constant 0 : index
    %c1_148 = arith.constant 1 : index
    %c15_149 = arith.constant 15 : index
    %c0_150 = arith.constant 0 : index
    %84 = vector.load %arg1[%c0_147, %c1_148, %c15_149, %c0_150] : memref<2x4x25x128xbf16, #tpu.memory_space<vmem>>, vector<1x1x4x128xbf16>
    %85 = vector.shape_cast %84 : vector<1x1x4x128xbf16> to vector<4x128xbf16>
    %c12_151 = arith.constant 12 : index
    %c128_152 = arith.constant 128 : index
    %86 = vector.load %arg5[%c12_151, %c128_152] : memref<32x1152xbf16, #tpu.memory_space<vmem>>, vector<4x128xbf16>
    tpu.vector_store %arg5[%c12_151, %c128_152], %85 {strides = array<i32>} : memref<32x1152xbf16, #tpu.memory_space<vmem>>, vector<4x128xbf16>,
    %c0_153 = arith.constant 0 : index
    %c0_154 = arith.constant 0 : index
    %c16_155 = arith.constant 16 : index
    %c0_156 = arith.constant 0 : index
    %87 = vector.load %arg1[%c0_153, %c0_154, %c16_155, %c0_156] : memref<2x4x25x128xbf16, #tpu.memory_space<vmem>>, vector<1x1x4x128xbf16>
    %88 = vector.shape_cast %87 : vector<1x1x4x128xbf16> to vector<4x128xbf16>
    %c12_157 = arith.constant 12 : index
    %c256_158 = arith.constant 256 : index
    %89 = vector.load %arg5[%c12_157, %c256_158] : memref<32x1152xbf16, #tpu.memory_space<vmem>>, vector<4x128xbf16>
    tpu.vector_store %arg5[%c12_157, %c256_158], %88 {strides = array<i32>} : memref<32x1152xbf16, #tpu.memory_space<vmem>>, vector<4x128xbf16>,
    %c0_159 = arith.constant 0 : index
    %c2_160 = arith.constant 2 : index
    %c15_161 = arith.constant 15 : index
    %c0_162 = arith.constant 0 : index
    %90 = vector.load %arg1[%c0_159, %c2_160, %c15_161, %c0_162] : memref<2x4x25x128xbf16, #tpu.memory_space<vmem>>, vector<1x1x4x128xbf16>
    %91 = vector.shape_cast %90 : vector<1x1x4x128xbf16> to vector<4x128xbf16>
    %c12_163 = arith.constant 12 : index
    %c384_164 = arith.constant 384 : index
    %92 = vector.load %arg5[%c12_163, %c384_164] : memref<32x1152xbf16, #tpu.memory_space<vmem>>, vector<4x128xbf16>
    tpu.vector_store %arg5[%c12_163, %c384_164], %91 {strides = array<i32>} : memref<32x1152xbf16, #tpu.memory_space<vmem>>, vector<4x128xbf16>,
    %c0_165 = arith.constant 0 : index
    %c3_166 = arith.constant 3 : index
    %c15_167 = arith.constant 15 : index
    %c0_168 = arith.constant 0 : index
    %93 = vector.load %arg1[%c0_165, %c3_166, %c15_167, %c0_168] : memref<2x4x25x128xbf16, #tpu.memory_space<vmem>>, vector<1x1x4x128xbf16>
    %94 = vector.shape_cast %93 : vector<1x1x4x128xbf16> to vector<4x128xbf16>
    %c12_169 = arith.constant 12 : index
    %c512_170 = arith.constant 512 : index
    %95 = vector.load %arg5[%c12_169, %c512_170] : memref<32x1152xbf16, #tpu.memory_space<vmem>>, vector<4x128xbf16>
    tpu.vector_store %arg5[%c12_169, %c512_170], %94 {strides = array<i32>} : memref<32x1152xbf16, #tpu.memory_space<vmem>>, vector<4x128xbf16>,
    %c0_171 = arith.constant 0 : index
    %c2_172 = arith.constant 2 : index
    %c16_173 = arith.constant 16 : index
    %c0_174 = arith.constant 0 : index
    %96 = vector.load %arg1[%c0_171, %c2_172, %c16_173, %c0_174] : memref<2x4x25x128xbf16, #tpu.memory_space<vmem>>, vector<1x1x4x128xbf16>
    %97 = vector.shape_cast %96 : vector<1x1x4x128xbf16> to vector<4x128xbf16>
    %c12_175 = arith.constant 12 : index
    %c640_176 = arith.constant 640 : index
    %98 = vector.load %arg5[%c12_175, %c640_176] : memref<32x1152xbf16, #tpu.memory_space<vmem>>, vector<4x128xbf16>
    tpu.vector_store %arg5[%c12_175, %c640_176], %97 {strides = array<i32>} : memref<32x1152xbf16, #tpu.memory_space<vmem>>, vector<4x128xbf16>,
    %c0_177 = arith.constant 0 : index
    %c0_178 = arith.constant 0 : index
    %c20 = arith.constant 20 : index
    %c0_179 = arith.constant 0 : index
    %99 = vector.load %arg1[%c0_177, %c0_178, %c20, %c0_179] : memref<2x4x25x128xbf16, #tpu.memory_space<vmem>>, vector<1x1x4x128xbf16>
    %100 = vector.shape_cast %99 : vector<1x1x4x128xbf16> to vector<4x128xbf16>
    %c12_180 = arith.constant 12 : index
    %c768_181 = arith.constant 768 : index
    %101 = vector.load %arg5[%c12_180, %c768_181] : memref<32x1152xbf16, #tpu.memory_space<vmem>>, vector<4x128xbf16>
    tpu.vector_store %arg5[%c12_180, %c768_181], %100 {strides = array<i32>} : memref<32x1152xbf16, #tpu.memory_space<vmem>>, vector<4x128xbf16>,
    %c0_182 = arith.constant 0 : index
    %c1_183 = arith.constant 1 : index
    %c20_184 = arith.constant 20 : index
    %c0_185 = arith.constant 0 : index
    %102 = vector.load %arg1[%c0_182, %c1_183, %c20_184, %c0_185] : memref<2x4x25x128xbf16, #tpu.memory_space<vmem>>, vector<1x1x4x128xbf16>
    %103 = vector.shape_cast %102 : vector<1x1x4x128xbf16> to vector<4x128xbf16>
    %c12_186 = arith.constant 12 : index
    %c896_187 = arith.constant 896 : index
    %104 = vector.load %arg5[%c12_186, %c896_187] : memref<32x1152xbf16, #tpu.memory_space<vmem>>, vector<4x128xbf16>
    tpu.vector_store %arg5[%c12_186, %c896_187], %103 {strides = array<i32>} : memref<32x1152xbf16, #tpu.memory_space<vmem>>, vector<4x128xbf16>,
    %c0_188 = arith.constant 0 : index
    %c0_189 = arith.constant 0 : index
    %c21 = arith.constant 21 : index
    %c0_190 = arith.constant 0 : index
    %105 = vector.load %arg1[%c0_188, %c0_189, %c21, %c0_190] : memref<2x4x25x128xbf16, #tpu.memory_space<vmem>>, vector<1x1x4x128xbf16>
    %106 = vector.shape_cast %105 : vector<1x1x4x128xbf16> to vector<4x128xbf16>
    %c12_191 = arith.constant 12 : index
    %c1024_192 = arith.constant 1024 : index
    %107 = vector.load %arg5[%c12_191, %c1024_192] : memref<32x1152xbf16, #tpu.memory_space<vmem>>, vector<4x128xbf16>
    tpu.vector_store %arg5[%c12_191, %c1024_192], %106 {strides = array<i32>} : memref<32x1152xbf16, #tpu.memory_space<vmem>>, vector<4x128xbf16>,
    %c1_193 = arith.constant 1 : index
    %c0_194 = arith.constant 0 : index
    %c0_195 = arith.constant 0 : index
    %c0_196 = arith.constant 0 : index
    %108 = vector.load %arg1[%c1_193, %c0_194, %c0_195, %c0_196] : memref<2x4x25x128xbf16, #tpu.memory_space<vmem>>, vector<1x1x4x128xbf16>
    %109 = vector.shape_cast %108 : vector<1x1x4x128xbf16> to vector<4x128xbf16>
    %c16_197 = arith.constant 16 : index
    %c0_198 = arith.constant 0 : index
    %110 = vector.load %arg5[%c16_197, %c0_198] : memref<32x1152xbf16, #tpu.memory_space<vmem>>, vector<4x128xbf16>
    tpu.vector_store %arg5[%c16_197, %c0_198], %109 {strides = array<i32>} : memref<32x1152xbf16, #tpu.memory_space<vmem>>, vector<4x128xbf16>,
    %c1_199 = arith.constant 1 : index
    %c1_200 = arith.constant 1 : index
    %c0_201 = arith.constant 0 : index
    %c0_202 = arith.constant 0 : index
    %111 = vector.load %arg1[%c1_199, %c1_200, %c0_201, %c0_202] : memref<2x4x25x128xbf16, #tpu.memory_space<vmem>>, vector<1x1x4x128xbf16>
    %112 = vector.shape_cast %111 : vector<1x1x4x128xbf16> to vector<4x128xbf16>
    %c16_203 = arith.constant 16 : index
    %c128_204 = arith.constant 128 : index
    %113 = vector.load %arg5[%c16_203, %c128_204] : memref<32x1152xbf16, #tpu.memory_space<vmem>>, vector<4x128xbf16>
    tpu.vector_store %arg5[%c16_203, %c128_204], %112 {strides = array<i32>} : memref<32x1152xbf16, #tpu.memory_space<vmem>>, vector<4x128xbf16>,
    %c1_205 = arith.constant 1 : index
    %c0_206 = arith.constant 0 : index
    %c1_207 = arith.constant 1 : index
    %c0_208 = arith.constant 0 : index
    %114 = vector.load %arg1[%c1_205, %c0_206, %c1_207, %c0_208] : memref<2x4x25x128xbf16, #tpu.memory_space<vmem>>, vector<1x1x4x128xbf16>
    %115 = vector.shape_cast %114 : vector<1x1x4x128xbf16> to vector<4x128xbf16>
    %c16_209 = arith.constant 16 : index
    %c256_210 = arith.constant 256 : index
    %116 = vector.load %arg5[%c16_209, %c256_210] : memref<32x1152xbf16, #tpu.memory_space<vmem>>, vector<4x128xbf16>
    tpu.vector_store %arg5[%c16_209, %c256_210], %115 {strides = array<i32>} : memref<32x1152xbf16, #tpu.memory_space<vmem>>, vector<4x128xbf16>,
    %c1_211 = arith.constant 1 : index
    %c2_212 = arith.constant 2 : index
    %c0_213 = arith.constant 0 : index
    %c0_214 = arith.constant 0 : index
    %117 = vector.load %arg1[%c1_211, %c2_212, %c0_213, %c0_214] : memref<2x4x25x128xbf16, #tpu.memory_space<vmem>>, vector<1x1x4x128xbf16>
    %118 = vector.shape_cast %117 : vector<1x1x4x128xbf16> to vector<4x128xbf16>
    %c16_215 = arith.constant 16 : index
    %c384_216 = arith.constant 384 : index
    %119 = vector.load %arg5[%c16_215, %c384_216] : memref<32x1152xbf16, #tpu.memory_space<vmem>>, vector<4x128xbf16>
    tpu.vector_store %arg5[%c16_215, %c384_216], %118 {strides = array<i32>} : memref<32x1152xbf16, #tpu.memory_space<vmem>>, vector<4x128xbf16>,
    %c1_217 = arith.constant 1 : index
    %c3_218 = arith.constant 3 : index
    %c0_219 = arith.constant 0 : index
    %c0_220 = arith.constant 0 : index
    %120 = vector.load %arg1[%c1_217, %c3_218, %c0_219, %c0_220] : memref<2x4x25x128xbf16, #tpu.memory_space<vmem>>, vector<1x1x4x128xbf16>
    %121 = vector.shape_cast %120 : vector<1x1x4x128xbf16> to vector<4x128xbf16>
    %c16_221 = arith.constant 16 : index
    %c512_222 = arith.constant 512 : index
    %122 = vector.load %arg5[%c16_221, %c512_222] : memref<32x1152xbf16, #tpu.memory_space<vmem>>, vector<4x128xbf16>
    tpu.vector_store %arg5[%c16_221, %c512_222], %121 {strides = array<i32>} : memref<32x1152xbf16, #tpu.memory_space<vmem>>, vector<4x128xbf16>,
    %c1_223 = arith.constant 1 : index
    %c2_224 = arith.constant 2 : index
    %c1_225 = arith.constant 1 : index
    %c0_226 = arith.constant 0 : index
    %123 = vector.load %arg1[%c1_223, %c2_224, %c1_225, %c0_226] : memref<2x4x25x128xbf16, #tpu.memory_space<vmem>>, vector<1x1x4x128xbf16>
    %124 = vector.shape_cast %123 : vector<1x1x4x128xbf16> to vector<4x128xbf16>
    %c16_227 = arith.constant 16 : index
    %c640_228 = arith.constant 640 : index
    %125 = vector.load %arg5[%c16_227, %c640_228] : memref<32x1152xbf16, #tpu.memory_space<vmem>>, vector<4x128xbf16>
    tpu.vector_store %arg5[%c16_227, %c640_228], %124 {strides = array<i32>} : memref<32x1152xbf16, #tpu.memory_space<vmem>>, vector<4x128xbf16>,
    %c1_229 = arith.constant 1 : index
    %c0_230 = arith.constant 0 : index
    %c5_231 = arith.constant 5 : index
    %c0_232 = arith.constant 0 : index
    %126 = vector.load %arg1[%c1_229, %c0_230, %c5_231, %c0_232] : memref<2x4x25x128xbf16, #tpu.memory_space<vmem>>, vector<1x1x4x128xbf16>
    %127 = vector.shape_cast %126 : vector<1x1x4x128xbf16> to vector<4x128xbf16>
    %c16_233 = arith.constant 16 : index
    %c768_234 = arith.constant 768 : index
    %128 = vector.load %arg5[%c16_233, %c768_234] : memref<32x1152xbf16, #tpu.memory_space<vmem>>, vector<4x128xbf16>
    tpu.vector_store %arg5[%c16_233, %c768_234], %127 {strides = array<i32>} : memref<32x1152xbf16, #tpu.memory_space<vmem>>, vector<4x128xbf16>,
    %c1_235 = arith.constant 1 : index
    %c1_236 = arith.constant 1 : index
    %c5_237 = arith.constant 5 : index
    %c0_238 = arith.constant 0 : index
    %129 = vector.load %arg1[%c1_235, %c1_236, %c5_237, %c0_238] : memref<2x4x25x128xbf16, #tpu.memory_space<vmem>>, vector<1x1x4x128xbf16>
    %130 = vector.shape_cast %129 : vector<1x1x4x128xbf16> to vector<4x128xbf16>
    %c16_239 = arith.constant 16 : index
    %c896_240 = arith.constant 896 : index
    %131 = vector.load %arg5[%c16_239, %c896_240] : memref<32x1152xbf16, #tpu.memory_space<vmem>>, vector<4x128xbf16>
    tpu.vector_store %arg5[%c16_239, %c896_240], %130 {strides = array<i32>} : memref<32x1152xbf16, #tpu.memory_space<vmem>>, vector<4x128xbf16>,
    %c1_241 = arith.constant 1 : index
    %c0_242 = arith.constant 0 : index
    %c6_243 = arith.constant 6 : index
    %c0_244 = arith.constant 0 : index
    %132 = vector.load %arg1[%c1_241, %c0_242, %c6_243, %c0_244] : memref<2x4x25x128xbf16, #tpu.memory_space<vmem>>, vector<1x1x4x128xbf16>
    %133 = vector.shape_cast %132 : vector<1x1x4x128xbf16> to vector<4x128xbf16>
    %c16_245 = arith.constant 16 : index
    %c1024_246 = arith.constant 1024 : index
    %134 = vector.load %arg5[%c16_245, %c1024_246] : memref<32x1152xbf16, #tpu.memory_space<vmem>>, vector<4x128xbf16>
    tpu.vector_store %arg5[%c16_245, %c1024_246], %133 {strides = array<i32>} : memref<32x1152xbf16, #tpu.memory_space<vmem>>, vector<4x128xbf16>,
    %c1_247 = arith.constant 1 : index
    %c0_248 = arith.constant 0 : index
    %c5_249 = arith.constant 5 : index
    %c0_250 = arith.constant 0 : index
    %135 = vector.load %arg1[%c1_247, %c0_248, %c5_249, %c0_250] : memref<2x4x25x128xbf16, #tpu.memory_space<vmem>>, vector<1x1x4x128xbf16>
    %136 = vector.shape_cast %135 : vector<1x1x4x128xbf16> to vector<4x128xbf16>
    %c20_251 = arith.constant 20 : index
    %c0_252 = arith.constant 0 : index
    %137 = vector.load %arg5[%c20_251, %c0_252] : memref<32x1152xbf16, #tpu.memory_space<vmem>>, vector<4x128xbf16>
    tpu.vector_store %arg5[%c20_251, %c0_252], %136 {strides = array<i32>} : memref<32x1152xbf16, #tpu.memory_space<vmem>>, vector<4x128xbf16>,
    %c1_253 = arith.constant 1 : index
    %c1_254 = arith.constant 1 : index
    %c5_255 = arith.constant 5 : index
    %c0_256 = arith.constant 0 : index
    %138 = vector.load %arg1[%c1_253, %c1_254, %c5_255, %c0_256] : memref<2x4x25x128xbf16, #tpu.memory_space<vmem>>, vector<1x1x4x128xbf16>
    %139 = vector.shape_cast %138 : vector<1x1x4x128xbf16> to vector<4x128xbf16>
    %c20_257 = arith.constant 20 : index
    %c128_258 = arith.constant 128 : index
    %140 = vector.load %arg5[%c20_257, %c128_258] : memref<32x1152xbf16, #tpu.memory_space<vmem>>, vector<4x128xbf16>
    tpu.vector_store %arg5[%c20_257, %c128_258], %139 {strides = array<i32>} : memref<32x1152xbf16, #tpu.memory_space<vmem>>, vector<4x128xbf16>,
    %c1_259 = arith.constant 1 : index
    %c0_260 = arith.constant 0 : index
    %c6_261 = arith.constant 6 : index
    %c0_262 = arith.constant 0 : index
    %141 = vector.load %arg1[%c1_259, %c0_260, %c6_261, %c0_262] : memref<2x4x25x128xbf16, #tpu.memory_space<vmem>>, vector<1x1x4x128xbf16>
    %142 = vector.shape_cast %141 : vector<1x1x4x128xbf16> to vector<4x128xbf16>
    %c20_263 = arith.constant 20 : index
    %c256_264 = arith.constant 256 : index
    %143 = vector.load %arg5[%c20_263, %c256_264] : memref<32x1152xbf16, #tpu.memory_space<vmem>>, vector<4x128xbf16>
    tpu.vector_store %arg5[%c20_263, %c256_264], %142 {strides = array<i32>} : memref<32x1152xbf16, #tpu.memory_space<vmem>>, vector<4x128xbf16>,
    %c1_265 = arith.constant 1 : index
    %c2_266 = arith.constant 2 : index
    %c5_267 = arith.constant 5 : index
    %c0_268 = arith.constant 0 : index
    %144 = vector.load %arg1[%c1_265, %c2_266, %c5_267, %c0_268] : memref<2x4x25x128xbf16, #tpu.memory_space<vmem>>, vector<1x1x4x128xbf16>
    %145 = vector.shape_cast %144 : vector<1x1x4x128xbf16> to vector<4x128xbf16>
    %c20_269 = arith.constant 20 : index
    %c384_270 = arith.constant 384 : index
    %146 = vector.load %arg5[%c20_269, %c384_270] : memref<32x1152xbf16, #tpu.memory_space<vmem>>, vector<4x128xbf16>
    tpu.vector_store %arg5[%c20_269, %c384_270], %145 {strides = array<i32>} : memref<32x1152xbf16, #tpu.memory_space<vmem>>, vector<4x128xbf16>,
    %c1_271 = arith.constant 1 : index
    %c3_272 = arith.constant 3 : index
    %c5_273 = arith.constant 5 : index
    %c0_274 = arith.constant 0 : index
    %147 = vector.load %arg1[%c1_271, %c3_272, %c5_273, %c0_274] : memref<2x4x25x128xbf16, #tpu.memory_space<vmem>>, vector<1x1x4x128xbf16>
    %148 = vector.shape_cast %147 : vector<1x1x4x128xbf16> to vector<4x128xbf16>
    %c20_275 = arith.constant 20 : index
    %c512_276 = arith.constant 512 : index
    %149 = vector.load %arg5[%c20_275, %c512_276] : memref<32x1152xbf16, #tpu.memory_space<vmem>>, vector<4x128xbf16>
    tpu.vector_store %arg5[%c20_275, %c512_276], %148 {strides = array<i32>} : memref<32x1152xbf16, #tpu.memory_space<vmem>>, vector<4x128xbf16>,
    %c1_277 = arith.constant 1 : index
    %c2_278 = arith.constant 2 : index
    %c6_279 = arith.constant 6 : index
    %c0_280 = arith.constant 0 : index
    %150 = vector.load %arg1[%c1_277, %c2_278, %c6_279, %c0_280] : memref<2x4x25x128xbf16, #tpu.memory_space<vmem>>, vector<1x1x4x128xbf16>
    %151 = vector.shape_cast %150 : vector<1x1x4x128xbf16> to vector<4x128xbf16>
    %c20_281 = arith.constant 20 : index
    %c640_282 = arith.constant 640 : index
    %152 = vector.load %arg5[%c20_281, %c640_282] : memref<32x1152xbf16, #tpu.memory_space<vmem>>, vector<4x128xbf16>
    tpu.vector_store %arg5[%c20_281, %c640_282], %151 {strides = array<i32>} : memref<32x1152xbf16, #tpu.memory_space<vmem>>, vector<4x128xbf16>,
    %c1_283 = arith.constant 1 : index
    %c0_284 = arith.constant 0 : index
    %c10_285 = arith.constant 10 : index
    %c0_286 = arith.constant 0 : index
    %153 = vector.load %arg1[%c1_283, %c0_284, %c10_285, %c0_286] : memref<2x4x25x128xbf16, #tpu.memory_space<vmem>>, vector<1x1x4x128xbf16>
    %154 = vector.shape_cast %153 : vector<1x1x4x128xbf16> to vector<4x128xbf16>
    %c20_287 = arith.constant 20 : index
    %c768_288 = arith.constant 768 : index
    %155 = vector.load %arg5[%c20_287, %c768_288] : memref<32x1152xbf16, #tpu.memory_space<vmem>>, vector<4x128xbf16>
    tpu.vector_store %arg5[%c20_287, %c768_288], %154 {strides = array<i32>} : memref<32x1152xbf16, #tpu.memory_space<vmem>>, vector<4x128xbf16>,
    %c1_289 = arith.constant 1 : index
    %c1_290 = arith.constant 1 : index
    %c10_291 = arith.constant 10 : index
    %c0_292 = arith.constant 0 : index
    %156 = vector.load %arg1[%c1_289, %c1_290, %c10_291, %c0_292] : memref<2x4x25x128xbf16, #tpu.memory_space<vmem>>, vector<1x1x4x128xbf16>
    %157 = vector.shape_cast %156 : vector<1x1x4x128xbf16> to vector<4x128xbf16>
    %c20_293 = arith.constant 20 : index
    %c896_294 = arith.constant 896 : index
    %158 = vector.load %arg5[%c20_293, %c896_294] : memref<32x1152xbf16, #tpu.memory_space<vmem>>, vector<4x128xbf16>
    tpu.vector_store %arg5[%c20_293, %c896_294], %157 {strides = array<i32>} : memref<32x1152xbf16, #tpu.memory_space<vmem>>, vector<4x128xbf16>,
    %c1_295 = arith.constant 1 : index
    %c0_296 = arith.constant 0 : index
    %c11_297 = arith.constant 11 : index
    %c0_298 = arith.constant 0 : index
    %159 = vector.load %arg1[%c1_295, %c0_296, %c11_297, %c0_298] : memref<2x4x25x128xbf16, #tpu.memory_space<vmem>>, vector<1x1x4x128xbf16>
    %160 = vector.shape_cast %159 : vector<1x1x4x128xbf16> to vector<4x128xbf16>
    %c20_299 = arith.constant 20 : index
    %c1024_300 = arith.constant 1024 : index
    %161 = vector.load %arg5[%c20_299, %c1024_300] : memref<32x1152xbf16, #tpu.memory_space<vmem>>, vector<4x128xbf16>
    tpu.vector_store %arg5[%c20_299, %c1024_300], %160 {strides = array<i32>} : memref<32x1152xbf16, #tpu.memory_space<vmem>>, vector<4x128xbf16>,
    %c1_301 = arith.constant 1 : index
    %c0_302 = arith.constant 0 : index
    %c10_303 = arith.constant 10 : index
    %c0_304 = arith.constant 0 : index
    %162 = vector.load %arg1[%c1_301, %c0_302, %c10_303, %c0_304] : memref<2x4x25x128xbf16, #tpu.memory_space<vmem>>, vector<1x1x4x128xbf16>
    %163 = vector.shape_cast %162 : vector<1x1x4x128xbf16> to vector<4x128xbf16>
    %c24 = arith.constant 24 : index
    %c0_305 = arith.constant 0 : index
    %164 = vector.load %arg5[%c24, %c0_305] : memref<32x1152xbf16, #tpu.memory_space<vmem>>, vector<4x128xbf16>
    tpu.vector_store %arg5[%c24, %c0_305], %163 {strides = array<i32>} : memref<32x1152xbf16, #tpu.memory_space<vmem>>, vector<4x128xbf16>,
    %c1_306 = arith.constant 1 : index
    %c1_307 = arith.constant 1 : index
    %c10_308 = arith.constant 10 : index
    %c0_309 = arith.constant 0 : index
    %165 = vector.load %arg1[%c1_306, %c1_307, %c10_308, %c0_309] : memref<2x4x25x128xbf16, #tpu.memory_space<vmem>>, vector<1x1x4x128xbf16>
    %166 = vector.shape_cast %165 : vector<1x1x4x128xbf16> to vector<4x128xbf16>
    %c24_310 = arith.constant 24 : index
    %c128_311 = arith.constant 128 : index
    %167 = vector.load %arg5[%c24_310, %c128_311] : memref<32x1152xbf16, #tpu.memory_space<vmem>>, vector<4x128xbf16>
    tpu.vector_store %arg5[%c24_310, %c128_311], %166 {strides = array<i32>} : memref<32x1152xbf16, #tpu.memory_space<vmem>>, vector<4x128xbf16>,
    %c1_312 = arith.constant 1 : index
    %c0_313 = arith.constant 0 : index
    %c11_314 = arith.constant 11 : index
    %c0_315 = arith.constant 0 : index
    %168 = vector.load %arg1[%c1_312, %c0_313, %c11_314, %c0_315] : memref<2x4x25x128xbf16, #tpu.memory_space<vmem>>, vector<1x1x4x128xbf16>
    %169 = vector.shape_cast %168 : vector<1x1x4x128xbf16> to vector<4x128xbf16>
    %c24_316 = arith.constant 24 : index
    %c256_317 = arith.constant 256 : index
    %170 = vector.load %arg5[%c24_316, %c256_317] : memref<32x1152xbf16, #tpu.memory_space<vmem>>, vector<4x128xbf16>
    tpu.vector_store %arg5[%c24_316, %c256_317], %169 {strides = array<i32>} : memref<32x1152xbf16, #tpu.memory_space<vmem>>, vector<4x128xbf16>,
    %c1_318 = arith.constant 1 : index
    %c2_319 = arith.constant 2 : index
    %c10_320 = arith.constant 10 : index
    %c0_321 = arith.constant 0 : index
    %171 = vector.load %arg1[%c1_318, %c2_319, %c10_320, %c0_321] : memref<2x4x25x128xbf16, #tpu.memory_space<vmem>>, vector<1x1x4x128xbf16>
    %172 = vector.shape_cast %171 : vector<1x1x4x128xbf16> to vector<4x128xbf16>
    %c24_322 = arith.constant 24 : index
    %c384_323 = arith.constant 384 : index
    %173 = vector.load %arg5[%c24_322, %c384_323] : memref<32x1152xbf16, #tpu.memory_space<vmem>>, vector<4x128xbf16>
    tpu.vector_store %arg5[%c24_322, %c384_323], %172 {strides = array<i32>} : memref<32x1152xbf16, #tpu.memory_space<vmem>>, vector<4x128xbf16>,
    %c1_324 = arith.constant 1 : index
    %c3_325 = arith.constant 3 : index
    %c10_326 = arith.constant 10 : index
    %c0_327 = arith.constant 0 : index
    %174 = vector.load %arg1[%c1_324, %c3_325, %c10_326, %c0_327] : memref<2x4x25x128xbf16, #tpu.memory_space<vmem>>, vector<1x1x4x128xbf16>
    %175 = vector.shape_cast %174 : vector<1x1x4x128xbf16> to vector<4x128xbf16>
    %c24_328 = arith.constant 24 : index
    %c512_329 = arith.constant 512 : index
    %176 = vector.load %arg5[%c24_328, %c512_329] : memref<32x1152xbf16, #tpu.memory_space<vmem>>, vector<4x128xbf16>
    tpu.vector_store %arg5[%c24_328, %c512_329], %175 {strides = array<i32>} : memref<32x1152xbf16, #tpu.memory_space<vmem>>, vector<4x128xbf16>,
    %c1_330 = arith.constant 1 : index
    %c2_331 = arith.constant 2 : index
    %c11_332 = arith.constant 11 : index
    %c0_333 = arith.constant 0 : index
    %177 = vector.load %arg1[%c1_330, %c2_331, %c11_332, %c0_333] : memref<2x4x25x128xbf16, #tpu.memory_space<vmem>>, vector<1x1x4x128xbf16>
    %178 = vector.shape_cast %177 : vector<1x1x4x128xbf16> to vector<4x128xbf16>
    %c24_334 = arith.constant 24 : index
    %c640_335 = arith.constant 640 : index
    %179 = vector.load %arg5[%c24_334, %c640_335] : memref<32x1152xbf16, #tpu.memory_space<vmem>>, vector<4x128xbf16>
    tpu.vector_store %arg5[%c24_334, %c640_335], %178 {strides = array<i32>} : memref<32x1152xbf16, #tpu.memory_space<vmem>>, vector<4x128xbf16>,
    %c1_336 = arith.constant 1 : index
    %c0_337 = arith.constant 0 : index
    %c15_338 = arith.constant 15 : index
    %c0_339 = arith.constant 0 : index
    %180 = vector.load %arg1[%c1_336, %c0_337, %c15_338, %c0_339] : memref<2x4x25x128xbf16, #tpu.memory_space<vmem>>, vector<1x1x4x128xbf16>
    %181 = vector.shape_cast %180 : vector<1x1x4x128xbf16> to vector<4x128xbf16>
    %c24_340 = arith.constant 24 : index
    %c768_341 = arith.constant 768 : index
    %182 = vector.load %arg5[%c24_340, %c768_341] : memref<32x1152xbf16, #tpu.memory_space<vmem>>, vector<4x128xbf16>
    tpu.vector_store %arg5[%c24_340, %c768_341], %181 {strides = array<i32>} : memref<32x1152xbf16, #tpu.memory_space<vmem>>, vector<4x128xbf16>,
    %c1_342 = arith.constant 1 : index
    %c1_343 = arith.constant 1 : index
    %c15_344 = arith.constant 15 : index
    %c0_345 = arith.constant 0 : index
    %183 = vector.load %arg1[%c1_342, %c1_343, %c15_344, %c0_345] : memref<2x4x25x128xbf16, #tpu.memory_space<vmem>>, vector<1x1x4x128xbf16>
    %184 = vector.shape_cast %183 : vector<1x1x4x128xbf16> to vector<4x128xbf16>
    %c24_346 = arith.constant 24 : index
    %c896_347 = arith.constant 896 : index
    %185 = vector.load %arg5[%c24_346, %c896_347] : memref<32x1152xbf16, #tpu.memory_space<vmem>>, vector<4x128xbf16>
    tpu.vector_store %arg5[%c24_346, %c896_347], %184 {strides = array<i32>} : memref<32x1152xbf16, #tpu.memory_space<vmem>>, vector<4x128xbf16>,
    %c1_348 = arith.constant 1 : index
    %c0_349 = arith.constant 0 : index
    %c16_350 = arith.constant 16 : index
    %c0_351 = arith.constant 0 : index
    %186 = vector.load %arg1[%c1_348, %c0_349, %c16_350, %c0_351] : memref<2x4x25x128xbf16, #tpu.memory_space<vmem>>, vector<1x1x4x128xbf16>
    %187 = vector.shape_cast %186 : vector<1x1x4x128xbf16> to vector<4x128xbf16>
    %c24_352 = arith.constant 24 : index
    %c1024_353 = arith.constant 1024 : index
    %188 = vector.load %arg5[%c24_352, %c1024_353] : memref<32x1152xbf16, #tpu.memory_space<vmem>>, vector<4x128xbf16>
    tpu.vector_store %arg5[%c24_352, %c1024_353], %187 {strides = array<i32>} : memref<32x1152xbf16, #tpu.memory_space<vmem>>, vector<4x128xbf16>,
    %c1_354 = arith.constant 1 : index
    %c0_355 = arith.constant 0 : index
    %c15_356 = arith.constant 15 : index
    %c0_357 = arith.constant 0 : index
    %189 = vector.load %arg1[%c1_354, %c0_355, %c15_356, %c0_357] : memref<2x4x25x128xbf16, #tpu.memory_space<vmem>>, vector<1x1x4x128xbf16>
    %190 = vector.shape_cast %189 : vector<1x1x4x128xbf16> to vector<4x128xbf16>
    %c28 = arith.constant 28 : index
    %c0_358 = arith.constant 0 : index
    %191 = vector.load %arg5[%c28, %c0_358] : memref<32x1152xbf16, #tpu.memory_space<vmem>>, vector<4x128xbf16>
    tpu.vector_store %arg5[%c28, %c0_358], %190 {strides = array<i32>} : memref<32x1152xbf16, #tpu.memory_space<vmem>>, vector<4x128xbf16>,
    %c1_359 = arith.constant 1 : index
    %c1_360 = arith.constant 1 : index
    %c15_361 = arith.constant 15 : index
    %c0_362 = arith.constant 0 : index
    %192 = vector.load %arg1[%c1_359, %c1_360, %c15_361, %c0_362] : memref<2x4x25x128xbf16, #tpu.memory_space<vmem>>, vector<1x1x4x128xbf16>
    %193 = vector.shape_cast %192 : vector<1x1x4x128xbf16> to vector<4x128xbf16>
    %c28_363 = arith.constant 28 : index
    %c128_364 = arith.constant 128 : index
    %194 = vector.load %arg5[%c28_363, %c128_364] : memref<32x1152xbf16, #tpu.memory_space<vmem>>, vector<4x128xbf16>
    tpu.vector_store %arg5[%c28_363, %c128_364], %193 {strides = array<i32>} : memref<32x1152xbf16, #tpu.memory_space<vmem>>, vector<4x128xbf16>,
    %c1_365 = arith.constant 1 : index
    %c0_366 = arith.constant 0 : index
    %c16_367 = arith.constant 16 : index
    %c0_368 = arith.constant 0 : index
    %195 = vector.load %arg1[%c1_365, %c0_366, %c16_367, %c0_368] : memref<2x4x25x128xbf16, #tpu.memory_space<vmem>>, vector<1x1x4x128xbf16>
    %196 = vector.shape_cast %195 : vector<1x1x4x128xbf16> to vector<4x128xbf16>
    %c28_369 = arith.constant 28 : index
    %c256_370 = arith.constant 256 : index
    %197 = vector.load %arg5[%c28_369, %c256_370] : memref<32x1152xbf16, #tpu.memory_space<vmem>>, vector<4x128xbf16>
    tpu.vector_store %arg5[%c28_369, %c256_370], %196 {strides = array<i32>} : memref<32x1152xbf16, #tpu.memory_space<vmem>>, vector<4x128xbf16>,
    %c1_371 = arith.constant 1 : index
    %c2_372 = arith.constant 2 : index
    %c15_373 = arith.constant 15 : index
    %c0_374 = arith.constant 0 : index
    %198 = vector.load %arg1[%c1_371, %c2_372, %c15_373, %c0_374] : memref<2x4x25x128xbf16, #tpu.memory_space<vmem>>, vector<1x1x4x128xbf16>
    %199 = vector.shape_cast %198 : vector<1x1x4x128xbf16> to vector<4x128xbf16>
    %c28_375 = arith.constant 28 : index
    %c384_376 = arith.constant 384 : index
    %200 = vector.load %arg5[%c28_375, %c384_376] : memref<32x1152xbf16, #tpu.memory_space<vmem>>, vector<4x128xbf16>
    tpu.vector_store %arg5[%c28_375, %c384_376], %199 {strides = array<i32>} : memref<32x1152xbf16, #tpu.memory_space<vmem>>, vector<4x128xbf16>,
    %c1_377 = arith.constant 1 : index
    %c3_378 = arith.constant 3 : index
    %c15_379 = arith.constant 15 : index
    %c0_380 = arith.constant 0 : index
    %201 = vector.load %arg1[%c1_377, %c3_378, %c15_379, %c0_380] : memref<2x4x25x128xbf16, #tpu.memory_space<vmem>>, vector<1x1x4x128xbf16>
    %202 = vector.shape_cast %201 : vector<1x1x4x128xbf16> to vector<4x128xbf16>
    %c28_381 = arith.constant 28 : index
    %c512_382 = arith.constant 512 : index
    %203 = vector.load %arg5[%c28_381, %c512_382] : memref<32x1152xbf16, #tpu.memory_space<vmem>>, vector<4x128xbf16>
    tpu.vector_store %arg5[%c28_381, %c512_382], %202 {strides = array<i32>} : memref<32x1152xbf16, #tpu.memory_space<vmem>>, vector<4x128xbf16>,
    %c1_383 = arith.constant 1 : index
    %c2_384 = arith.constant 2 : index
    %c16_385 = arith.constant 16 : index
    %c0_386 = arith.constant 0 : index
    %204 = vector.load %arg1[%c1_383, %c2_384, %c16_385, %c0_386] : memref<2x4x25x128xbf16, #tpu.memory_space<vmem>>, vector<1x1x4x128xbf16>
    %205 = vector.shape_cast %204 : vector<1x1x4x128xbf16> to vector<4x128xbf16>
    %c28_387 = arith.constant 28 : index
    %c640_388 = arith.constant 640 : index
    %206 = vector.load %arg5[%c28_387, %c640_388] : memref<32x1152xbf16, #tpu.memory_space<vmem>>, vector<4x128xbf16>
    tpu.vector_store %arg5[%c28_387, %c640_388], %205 {strides = array<i32>} : memref<32x1152xbf16, #tpu.memory_space<vmem>>, vector<4x128xbf16>,
    %c1_389 = arith.constant 1 : index
    %c0_390 = arith.constant 0 : index
    %c20_391 = arith.constant 20 : index
    %c0_392 = arith.constant 0 : index
    %207 = vector.load %arg1[%c1_389, %c0_390, %c20_391, %c0_392] : memref<2x4x25x128xbf16, #tpu.memory_space<vmem>>, vector<1x1x4x128xbf16>
    %208 = vector.shape_cast %207 : vector<1x1x4x128xbf16> to vector<4x128xbf16>
    %c28_393 = arith.constant 28 : index
    %c768_394 = arith.constant 768 : index
    %209 = vector.load %arg5[%c28_393, %c768_394] : memref<32x1152xbf16, #tpu.memory_space<vmem>>, vector<4x128xbf16>
    tpu.vector_store %arg5[%c28_393, %c768_394], %208 {strides = array<i32>} : memref<32x1152xbf16, #tpu.memory_space<vmem>>, vector<4x128xbf16>,
    %c1_395 = arith.constant 1 : index
    %c1_396 = arith.constant 1 : index
    %c20_397 = arith.constant 20 : index
    %c0_398 = arith.constant 0 : index
    %210 = vector.load %arg1[%c1_395, %c1_396, %c20_397, %c0_398] : memref<2x4x25x128xbf16, #tpu.memory_space<vmem>>, vector<1x1x4x128xbf16>
    %211 = vector.shape_cast %210 : vector<1x1x4x128xbf16> to vector<4x128xbf16>
    %c28_399 = arith.constant 28 : index
    %c896_400 = arith.constant 896 : index
    %212 = vector.load %arg5[%c28_399, %c896_400] : memref<32x1152xbf16, #tpu.memory_space<vmem>>, vector<4x128xbf16>
    tpu.vector_store %arg5[%c28_399, %c896_400], %211 {strides = array<i32>} : memref<32x1152xbf16, #tpu.memory_space<vmem>>, vector<4x128xbf16>,
    %c1_401 = arith.constant 1 : index
    %c0_402 = arith.constant 0 : index
    %c21_403 = arith.constant 21 : index
    %c0_404 = arith.constant 0 : index
    %213 = vector.load %arg1[%c1_401, %c0_402, %c21_403, %c0_404] : memref<2x4x25x128xbf16, #tpu.memory_space<vmem>>, vector<1x1x4x128xbf16>
    %214 = vector.shape_cast %213 : vector<1x1x4x128xbf16> to vector<4x128xbf16>
    %c28_405 = arith.constant 28 : index
    %c1024_406 = arith.constant 1024 : index
    %215 = vector.load %arg5[%c28_405, %c1024_406] : memref<32x1152xbf16, #tpu.memory_space<vmem>>, vector<4x128xbf16>
    tpu.vector_store %arg5[%c28_405, %c1024_406], %214 {strides = array<i32>} : memref<32x1152xbf16, #tpu.memory_space<vmem>>, vector<4x128xbf16>,
    %c0_407 = arith.constant 0 : index
    %c0_408 = arith.constant 0 : index
    %216 = vector.load %arg5[%c0_407, %c0_408] : memref<32x1152xbf16, #tpu.memory_space<vmem>>, vector<32x1152xbf16>
    %c0_409 = arith.constant 0 : index
    %c0_410 = arith.constant 0 : index
    %217 = vector.load %arg2[%c0_409, %c0_410] : memref<1152x128xbf16, #tpu.memory_space<vmem>>, vector<1152x128xbf16>
    %cst = arith.constant dense<0.000000e+00> : vector<32x128xf32>
    %218 = tpu.matmul %216, %217, %cst {dimension_numbers = #tpu.dot_dimension_numbers<[1], [0], [0], [1], [0, 0, 1, 1], [], []>} : vector<32x1152xbf16>, vector<1152x128xbf16>, vector<32x128xf32> -> vector<32x128xf32>
    %c0_411 = arith.constant 0 : index
    %c0_412 = arith.constant 0 : index
    %219 = vector.load %arg3[%c0_411, %c0_412] : memref<1x128xf32, #tpu.memory_space<vmem>>, vector<1x128xf32>
    %220 = vector.broadcast %219 : vector<1x128xf32> to vector<32x128xf32>
    %221 = arith.addf %218, %220 : vector<32x128xf32>
    %cst_413 = arith.constant 0.000000e+00 : f32
    %222 = vector.broadcast %cst_413 : f32 to vector<32x128xf32>
    %223 = arith.cmpf oge, %221, %222 : vector<32x128xf32>
    %cst_414 = arith.constant 0.00999999977 : f32
    %224 = vector.broadcast %cst_414 : f32 to vector<32x128xf32>
    %225 = arith.mulf %224, %221 : vector<32x128xf32>
    %226 = arith.select %223, %221, %225 : vector<32x128xi1>, vector<32x128xf32>
    %227 = arith.truncf %226 : vector<32x128xf32> to vector<32x128xbf16>
    %c0_415 = arith.constant 0 : index
    %c0_416 = arith.constant 0 : index
    %228 = vector.load %arg4[%c0_415, %c0_416] : memref<32x128xbf16, #tpu.memory_space<vmem>>, vector<32x128xbf16>
    tpu.vector_store %arg4[%c0_415, %c0_416], %227 {strides = array<i32>} : memref<32x128xbf16, #tpu.memory_space<vmem>>, vector<32x128xbf16>,
    return
  }
  func.func @transform_0(%arg0: i32) -> (i32, i32, i32, i32) {
    %c0_i32 = arith.constant 0 : i32
    %c0_i32_0 = arith.constant 0 : i32
    %c0_i32_1 = arith.constant 0 : i32
    %c0_i32_2 = arith.constant 0 : i32
    return %arg0, %c0_i32, %c0_i32_0, %c0_i32_1 : i32, i32, i32, i32
  }
  func.func @transform_1(%arg0: i32) -> (i32, i32) {
    %c0_i32 = arith.constant 0 : i32
    %c0_i32_0 = arith.constant 0 : i32
    %c0_i32_1 = arith.constant 0 : i32
    return %c0_i32, %c0_i32_0 : i32, i32
  }
  func.func @transform_2(%arg0: i32) -> (i32, i32) {
    %c0_i32 = arith.constant 0 : i32
    %c0_i32_0 = arith.constant 0 : i32
    %c0_i32_1 = arith.constant 0 : i32
    return %c0_i32, %c0_i32_0 : i32, i32
  }
  func.func @transform_3(%arg0: i32) -> (i32, i32) {
    %c0_i32 = arith.constant 0 : i32
    %c0_i32_0 = arith.constant 0 : i32
    return %arg0, %c0_i32 : i32, i32
  }
}

module attributes {stable_mosaic.version = 11 : i64} {
  func.func @_conv3x3s2_lrelu_kernel(%arg0: i32, %arg1: memref<2x4x9x128xbf16, #tpu.memory_space<vmem>>, %arg2: memref<1152x128xbf16, #tpu.memory_space<vmem>>, %arg3: memref<1x128xf32, #tpu.memory_space<vmem>>, %arg4: memref<8x128xbf16, #tpu.memory_space<vmem>>, %arg5: memref<8x1152xbf16, #tpu.memory_space<vmem>>) attributes {dimension_semantics = [#tpu.dimension_semantics<parallel>], iteration_bounds = array<i64: 1>, scalar_prefetch = 0 : i64, scratch_operands = 1 : i64, tpu.core_type = #tpu.core_type<tc>, window_params = [{transform_indices = @transform_0, window_bounds = array<i64: 2, 4, 9, 128>}, {pipeline_mode = #tpu.pipeline_mode<synchronous>, transform_indices = @transform_1, window_bounds = array<i64: 1152, 128>}, {pipeline_mode = #tpu.pipeline_mode<synchronous>, transform_indices = @transform_2, window_bounds = array<i64: 1, 128>}, {transform_indices = @transform_3, window_bounds = array<i64: 8, 128>}]} {
    %c0 = arith.constant 0 : index
    %c0_0 = arith.constant 0 : index
    %c0_1 = arith.constant 0 : index
    %c0_2 = arith.constant 0 : index
    %0 = vector.load %arg1[%c0, %c0_0, %c0_1, %c0_2] : memref<2x4x9x128xbf16, #tpu.memory_space<vmem>>, vector<1x1x2x128xbf16>
    %1 = vector.shape_cast %0 : vector<1x1x2x128xbf16> to vector<2x128xbf16>
    %c0_3 = arith.constant 0 : index
    %c0_4 = arith.constant 0 : index
    %2 = vector.load %arg5[%c0_3, %c0_4] : memref<8x1152xbf16, #tpu.memory_space<vmem>>, vector<2x128xbf16>
    tpu.vector_store %arg5[%c0_3, %c0_4], %1 {strides = array<i32>} : memref<8x1152xbf16, #tpu.memory_space<vmem>>, vector<2x128xbf16>,
    %c0_5 = arith.constant 0 : index
    %c1 = arith.constant 1 : index
    %c0_6 = arith.constant 0 : index
    %c0_7 = arith.constant 0 : index
    %3 = vector.load %arg1[%c0_5, %c1, %c0_6, %c0_7] : memref<2x4x9x128xbf16, #tpu.memory_space<vmem>>, vector<1x1x2x128xbf16>
    %4 = vector.shape_cast %3 : vector<1x1x2x128xbf16> to vector<2x128xbf16>
    %c0_8 = arith.constant 0 : index
    %c128 = arith.constant 128 : index
    %5 = vector.load %arg5[%c0_8, %c128] : memref<8x1152xbf16, #tpu.memory_space<vmem>>, vector<2x128xbf16>
    tpu.vector_store %arg5[%c0_8, %c128], %4 {strides = array<i32>} : memref<8x1152xbf16, #tpu.memory_space<vmem>>, vector<2x128xbf16>,
    %c0_9 = arith.constant 0 : index
    %c0_10 = arith.constant 0 : index
    %c1_11 = arith.constant 1 : index
    %c0_12 = arith.constant 0 : index
    %6 = vector.load %arg1[%c0_9, %c0_10, %c1_11, %c0_12] : memref<2x4x9x128xbf16, #tpu.memory_space<vmem>>, vector<1x1x2x128xbf16>
    %7 = vector.shape_cast %6 : vector<1x1x2x128xbf16> to vector<2x128xbf16>
    %c0_13 = arith.constant 0 : index
    %c256 = arith.constant 256 : index
    %8 = vector.load %arg5[%c0_13, %c256] : memref<8x1152xbf16, #tpu.memory_space<vmem>>, vector<2x128xbf16>
    tpu.vector_store %arg5[%c0_13, %c256], %7 {strides = array<i32>} : memref<8x1152xbf16, #tpu.memory_space<vmem>>, vector<2x128xbf16>,
    %c0_14 = arith.constant 0 : index
    %c2 = arith.constant 2 : index
    %c0_15 = arith.constant 0 : index
    %c0_16 = arith.constant 0 : index
    %9 = vector.load %arg1[%c0_14, %c2, %c0_15, %c0_16] : memref<2x4x9x128xbf16, #tpu.memory_space<vmem>>, vector<1x1x2x128xbf16>
    %10 = vector.shape_cast %9 : vector<1x1x2x128xbf16> to vector<2x128xbf16>
    %c0_17 = arith.constant 0 : index
    %c384 = arith.constant 384 : index
    %11 = vector.load %arg5[%c0_17, %c384] : memref<8x1152xbf16, #tpu.memory_space<vmem>>, vector<2x128xbf16>
    tpu.vector_store %arg5[%c0_17, %c384], %10 {strides = array<i32>} : memref<8x1152xbf16, #tpu.memory_space<vmem>>, vector<2x128xbf16>,
    %c0_18 = arith.constant 0 : index
    %c3 = arith.constant 3 : index
    %c0_19 = arith.constant 0 : index
    %c0_20 = arith.constant 0 : index
    %12 = vector.load %arg1[%c0_18, %c3, %c0_19, %c0_20] : memref<2x4x9x128xbf16, #tpu.memory_space<vmem>>, vector<1x1x2x128xbf16>
    %13 = vector.shape_cast %12 : vector<1x1x2x128xbf16> to vector<2x128xbf16>
    %c0_21 = arith.constant 0 : index
    %c512 = arith.constant 512 : index
    %14 = vector.load %arg5[%c0_21, %c512] : memref<8x1152xbf16, #tpu.memory_space<vmem>>, vector<2x128xbf16>
    tpu.vector_store %arg5[%c0_21, %c512], %13 {strides = array<i32>} : memref<8x1152xbf16, #tpu.memory_space<vmem>>, vector<2x128xbf16>,
    %c0_22 = arith.constant 0 : index
    %c2_23 = arith.constant 2 : index
    %c1_24 = arith.constant 1 : index
    %c0_25 = arith.constant 0 : index
    %15 = vector.load %arg1[%c0_22, %c2_23, %c1_24, %c0_25] : memref<2x4x9x128xbf16, #tpu.memory_space<vmem>>, vector<1x1x2x128xbf16>
    %16 = vector.shape_cast %15 : vector<1x1x2x128xbf16> to vector<2x128xbf16>
    %c0_26 = arith.constant 0 : index
    %c640 = arith.constant 640 : index
    %17 = vector.load %arg5[%c0_26, %c640] : memref<8x1152xbf16, #tpu.memory_space<vmem>>, vector<2x128xbf16>
    tpu.vector_store %arg5[%c0_26, %c640], %16 {strides = array<i32>} : memref<8x1152xbf16, #tpu.memory_space<vmem>>, vector<2x128xbf16>,
    %c0_27 = arith.constant 0 : index
    %c0_28 = arith.constant 0 : index
    %c3_29 = arith.constant 3 : index
    %c0_30 = arith.constant 0 : index
    %18 = vector.load %arg1[%c0_27, %c0_28, %c3_29, %c0_30] : memref<2x4x9x128xbf16, #tpu.memory_space<vmem>>, vector<1x1x2x128xbf16>
    %19 = vector.shape_cast %18 : vector<1x1x2x128xbf16> to vector<2x128xbf16>
    %c0_31 = arith.constant 0 : index
    %c768 = arith.constant 768 : index
    %20 = vector.load %arg5[%c0_31, %c768] : memref<8x1152xbf16, #tpu.memory_space<vmem>>, vector<2x128xbf16>
    tpu.vector_store %arg5[%c0_31, %c768], %19 {strides = array<i32>} : memref<8x1152xbf16, #tpu.memory_space<vmem>>, vector<2x128xbf16>,
    %c0_32 = arith.constant 0 : index
    %c1_33 = arith.constant 1 : index
    %c3_34 = arith.constant 3 : index
    %c0_35 = arith.constant 0 : index
    %21 = vector.load %arg1[%c0_32, %c1_33, %c3_34, %c0_35] : memref<2x4x9x128xbf16, #tpu.memory_space<vmem>>, vector<1x1x2x128xbf16>
    %22 = vector.shape_cast %21 : vector<1x1x2x128xbf16> to vector<2x128xbf16>
    %c0_36 = arith.constant 0 : index
    %c896 = arith.constant 896 : index
    %23 = vector.load %arg5[%c0_36, %c896] : memref<8x1152xbf16, #tpu.memory_space<vmem>>, vector<2x128xbf16>
    tpu.vector_store %arg5[%c0_36, %c896], %22 {strides = array<i32>} : memref<8x1152xbf16, #tpu.memory_space<vmem>>, vector<2x128xbf16>,
    %c0_37 = arith.constant 0 : index
    %c0_38 = arith.constant 0 : index
    %c4 = arith.constant 4 : index
    %c0_39 = arith.constant 0 : index
    %24 = vector.load %arg1[%c0_37, %c0_38, %c4, %c0_39] : memref<2x4x9x128xbf16, #tpu.memory_space<vmem>>, vector<1x1x2x128xbf16>
    %25 = vector.shape_cast %24 : vector<1x1x2x128xbf16> to vector<2x128xbf16>
    %c0_40 = arith.constant 0 : index
    %c1024 = arith.constant 1024 : index
    %26 = vector.load %arg5[%c0_40, %c1024] : memref<8x1152xbf16, #tpu.memory_space<vmem>>, vector<2x128xbf16>
    tpu.vector_store %arg5[%c0_40, %c1024], %25 {strides = array<i32>} : memref<8x1152xbf16, #tpu.memory_space<vmem>>, vector<2x128xbf16>,
    %c0_41 = arith.constant 0 : index
    %c0_42 = arith.constant 0 : index
    %c3_43 = arith.constant 3 : index
    %c0_44 = arith.constant 0 : index
    %27 = vector.load %arg1[%c0_41, %c0_42, %c3_43, %c0_44] : memref<2x4x9x128xbf16, #tpu.memory_space<vmem>>, vector<1x1x2x128xbf16>
    %28 = vector.shape_cast %27 : vector<1x1x2x128xbf16> to vector<2x128xbf16>
    %c2_45 = arith.constant 2 : index
    %c0_46 = arith.constant 0 : index
    %29 = vector.load %arg5[%c2_45, %c0_46] : memref<8x1152xbf16, #tpu.memory_space<vmem>>, vector<2x128xbf16>
    tpu.vector_store %arg5[%c2_45, %c0_46], %28 {strides = array<i32>} : memref<8x1152xbf16, #tpu.memory_space<vmem>>, vector<2x128xbf16>,
    %c0_47 = arith.constant 0 : index
    %c1_48 = arith.constant 1 : index
    %c3_49 = arith.constant 3 : index
    %c0_50 = arith.constant 0 : index
    %30 = vector.load %arg1[%c0_47, %c1_48, %c3_49, %c0_50] : memref<2x4x9x128xbf16, #tpu.memory_space<vmem>>, vector<1x1x2x128xbf16>
    %31 = vector.shape_cast %30 : vector<1x1x2x128xbf16> to vector<2x128xbf16>
    %c2_51 = arith.constant 2 : index
    %c128_52 = arith.constant 128 : index
    %32 = vector.load %arg5[%c2_51, %c128_52] : memref<8x1152xbf16, #tpu.memory_space<vmem>>, vector<2x128xbf16>
    tpu.vector_store %arg5[%c2_51, %c128_52], %31 {strides = array<i32>} : memref<8x1152xbf16, #tpu.memory_space<vmem>>, vector<2x128xbf16>,
    %c0_53 = arith.constant 0 : index
    %c0_54 = arith.constant 0 : index
    %c4_55 = arith.constant 4 : index
    %c0_56 = arith.constant 0 : index
    %33 = vector.load %arg1[%c0_53, %c0_54, %c4_55, %c0_56] : memref<2x4x9x128xbf16, #tpu.memory_space<vmem>>, vector<1x1x2x128xbf16>
    %34 = vector.shape_cast %33 : vector<1x1x2x128xbf16> to vector<2x128xbf16>
    %c2_57 = arith.constant 2 : index
    %c256_58 = arith.constant 256 : index
    %35 = vector.load %arg5[%c2_57, %c256_58] : memref<8x1152xbf16, #tpu.memory_space<vmem>>, vector<2x128xbf16>
    tpu.vector_store %arg5[%c2_57, %c256_58], %34 {strides = array<i32>} : memref<8x1152xbf16, #tpu.memory_space<vmem>>, vector<2x128xbf16>,
    %c0_59 = arith.constant 0 : index
    %c2_60 = arith.constant 2 : index
    %c3_61 = arith.constant 3 : index
    %c0_62 = arith.constant 0 : index
    %36 = vector.load %arg1[%c0_59, %c2_60, %c3_61, %c0_62] : memref<2x4x9x128xbf16, #tpu.memory_space<vmem>>, vector<1x1x2x128xbf16>
    %37 = vector.shape_cast %36 : vector<1x1x2x128xbf16> to vector<2x128xbf16>
    %c2_63 = arith.constant 2 : index
    %c384_64 = arith.constant 384 : index
    %38 = vector.load %arg5[%c2_63, %c384_64] : memref<8x1152xbf16, #tpu.memory_space<vmem>>, vector<2x128xbf16>
    tpu.vector_store %arg5[%c2_63, %c384_64], %37 {strides = array<i32>} : memref<8x1152xbf16, #tpu.memory_space<vmem>>, vector<2x128xbf16>,
    %c0_65 = arith.constant 0 : index
    %c3_66 = arith.constant 3 : index
    %c3_67 = arith.constant 3 : index
    %c0_68 = arith.constant 0 : index
    %39 = vector.load %arg1[%c0_65, %c3_66, %c3_67, %c0_68] : memref<2x4x9x128xbf16, #tpu.memory_space<vmem>>, vector<1x1x2x128xbf16>
    %40 = vector.shape_cast %39 : vector<1x1x2x128xbf16> to vector<2x128xbf16>
    %c2_69 = arith.constant 2 : index
    %c512_70 = arith.constant 512 : index
    %41 = vector.load %arg5[%c2_69, %c512_70] : memref<8x1152xbf16, #tpu.memory_space<vmem>>, vector<2x128xbf16>
    tpu.vector_store %arg5[%c2_69, %c512_70], %40 {strides = array<i32>} : memref<8x1152xbf16, #tpu.memory_space<vmem>>, vector<2x128xbf16>,
    %c0_71 = arith.constant 0 : index
    %c2_72 = arith.constant 2 : index
    %c4_73 = arith.constant 4 : index
    %c0_74 = arith.constant 0 : index
    %42 = vector.load %arg1[%c0_71, %c2_72, %c4_73, %c0_74] : memref<2x4x9x128xbf16, #tpu.memory_space<vmem>>, vector<1x1x2x128xbf16>
    %43 = vector.shape_cast %42 : vector<1x1x2x128xbf16> to vector<2x128xbf16>
    %c2_75 = arith.constant 2 : index
    %c640_76 = arith.constant 640 : index
    %44 = vector.load %arg5[%c2_75, %c640_76] : memref<8x1152xbf16, #tpu.memory_space<vmem>>, vector<2x128xbf16>
    tpu.vector_store %arg5[%c2_75, %c640_76], %43 {strides = array<i32>} : memref<8x1152xbf16, #tpu.memory_space<vmem>>, vector<2x128xbf16>,
    %c0_77 = arith.constant 0 : index
    %c0_78 = arith.constant 0 : index
    %c6 = arith.constant 6 : index
    %c0_79 = arith.constant 0 : index
    %45 = vector.load %arg1[%c0_77, %c0_78, %c6, %c0_79] : memref<2x4x9x128xbf16, #tpu.memory_space<vmem>>, vector<1x1x2x128xbf16>
    %46 = vector.shape_cast %45 : vector<1x1x2x128xbf16> to vector<2x128xbf16>
    %c2_80 = arith.constant 2 : index
    %c768_81 = arith.constant 768 : index
    %47 = vector.load %arg5[%c2_80, %c768_81] : memref<8x1152xbf16, #tpu.memory_space<vmem>>, vector<2x128xbf16>
    tpu.vector_store %arg5[%c2_80, %c768_81], %46 {strides = array<i32>} : memref<8x1152xbf16, #tpu.memory_space<vmem>>, vector<2x128xbf16>,
    %c0_82 = arith.constant 0 : index
    %c1_83 = arith.constant 1 : index
    %c6_84 = arith.constant 6 : index
    %c0_85 = arith.constant 0 : index
    %48 = vector.load %arg1[%c0_82, %c1_83, %c6_84, %c0_85] : memref<2x4x9x128xbf16, #tpu.memory_space<vmem>>, vector<1x1x2x128xbf16>
    %49 = vector.shape_cast %48 : vector<1x1x2x128xbf16> to vector<2x128xbf16>
    %c2_86 = arith.constant 2 : index
    %c896_87 = arith.constant 896 : index
    %50 = vector.load %arg5[%c2_86, %c896_87] : memref<8x1152xbf16, #tpu.memory_space<vmem>>, vector<2x128xbf16>
    tpu.vector_store %arg5[%c2_86, %c896_87], %49 {strides = array<i32>} : memref<8x1152xbf16, #tpu.memory_space<vmem>>, vector<2x128xbf16>,
    %c0_88 = arith.constant 0 : index
    %c0_89 = arith.constant 0 : index
    %c7 = arith.constant 7 : index
    %c0_90 = arith.constant 0 : index
    %51 = vector.load %arg1[%c0_88, %c0_89, %c7, %c0_90] : memref<2x4x9x128xbf16, #tpu.memory_space<vmem>>, vector<1x1x2x128xbf16>
    %52 = vector.shape_cast %51 : vector<1x1x2x128xbf16> to vector<2x128xbf16>
    %c2_91 = arith.constant 2 : index
    %c1024_92 = arith.constant 1024 : index
    %53 = vector.load %arg5[%c2_91, %c1024_92] : memref<8x1152xbf16, #tpu.memory_space<vmem>>, vector<2x128xbf16>
    tpu.vector_store %arg5[%c2_91, %c1024_92], %52 {strides = array<i32>} : memref<8x1152xbf16, #tpu.memory_space<vmem>>, vector<2x128xbf16>,
    %c1_93 = arith.constant 1 : index
    %c0_94 = arith.constant 0 : index
    %c0_95 = arith.constant 0 : index
    %c0_96 = arith.constant 0 : index
    %54 = vector.load %arg1[%c1_93, %c0_94, %c0_95, %c0_96] : memref<2x4x9x128xbf16, #tpu.memory_space<vmem>>, vector<1x1x2x128xbf16>
    %55 = vector.shape_cast %54 : vector<1x1x2x128xbf16> to vector<2x128xbf16>
    %c4_97 = arith.constant 4 : index
    %c0_98 = arith.constant 0 : index
    %56 = vector.load %arg5[%c4_97, %c0_98] : memref<8x1152xbf16, #tpu.memory_space<vmem>>, vector<2x128xbf16>
    tpu.vector_store %arg5[%c4_97, %c0_98], %55 {strides = array<i32>} : memref<8x1152xbf16, #tpu.memory_space<vmem>>, vector<2x128xbf16>,
    %c1_99 = arith.constant 1 : index
    %c1_100 = arith.constant 1 : index
    %c0_101 = arith.constant 0 : index
    %c0_102 = arith.constant 0 : index
    %57 = vector.load %arg1[%c1_99, %c1_100, %c0_101, %c0_102] : memref<2x4x9x128xbf16, #tpu.memory_space<vmem>>, vector<1x1x2x128xbf16>
    %58 = vector.shape_cast %57 : vector<1x1x2x128xbf16> to vector<2x128xbf16>
    %c4_103 = arith.constant 4 : index
    %c128_104 = arith.constant 128 : index
    %59 = vector.load %arg5[%c4_103, %c128_104] : memref<8x1152xbf16, #tpu.memory_space<vmem>>, vector<2x128xbf16>
    tpu.vector_store %arg5[%c4_103, %c128_104], %58 {strides = array<i32>} : memref<8x1152xbf16, #tpu.memory_space<vmem>>, vector<2x128xbf16>,
    %c1_105 = arith.constant 1 : index
    %c0_106 = arith.constant 0 : index
    %c1_107 = arith.constant 1 : index
    %c0_108 = arith.constant 0 : index
    %60 = vector.load %arg1[%c1_105, %c0_106, %c1_107, %c0_108] : memref<2x4x9x128xbf16, #tpu.memory_space<vmem>>, vector<1x1x2x128xbf16>
    %61 = vector.shape_cast %60 : vector<1x1x2x128xbf16> to vector<2x128xbf16>
    %c4_109 = arith.constant 4 : index
    %c256_110 = arith.constant 256 : index
    %62 = vector.load %arg5[%c4_109, %c256_110] : memref<8x1152xbf16, #tpu.memory_space<vmem>>, vector<2x128xbf16>
    tpu.vector_store %arg5[%c4_109, %c256_110], %61 {strides = array<i32>} : memref<8x1152xbf16, #tpu.memory_space<vmem>>, vector<2x128xbf16>,
    %c1_111 = arith.constant 1 : index
    %c2_112 = arith.constant 2 : index
    %c0_113 = arith.constant 0 : index
    %c0_114 = arith.constant 0 : index
    %63 = vector.load %arg1[%c1_111, %c2_112, %c0_113, %c0_114] : memref<2x4x9x128xbf16, #tpu.memory_space<vmem>>, vector<1x1x2x128xbf16>
    %64 = vector.shape_cast %63 : vector<1x1x2x128xbf16> to vector<2x128xbf16>
    %c4_115 = arith.constant 4 : index
    %c384_116 = arith.constant 384 : index
    %65 = vector.load %arg5[%c4_115, %c384_116] : memref<8x1152xbf16, #tpu.memory_space<vmem>>, vector<2x128xbf16>
    tpu.vector_store %arg5[%c4_115, %c384_116], %64 {strides = array<i32>} : memref<8x1152xbf16, #tpu.memory_space<vmem>>, vector<2x128xbf16>,
    %c1_117 = arith.constant 1 : index
    %c3_118 = arith.constant 3 : index
    %c0_119 = arith.constant 0 : index
    %c0_120 = arith.constant 0 : index
    %66 = vector.load %arg1[%c1_117, %c3_118, %c0_119, %c0_120] : memref<2x4x9x128xbf16, #tpu.memory_space<vmem>>, vector<1x1x2x128xbf16>
    %67 = vector.shape_cast %66 : vector<1x1x2x128xbf16> to vector<2x128xbf16>
    %c4_121 = arith.constant 4 : index
    %c512_122 = arith.constant 512 : index
    %68 = vector.load %arg5[%c4_121, %c512_122] : memref<8x1152xbf16, #tpu.memory_space<vmem>>, vector<2x128xbf16>
    tpu.vector_store %arg5[%c4_121, %c512_122], %67 {strides = array<i32>} : memref<8x1152xbf16, #tpu.memory_space<vmem>>, vector<2x128xbf16>,
    %c1_123 = arith.constant 1 : index
    %c2_124 = arith.constant 2 : index
    %c1_125 = arith.constant 1 : index
    %c0_126 = arith.constant 0 : index
    %69 = vector.load %arg1[%c1_123, %c2_124, %c1_125, %c0_126] : memref<2x4x9x128xbf16, #tpu.memory_space<vmem>>, vector<1x1x2x128xbf16>
    %70 = vector.shape_cast %69 : vector<1x1x2x128xbf16> to vector<2x128xbf16>
    %c4_127 = arith.constant 4 : index
    %c640_128 = arith.constant 640 : index
    %71 = vector.load %arg5[%c4_127, %c640_128] : memref<8x1152xbf16, #tpu.memory_space<vmem>>, vector<2x128xbf16>
    tpu.vector_store %arg5[%c4_127, %c640_128], %70 {strides = array<i32>} : memref<8x1152xbf16, #tpu.memory_space<vmem>>, vector<2x128xbf16>,
    %c1_129 = arith.constant 1 : index
    %c0_130 = arith.constant 0 : index
    %c3_131 = arith.constant 3 : index
    %c0_132 = arith.constant 0 : index
    %72 = vector.load %arg1[%c1_129, %c0_130, %c3_131, %c0_132] : memref<2x4x9x128xbf16, #tpu.memory_space<vmem>>, vector<1x1x2x128xbf16>
    %73 = vector.shape_cast %72 : vector<1x1x2x128xbf16> to vector<2x128xbf16>
    %c4_133 = arith.constant 4 : index
    %c768_134 = arith.constant 768 : index
    %74 = vector.load %arg5[%c4_133, %c768_134] : memref<8x1152xbf16, #tpu.memory_space<vmem>>, vector<2x128xbf16>
    tpu.vector_store %arg5[%c4_133, %c768_134], %73 {strides = array<i32>} : memref<8x1152xbf16, #tpu.memory_space<vmem>>, vector<2x128xbf16>,
    %c1_135 = arith.constant 1 : index
    %c1_136 = arith.constant 1 : index
    %c3_137 = arith.constant 3 : index
    %c0_138 = arith.constant 0 : index
    %75 = vector.load %arg1[%c1_135, %c1_136, %c3_137, %c0_138] : memref<2x4x9x128xbf16, #tpu.memory_space<vmem>>, vector<1x1x2x128xbf16>
    %76 = vector.shape_cast %75 : vector<1x1x2x128xbf16> to vector<2x128xbf16>
    %c4_139 = arith.constant 4 : index
    %c896_140 = arith.constant 896 : index
    %77 = vector.load %arg5[%c4_139, %c896_140] : memref<8x1152xbf16, #tpu.memory_space<vmem>>, vector<2x128xbf16>
    tpu.vector_store %arg5[%c4_139, %c896_140], %76 {strides = array<i32>} : memref<8x1152xbf16, #tpu.memory_space<vmem>>, vector<2x128xbf16>,
    %c1_141 = arith.constant 1 : index
    %c0_142 = arith.constant 0 : index
    %c4_143 = arith.constant 4 : index
    %c0_144 = arith.constant 0 : index
    %78 = vector.load %arg1[%c1_141, %c0_142, %c4_143, %c0_144] : memref<2x4x9x128xbf16, #tpu.memory_space<vmem>>, vector<1x1x2x128xbf16>
    %79 = vector.shape_cast %78 : vector<1x1x2x128xbf16> to vector<2x128xbf16>
    %c4_145 = arith.constant 4 : index
    %c1024_146 = arith.constant 1024 : index
    %80 = vector.load %arg5[%c4_145, %c1024_146] : memref<8x1152xbf16, #tpu.memory_space<vmem>>, vector<2x128xbf16>
    tpu.vector_store %arg5[%c4_145, %c1024_146], %79 {strides = array<i32>} : memref<8x1152xbf16, #tpu.memory_space<vmem>>, vector<2x128xbf16>,
    %c1_147 = arith.constant 1 : index
    %c0_148 = arith.constant 0 : index
    %c3_149 = arith.constant 3 : index
    %c0_150 = arith.constant 0 : index
    %81 = vector.load %arg1[%c1_147, %c0_148, %c3_149, %c0_150] : memref<2x4x9x128xbf16, #tpu.memory_space<vmem>>, vector<1x1x2x128xbf16>
    %82 = vector.shape_cast %81 : vector<1x1x2x128xbf16> to vector<2x128xbf16>
    %c6_151 = arith.constant 6 : index
    %c0_152 = arith.constant 0 : index
    %83 = vector.load %arg5[%c6_151, %c0_152] : memref<8x1152xbf16, #tpu.memory_space<vmem>>, vector<2x128xbf16>
    tpu.vector_store %arg5[%c6_151, %c0_152], %82 {strides = array<i32>} : memref<8x1152xbf16, #tpu.memory_space<vmem>>, vector<2x128xbf16>,
    %c1_153 = arith.constant 1 : index
    %c1_154 = arith.constant 1 : index
    %c3_155 = arith.constant 3 : index
    %c0_156 = arith.constant 0 : index
    %84 = vector.load %arg1[%c1_153, %c1_154, %c3_155, %c0_156] : memref<2x4x9x128xbf16, #tpu.memory_space<vmem>>, vector<1x1x2x128xbf16>
    %85 = vector.shape_cast %84 : vector<1x1x2x128xbf16> to vector<2x128xbf16>
    %c6_157 = arith.constant 6 : index
    %c128_158 = arith.constant 128 : index
    %86 = vector.load %arg5[%c6_157, %c128_158] : memref<8x1152xbf16, #tpu.memory_space<vmem>>, vector<2x128xbf16>
    tpu.vector_store %arg5[%c6_157, %c128_158], %85 {strides = array<i32>} : memref<8x1152xbf16, #tpu.memory_space<vmem>>, vector<2x128xbf16>,
    %c1_159 = arith.constant 1 : index
    %c0_160 = arith.constant 0 : index
    %c4_161 = arith.constant 4 : index
    %c0_162 = arith.constant 0 : index
    %87 = vector.load %arg1[%c1_159, %c0_160, %c4_161, %c0_162] : memref<2x4x9x128xbf16, #tpu.memory_space<vmem>>, vector<1x1x2x128xbf16>
    %88 = vector.shape_cast %87 : vector<1x1x2x128xbf16> to vector<2x128xbf16>
    %c6_163 = arith.constant 6 : index
    %c256_164 = arith.constant 256 : index
    %89 = vector.load %arg5[%c6_163, %c256_164] : memref<8x1152xbf16, #tpu.memory_space<vmem>>, vector<2x128xbf16>
    tpu.vector_store %arg5[%c6_163, %c256_164], %88 {strides = array<i32>} : memref<8x1152xbf16, #tpu.memory_space<vmem>>, vector<2x128xbf16>,
    %c1_165 = arith.constant 1 : index
    %c2_166 = arith.constant 2 : index
    %c3_167 = arith.constant 3 : index
    %c0_168 = arith.constant 0 : index
    %90 = vector.load %arg1[%c1_165, %c2_166, %c3_167, %c0_168] : memref<2x4x9x128xbf16, #tpu.memory_space<vmem>>, vector<1x1x2x128xbf16>
    %91 = vector.shape_cast %90 : vector<1x1x2x128xbf16> to vector<2x128xbf16>
    %c6_169 = arith.constant 6 : index
    %c384_170 = arith.constant 384 : index
    %92 = vector.load %arg5[%c6_169, %c384_170] : memref<8x1152xbf16, #tpu.memory_space<vmem>>, vector<2x128xbf16>
    tpu.vector_store %arg5[%c6_169, %c384_170], %91 {strides = array<i32>} : memref<8x1152xbf16, #tpu.memory_space<vmem>>, vector<2x128xbf16>,
    %c1_171 = arith.constant 1 : index
    %c3_172 = arith.constant 3 : index
    %c3_173 = arith.constant 3 : index
    %c0_174 = arith.constant 0 : index
    %93 = vector.load %arg1[%c1_171, %c3_172, %c3_173, %c0_174] : memref<2x4x9x128xbf16, #tpu.memory_space<vmem>>, vector<1x1x2x128xbf16>
    %94 = vector.shape_cast %93 : vector<1x1x2x128xbf16> to vector<2x128xbf16>
    %c6_175 = arith.constant 6 : index
    %c512_176 = arith.constant 512 : index
    %95 = vector.load %arg5[%c6_175, %c512_176] : memref<8x1152xbf16, #tpu.memory_space<vmem>>, vector<2x128xbf16>
    tpu.vector_store %arg5[%c6_175, %c512_176], %94 {strides = array<i32>} : memref<8x1152xbf16, #tpu.memory_space<vmem>>, vector<2x128xbf16>,
    %c1_177 = arith.constant 1 : index
    %c2_178 = arith.constant 2 : index
    %c4_179 = arith.constant 4 : index
    %c0_180 = arith.constant 0 : index
    %96 = vector.load %arg1[%c1_177, %c2_178, %c4_179, %c0_180] : memref<2x4x9x128xbf16, #tpu.memory_space<vmem>>, vector<1x1x2x128xbf16>
    %97 = vector.shape_cast %96 : vector<1x1x2x128xbf16> to vector<2x128xbf16>
    %c6_181 = arith.constant 6 : index
    %c640_182 = arith.constant 640 : index
    %98 = vector.load %arg5[%c6_181, %c640_182] : memref<8x1152xbf16, #tpu.memory_space<vmem>>, vector<2x128xbf16>
    tpu.vector_store %arg5[%c6_181, %c640_182], %97 {strides = array<i32>} : memref<8x1152xbf16, #tpu.memory_space<vmem>>, vector<2x128xbf16>,
    %c1_183 = arith.constant 1 : index
    %c0_184 = arith.constant 0 : index
    %c6_185 = arith.constant 6 : index
    %c0_186 = arith.constant 0 : index
    %99 = vector.load %arg1[%c1_183, %c0_184, %c6_185, %c0_186] : memref<2x4x9x128xbf16, #tpu.memory_space<vmem>>, vector<1x1x2x128xbf16>
    %100 = vector.shape_cast %99 : vector<1x1x2x128xbf16> to vector<2x128xbf16>
    %c6_187 = arith.constant 6 : index
    %c768_188 = arith.constant 768 : index
    %101 = vector.load %arg5[%c6_187, %c768_188] : memref<8x1152xbf16, #tpu.memory_space<vmem>>, vector<2x128xbf16>
    tpu.vector_store %arg5[%c6_187, %c768_188], %100 {strides = array<i32>} : memref<8x1152xbf16, #tpu.memory_space<vmem>>, vector<2x128xbf16>,
    %c1_189 = arith.constant 1 : index
    %c1_190 = arith.constant 1 : index
    %c6_191 = arith.constant 6 : index
    %c0_192 = arith.constant 0 : index
    %102 = vector.load %arg1[%c1_189, %c1_190, %c6_191, %c0_192] : memref<2x4x9x128xbf16, #tpu.memory_space<vmem>>, vector<1x1x2x128xbf16>
    %103 = vector.shape_cast %102 : vector<1x1x2x128xbf16> to vector<2x128xbf16>
    %c6_193 = arith.constant 6 : index
    %c896_194 = arith.constant 896 : index
    %104 = vector.load %arg5[%c6_193, %c896_194] : memref<8x1152xbf16, #tpu.memory_space<vmem>>, vector<2x128xbf16>
    tpu.vector_store %arg5[%c6_193, %c896_194], %103 {strides = array<i32>} : memref<8x1152xbf16, #tpu.memory_space<vmem>>, vector<2x128xbf16>,
    %c1_195 = arith.constant 1 : index
    %c0_196 = arith.constant 0 : index
    %c7_197 = arith.constant 7 : index
    %c0_198 = arith.constant 0 : index
    %105 = vector.load %arg1[%c1_195, %c0_196, %c7_197, %c0_198] : memref<2x4x9x128xbf16, #tpu.memory_space<vmem>>, vector<1x1x2x128xbf16>
    %106 = vector.shape_cast %105 : vector<1x1x2x128xbf16> to vector<2x128xbf16>
    %c6_199 = arith.constant 6 : index
    %c1024_200 = arith.constant 1024 : index
    %107 = vector.load %arg5[%c6_199, %c1024_200] : memref<8x1152xbf16, #tpu.memory_space<vmem>>, vector<2x128xbf16>
    tpu.vector_store %arg5[%c6_199, %c1024_200], %106 {strides = array<i32>} : memref<8x1152xbf16, #tpu.memory_space<vmem>>, vector<2x128xbf16>,
    %c0_201 = arith.constant 0 : index
    %c0_202 = arith.constant 0 : index
    %108 = vector.load %arg5[%c0_201, %c0_202] : memref<8x1152xbf16, #tpu.memory_space<vmem>>, vector<8x1152xbf16>
    %c0_203 = arith.constant 0 : index
    %c0_204 = arith.constant 0 : index
    %109 = vector.load %arg2[%c0_203, %c0_204] : memref<1152x128xbf16, #tpu.memory_space<vmem>>, vector<1152x128xbf16>
    %cst = arith.constant dense<0.000000e+00> : vector<8x128xf32>
    %110 = tpu.matmul %108, %109, %cst {dimension_numbers = #tpu.dot_dimension_numbers<[1], [0], [0], [1], [0, 0, 1, 1], [], []>} : vector<8x1152xbf16>, vector<1152x128xbf16>, vector<8x128xf32> -> vector<8x128xf32>
    %c0_205 = arith.constant 0 : index
    %c0_206 = arith.constant 0 : index
    %111 = vector.load %arg3[%c0_205, %c0_206] : memref<1x128xf32, #tpu.memory_space<vmem>>, vector<1x128xf32>
    %112 = vector.broadcast %111 : vector<1x128xf32> to vector<8x128xf32>
    %113 = arith.addf %110, %112 : vector<8x128xf32>
    %cst_207 = arith.constant 0.000000e+00 : f32
    %114 = vector.broadcast %cst_207 : f32 to vector<8x128xf32>
    %115 = arith.cmpf oge, %113, %114 : vector<8x128xf32>
    %cst_208 = arith.constant 0.00999999977 : f32
    %116 = vector.broadcast %cst_208 : f32 to vector<8x128xf32>
    %117 = arith.mulf %116, %113 : vector<8x128xf32>
    %118 = arith.select %115, %113, %117 : vector<8x128xi1>, vector<8x128xf32>
    %119 = arith.truncf %118 : vector<8x128xf32> to vector<8x128xbf16>
    %c0_209 = arith.constant 0 : index
    %c0_210 = arith.constant 0 : index
    %120 = vector.load %arg4[%c0_209, %c0_210] : memref<8x128xbf16, #tpu.memory_space<vmem>>, vector<8x128xbf16>
    tpu.vector_store %arg4[%c0_209, %c0_210], %119 {strides = array<i32>} : memref<8x128xbf16, #tpu.memory_space<vmem>>, vector<8x128xbf16>,
    return
  }
  func.func @transform_0(%arg0: i32) -> (i32, i32, i32, i32) {
    %c0_i32 = arith.constant 0 : i32
    %c0_i32_0 = arith.constant 0 : i32
    %c0_i32_1 = arith.constant 0 : i32
    %c0_i32_2 = arith.constant 0 : i32
    return %arg0, %c0_i32, %c0_i32_0, %c0_i32_1 : i32, i32, i32, i32
  }
  func.func @transform_1(%arg0: i32) -> (i32, i32) {
    %c0_i32 = arith.constant 0 : i32
    %c0_i32_0 = arith.constant 0 : i32
    %c0_i32_1 = arith.constant 0 : i32
    return %c0_i32, %c0_i32_0 : i32, i32
  }
  func.func @transform_2(%arg0: i32) -> (i32, i32) {
    %c0_i32 = arith.constant 0 : i32
    %c0_i32_0 = arith.constant 0 : i32
    %c0_i32_1 = arith.constant 0 : i32
    return %c0_i32, %c0_i32_0 : i32, i32
  }
  func.func @transform_3(%arg0: i32) -> (i32, i32) {
    %c0_i32 = arith.constant 0 : i32
    %c0_i32_0 = arith.constant 0 : i32
    return %arg0, %c0_i32 : i32, i32
  }
}

module attributes {stable_mosaic.version = 11 : i64} {
  func.func @_tail_conv_linear_kernel(%arg0: i32, %arg1: memref<2x512xbf16, #tpu.memory_space<vmem>>, %arg2: memref<512x128xbf16, #tpu.memory_space<vmem>>, %arg3: memref<1x128xf32, #tpu.memory_space<vmem>>, %arg4: memref<128x128xbf16, #tpu.memory_space<vmem>>, %arg5: memref<1x128xf32, #tpu.memory_space<vmem>>, %arg6: memref<2x128xf32, #tpu.memory_space<vmem>>) attributes {dimension_semantics = [#tpu.dimension_semantics<parallel>], iteration_bounds = array<i64: 1>, scalar_prefetch = 0 : i64, scratch_operands = 0 : i64, tpu.core_type = #tpu.core_type<tc>, window_params = [{transform_indices = @transform_0, window_bounds = array<i64: 2, 512>}, {pipeline_mode = #tpu.pipeline_mode<synchronous>, transform_indices = @transform_1, window_bounds = array<i64: 512, 128>}, {pipeline_mode = #tpu.pipeline_mode<synchronous>, transform_indices = @transform_2, window_bounds = array<i64: 1, 128>}, {pipeline_mode = #tpu.pipeline_mode<synchronous>, transform_indices = @transform_3, window_bounds = array<i64: 128, 128>}, {pipeline_mode = #tpu.pipeline_mode<synchronous>, transform_indices = @transform_4, window_bounds = array<i64: 1, 128>}, {transform_indices = @transform_5, window_bounds = array<i64: 2, 128>}]} {
    %c0 = arith.constant 0 : index
    %c0_0 = arith.constant 0 : index
    %0 = vector.load %arg1[%c0, %c0_0] : memref<2x512xbf16, #tpu.memory_space<vmem>>, vector<2x512xbf16>
    %c0_1 = arith.constant 0 : index
    %c0_2 = arith.constant 0 : index
    %1 = vector.load %arg2[%c0_1, %c0_2] : memref<512x128xbf16, #tpu.memory_space<vmem>>, vector<512x128xbf16>
    %cst = arith.constant dense<0.000000e+00> : vector<2x128xf32>
    %2 = tpu.matmul %0, %1, %cst {dimension_numbers = #tpu.dot_dimension_numbers<[1], [0], [0], [1], [0, 0, 1, 1], [], []>} : vector<2x512xbf16>, vector<512x128xbf16>, vector<2x128xf32> -> vector<2x128xf32>
    %c0_3 = arith.constant 0 : index
    %c0_4 = arith.constant 0 : index
    %3 = vector.load %arg3[%c0_3, %c0_4] : memref<1x128xf32, #tpu.memory_space<vmem>>, vector<1x128xf32>
    %4 = vector.broadcast %3 : vector<1x128xf32> to vector<2x128xf32>
    %5 = arith.addf %2, %4 : vector<2x128xf32>
    %cst_5 = arith.constant 0.000000e+00 : f32
    %6 = vector.broadcast %cst_5 : f32 to vector<2x128xf32>
    %7 = arith.cmpf oge, %5, %6 : vector<2x128xf32>
    %cst_6 = arith.constant 0.00999999977 : f32
    %8 = vector.broadcast %cst_6 : f32 to vector<2x128xf32>
    %9 = arith.mulf %8, %5 : vector<2x128xf32>
    %10 = arith.select %7, %5, %9 : vector<2x128xi1>, vector<2x128xf32>
    %11 = arith.truncf %10 : vector<2x128xf32> to vector<2x128xbf16>
    %c0_7 = arith.constant 0 : index
    %c0_8 = arith.constant 0 : index
    %12 = vector.load %arg4[%c0_7, %c0_8] : memref<128x128xbf16, #tpu.memory_space<vmem>>, vector<128x128xbf16>
    %cst_9 = arith.constant dense<0.000000e+00> : vector<2x128xf32>
    %13 = tpu.matmul %11, %12, %cst_9 {dimension_numbers = #tpu.dot_dimension_numbers<[1], [0], [0], [1], [0, 0, 1, 1], [], []>} : vector<2x128xbf16>, vector<128x128xbf16>, vector<2x128xf32> -> vector<2x128xf32>
    %c0_10 = arith.constant 0 : index
    %c0_11 = arith.constant 0 : index
    %14 = vector.load %arg5[%c0_10, %c0_11] : memref<1x128xf32, #tpu.memory_space<vmem>>, vector<1x128xf32>
    %15 = vector.broadcast %14 : vector<1x128xf32> to vector<2x128xf32>
    %16 = arith.addf %13, %15 : vector<2x128xf32>
    %c0_12 = arith.constant 0 : index
    %c0_13 = arith.constant 0 : index
    %17 = vector.load %arg6[%c0_12, %c0_13] : memref<2x128xf32, #tpu.memory_space<vmem>>, vector<2x128xf32>
    tpu.vector_store %arg6[%c0_12, %c0_13], %16 {strides = array<i32>} : memref<2x128xf32, #tpu.memory_space<vmem>>, vector<2x128xf32>,
    return
  }
  func.func @transform_0(%arg0: i32) -> (i32, i32) {
    %c0_i32 = arith.constant 0 : i32
    %c0_i32_0 = arith.constant 0 : i32
    return %arg0, %c0_i32 : i32, i32
  }
  func.func @transform_1(%arg0: i32) -> (i32, i32) {
    %c0_i32 = arith.constant 0 : i32
    %c0_i32_0 = arith.constant 0 : i32
    %c0_i32_1 = arith.constant 0 : i32
    return %c0_i32, %c0_i32_0 : i32, i32
  }
  func.func @transform_2(%arg0: i32) -> (i32, i32) {
    %c0_i32 = arith.constant 0 : i32
    %c0_i32_0 = arith.constant 0 : i32
    %c0_i32_1 = arith.constant 0 : i32
    return %c0_i32, %c0_i32_0 : i32, i32
  }
  func.func @transform_3(%arg0: i32) -> (i32, i32) {
    %c0_i32 = arith.constant 0 : i32
    %c0_i32_0 = arith.constant 0 : i32
    %c0_i32_1 = arith.constant 0 : i32
    return %c0_i32, %c0_i32_0 : i32, i32
  }
  func.func @transform_4(%arg0: i32) -> (i32, i32) {
    %c0_i32 = arith.constant 0 : i32
    %c0_i32_0 = arith.constant 0 : i32
    %c0_i32_1 = arith.constant 0 : i32
    return %c0_i32, %c0_i32_0 : i32, i32
  }
  func.func @transform_5(%arg0: i32) -> (i32, i32) {
    %c0_i32 = arith.constant 0 : i32
    %c0_i32_0 = arith.constant 0 : i32
    return %arg0, %c0_i32 : i32, i32
  }
}

</mosaic_0001>

<llo_original>
// kernel: subblock_forward.5
$region0: #{subblock_forward.5}
  #allocation0 [shape = 'u32[]', space=smem, size = 0x4, offset = 0x4, fixed_abs, tag = 'smem constant byte address 0x4 - core index']
  #allocation1 [shape = 'u32[144,128]{1,0:T(1,128)}', space=vmem, size = 0x12000, scoped, tag = 'internal scratch']
  #allocation2 [shape = 'bf16[32,1152]{1,0:T(16,128)(2,1)}', space=vmem, size = 0x12000, scoped, tag = 'scratch operand']
  %s0 = inlined_call_operand.vmem [shape: bf16[2,4,25,128], index: 0, kind: input, shape index: {}]
  %s1 = inlined_call_operand.vmem [shape: bf16[1152,128], index: 1, kind: input, shape index: {}]
  %s2 = inlined_call_operand.vmem [shape: f32[1,128], index: 2, kind: input, shape index: {}]
  %s3 = inlined_call_operand.vmem [shape: bf16[32,128], index: 3, kind: output, shape index: {}]
  %s4 = sld [smem:[#allocation0]]
  $region22: #{subblock_forward.5} parent=0
    _
  %s6 = ssub.s32 1, %s4
  %s7 = scalar_select 0, %s6, %s4
  // Predicated region
  $region2: #{subblock_forward.5} parent=0 // pred_check
    _
  $region3: #{subblock_forward.5} parent=0 // pred_check_branch
    %9 = sbr.rel (0) target = $region5
  $region4: #{subblock_forward.5} parent=0 // pred_region
    _
  $region5: #{subblock_forward.5} parent=0 // pred_fallthru
    _
  // Predicated region
  $region6: #{subblock_forward.5} parent=0 // pred_check
    _
  $region7: #{subblock_forward.5} parent=0 // pred_check_branch
    %11 = sbr.rel (0) target = $region9
  $region8: #{subblock_forward.5} parent=0 // pred_region
    _
  $region9: #{subblock_forward.5} parent=0 // pred_fallthru
    _
  // Predicated region
  $region10: #{subblock_forward.5} parent=0 // pred_check
    _
  $region11: #{subblock_forward.5} parent=0 // pred_check_branch
    %13 = sbr.rel (0) target = $region13
  $region12: #{subblock_forward.5} parent=0 // pred_region
    _
  $region13: #{subblock_forward.5} parent=0 // pred_fallthru
    _
  %v15 = vld [vmem:[%s0] sm:$0x3]
  %16 = vst [vmem:[#allocation2] sm:$0x3] %v15
  %s17 = scalar_lea.vmem %s0, 16
  %v18 = vld [vmem:[%s17] sm:$0x3]
  %19 = vst [vmem:[#allocation2 + $0x8] sm:$0x3] %v18
  %v20 = vld [vmem:[%s0] sm:$0x7]
  %v22 = vunpack.c.l.b16 %v20
  %v23 = vpack.c.b16 %v22, %v22
  %v25 = vshrl.u32 %v23, 16
  %v27 = vshll.u32 %v23, 16
  %v29 = vrot.slane %v27, 1
  %v30 = vor.u32 %v25, %v29
  %32 = vst [vmem:[#allocation2 + $0x10] sm:$0x3] %v30
  %s33 = scalar_lea.vmem %s0, 32
  %v34 = vld [vmem:[%s33] sm:$0x3]
  %35 = vst [vmem:[#allocation2 + $0x18] sm:$0x3] %v34
  %s36 = scalar_lea.vmem %s0, 48
  %v37 = vld [vmem:[%s36] sm:$0x3]
  %38 = vst [vmem:[#allocation2 + $0x20] sm:$0x3] %v37
  %v39 = vld [vmem:[%s33] sm:$0x7]
  %v41 = vunpack.c.l.b16 %v39
  %v42 = vpack.c.b16 %v41, %v41
  %v44 = vshrl.u32 %v42, 16
  %v46 = vshll.u32 %v42, 16
  %v48 = vrot.slane %v46, 1
  %v49 = vor.u32 %v44, %v48
  %51 = vst [vmem:[#allocation2 + $0x28] sm:$0x3] %v49
  %v52 = vld [vmem:[%s0] sm:$0xc]
  %v53 = vld [vmem:[%s0 + $0x4] sm:$0x1]
  %v56 = vunpack.c.l.b16 %v52
  %v57 = vunpack.c.l.b16 %v53
  %v58 = vpack.c.b16 %v57, %v56
  %v60 = vshrl.u32 %v58, 16
  %v62 = vrot.slane %v60, 2
  %v63 = vshll.u32 %v58, 16
  %v65 = vrot.slane %v63, 3
  %v66 = vor.u32 %v62, %v65
  %68 = vst [vmem:[#allocation2 + $0x30] sm:$0x3] %v66
  %v69 = vld [vmem:[%s17] sm:$0xc]
  %v70 = vld [vmem:[%s17 + $0x4] sm:$0x1]
  %v73 = vunpack.c.l.b16 %v69
  %v74 = vunpack.c.l.b16 %v70
  %v75 = vpack.c.b16 %v74, %v73
  %v77 = vshrl.u32 %v75, 16
  %v79 = vrot.slane %v77, 2
  %v80 = vshll.u32 %v75, 16
  %v82 = vrot.slane %v80, 3
  %v83 = vor.u32 %v79, %v82
  %85 = vst [vmem:[#allocation2 + $0x38] sm:$0x3] %v83
  %v86 = vld [vmem:[%s0] sm:$0x8]
  %v87 = vld [vmem:[%s0 + $0x4] sm:$0x1]
  %v90 = vunpack.c.l.b16 %v86
  %v91 = vunpack.c.l.b16 %v87
  %v92 = vpack.c.b16 %v91, %v90
  %v93 = vrot.slane %v92, 3
  %95 = vst [vmem:[#allocation2 + $0x40] sm:$0x3] %v93
  %v96 = vld [vmem:[%s0] sm:$0xc]
  %v97 = vld [vmem:[%s0 + $0x4] sm:$0x1]
  %v100 = vunpack.c.l.b16 %v96
  %v101 = vunpack.c.l.b16 %v97
  %v102 = vpack.c.b16 %v101, %v100
  %v104 = vshrl.u32 %v102, 16
  %v106 = vshll.u32 %v102, 16
  %v108 = vrot.slane %v106, 1
  %v109 = vor.u32 %v104, %v108
  %111 = vst [vmem:[#allocation2] sm:$0xc] %v109
  %v112 = vld [vmem:[%s17] sm:$0xc]
  %v113 = vld [vmem:[%s17 + $0x4] sm:$0x1]
  %v116 = vunpack.c.l.b16 %v112
  %v117 = vunpack.c.l.b16 %v113
  %v118 = vpack.c.b16 %v117, %v116
  %v120 = vshrl.u32 %v118, 16
  %v122 = vshll.u32 %v118, 16
  %v124 = vrot.slane %v122, 1
  %v125 = vor.u32 %v120, %v124
  %127 = vst [vmem:[#allocation2 + $0x8] sm:$0xc] %v125
  %v128 = vld [vmem:[%s0] sm:$0x8]
  %v129 = vld [vmem:[%s0 + $0x4] sm:$0x1]
  %v132 = vunpack.c.l.b16 %v128
  %v133 = vunpack.c.l.b16 %v129
  %v134 = vpack.c.b16 %v133, %v132
  %v135 = vrot.slane %v134, 1
  %137 = vst [vmem:[#allocation2 + $0x10] sm:$0xc] %v135
  %v138 = vld [vmem:[%s33] sm:$0xc]
  %v139 = vld [vmem:[%s33 + $0x4] sm:$0x1]
  %v142 = vunpack.c.l.b16 %v138
  %v143 = vunpack.c.l.b16 %v139
  %v144 = vpack.c.b16 %v143, %v142
  %v146 = vshrl.u32 %v144, 16
  %v148 = vshll.u32 %v144, 16
  %v150 = vrot.slane %v148, 1
  %v151 = vor.u32 %v146, %v150
  %153 = vst [vmem:[#allocation2 + $0x18] sm:$0xc] %v151
  %v154 = vld [vmem:[%s36] sm:$0xc]
  %v155 = vld [vmem:[%s36 + $0x4] sm:$0x1]
  %v158 = vunpack.c.l.b16 %v154
  %v159 = vunpack.c.l.b16 %v155
  %v160 = vpack.c.b16 %v159, %v158
  %v162 = vshrl.u32 %v160, 16
  %v164 = vshll.u32 %v160, 16
  %v166 = vrot.slane %v164, 1
  %v167 = vor.u32 %v162, %v166
  %169 = vst [vmem:[#allocation2 + $0x20] sm:$0xc] %v167
  %v170 = vld [vmem:[%s33] sm:$0x8]
  %v171 = vld [vmem:[%s33 + $0x4] sm:$0x1]
  %v174 = vunpack.c.l.b16 %v170
  %v175 = vunpack.c.l.b16 %v171
  %v176 = vpack.c.b16 %v175, %v174
  %v177 = vrot.slane %v176, 1
  %179 = vst [vmem:[#allocation2 + $0x28] sm:$0xc] %v177
  %v180 = vld [vmem:[%s0 + $0x4] sm:$0x6]
  %v182 = vunpack.c.l.b16 %v180
  %v183 = vpack.c.b16 %v182, %v182
  %v184 = vrot.slane %v183, 7
  %186 = vst [vmem:[#allocation2 + $0x30] sm:$0xc] %v184
  %v187 = vld [vmem:[%s17 + $0x4] sm:$0x6]
  %v189 = vunpack.c.l.b16 %v187
  %v190 = vpack.c.b16 %v189, %v189
  %v191 = vrot.slane %v190, 7
  %193 = vst [vmem:[#allocation2 + $0x38] sm:$0xc] %v191
  %v194 = vld [vmem:[%s0 + $0x4] sm:$0xe]
  %v196 = vunpack.c.l.b16 %v194
  %v197 = vpack.c.b16 %v196, %v196
  %v199 = vshrl.u32 %v197, 16
  %v201 = vrot.slane %v199, 7
  %v202 = vshll.u32 %v197, 16
  %v204 = vor.u32 %v201, %v202
  %206 = vst [vmem:[#allocation2 + $0x40] sm:$0xc] %v204
  %v207 = vld [vmem:[%s0 + $0x4] sm:$0x6]
  %v209 = vunpack.c.l.b16 %v207
  %v210 = vpack.c.b16 %v209, %v209
  %v211 = vrot.slane %v210, 5
  %213 = vst [vmem:[#allocation2] sm:$0x30] %v211
  %v214 = vld [vmem:[%s17 + $0x4] sm:$0x6]
  %v216 = vunpack.c.l.b16 %v214
  %v217 = vpack.c.b16 %v216, %v216
  %v218 = vrot.slane %v217, 5
  %220 = vst [vmem:[#allocation2 + $0x8] sm:$0x30] %v218
  %v221 = vld [vmem:[%s0 + $0x4] sm:$0xe]
  %v223 = vunpack.c.l.b16 %v221
  %v224 = vpack.c.b16 %v223, %v223
  %v226 = vshrl.u32 %v224, 16
  %v228 = vrot.slane %v226, 5
  %v229 = vshll.u32 %v224, 16
  %v231 = vrot.slane %v229, 6
  %v232 = vor.u32 %v228, %v231
  %234 = vst [vmem:[#allocation2 + $0x10] sm:$0x30] %v232
  %v235 = vld [vmem:[%s33 + $0x4] sm:$0x6]
  %v237 = vunpack.c.l.b16 %v235
  %v238 = vpack.c.b16 %v237, %v237
  %v239 = vrot.slane %v238, 5
  %241 = vst [vmem:[#allocation2 + $0x18] sm:$0x30] %v239
  %v242 = vld [vmem:[%s36 + $0x4] sm:$0x6]
  %v244 = vunpack.c.l.b16 %v242
  %v245 = vpack.c.b16 %v244, %v244
  %v246 = vrot.slane %v245, 5
  %248 = vst [vmem:[#allocation2 + $0x20] sm:$0x30] %v246
  %v249 = vld [vmem:[%s33 + $0x4] sm:$0xe]
  %v251 = vunpack.c.l.b16 %v249
  %v252 = vpack.c.b16 %v251, %v251
  %v254 = vshrl.u32 %v252, 16
  %v256 = vrot.slane %v254, 5
  %v257 = vshll.u32 %v252, 16
  %v259 = vrot.slane %v257, 6
  %v260 = vor.u32 %v256, %v259
  %262 = vst [vmem:[#allocation2 + $0x28] sm:$0x30] %v260
  %v263 = vld [vmem:[%s0 + $0x4] sm:$0x8]
  %v264 = vld [vmem:[%s0 + $0x8] sm:$0x3]
  %v267 = vunpack.c.l.b16 %v263
  %v268 = vunpack.c.l.b16 %v264
  %v269 = vpack.c.b16 %v268, %v267
  %v271 = vshrl.u32 %v269, 16
  %v273 = vrot.slane %v271, 7
  %v274 = vshll.u32 %v269, 16
  %v276 = vor.u32 %v273, %v274
  %278 = vst [vmem:[#allocation2 + $0x30] sm:$0x30] %v276
  %v279 = vld [vmem:[%s17 + $0x4] sm:$0x8]
  %v280 = vld [vmem:[%s17 + $0x8] sm:$0x3]
  %v283 = vunpack.c.l.b16 %v279
  %v284 = vunpack.c.l.b16 %v280
  %v285 = vpack.c.b16 %v284, %v283
  %v287 = vshrl.u32 %v285, 16
  %v289 = vrot.slane %v287, 7
  %v290 = vshll.u32 %v285, 16
  %v292 = vor.u32 %v289, %v290
  %294 = vst [vmem:[#allocation2 + $0x38] sm:$0x30] %v292
  %v295 = vld [vmem:[%s0 + $0x8] sm:$0x3]
  %v297 = vunpack.c.l.b16 %v295
  %v298 = vpack.c.b16 %v297, %v297
  %300 = vst [vmem:[#allocation2 + $0x40] sm:$0x30] %v298
  %v301 = vld [vmem:[%s0 + $0x4] sm:$0x8]
  %v302 = vld [vmem:[%s0 + $0x8] sm:$0x3]
  %v305 = vunpack.c.l.b16 %v301
  %v306 = vunpack.c.l.b16 %v302
  %v307 = vpack.c.b16 %v306, %v305
  %v309 = vshrl.u32 %v307, 16
  %v311 = vrot.slane %v309, 5
  %v312 = vshll.u32 %v307, 16
  %v314 = vrot.slane %v312, 6
  %v315 = vor.u32 %v311, %v314
  %317 = vst [vmem:[#allocation2] sm:$0xc0] %v315
  %v318 = vld [vmem:[%s17 + $0x4] sm:$0x8]
  %v319 = vld [vmem:[%s17 + $0x8] sm:$0x3]
  %v322 = vunpack.c.l.b16 %v318
  %v323 = vunpack.c.l.b16 %v319
  %v324 = vpack.c.b16 %v323, %v322
  %v326 = vshrl.u32 %v324, 16
  %v328 = vrot.slane %v326, 5
  %v329 = vshll.u32 %v324, 16
  %v331 = vrot.slane %v329, 6
  %v332 = vor.u32 %v328, %v331
  %334 = vst [vmem:[#allocation2 + $0x8] sm:$0xc0] %v332
  %v335 = vld [vmem:[%s0 + $0x8] sm:$0x3]
  %v337 = vunpack.c.l.b16 %v335
  %v338 = vpack.c.b16 %v337, %v337
  %v339 = vrot.slane %v338, 2
  %341 = vst [vmem:[#allocation2 + $0x10] sm:$0xc0] %v339
  %v342 = vld [vmem:[%s33 + $0x4] sm:$0x8]
  %v343 = vld [vmem:[%s33 + $0x8] sm:$0x3]
  %v346 = vunpack.c.l.b16 %v342
  %v347 = vunpack.c.l.b16 %v343
  %v348 = vpack.c.b16 %v347, %v346
  %v350 = vshrl.u32 %v348, 16
  %v352 = vrot.slane %v350, 5
  %v353 = vshll.u32 %v348, 16
  %v355 = vrot.slane %v353, 6
  %v356 = vor.u32 %v352, %v355
  %358 = vst [vmem:[#allocation2 + $0x18] sm:$0xc0] %v356
  %v359 = vld [vmem:[%s36 + $0x4] sm:$0x8]
  %v360 = vld [vmem:[%s36 + $0x8] sm:$0x3]
  %v363 = vunpack.c.l.b16 %v359
  %v364 = vunpack.c.l.b16 %v360
  %v365 = vpack.c.b16 %v364, %v363
  %v367 = vshrl.u32 %v365, 16
  %v369 = vrot.slane %v367, 5
  %v370 = vshll.u32 %v365, 16
  %v372 = vrot.slane %v370, 6
  %v373 = vor.u32 %v369, %v372
  %375 = vst [vmem:[#allocation2 + $0x20] sm:$0xc0] %v373
  %v376 = vld [vmem:[%s33 + $0x8] sm:$0x3]
  %v378 = vunpack.c.l.b16 %v376
  %v379 = vpack.c.b16 %v378, %v378
  %v380 = vrot.slane %v379, 2
  %382 = vst [vmem:[#allocation2 + $0x28] sm:$0xc0] %v380
  %v383 = vld [vmem:[%s0 + $0x8] sm:$0xc]
  %v385 = vunpack.c.l.b16 %v383
  %v386 = vpack.c.b16 %v385, %v385
  %388 = vst [vmem:[#allocation2 + $0x30] sm:$0xc0] %v386
  %v389 = vld [vmem:[%s17 + $0x8] sm:$0xc]
  %v391 = vunpack.c.l.b16 %v389
  %v392 = vpack.c.b16 %v391, %v391
  %394 = vst [vmem:[#allocation2 + $0x38] sm:$0xc0] %v392
  %v395 = vld [vmem:[%s0 + $0x8] sm:$0xc]
  %v396 = vld [vmem:[%s0 + $0xc] sm:$0x1]
  %v399 = vunpack.c.l.b16 %v395
  %v400 = vunpack.c.l.b16 %v396
  %v401 = vpack.c.b16 %v400, %v399
  %v403 = vshrl.u32 %v401, 16
  %v405 = vrot.slane %v403, 4
  %v406 = vshll.u32 %v401, 16
  %v408 = vrot.slane %v406, 5
  %v409 = vor.u32 %v405, %v408
  %411 = vst [vmem:[#allocation2 + $0x40] sm:$0xc0] %v409
  %s412 = scalar_lea.vmem %s0, 64
  %v413 = vld [vmem:[%s412] sm:$0x3]
  %414 = vst [vmem:[#allocation2 + $0x48] sm:$0x3] %v413
  %s415 = scalar_lea.vmem %s0, 80
  %v416 = vld [vmem:[%s415] sm:$0x3]
  %417 = vst [vmem:[#allocation2 + $0x50] sm:$0x3] %v416
  %v418 = vld [vmem:[%s412] sm:$0x7]
  %v420 = vunpack.c.l.b16 %v418
  %v421 = vpack.c.b16 %v420, %v420
  %v423 = vshrl.u32 %v421, 16
  %v425 = vshll.u32 %v421, 16
  %v427 = vrot.slane %v425, 1
  %v428 = vor.u32 %v423, %v427
  %430 = vst [vmem:[#allocation2 + $0x58] sm:$0x3] %v428
  %s431 = scalar_lea.vmem %s0, 96
  %v432 = vld [vmem:[%s431] sm:$0x3]
  %433 = vst [vmem:[#allocation2 + $0x60] sm:$0x3] %v432
  %s434 = scalar_lea.vmem %s0, 112
  %v435 = vld [vmem:[%s434] sm:$0x3]
  %436 = vst [vmem:[#allocation2 + $0x68] sm:$0x3] %v435
  %v437 = vld [vmem:[%s431] sm:$0x7]
  %v439 = vunpack.c.l.b16 %v437
  %v440 = vpack.c.b16 %v439, %v439
  %v442 = vshrl.u32 %v440, 16
  %v444 = vshll.u32 %v440, 16
  %v446 = vrot.slane %v444, 1
  %v447 = vor.u32 %v442, %v446
  %449 = vst [vmem:[#allocation2 + $0x70] sm:$0x3] %v447
  %v450 = vld [vmem:[%s412] sm:$0xc]
  %v451 = vld [vmem:[%s412 + $0x4] sm:$0x1]
  %v454 = vunpack.c.l.b16 %v450
  %v455 = vunpack.c.l.b16 %v451
  %v456 = vpack.c.b16 %v455, %v454
  %v458 = vshrl.u32 %v456, 16
  %v460 = vrot.slane %v458, 2
  %v461 = vshll.u32 %v456, 16
  %v463 = vrot.slane %v461, 3
  %v464 = vor.u32 %v460, %v463
  %466 = vst [vmem:[#allocation2 + $0x78] sm:$0x3] %v464
  %v467 = vld [vmem:[%s415] sm:$0xc]
  %v468 = vld [vmem:[%s415 + $0x4] sm:$0x1]
  %v471 = vunpack.c.l.b16 %v467
  %v472 = vunpack.c.l.b16 %v468
  %v473 = vpack.c.b16 %v472, %v471
  %v475 = vshrl.u32 %v473, 16
  %v477 = vrot.slane %v475, 2
  %v478 = vshll.u32 %v473, 16
  %v480 = vrot.slane %v478, 3
  %v481 = vor.u32 %v477, %v480
  %483 = vst [vmem:[#allocation2 + $0x80] sm:$0x3] %v481
  %v484 = vld [vmem:[%s412] sm:$0x8]
  %v485 = vld [vmem:[%s412 + $0x4] sm:$0x1]
  %v488 = vunpack.c.l.b16 %v484
  %v489 = vunpack.c.l.b16 %v485
  %v490 = vpack.c.b16 %v489, %v488
  %v491 = vrot.slane %v490, 3
  %493 = vst [vmem:[#allocation2 + $0x88] sm:$0x3] %v491
  %v494 = vld [vmem:[%s412] sm:$0xc]
  %v495 = vld [vmem:[%s412 + $0x4] sm:$0x1]
  %v498 = vunpack.c.l.b16 %v494
  %v499 = vunpack.c.l.b16 %v495
  %v500 = vpack.c.b16 %v499, %v498
  %v502 = vshrl.u32 %v500, 16
  %v504 = vshll.u32 %v500, 16
  %v506 = vrot.slane %v504, 1
  %v507 = vor.u32 %v502, %v506
  %509 = vst [vmem:[#allocation2 + $0x48] sm:$0xc] %v507
  %v510 = vld [vmem:[%s415] sm:$0xc]
  %v511 = vld [vmem:[%s415 + $0x4] sm:$0x1]
  %v514 = vunpack.c.l.b16 %v510
  %v515 = vunpack.c.l.b16 %v511
  %v516 = vpack.c.b16 %v515, %v514
  %v518 = vshrl.u32 %v516, 16
  %v520 = vshll.u32 %v516, 16
  %v522 = vrot.slane %v520, 1
  %v523 = vor.u32 %v518, %v522
  %525 = vst [vmem:[#allocation2 + $0x50] sm:$0xc] %v523
  %v526 = vld [vmem:[%s412] sm:$0x8]
  %v527 = vld [vmem:[%s412 + $0x4] sm:$0x1]
  %v530 = vunpack.c.l.b16 %v526
  %v531 = vunpack.c.l.b16 %v527
  %v532 = vpack.c.b16 %v531, %v530
  %v533 = vrot.slane %v532, 1
  %535 = vst [vmem:[#allocation2 + $0x58] sm:$0xc] %v533
  %v536 = vld [vmem:[%s431] sm:$0xc]
  %v537 = vld [vmem:[%s431 + $0x4] sm:$0x1]
  %v540 = vunpack.c.l.b16 %v536
  %v541 = vunpack.c.l.b16 %v537
  %v542 = vpack.c.b16 %v541, %v540
  %v544 = vshrl.u32 %v542, 16
  %v546 = vshll.u32 %v542, 16
  %v548 = vrot.slane %v546, 1
  %v549 = vor.u32 %v544, %v548
  %551 = vst [vmem:[#allocation2 + $0x60] sm:$0xc] %v549
  %v552 = vld [vmem:[%s434] sm:$0xc]
  %v553 = vld [vmem:[%s434 + $0x4] sm:$0x1]
  %v556 = vunpack.c.l.b16 %v552
  %v557 = vunpack.c.l.b16 %v553
  %v558 = vpack.c.b16 %v557, %v556
  %v560 = vshrl.u32 %v558, 16
  %v562 = vshll.u32 %v558, 16
  %v564 = vrot.slane %v562, 1
  %v565 = vor.u32 %v560, %v564
  %567 = vst [vmem:[#allocation2 + $0x68] sm:$0xc] %v565
  %v568 = vld [vmem:[%s431] sm:$0x8]
  %v569 = vld [vmem:[%s431 + $0x4] sm:$0x1]
  %v572 = vunpack.c.l.b16 %v568
  %v573 = vunpack.c.l.b16 %v569
  %v574 = vpack.c.b16 %v573, %v572
  %v575 = vrot.slane %v574, 1
  %577 = vst [vmem:[#allocation2 + $0x70] sm:$0xc] %v575
  %v578 = vld [vmem:[%s412 + $0x4] sm:$0x6]
  %v580 = vunpack.c.l.b16 %v578
  %v581 = vpack.c.b16 %v580, %v580
  %v582 = vrot.slane %v581, 7
  %584 = vst [vmem:[#allocation2 + $0x78] sm:$0xc] %v582
  %v585 = vld [vmem:[%s415 + $0x4] sm:$0x6]
  %v587 = vunpack.c.l.b16 %v585
  %v588 = vpack.c.b16 %v587, %v587
  %v589 = vrot.slane %v588, 7
  %591 = vst [vmem:[#allocation2 + $0x80] sm:$0xc] %v589
  %v592 = vld [vmem:[%s412 + $0x4] sm:$0xe]
  %v594 = vunpack.c.l.b16 %v592
  %v595 = vpack.c.b16 %v594, %v594
  %v597 = vshrl.u32 %v595, 16
  %v599 = vrot.slane %v597, 7
  %v600 = vshll.u32 %v595, 16
  %v602 = vor.u32 %v599, %v600
  %604 = vst [vmem:[#allocation2 + $0x88] sm:$0xc] %v602
  %v605 = vld [vmem:[%s412 + $0x4] sm:$0x6]
  %v607 = vunpack.c.l.b16 %v605
  %v608 = vpack.c.b16 %v607, %v607
  %v609 = vrot.slane %v608, 5
  %611 = vst [vmem:[#allocation2 + $0x48] sm:$0x30] %v609
  %v612 = vld [vmem:[%s415 + $0x4] sm:$0x6]
  %v614 = vunpack.c.l.b16 %v612
  %v615 = vpack.c.b16 %v614, %v614
  %v616 = vrot.slane %v615, 5
  %618 = vst [vmem:[#allocation2 + $0x50] sm:$0x30] %v616
  %v619 = vld [vmem:[%s412 + $0x4] sm:$0xe]
  %v621 = vunpack.c.l.b16 %v619
  %v622 = vpack.c.b16 %v621, %v621
  %v624 = vshrl.u32 %v622, 16
  %v626 = vrot.slane %v624, 5
  %v627 = vshll.u32 %v622, 16
  %v629 = vrot.slane %v627, 6
  %v630 = vor.u32 %v626, %v629
  %632 = vst [vmem:[#allocation2 + $0x58] sm:$0x30] %v630
  %v633 = vld [vmem:[%s431 + $0x4] sm:$0x6]
  %v635 = vunpack.c.l.b16 %v633
  %v636 = vpack.c.b16 %v635, %v635
  %v637 = vrot.slane %v636, 5
  %639 = vst [vmem:[#allocation2 + $0x60] sm:$0x30] %v637
  %v640 = vld [vmem:[%s434 + $0x4] sm:$0x6]
  %v642 = vunpack.c.l.b16 %v640
  %v643 = vpack.c.b16 %v642, %v642
  %v644 = vrot.slane %v643, 5
  %646 = vst [vmem:[#allocation2 + $0x68] sm:$0x30] %v644
  %v647 = vld [vmem:[%s431 + $0x4] sm:$0xe]
  %v649 = vunpack.c.l.b16 %v647
  %v650 = vpack.c.b16 %v649, %v649
  %v652 = vshrl.u32 %v650, 16
  %v654 = vrot.slane %v652, 5
  %v655 = vshll.u32 %v650, 16
  %v657 = vrot.slane %v655, 6
  %v658 = vor.u32 %v654, %v657
  %660 = vst [vmem:[#allocation2 + $0x70] sm:$0x30] %v658
  %v661 = vld [vmem:[%s412 + $0x4] sm:$0x8]
  %v662 = vld [vmem:[%s412 + $0x8] sm:$0x3]
  %v665 = vunpack.c.l.b16 %v661
  %v666 = vunpack.c.l.b16 %v662
  %v667 = vpack.c.b16 %v666, %v665
  %v669 = vshrl.u32 %v667, 16
  %v671 = vrot.slane %v669, 7
  %v672 = vshll.u32 %v667, 16
  %v674 = vor.u32 %v671, %v672
  %676 = vst [vmem:[#allocation2 + $0x78] sm:$0x30] %v674
  %v677 = vld [vmem:[%s415 + $0x4] sm:$0x8]
  %v678 = vld [vmem:[%s415 + $0x8] sm:$0x3]
  %v681 = vunpack.c.l.b16 %v677
  %v682 = vunpack.c.l.b16 %v678
  %v683 = vpack.c.b16 %v682, %v681
  %v685 = vshrl.u32 %v683, 16
  %v687 = vrot.slane %v685, 7
  %v688 = vshll.u32 %v683, 16
  %v690 = vor.u32 %v687, %v688
  %692 = vst [vmem:[#allocation2 + $0x80] sm:$0x30] %v690
  %v693 = vld [vmem:[%s412 + $0x8] sm:$0x3]
  %v695 = vunpack.c.l.b16 %v693
  %v696 = vpack.c.b16 %v695, %v695
  %698 = vst [vmem:[#allocation2 + $0x88] sm:$0x30] %v696
  %v699 = vld [vmem:[%s412 + $0x4] sm:$0x8]
  %v700 = vld [vmem:[%s412 + $0x8] sm:$0x3]
  %v703 = vunpack.c.l.b16 %v699
  %v704 = vunpack.c.l.b16 %v700
  %v705 = vpack.c.b16 %v704, %v703
  %v707 = vshrl.u32 %v705, 16
  %v709 = vrot.slane %v707, 5
  %v710 = vshll.u32 %v705, 16
  %v712 = vrot.slane %v710, 6
  %v713 = vor.u32 %v709, %v712
  %715 = vst [vmem:[#allocation2 + $0x48] sm:$0xc0] %v713
  %v716 = vld [vmem:[%s415 + $0x4] sm:$0x8]
  %v717 = vld [vmem:[%s415 + $0x8] sm:$0x3]
  %v720 = vunpack.c.l.b16 %v716
  %v721 = vunpack.c.l.b16 %v717
  %v722 = vpack.c.b16 %v721, %v720
  %v724 = vshrl.u32 %v722, 16
  %v726 = vrot.slane %v724, 5
  %v727 = vshll.u32 %v722, 16
  %v729 = vrot.slane %v727, 6
  %v730 = vor.u32 %v726, %v729
  %732 = vst [vmem:[#allocation2 + $0x50] sm:$0xc0] %v730
  %v733 = vld [vmem:[%s412 + $0x8] sm:$0x3]
  %v735 = vunpack.c.l.b16 %v733
  %v736 = vpack.c.b16 %v735, %v735
  %v737 = vrot.slane %v736, 2
  %739 = vst [vmem:[#allocation2 + $0x58] sm:$0xc0] %v737
  %v740 = vld [vmem:[%s431 + $0x4] sm:$0x8]
  %v741 = vld [vmem:[%s431 + $0x8] sm:$0x3]
  %v744 = vunpack.c.l.b16 %v740
  %v745 = vunpack.c.l.b16 %v741
  %v746 = vpack.c.b16 %v745, %v744
  %v748 = vshrl.u32 %v746, 16
  %v750 = vrot.slane %v748, 5
  %v751 = vshll.u32 %v746, 16
  %v753 = vrot.slane %v751, 6
  %v754 = vor.u32 %v750, %v753
  %756 = vst [vmem:[#allocation2 + $0x60] sm:$0xc0] %v754
  %v757 = vld [vmem:[%s434 + $0x4] sm:$0x8]
  %v758 = vld [vmem:[%s434 + $0x8] sm:$0x3]
  %v761 = vunpack.c.l.b16 %v757
  %v762 = vunpack.c.l.b16 %v758
  %v763 = vpack.c.b16 %v762, %v761
  %v765 = vshrl.u32 %v763, 16
  %v767 = vrot.slane %v765, 5
  %v768 = vshll.u32 %v763, 16
  %v770 = vrot.slane %v768, 6
  %v771 = vor.u32 %v767, %v770
  %773 = vst [vmem:[#allocation2 + $0x68] sm:$0xc0] %v771
  %v774 = vld [vmem:[%s431 + $0x8] sm:$0x3]
  %v776 = vunpack.c.l.b16 %v774
  %v777 = vpack.c.b16 %v776, %v776
  %v778 = vrot.slane %v777, 2
  %780 = vst [vmem:[#allocation2 + $0x70] sm:$0xc0] %v778
  %v781 = vld [vmem:[%s412 + $0x8] sm:$0xc]
  %v783 = vunpack.c.l.b16 %v781
  %v784 = vpack.c.b16 %v783, %v783
  %786 = vst [vmem:[#allocation2 + $0x78] sm:$0xc0] %v784
  %v787 = vld [vmem:[%s415 + $0x8] sm:$0xc]
  %v789 = vunpack.c.l.b16 %v787
  %v790 = vpack.c.b16 %v789, %v789
  %792 = vst [vmem:[#allocation2 + $0x80] sm:$0xc0] %v790
  %v793 = vld [vmem:[%s412 + $0x8] sm:$0xc]
  %v794 = vld [vmem:[%s412 + $0xc] sm:$0x1]
  %v797 = vunpack.c.l.b16 %v793
  %v798 = vunpack.c.l.b16 %v794
  %v799 = vpack.c.b16 %v798, %v797
  %v801 = vshrl.u32 %v799, 16
  %v803 = vrot.slane %v801, 4
  %v804 = vshll.u32 %v799, 16
  %v806 = vrot.slane %v804, 5
  %v807 = vor.u32 %v803, %v806
  %809 = vst [vmem:[#allocation2 + $0x88] sm:$0xc0] %v807
  %v810 = vld [vmem:[#allocation2] sm:$0xff]
  %v811 = vld [vmem:[#allocation2 + $0x8] sm:$0xff]
  %v812 = vld [vmem:[#allocation2 + $0x10] sm:$0xff]
  %v813 = vld [vmem:[#allocation2 + $0x18] sm:$0xff]
  %v814 = vld [vmem:[#allocation2 + $0x20] sm:$0xff]
  %v815 = vld [vmem:[#allocation2 + $0x28] sm:$0xff]
  %v816 = vld [vmem:[#allocation2 + $0x30] sm:$0xff]
  %v817 = vld [vmem:[#allocation2 + $0x38] sm:$0xff]
  %v818 = vld [vmem:[#allocation2 + $0x40] sm:$0xff]
  %v819 = vld [vmem:[#allocation2 + $0x48] sm:$0xff]
  %v820 = vld [vmem:[#allocation2 + $0x50] sm:$0xff]
  %v821 = vld [vmem:[#allocation2 + $0x58] sm:$0xff]
  %v822 = vld [vmem:[#allocation2 + $0x60] sm:$0xff]
  %v823 = vld [vmem:[#allocation2 + $0x68] sm:$0xff]
  %v824 = vld [vmem:[#allocation2 + $0x70] sm:$0xff]
  %v825 = vld [vmem:[#allocation2 + $0x78] sm:$0xff]
  %v826 = vld [vmem:[#allocation2 + $0x80] sm:$0xff]
  %v827 = vld [vmem:[#allocation2 + $0x88] sm:$0xff]
  %v828 = vld [vmem:[%s1] sm:$0xf]
  %v829 = vld [vmem:[%s1 + $0x4] sm:$0xf]
  %v830 = vld [vmem:[%s1 + $0x8] sm:$0xf]
  %v831 = vld [vmem:[%s1 + $0xc] sm:$0xf]
  %v832 = vld [vmem:[%s1 + $0x10] sm:$0xf]
  %v833 = vld [vmem:[%s1 + $0x14] sm:$0xf]
  %v834 = vld [vmem:[%s1 + $0x18] sm:$0xf]
  %v835 = vld [vmem:[%s1 + $0x1c] sm:$0xf]
  %v836 = vld [vmem:[%s1 + $0x20] sm:$0xf]
  %v837 = vld [vmem:[%s1 + $0x24] sm:$0xf]
  %v838 = vld [vmem:[%s1 + $0x28] sm:$0xf]
  %v839 = vld [vmem:[%s1 + $0x2c] sm:$0xf]
  %v840 = vld [vmem:[%s1 + $0x30] sm:$0xf]
  %v841 = vld [vmem:[%s1 + $0x34] sm:$0xf]
  %v842 = vld [vmem:[%s1 + $0x38] sm:$0xf]
  %v843 = vld [vmem:[%s1 + $0x3c] sm:$0xf]
  %v844 = vld [vmem:[%s1 + $0x40] sm:$0xf]
  %v845 = vld [vmem:[%s1 + $0x44] sm:$0xf]
  %v846 = vld [vmem:[%s1 + $0x48] sm:$0xf]
  %v847 = vld [vmem:[%s1 + $0x4c] sm:$0xf]
  %v848 = vld [vmem:[%s1 + $0x50] sm:$0xf]
  %v849 = vld [vmem:[%s1 + $0x54] sm:$0xf]
  %v850 = vld [vmem:[%s1 + $0x58] sm:$0xf]
  %v851 = vld [vmem:[%s1 + $0x5c] sm:$0xf]
  %v852 = vld [vmem:[%s1 + $0x60] sm:$0xf]
  %v853 = vld [vmem:[%s1 + $0x64] sm:$0xf]
  %v854 = vld [vmem:[%s1 + $0x68] sm:$0xf]
  %v855 = vld [vmem:[%s1 + $0x6c] sm:$0xf]
  %v856 = vld [vmem:[%s1 + $0x70] sm:$0xf]
  %v857 = vld [vmem:[%s1 + $0x74] sm:$0xf]
  %v858 = vld [vmem:[%s1 + $0x78] sm:$0xf]
  %v859 = vld [vmem:[%s1 + $0x7c] sm:$0xf]
  %v860 = vld [vmem:[%s1 + $0x80] sm:$0xf]
  %v861 = vld [vmem:[%s1 + $0x84] sm:$0xf]
  %v862 = vld [vmem:[%s1 + $0x88] sm:$0xf]
  %v863 = vld [vmem:[%s1 + $0x8c] sm:$0xf]
  %v864 = vld [vmem:[%s1 + $0x90] sm:$0xf]
  %v865 = vld [vmem:[%s1 + $0x94] sm:$0xf]
  %v866 = vld [vmem:[%s1 + $0x98] sm:$0xf]
  %v867 = vld [vmem:[%s1 + $0x9c] sm:$0xf]
  %v868 = vld [vmem:[%s1 + $0xa0] sm:$0xf]
  %v869 = vld [vmem:[%s1 + $0xa4] sm:$0xf]
  %v870 = vld [vmem:[%s1 + $0xa8] sm:$0xf]
  %v871 = vld [vmem:[%s1 + $0xac] sm:$0xf]
  %v872 = vld [vmem:[%s1 + $0xb0] sm:$0xf]
  %v873 = vld [vmem:[%s1 + $0xb4] sm:$0xf]
  %v874 = vld [vmem:[%s1 + $0xb8] sm:$0xf]
  %v875 = vld [vmem:[%s1 + $0xbc] sm:$0xf]
  %v876 = vld [vmem:[%s1 + $0xc0] sm:$0xf]
  %v877 = vld [vmem:[%s1 + $0xc4] sm:$0xf]
  %v878 = vld [vmem:[%s1 + $0xc8] sm:$0xf]
  %v879 = vld [vmem:[%s1 + $0xcc] sm:$0xf]
  %v880 = vld [vmem:[%s1 + $0xd0] sm:$0xf]
  %v881 = vld [vmem:[%s1 + $0xd4] sm:$0xf]
  %v882 = vld [vmem:[%s1 + $0xd8] sm:$0xf]
  %v883 = vld [vmem:[%s1 + $0xdc] sm:$0xf]
  %v884 = vld [vmem:[%s1 + $0xe0] sm:$0xf]
  %v885 = vld [vmem:[%s1 + $0xe4] sm:$0xf]
  %v886 = vld [vmem:[%s1 + $0xe8] sm:$0xf]
  %v887 = vld [vmem:[%s1 + $0xec] sm:$0xf]
  %v888 = vld [vmem:[%s1 + $0xf0] sm:$0xf]
  %v889 = vld [vmem:[%s1 + $0xf4] sm:$0xf]
  %v890 = vld [vmem:[%s1 + $0xf8] sm:$0xf]
  %v891 = vld [vmem:[%s1 + $0xfc] sm:$0xf]
  %v892 = vld [vmem:[%s1 + $0x100] sm:$0xf]
  %v893 = vld [vmem:[%s1 + $0x104] sm:$0xf]
  %v894 = vld [vmem:[%s1 + $0x108] sm:$0xf]
  %v895 = vld [vmem:[%s1 + $0x10c] sm:$0xf]
  %v896 = vld [vmem:[%s1 + $0x110] sm:$0xf]
  %v897 = vld [vmem:[%s1 + $0x114] sm:$0xf]
  %v898 = vld [vmem:[%s1 + $0x118] sm:$0xf]
  %v899 = vld [vmem:[%s1 + $0x11c] sm:$0xf]
  %v900 = vld [vmem:[%s1 + $0x120] sm:$0xf]
  %v901 = vld [vmem:[%s1 + $0x124] sm:$0xf]
  %v902 = vld [vmem:[%s1 + $0x128] sm:$0xf]
  %v903 = vld [vmem:[%s1 + $0x12c] sm:$0xf]
  %v904 = vld [vmem:[%s1 + $0x130] sm:$0xf]
  %v905 = vld [vmem:[%s1 + $0x134] sm:$0xf]
  %v906 = vld [vmem:[%s1 + $0x138] sm:$0xf]
  %v907 = vld [vmem:[%s1 + $0x13c] sm:$0xf]
  %v908 = vld [vmem:[%s1 + $0x140] sm:$0xf]
  %v909 = vld [vmem:[%s1 + $0x144] sm:$0xf]
  %v910 = vld [vmem:[%s1 + $0x148] sm:$0xf]
  %v911 = vld [vmem:[%s1 + $0x14c] sm:$0xf]
  %v912 = vld [vmem:[%s1 + $0x150] sm:$0xf]
  %v913 = vld [vmem:[%s1 + $0x154] sm:$0xf]
  %v914 = vld [vmem:[%s1 + $0x158] sm:$0xf]
  %v915 = vld [vmem:[%s1 + $0x15c] sm:$0xf]
  %v916 = vld [vmem:[%s1 + $0x160] sm:$0xf]
  %v917 = vld [vmem:[%s1 + $0x164] sm:$0xf]
  %v918 = vld [vmem:[%s1 + $0x168] sm:$0xf]
  %v919 = vld [vmem:[%s1 + $0x16c] sm:$0xf]
  %v920 = vld [vmem:[%s1 + $0x170] sm:$0xf]
  %v921 = vld [vmem:[%s1 + $0x174] sm:$0xf]
  %v922 = vld [vmem:[%s1 + $0x178] sm:$0xf]
  %v923 = vld [vmem:[%s1 + $0x17c] sm:$0xf]
  %v924 = vld [vmem:[%s1 + $0x180] sm:$0xf]
  %v925 = vld [vmem:[%s1 + $0x184] sm:$0xf]
  %v926 = vld [vmem:[%s1 + $0x188] sm:$0xf]
  %v927 = vld [vmem:[%s1 + $0x18c] sm:$0xf]
  %v928 = vld [vmem:[%s1 + $0x190] sm:$0xf]
  %v929 = vld [vmem:[%s1 + $0x194] sm:$0xf]
  %v930 = vld [vmem:[%s1 + $0x198] sm:$0xf]
  %v931 = vld [vmem:[%s1 + $0x19c] sm:$0xf]
  %v932 = vld [vmem:[%s1 + $0x1a0] sm:$0xf]
  %v933 = vld [vmem:[%s1 + $0x1a4] sm:$0xf]
  %v934 = vld [vmem:[%s1 + $0x1a8] sm:$0xf]
  %v935 = vld [vmem:[%s1 + $0x1ac] sm:$0xf]
  %v936 = vld [vmem:[%s1 + $0x1b0] sm:$0xf]
  %v937 = vld [vmem:[%s1 + $0x1b4] sm:$0xf]
  %v938 = vld [vmem:[%s1 + $0x1b8] sm:$0xf]
  %v939 = vld [vmem:[%s1 + $0x1bc] sm:$0xf]
  %v940 = vld [vmem:[%s1 + $0x1c0] sm:$0xf]
  %v941 = vld [vmem:[%s1 + $0x1c4] sm:$0xf]
  %v942 = vld [vmem:[%s1 + $0x1c8] sm:$0xf]
  %v943 = vld [vmem:[%s1 + $0x1cc] sm:$0xf]
  %v944 = vld [vmem:[%s1 + $0x1d0] sm:$0xf]
  %v945 = vld [vmem:[%s1 + $0x1d4] sm:$0xf]
  %v946 = vld [vmem:[%s1 + $0x1d8] sm:$0xf]
  %v947 = vld [vmem:[%s1 + $0x1dc] sm:$0xf]
  %v948 = vld [vmem:[%s1 + $0x1e0] sm:$0xf]
  %v949 = vld [vmem:[%s1 + $0x1e4] sm:$0xf]
  %v950 = vld [vmem:[%s1 + $0x1e8] sm:$0xf]
  %v951 = vld [vmem:[%s1 + $0x1ec] sm:$0xf]
  %v952 = vld [vmem:[%s1 + $0x1f0] sm:$0xf]
  %v953 = vld [vmem:[%s1 + $0x1f4] sm:$0xf]
  %v954 = vld [vmem:[%s1 + $0x1f8] sm:$0xf]
  %v955 = vld [vmem:[%s1 + $0x1fc] sm:$0xf]
  %v956 = vld [vmem:[%s1 + $0x200] sm:$0xf]
  %v957 = vld [vmem:[%s1 + $0x204] sm:$0xf]
  %v958 = vld [vmem:[%s1 + $0x208] sm:$0xf]
  %v959 = vld [vmem:[%s1 + $0x20c] sm:$0xf]
  %v960 = vld [vmem:[%s1 + $0x210] sm:$0xf]
  %v961 = vld [vmem:[%s1 + $0x214] sm:$0xf]
  %v962 = vld [vmem:[%s1 + $0x218] sm:$0xf]
  %v963 = vld [vmem:[%s1 + $0x21c] sm:$0xf]
  %v964 = vld [vmem:[%s1 + $0x220] sm:$0xf]
  %v965 = vld [vmem:[%s1 + $0x224] sm:$0xf]
  %v966 = vld [vmem:[%s1 + $0x228] sm:$0xf]
  %v967 = vld [vmem:[%s1 + $0x22c] sm:$0xf]
  %v968 = vld [vmem:[%s1 + $0x230] sm:$0xf]
  %v969 = vld [vmem:[%s1 + $0x234] sm:$0xf]
  %v970 = vld [vmem:[%s1 + $0x238] sm:$0xf]
  %v971 = vld [vmem:[%s1 + $0x23c] sm:$0xf]
  %v972 = vld [vmem:[%s2] sm:$0x1]
  %v974 = vlaneseq
  %v975 = vshrl.u32 %v974, 7
  %v976 = vsub.s32 0, %v975
  %v977 = vrot.slane %v972, %v976
  %v1123 = vunpack.c.l.b16 %v828
  %v1124 = vunpack.c.l.b16 %v829
  %v1125 = vunpack.c.l.b16 %v830
  %v1126 = vunpack.c.l.b16 %v831
  %v1127 = vunpack.c.l.b16 %v832
  %v1128 = vunpack.c.l.b16 %v833
  %v1129 = vunpack.c.l.b16 %v834
  %v1130 = vunpack.c.l.b16 %v835
  %v1131 = vunpack.c.l.b16 %v836
  %v1132 = vunpack.c.l.b16 %v837
  %v1133 = vunpack.c.l.b16 %v838
  %v1134 = vunpack.c.l.b16 %v839
  %v1135 = vunpack.c.l.b16 %v840
  %v1136 = vunpack.c.l.b16 %v841
  %v1137 = vunpack.c.l.b16 %v842
  %v1138 = vunpack.c.l.b16 %v843
  %v1139 = vunpack.c.l.b16 %v844
  %v1140 = vunpack.c.l.b16 %v845
  %v1141 = vunpack.c.l.b16 %v846
  %v1142 = vunpack.c.l.b16 %v847
  %v1143 = vunpack.c.l.b16 %v848
  %v1144 = vunpack.c.l.b16 %v849
  %v1145 = vunpack.c.l.b16 %v850
  %v1146 = vunpack.c.l.b16 %v851
  %v1147 = vunpack.c.l.b16 %v852
  %v1148 = vunpack.c.l.b16 %v853
  %v1149 = vunpack.c.l.b16 %v854
  %v1150 = vunpack.c.l.b16 %v855
  %v1151 = vunpack.c.l.b16 %v856
  %v1152 = vunpack.c.l.b16 %v857
  %v1153 = vunpack.c.l.b16 %v858
  %v1154 = vunpack.c.l.b16 %v859
  %v1155 = vunpack.c.l.b16 %v860
  %v1156 = vunpack.c.l.b16 %v861
  %v1157 = vunpack.c.l.b16 %v862
  %v1158 = vunpack.c.l.b16 %v863
  %v1159 = vunpack.c.l.b16 %v864
  %v1160 = vunpack.c.l.b16 %v865
  %v1161 = vunpack.c.l.b16 %v866
  %v1162 = vunpack.c.l.b16 %v867
  %v1163 = vunpack.c.l.b16 %v868
  %v1164 = vunpack.c.l.b16 %v869
  %v1165 = vunpack.c.l.b16 %v870
  %v1166 = vunpack.c.l.b16 %v871
  %v1167 = vunpack.c.l.b16 %v872
  %v1168 = vunpack.c.l.b16 %v873
  %v1169 = vunpack.c.l.b16 %v874
  %v1170 = vunpack.c.l.b16 %v875
  %v1171 = vunpack.c.l.b16 %v876
  %v1172 = vunpack.c.l.b16 %v877
  %v1173 = vunpack.c.l.b16 %v878
  %v1174 = vunpack.c.l.b16 %v879
  %v1175 = vunpack.c.l.b16 %v880
  %v1176 = vunpack.c.l.b16 %v881
  %v1177 = vunpack.c.l.b16 %v882
  %v1178 = vunpack.c.l.b16 %v883
  %v1179 = vunpack.c.l.b16 %v884
  %v1180 = vunpack.c.l.b16 %v885
  %v1181 = vunpack.c.l.b16 %v886
  %v1182 = vunpack.c.l.b16 %v887
  %v1183 = vunpack.c.l.b16 %v888
  %v1184 = vunpack.c.l.b16 %v889
  %v1185 = vunpack.c.l.b16 %v890
  %v1186 = vunpack.c.l.b16 %v891
  %v1187 = vunpack.c.l.b16 %v892
  %v1188 = vunpack.c.l.b16 %v893
  %v1189 = vunpack.c.l.b16 %v894
  %v1190 = vunpack.c.l.b16 %v895
  %v1191 = vunpack.c.l.b16 %v896
  %v1192 = vunpack.c.l.b16 %v897
  %v1193 = vunpack.c.l.b16 %v898
  %v1194 = vunpack.c.l.b16 %v899
  %v1195 = vunpack.c.l.b16 %v900
  %v1196 = vunpack.c.l.b16 %v901
  %v1197 = vunpack.c.l.b16 %v902
  %v1198 = vunpack.c.l.b16 %v903
  %v1199 = vunpack.c.l.b16 %v904
  %v1200 = vunpack.c.l.b16 %v905
  %v1201 = vunpack.c.l.b16 %v906
  %v1202 = vunpack.c.l.b16 %v907
  %v1203 = vunpack.c.l.b16 %v908
  %v1204 = vunpack.c.l.b16 %v909
  %v1205 = vunpack.c.l.b16 %v910
  %v1206 = vunpack.c.l.b16 %v911
  %v1207 = vunpack.c.l.b16 %v912
  %v1208 = vunpack.c.l.b16 %v913
  %v1209 = vunpack.c.l.b16 %v914
  %v1210 = vunpack.c.l.b16 %v915
  %v1211 = vunpack.c.l.b16 %v916
  %v1212 = vunpack.c.l.b16 %v917
  %v1213 = vunpack.c.l.b16 %v918
  %v1214 = vunpack.c.l.b16 %v919
  %v1215 = vunpack.c.l.b16 %v920
  %v1216 = vunpack.c.l.b16 %v921
  %v1217 = vunpack.c.l.b16 %v922
  %v1218 = vunpack.c.l.b16 %v923
  %v1219 = vunpack.c.l.b16 %v924
  %v1220 = vunpack.c.l.b16 %v925
  %v1221 = vunpack.c.l.b16 %v926
  %v1222 = vunpack.c.l.b16 %v927
  %v1223 = vunpack.c.l.b16 %v928
  %v1224 = vunpack.c.l.b16 %v929
  %v1225 = vunpack.c.l.b16 %v930
  %v1226 = vunpack.c.l.b16 %v931
  %v1227 = vunpack.c.l.b16 %v932
  %v1228 = vunpack.c.l.b16 %v933
  %v1229 = vunpack.c.l.b16 %v934
  %v1230 = vunpack.c.l.b16 %v935
  %v1231 = vunpack.c.l.b16 %v936
  %v1232 = vunpack.c.l.b16 %v937
  %v1233 = vunpack.c.l.b16 %v938
  %v1234 = vunpack.c.l.b16 %v939
  %v1235 = vunpack.c.l.b16 %v940
  %v1236 = vunpack.c.l.b16 %v941
  %v1237 = vunpack.c.l.b16 %v942
  %v1238 = vunpack.c.l.b16 %v943
  %v1239 = vunpack.c.l.b16 %v944
  %v1240 = vunpack.c.l.b16 %v945
  %v1241 = vunpack.c.l.b16 %v946
  %v1242 = vunpack.c.l.b16 %v947
  %v1243 = vunpack.c.l.b16 %v948
  %v1244 = vunpack.c.l.b16 %v949
  %v1245 = vunpack.c.l.b16 %v950
  %v1246 = vunpack.c.l.b16 %v951
  %v1247 = vunpack.c.l.b16 %v952
  %v1248 = vunpack.c.l.b16 %v953
  %v1249 = vunpack.c.l.b16 %v954
  %v1250 = vunpack.c.l.b16 %v955
  %v1251 = vunpack.c.l.b16 %v956
  %v1252 = vunpack.c.l.b16 %v957
  %v1253 = vunpack.c.l.b16 %v958
  %v1254 = vunpack.c.l.b16 %v959
  %v1255 = vunpack.c.l.b16 %v960
  %v1256 = vunpack.c.l.b16 %v961
  %v1257 = vunpack.c.l.b16 %v962
  %v1258 = vunpack.c.l.b16 %v963
  %v1259 = vunpack.c.l.b16 %v964
  %v1260 = vunpack.c.l.b16 %v965
  %v1261 = vunpack.c.l.b16 %v966
  %v1262 = vunpack.c.l.b16 %v967
  %v1263 = vunpack.c.l.b16 %v968
  %v1264 = vunpack.c.l.b16 %v969
  %v1265 = vunpack.c.l.b16 %v970
  %v1266 = vunpack.c.l.b16 %v971
  %v1267 = vpack.c.b16 %v1124, %v1123
  %v1268 = vpack.c.b16 %v1126, %v1125
  %v1269 = vpack.c.b16 %v1128, %v1127
  %v1270 = vpack.c.b16 %v1130, %v1129
  %v1271 = vpack.c.b16 %v1132, %v1131
  %v1272 = vpack.c.b16 %v1134, %v1133
  %v1273 = vpack.c.b16 %v1136, %v1135
  %v1274 = vpack.c.b16 %v1138, %v1137
  %v1275 = vpack.c.b16 %v1140, %v1139
  %v1276 = vpack.c.b16 %v1142, %v1141
  %v1277 = vpack.c.b16 %v1144, %v1143
  %v1278 = vpack.c.b16 %v1146, %v1145
  %v1279 = vpack.c.b16 %v1148, %v1147
  %v1280 = vpack.c.b16 %v1150, %v1149
  %v1281 = vpack.c.b16 %v1152, %v1151
  %v1282 = vpack.c.b16 %v1154, %v1153
  %v1283 = vpack.c.b16 %v1156, %v1155
  %v1284 = vpack.c.b16 %v1158, %v1157
  %v1285 = vpack.c.b16 %v1160, %v1159
  %v1286 = vpack.c.b16 %v1162, %v1161
  %v1287 = vpack.c.b16 %v1164, %v1163
  %v1288 = vpack.c.b16 %v1166, %v1165
  %v1289 = vpack.c.b16 %v1168, %v1167
  %v1290 = vpack.c.b16 %v1170, %v1169
  %v1291 = vpack.c.b16 %v1172, %v1171
  %v1292 = vpack.c.b16 %v1174, %v1173
  %v1293 = vpack.c.b16 %v1176, %v1175
  %v1294 = vpack.c.b16 %v1178, %v1177
  %v1295 = vpack.c.b16 %v1180, %v1179
  %v1296 = vpack.c.b16 %v1182, %v1181
  %v1297 = vpack.c.b16 %v1184, %v1183
  %v1298 = vpack.c.b16 %v1186, %v1185
  %v1299 = vpack.c.b16 %v1188, %v1187
  %v1300 = vpack.c.b16 %v1190, %v1189
  %v1301 = vpack.c.b16 %v1192, %v1191
  %v1302 = vpack.c.b16 %v1194, %v1193
  %v1303 = vpack.c.b16 %v1196, %v1195
  %v1304 = vpack.c.b16 %v1198, %v1197
  %v1305 = vpack.c.b16 %v1200, %v1199
  %v1306 = vpack.c.b16 %v1202, %v1201
  %v1307 = vpack.c.b16 %v1204, %v1203
  %v1308 = vpack.c.b16 %v1206, %v1205
  %v1309 = vpack.c.b16 %v1208, %v1207
  %v1310 = vpack.c.b16 %v1210, %v1209
  %v1311 = vpack.c.b16 %v1212, %v1211
  %v1312 = vpack.c.b16 %v1214, %v1213
  %v1313 = vpack.c.b16 %v1216, %v1215
  %v1314 = vpack.c.b16 %v1218, %v1217
  %v1315 = vpack.c.b16 %v1220, %v1219
  %v1316 = vpack.c.b16 %v1222, %v1221
  %v1317 = vpack.c.b16 %v1224, %v1223
  %v1318 = vpack.c.b16 %v1226, %v1225
  %v1319 = vpack.c.b16 %v1228, %v1227
  %v1320 = vpack.c.b16 %v1230, %v1229
  %v1321 = vpack.c.b16 %v1232, %v1231
  %v1322 = vpack.c.b16 %v1234, %v1233
  %v1323 = vpack.c.b16 %v1236, %v1235
  %v1324 = vpack.c.b16 %v1238, %v1237
  %v1325 = vpack.c.b16 %v1240, %v1239
  %v1326 = vpack.c.b16 %v1242, %v1241
  %v1327 = vpack.c.b16 %v1244, %v1243
  %v1328 = vpack.c.b16 %v1246, %v1245
  %v1329 = vpack.c.b16 %v1248, %v1247
  %v1330 = vpack.c.b16 %v1250, %v1249
  %v1331 = vpack.c.b16 %v1252, %v1251
  %v1332 = vpack.c.b16 %v1254, %v1253
  %v1333 = vpack.c.b16 %v1256, %v1255
  %v1334 = vpack.c.b16 %v1258, %v1257
  %v1335 = vpack.c.b16 %v1260, %v1259
  %v1336 = vpack.c.b16 %v1262, %v1261
  %v1337 = vpack.c.b16 %v1264, %v1263
  %v1338 = vpack.c.b16 %v1266, %v1265
  %1411 = vmatprep.subr.bf16.mxu0 0
  %1412 = vmatpush1.bf16.msra.mxu0 %v1267
  %1413 = vmatprep.subr.bf16.mxu0 0
  %1414 = vmatpush1.bf16.msra.mxu0 %v1268
  %1415 = vmatprep.subr.bf16.mxu0 0
  %1416 = vmatpush1.bf16.msra.mxu0 %v1269
  %1417 = vmatprep.subr.bf16.mxu0 0
  %1418 = vmatpush1.bf16.msra.mxu0 %v1270
  %1419 = vmatprep.subr.bf16.mxu0 0
  %1420 = vmatpush1.bf16.msra.mxu0 %v1271
  %1421 = vmatprep.subr.bf16.mxu0 0
  %1422 = vmatpush1.bf16.msra.mxu0 %v1272
  %1423 = vmatprep.subr.bf16.mxu0 0
  %1424 = vmatpush1.bf16.msra.mxu0 %v1273
  %1425 = vmatprep.subr.bf16.mxu0 0
  %1426 = vmatpush1.bf16.msra.mxu0 %v1274
  %1427 = vmatprep.subr.bf16.mxu0 0
  %1428 = vmatpush1.bf16.msra.mxu0 %v1275
  %1429 = vmatprep.subr.bf16.mxu0 0
  %1430 = vmatpush1.bf16.msra.mxu0 %v1276
  %1431 = vmatprep.subr.bf16.mxu0 0
  %1432 = vmatpush1.bf16.msra.mxu0 %v1277
  %1433 = vmatprep.subr.bf16.mxu0 0
  %1434 = vmatpush1.bf16.msra.mxu0 %v1278
  %1435 = vmatprep.subr.bf16.mxu0 0
  %1436 = vmatpush1.bf16.msra.mxu0 %v1279
  %1437 = vmatprep.subr.bf16.mxu0 0
  %1438 = vmatpush1.bf16.msra.mxu0 %v1280
  %1439 = vmatprep.subr.bf16.mxu0 0
  %1440 = vmatpush1.bf16.msra.mxu0 %v1281
  %1441 = vmatprep.subr.bf16.mxu0 0
  %1442 = vmatpush1.bf16.msra.mxu0 %v1282
  %1443 = vmatprep.mubr.bf16.mxu0 %v811
  %1444 = vmatmul.mubr.bf16.gmra.mrb[0].mxu0 %v810
  %v1445 = vpop.f32.mrb[0].mxu0
  %v1446 = vadd.f32 %v977, %v1445
  %v1447 = vpop.f32.mrb[0].mxu0
  %v1448 = vpop.f32.mrb[0].mxu0
  %v1449 = vadd.f32 %v977, %v1448
  %v1450 = vpop.f32.mrb[0].mxu0
  %1451 = vmatprep.mubr.bf16.mxu0 %v820
  %1452 = vmatmul.mubr.bf16.gmra.mrb[0].mxu0 %v819
  %v1453 = vpop.f32.mrb[0].mxu0
  %v1454 = vadd.f32 %v977, %v1453
  %v1455 = vpop.f32.mrb[0].mxu0
  %v1456 = vpop.f32.mrb[0].mxu0
  %v1457 = vadd.f32 %v977, %v1456
  %v1458 = vpop.f32.mrb[0].mxu0
  %1459 = vdwg.mxu0
  %1460 = vmatprep.subr.bf16.mxu0 0
  %1461 = vmatpush1.bf16.msra.mxu0 %v1283
  %1462 = vmatprep.subr.bf16.mxu0 0
  %1463 = vmatpush1.bf16.msra.mxu0 %v1284
  %1464 = vmatprep.subr.bf16.mxu0 0
  %1465 = vmatpush1.bf16.msra.mxu0 %v1285
  %1466 = vmatprep.subr.bf16.mxu0 0
  %1467 = vmatpush1.bf16.msra.mxu0 %v1286
  %1468 = vmatprep.subr.bf16.mxu0 0
  %1469 = vmatpush1.bf16.msra.mxu0 %v1287
  %1470 = vmatprep.subr.bf16.mxu0 0
  %1471 = vmatpush1.bf16.msra.mxu0 %v1288
  %1472 = vmatprep.subr.bf16.mxu0 0
  %1473 = vmatpush1.bf16.msra.mxu0 %v1289
  %1474 = vmatprep.subr.bf16.mxu0 0
  %1475 = vmatpush1.bf16.msra.mxu0 %v1290
  %1476 = vmatprep.subr.bf16.mxu0 0
  %1477 = vmatpush1.bf16.msra.mxu0 %v1291
  %1478 = vmatprep.subr.bf16.mxu0 0
  %1479 = vmatpush1.bf16.msra.mxu0 %v1292
  %1480 = vmatprep.subr.bf16.mxu0 0
  %1481 = vmatpush1.bf16.msra.mxu0 %v1293
  %1482 = vmatprep.subr.bf16.mxu0 0
  %1483 = vmatpush1.bf16.msra.mxu0 %v1294
  %1484 = vmatprep.subr.bf16.mxu0 0
  %1485 = vmatpush1.bf16.msra.mxu0 %v1295
  %1486 = vmatprep.subr.bf16.mxu0 0
  %1487 = vmatpush1.bf16.msra.mxu0 %v1296
  %1488 = vmatprep.subr.bf16.mxu0 0
  %1489 = vmatpush1.bf16.msra.mxu0 %v1297
  %1490 = vmatprep.subr.bf16.mxu0 0
  %1491 = vmatpush1.bf16.msra.mxu0 %v1298
  %1492 = vmatprep.mubr.bf16.mxu0 %v813
  %1493 = vmatmul.mubr.bf16.gmra.mrb[0].mxu0 %v812
  %v1494 = vpop.f32.mrb[0].mxu0
  %v1495 = vadd.f32 %v1446, %v1494
  %v1496 = vpop.f32.mrb[0].mxu0
  %v1497 = vpop.f32.mrb[0].mxu0
  %v1498 = vadd.f32 %v1449, %v1497
  %v1499 = vpop.f32.mrb[0].mxu0
  %1500 = vmatprep.mubr.bf16.mxu0 %v822
  %1501 = vmatmul.mubr.bf16.gmra.mrb[0].mxu0 %v821
  %v1502 = vpop.f32.mrb[0].mxu0
  %v1503 = vadd.f32 %v1454, %v1502
  %v1504 = vpop.f32.mrb[0].mxu0
  %v1505 = vpop.f32.mrb[0].mxu0
  %v1506 = vadd.f32 %v1457, %v1505
  %v1507 = vpop.f32.mrb[0].mxu0
  %1508 = vdwg.mxu0
  %1509 = vmatprep.subr.bf16.mxu0 0
  %1510 = vmatpush1.bf16.msra.mxu0 %v1299
  %1511 = vmatprep.subr.bf16.mxu0 0
  %1512 = vmatpush1.bf16.msra.mxu0 %v1300
  %1513 = vmatprep.subr.bf16.mxu0 0
  %1514 = vmatpush1.bf16.msra.mxu0 %v1301
  %1515 = vmatprep.subr.bf16.mxu0 0
  %1516 = vmatpush1.bf16.msra.mxu0 %v1302
  %1517 = vmatprep.subr.bf16.mxu0 0
  %1518 = vmatpush1.bf16.msra.mxu0 %v1303
  %1519 = vmatprep.subr.bf16.mxu0 0
  %1520 = vmatpush1.bf16.msra.mxu0 %v1304
  %1521 = vmatprep.subr.bf16.mxu0 0
  %1522 = vmatpush1.bf16.msra.mxu0 %v1305
  %1523 = vmatprep.subr.bf16.mxu0 0
  %1524 = vmatpush1.bf16.msra.mxu0 %v1306
  %1525 = vmatprep.subr.bf16.mxu0 0
  %1526 = vmatpush1.bf16.msra.mxu0 %v1307
  %1527 = vmatprep.subr.bf16.mxu0 0
  %1528 = vmatpush1.bf16.msra.mxu0 %v1308
  %1529 = vmatprep.subr.bf16.mxu0 0
  %1530 = vmatpush1.bf16.msra.mxu0 %v1309
  %1531 = vmatprep.subr.bf16.mxu0 0
  %1532 = vmatpush1.bf16.msra.mxu0 %v1310
  %1533 = vmatprep.subr.bf16.mxu0 0
  %1534 = vmatpush1.bf16.msra.mxu0 %v1311
  %1535 = vmatprep.subr.bf16.mxu0 0
  %1536 = vmatpush1.bf16.msra.mxu0 %v1312
  %1537 = vmatprep.subr.bf16.mxu0 0
  %1538 = vmatpush1.bf16.msra.mxu0 %v1313
  %1539 = vmatprep.subr.bf16.mxu0 0
  %1540 = vmatpush1.bf16.msra.mxu0 %v1314
  %1541 = vmatprep.mubr.bf16.mxu0 %v815
  %1542 = vmatmul.mubr.bf16.gmra.mrb[0].mxu0 %v814
  %v1543 = vpop.f32.mrb[0].mxu0
  %v1544 = vadd.f32 %v1495, %v1543
  %v1545 = vpop.f32.mrb[0].mxu0
  %v1546 = vpop.f32.mrb[0].mxu0
  %v1547 = vadd.f32 %v1498, %v1546
  %v1548 = vpop.f32.mrb[0].mxu0
  %1549 = vmatprep.mubr.bf16.mxu0 %v824
  %1550 = vmatmul.mubr.bf16.gmra.mrb[0].mxu0 %v823
  %v1551 = vpop.f32.mrb[0].mxu0
  %v1552 = vadd.f32 %v1503, %v1551
  %v1553 = vpop.f32.mrb[0].mxu0
  %v1554 = vpop.f32.mrb[0].mxu0
  %v1555 = vadd.f32 %v1506, %v1554
  %v1556 = vpop.f32.mrb[0].mxu0
  %1557 = vdwg.mxu0
  %1558 = vmatprep.subr.bf16.mxu0 0
  %1559 = vmatpush1.bf16.msra.mxu0 %v1315
  %1560 = vmatprep.subr.bf16.mxu0 0
  %1561 = vmatpush1.bf16.msra.mxu0 %v1316
  %1562 = vmatprep.subr.bf16.mxu0 0
  %1563 = vmatpush1.bf16.msra.mxu0 %v1317
  %1564 = vmatprep.subr.bf16.mxu0 0
  %1565 = vmatpush1.bf16.msra.mxu0 %v1318
  %1566 = vmatprep.subr.bf16.mxu0 0
  %1567 = vmatpush1.bf16.msra.mxu0 %v1319
  %1568 = vmatprep.subr.bf16.mxu0 0
  %1569 = vmatpush1.bf16.msra.mxu0 %v1320
  %1570 = vmatprep.subr.bf16.mxu0 0
  %1571 = vmatpush1.bf16.msra.mxu0 %v1321
  %1572 = vmatprep.subr.bf16.mxu0 0
  %1573 = vmatpush1.bf16.msra.mxu0 %v1322
  %1574 = vmatprep.subr.bf16.mxu0 0
  %1575 = vmatpush1.bf16.msra.mxu0 %v1323
  %1576 = vmatprep.subr.bf16.mxu0 0
  %1577 = vmatpush1.bf16.msra.mxu0 %v1324
  %1578 = vmatprep.subr.bf16.mxu0 0
  %1579 = vmatpush1.bf16.msra.mxu0 %v1325
  %1580 = vmatprep.subr.bf16.mxu0 0
  %1581 = vmatpush1.bf16.msra.mxu0 %v1326
  %1582 = vmatprep.subr.bf16.mxu0 0
  %1583 = vmatpush1.bf16.msra.mxu0 %v1327
  %1584 = vmatprep.subr.bf16.mxu0 0
  %1585 = vmatpush1.bf16.msra.mxu0 %v1328
  %1586 = vmatprep.subr.bf16.mxu0 0
  %1587 = vmatpush1.bf16.msra.mxu0 %v1329
  %1588 = vmatprep.subr.bf16.mxu0 0
  %1589 = vmatpush1.bf16.msra.mxu0 %v1330
  %1590 = vmatprep.mubr.bf16.mxu0 %v817
  %1591 = vmatmul.mubr.bf16.gmra.mrb[0].mxu0 %v816
  %v1592 = vpop.f32.mrb[0].mxu0
  %v1593 = vadd.f32 %v1544, %v1592
  %v1594 = vpop.f32.mrb[0].mxu0
  %v1595 = vpop.f32.mrb[0].mxu0
  %v1596 = vadd.f32 %v1547, %v1595
  %v1597 = vpop.f32.mrb[0].mxu0
  %1598 = vmatprep.mubr.bf16.mxu0 %v826
  %1599 = vmatmul.mubr.bf16.gmra.mrb[0].mxu0 %v825
  %v1600 = vpop.f32.mrb[0].mxu0
  %v1601 = vadd.f32 %v1552, %v1600
  %v1602 = vpop.f32.mrb[0].mxu0
  %v1603 = vpop.f32.mrb[0].mxu0
  %v1604 = vadd.f32 %v1555, %v1603
  %v1605 = vpop.f32.mrb[0].mxu0
  %1606 = vdwg.mxu0
  %1607 = vmatprep.subr.bf16.mxu0 0
  %1608 = vmatpush1.bf16.msra.mxu0 %v1331
  %1609 = vmatprep.subr.bf16.mxu0 0
  %1610 = vmatpush1.bf16.msra.mxu0 %v1332
  %1611 = vmatprep.subr.bf16.mxu0 0
  %1612 = vmatpush1.bf16.msra.mxu0 %v1333
  %1613 = vmatprep.subr.bf16.mxu0 0
  %1614 = vmatpush1.bf16.msra.mxu0 %v1334
  %1615 = vmatprep.subr.bf16.mxu0 0
  %1616 = vmatpush1.bf16.msra.mxu0 %v1335
  %1617 = vmatprep.subr.bf16.mxu0 0
  %1618 = vmatpush1.bf16.msra.mxu0 %v1336
  %1619 = vmatprep.subr.bf16.mxu0 0
  %1620 = vmatpush1.bf16.msra.mxu0 %v1337
  %1621 = vmatprep.subr.bf16.mxu0 0
  %1622 = vmatpush1.bf16.msra.mxu0 %v1338
  %1623 = vmatprep.subr.bf16.mxu0 0
  %1624 = vmatpush1.bf16.msra.mxu0 0
  %1625 = vmatprep.subr.bf16.mxu0 0
  %1626 = vmatpush1.bf16.msra.mxu0 0
  %1627 = vmatprep.subr.bf16.mxu0 0
  %1628 = vmatpush1.bf16.msra.mxu0 0
  %1629 = vmatprep.subr.bf16.mxu0 0
  %1630 = vmatpush1.bf16.msra.mxu0 0
  %1631 = vmatprep.subr.bf16.mxu0 0
  %1632 = vmatpush1.bf16.msra.mxu0 0
  %1633 = vmatprep.subr.bf16.mxu0 0
  %1634 = vmatpush1.bf16.msra.mxu0 0
  %1635 = vmatprep.subr.bf16.mxu0 0
  %1636 = vmatpush1.bf16.msra.mxu0 0
  %1637 = vmatprep.subr.bf16.mxu0 0
  %1638 = vmatpush1.bf16.msra.mxu0 0
  %1639 = vmatprep.mubr.bf16.mxu0 0
  %1640 = vmatmul.mubr.bf16.gmra.mrb[0].mxu0 %v818
  %v1641 = vpop.f32.mrb[0].mxu0
  %v1642 = vadd.f32 %v1593, %v1641
  %v1643 = vpop.f32.mrb[0].mxu0
  %v1644 = vpop.f32.mrb[0].mxu0
  %v1645 = vadd.f32 %v1596, %v1644
  %v1646 = vpop.f32.mrb[0].mxu0
  %1647 = vmatprep.mubr.bf16.mxu0 0
  %1648 = vmatmul.mubr.bf16.gmra.mrb[0].mxu0 %v827
  %v1649 = vpop.f32.mrb[0].mxu0
  %v1650 = vadd.f32 %v1601, %v1649
  %v1651 = vpop.f32.mrb[0].mxu0
  %v1652 = vpop.f32.mrb[0].mxu0
  %v1653 = vadd.f32 %v1604, %v1652
  %v1654 = vpop.f32.mrb[0].mxu0
  %1655 = vdwg.mxu0
  %vm1656 = vcmp.ge.f32.partialorder %v1642, 0.0
  %vm1657 = vcmp.ge.f32.partialorder %v1645, 0.0
  %vm1658 = vcmp.ge.f32.partialorder %v1650, 0.0
  %vm1659 = vcmp.ge.f32.partialorder %v1653, 0.0
  %v1660 = vmul.f32 %v1642, 0.01
  %v1661 = vmul.f32 %v1645, 0.01
  %v1662 = vmul.f32 %v1650, 0.01
  %v1663 = vmul.f32 %v1653, 0.01
  %v1664 = vsel %vm1656, %v1642, %v1660
  %v1665 = vsel %vm1657, %v1645, %v1661
  %v1666 = vsel %vm1658, %v1650, %v1662
  %v1667 = vsel %vm1659, %v1653, %v1663
  %v1668 = vpack.c.bf16 %v1665, %v1664
  %v1669 = vpack.c.bf16 %v1667, %v1666
  %v1672 = vunpack.c.l.b16 %v1668
  %v1673 = vunpack.c.h.b16 %v1668
  %v1674 = vunpack.c.l.b16 %v1669
  %v1675 = vunpack.c.h.b16 %v1669
  %v1676 = vpack.c.b16 %v1672, %v1672
  %v1677 = vpack.c.b16 %v1673, %v1673
  %v1678 = vpack.c.b16 %v1674, %v1674
  %v1679 = vpack.c.b16 %v1675, %v1675
  %1684 = vst [vmem:[%s3] sm:$0xf] %v1676
  %1685 = vst [vmem:[%s3 + $0x4] sm:$0xf] %v1677
  %1686 = vst [vmem:[%s3 + $0x8] sm:$0xf] %v1678
  %1687 = vst [vmem:[%s3 + $0xc] sm:$0xf] %v1679
  // Predicated region
  $region14: #{subblock_forward.5} parent=0 // pred_check
    _
  $region15: #{subblock_forward.5} parent=0 // pred_check_branch
    %1689 = sbr.rel (0) target = $region17
  $region16: #{subblock_forward.5} parent=0 // pred_region
    _
  $region17: #{subblock_forward.5} parent=0 // pred_fallthru
    _
  // Predicated region
  $region18: #{subblock_forward.5} parent=0 // pred_check
    _
  $region19: #{subblock_forward.5} parent=0 // pred_check_branch
    %1691 = sbr.rel (0) target = $region21
  $region20: #{subblock_forward.5} parent=0 // pred_region
    _
  $region21: #{subblock_forward.5} parent=0 // pred_fallthru
    _

// kernel: subblock_forward.4
$region0: #{subblock_forward.4}
  #allocation0 [shape = 'u32[]', space=smem, size = 0x4, offset = 0x4, fixed_abs, tag = 'smem constant byte address 0x4 - core index']
  #allocation1 [shape = 'u32[144,128]{1,0:T(1,128)}', space=vmem, size = 0x12000, scoped, tag = 'internal scratch']
  #allocation2 [shape = 'bf16[128,1152]{1,0:T(16,128)(2,1)}', space=vmem, size = 0x48000, scoped, tag = 'scratch operand']
  %s0 = inlined_call_operand.vmem [shape: bf16[2,4,81,128], index: 0, kind: input, shape index: {}]
  %s1 = inlined_call_operand.vmem [shape: bf16[1152,128], index: 1, kind: input, shape index: {}]
  %s2 = inlined_call_operand.vmem [shape: f32[1,128], index: 2, kind: input, shape index: {}]
  %s3 = inlined_call_operand.vmem [shape: bf16[128,128], index: 3, kind: output, shape index: {}]
  %s4 = sld [smem:[#allocation0]]
  $region22: #{subblock_forward.4} parent=0
    _
  %s6 = ssub.s32 1, %s4
  %s7 = scalar_select 0, %s6, %s4
  // Predicated region
  $region2: #{subblock_forward.4} parent=0 // pred_check
    _
  $region3: #{subblock_forward.4} parent=0 // pred_check_branch
    %9 = sbr.rel (0) target = $region5
  $region4: #{subblock_forward.4} parent=0 // pred_region
    _
  $region5: #{subblock_forward.4} parent=0 // pred_fallthru
    _
  // Predicated region
  $region6: #{subblock_forward.4} parent=0 // pred_check
    _
  $region7: #{subblock_forward.4} parent=0 // pred_check_branch
    %11 = sbr.rel (0) target = $region9
  $region8: #{subblock_forward.4} parent=0 // pred_region
    _
  $region9: #{subblock_forward.4} parent=0 // pred_fallthru
    _
  // Predicated region
  $region10: #{subblock_forward.4} parent=0 // pred_check
    _
  $region11: #{subblock_forward.4} parent=0 // pred_check_branch
    %13 = sbr.rel (0) target = $region13
  $region12: #{subblock_forward.4} parent=0 // pred_region
    _
  $region13: #{subblock_forward.4} parent=0 // pred_fallthru
    _
  %v15 = vld [vmem:[%s0] sm:$0xf]
  %16 = vst [vmem:[#allocation2] sm:$0xf] %v15
  %s17 = scalar_lea.vmem %s0, 44
  %v18 = vld [vmem:[%s17] sm:$0xf]
  %19 = vst [vmem:[#allocation2 + $0x8] sm:$0xf] %v18
  %v20 = vld [vmem:[%s0] sm:$0xf]
  %v21 = vld [vmem:[%s0 + $0x4] sm:$0x1]
  %v24 = vunpack.c.l.b16 %v20
  %v25 = vunpack.c.l.b16 %v21
  %v26 = vpack.c.b16 %v25, %v24
  %v28 = vshrl.u32 %v26, 16
  %v30 = vshll.u32 %v26, 16
  %v32 = vrot.slane %v30, 1
  %v33 = vor.u32 %v28, %v32
  %35 = vst [vmem:[#allocation2 + $0x10] sm:$0xf] %v33
  %s36 = scalar_lea.vmem %s0, 88
  %v37 = vld [vmem:[%s36] sm:$0xf]
  %38 = vst [vmem:[#allocation2 + $0x18] sm:$0xf] %v37
  %s39 = scalar_lea.vmem %s0, 132
  %v40 = vld [vmem:[%s39] sm:$0xf]
  %41 = vst [vmem:[#allocation2 + $0x20] sm:$0xf] %v40
  %v42 = vld [vmem:[%s36] sm:$0xf]
  %v43 = vld [vmem:[%s36 + $0x4] sm:$0x1]
  %v46 = vunpack.c.l.b16 %v42
  %v47 = vunpack.c.l.b16 %v43
  %v48 = vpack.c.b16 %v47, %v46
  %v50 = vshrl.u32 %v48, 16
  %v52 = vshll.u32 %v48, 16
  %v54 = vrot.slane %v52, 1
  %v55 = vor.u32 %v50, %v54
  %57 = vst [vmem:[#allocation2 + $0x28] sm:$0xf] %v55
  %v58 = vld [vmem:[%s0 + $0x4] sm:$0xf]
  %v59 = vld [vmem:[%s0 + $0x8] sm:$0x1]
  %v62 = vunpack.c.l.b16 %v58
  %v63 = vunpack.c.l.b16 %v59
  %v64 = vpack.c.b16 %v63, %v62
  %v66 = vshrl.u32 %v64, 16
  %v68 = vshll.u32 %v64, 16
  %v70 = vrot.slane %v68, 1
  %v71 = vor.u32 %v66, %v70
  %73 = vst [vmem:[#allocation2 + $0x30] sm:$0xf] %v71
  %v74 = vld [vmem:[%s17 + $0x4] sm:$0xf]
  %v75 = vld [vmem:[%s17 + $0x8] sm:$0x1]
  %v78 = vunpack.c.l.b16 %v74
  %v79 = vunpack.c.l.b16 %v75
  %v80 = vpack.c.b16 %v79, %v78
  %v82 = vshrl.u32 %v80, 16
  %v84 = vshll.u32 %v80, 16
  %v86 = vrot.slane %v84, 1
  %v87 = vor.u32 %v82, %v86
  %89 = vst [vmem:[#allocation2 + $0x38] sm:$0xf] %v87
  %v90 = vld [vmem:[%s0 + $0x4] sm:$0xe]
  %v91 = vld [vmem:[%s0 + $0x8] sm:$0x1]
  %v94 = vunpack.c.l.b16 %v90
  %v95 = vunpack.c.l.b16 %v91
  %v96 = vpack.c.b16 %v95, %v94
  %v97 = vrot.slane %v96, 1
  %99 = vst [vmem:[#allocation2 + $0x40] sm:$0xf] %v97
  %v100 = vld [vmem:[%s0 + $0x4] sm:$0xf]
  %v101 = vld [vmem:[%s0 + $0x8] sm:$0x1]
  %v104 = vunpack.c.l.b16 %v100
  %v105 = vunpack.c.l.b16 %v101
  %v106 = vpack.c.b16 %v105, %v104
  %v108 = vshrl.u32 %v106, 16
  %v110 = vrot.slane %v108, 4
  %v111 = vshll.u32 %v106, 16
  %v113 = vrot.slane %v111, 5
  %v114 = vor.u32 %v110, %v113
  %116 = vst [vmem:[#allocation2] sm:$0xf0] %v114
  %v117 = vld [vmem:[%s17 + $0x4] sm:$0xf]
  %v118 = vld [vmem:[%s17 + $0x8] sm:$0x1]
  %v121 = vunpack.c.l.b16 %v117
  %v122 = vunpack.c.l.b16 %v118
  %v123 = vpack.c.b16 %v122, %v121
  %v125 = vshrl.u32 %v123, 16
  %v127 = vrot.slane %v125, 4
  %v128 = vshll.u32 %v123, 16
  %v130 = vrot.slane %v128, 5
  %v131 = vor.u32 %v127, %v130
  %133 = vst [vmem:[#allocation2 + $0x8] sm:$0xf0] %v131
  %v134 = vld [vmem:[%s0 + $0x4] sm:$0xe]
  %v135 = vld [vmem:[%s0 + $0x8] sm:$0x1]
  %v138 = vunpack.c.l.b16 %v134
  %v139 = vunpack.c.l.b16 %v135
  %v140 = vpack.c.b16 %v139, %v138
  %v141 = vrot.slane %v140, 5
  %143 = vst [vmem:[#allocation2 + $0x10] sm:$0xf0] %v141
  %v144 = vld [vmem:[%s36 + $0x4] sm:$0xf]
  %v145 = vld [vmem:[%s36 + $0x8] sm:$0x1]
  %v148 = vunpack.c.l.b16 %v144
  %v149 = vunpack.c.l.b16 %v145
  %v150 = vpack.c.b16 %v149, %v148
  %v152 = vshrl.u32 %v150, 16
  %v154 = vrot.slane %v152, 4
  %v155 = vshll.u32 %v150, 16
  %v157 = vrot.slane %v155, 5
  %v158 = vor.u32 %v154, %v157
  %160 = vst [vmem:[#allocation2 + $0x18] sm:$0xf0] %v158
  %v161 = vld [vmem:[%s39 + $0x4] sm:$0xf]
  %v162 = vld [vmem:[%s39 + $0x8] sm:$0x1]
  %v165 = vunpack.c.l.b16 %v161
  %v166 = vunpack.c.l.b16 %v162
  %v167 = vpack.c.b16 %v166, %v165
  %v169 = vshrl.u32 %v167, 16
  %v171 = vrot.slane %v169, 4
  %v172 = vshll.u32 %v167, 16
  %v174 = vrot.slane %v172, 5
  %v175 = vor.u32 %v171, %v174
  %177 = vst [vmem:[#allocation2 + $0x20] sm:$0xf0] %v175
  %v178 = vld [vmem:[%s36 + $0x4] sm:$0xe]
  %v179 = vld [vmem:[%s36 + $0x8] sm:$0x1]
  %v182 = vunpack.c.l.b16 %v178
  %v183 = vunpack.c.l.b16 %v179
  %v184 = vpack.c.b16 %v183, %v182
  %v185 = vrot.slane %v184, 5
  %187 = vst [vmem:[#allocation2 + $0x28] sm:$0xf0] %v185
  %v188 = vld [vmem:[%s0 + $0x8] sm:$0xe]
  %v189 = vld [vmem:[%s0 + $0xc] sm:$0x1]
  %v192 = vunpack.c.l.b16 %v188
  %v193 = vunpack.c.l.b16 %v189
  %v194 = vpack.c.b16 %v193, %v192
  %v195 = vrot.slane %v194, 5
  %197 = vst [vmem:[#allocation2 + $0x30] sm:$0xf0] %v195
  %v198 = vld [vmem:[%s17 + $0x8] sm:$0xe]
  %v199 = vld [vmem:[%s17 + $0xc] sm:$0x1]
  %v202 = vunpack.c.l.b16 %v198
  %v203 = vunpack.c.l.b16 %v199
  %v204 = vpack.c.b16 %v203, %v202
  %v205 = vrot.slane %v204, 5
  %207 = vst [vmem:[#allocation2 + $0x38] sm:$0xf0] %v205
  %v208 = vld [vmem:[%s0 + $0x8] sm:$0xe]
  %v209 = vld [vmem:[%s0 + $0xc] sm:$0x3]
  %v212 = vunpack.c.l.b16 %v208
  %v213 = vunpack.c.l.b16 %v209
  %v214 = vpack.c.b16 %v213, %v212
  %v216 = vshrl.u32 %v214, 16
  %v218 = vrot.slane %v216, 5
  %v219 = vshll.u32 %v214, 16
  %v221 = vrot.slane %v219, 6
  %v222 = vor.u32 %v218, %v221
  %224 = vst [vmem:[#allocation2 + $0x40] sm:$0xf0] %v222
  %v225 = vld [vmem:[%s0 + $0x8] sm:$0xe]
  %v226 = vld [vmem:[%s0 + $0xc] sm:$0x1]
  %v229 = vunpack.c.l.b16 %v225
  %v230 = vunpack.c.l.b16 %v226
  %v231 = vpack.c.b16 %v230, %v229
  %v232 = vrot.slane %v231, 1
  %234 = vst [vmem:[#allocation2 + $0x48] sm:$0xf] %v232
  %v235 = vld [vmem:[%s17 + $0x8] sm:$0xe]
  %v236 = vld [vmem:[%s17 + $0xc] sm:$0x1]
  %v239 = vunpack.c.l.b16 %v235
  %v240 = vunpack.c.l.b16 %v236
  %v241 = vpack.c.b16 %v240, %v239
  %v242 = vrot.slane %v241, 1
  %244 = vst [vmem:[#allocation2 + $0x50] sm:$0xf] %v242
  %v245 = vld [vmem:[%s0 + $0x8] sm:$0xe]
  %v246 = vld [vmem:[%s0 + $0xc] sm:$0x3]
  %v249 = vunpack.c.l.b16 %v245
  %v250 = vunpack.c.l.b16 %v246
  %v251 = vpack.c.b16 %v250, %v249
  %v253 = vshrl.u32 %v251, 16
  %v255 = vrot.slane %v253, 1
  %v256 = vshll.u32 %v251, 16
  %v258 = vrot.slane %v256, 2
  %v259 = vor.u32 %v255, %v258
  %261 = vst [vmem:[#allocation2 + $0x58] sm:$0xf] %v259
  %v262 = vld [vmem:[%s36 + $0x8] sm:$0xe]
  %v263 = vld [vmem:[%s36 + $0xc] sm:$0x1]
  %v266 = vunpack.c.l.b16 %v262
  %v267 = vunpack.c.l.b16 %v263
  %v268 = vpack.c.b16 %v267, %v266
  %v269 = vrot.slane %v268, 1
  %271 = vst [vmem:[#allocation2 + $0x60] sm:$0xf] %v269
  %v272 = vld [vmem:[%s39 + $0x8] sm:$0xe]
  %v273 = vld [vmem:[%s39 + $0xc] sm:$0x1]
  %v276 = vunpack.c.l.b16 %v272
  %v277 = vunpack.c.l.b16 %v273
  %v278 = vpack.c.b16 %v277, %v276
  %v279 = vrot.slane %v278, 1
  %281 = vst [vmem:[#allocation2 + $0x68] sm:$0xf] %v279
  %v282 = vld [vmem:[%s36 + $0x8] sm:$0xe]
  %v283 = vld [vmem:[%s36 + $0xc] sm:$0x3]
  %v286 = vunpack.c.l.b16 %v282
  %v287 = vunpack.c.l.b16 %v283
  %v288 = vpack.c.b16 %v287, %v286
  %v290 = vshrl.u32 %v288, 16
  %v292 = vrot.slane %v290, 1
  %v293 = vshll.u32 %v288, 16
  %v295 = vrot.slane %v293, 2
  %v296 = vor.u32 %v292, %v295
  %298 = vst [vmem:[#allocation2 + $0x70] sm:$0xf] %v296
  %v299 = vld [vmem:[%s0 + $0xc] sm:$0xe]
  %v300 = vld [vmem:[%s0 + $0x10] sm:$0x3]
  %v303 = vunpack.c.l.b16 %v299
  %v304 = vunpack.c.l.b16 %v300
  %v305 = vpack.c.b16 %v304, %v303
  %v307 = vshrl.u32 %v305, 16
  %v309 = vrot.slane %v307, 1
  %v310 = vshll.u32 %v305, 16
  %v312 = vrot.slane %v310, 2
  %v313 = vor.u32 %v309, %v312
  %315 = vst [vmem:[#allocation2 + $0x78] sm:$0xf] %v313
  %v316 = vld [vmem:[%s17 + $0xc] sm:$0xe]
  %v317 = vld [vmem:[%s17 + $0x10] sm:$0x3]
  %v320 = vunpack.c.l.b16 %v316
  %v321 = vunpack.c.l.b16 %v317
  %v322 = vpack.c.b16 %v321, %v320
  %v324 = vshrl.u32 %v322, 16
  %v326 = vrot.slane %v324, 1
  %v327 = vshll.u32 %v322, 16
  %v329 = vrot.slane %v327, 2
  %v330 = vor.u32 %v326, %v329
  %332 = vst [vmem:[#allocation2 + $0x80] sm:$0xf] %v330
  %v333 = vld [vmem:[%s0 + $0xc] sm:$0xc]
  %v334 = vld [vmem:[%s0 + $0x10] sm:$0x3]
  %v337 = vunpack.c.l.b16 %v333
  %v338 = vunpack.c.l.b16 %v334
  %v339 = vpack.c.b16 %v338, %v337
  %v340 = vrot.slane %v339, 2
  %342 = vst [vmem:[#allocation2 + $0x88] sm:$0xf] %v340
  %v343 = vld [vmem:[%s0 + $0xc] sm:$0xe]
  %v344 = vld [vmem:[%s0 + $0x10] sm:$0x3]
  %v347 = vunpack.c.l.b16 %v343
  %v348 = vunpack.c.l.b16 %v344
  %v349 = vpack.c.b16 %v348, %v347
  %v351 = vshrl.u32 %v349, 16
  %v353 = vrot.slane %v351, 5
  %v354 = vshll.u32 %v349, 16
  %v356 = vrot.slane %v354, 6
  %v357 = vor.u32 %v353, %v356
  %359 = vst [vmem:[#allocation2 + $0x48] sm:$0xf0] %v357
  %v360 = vld [vmem:[%s17 + $0xc] sm:$0xe]
  %v361 = vld [vmem:[%s17 + $0x10] sm:$0x3]
  %v364 = vunpack.c.l.b16 %v360
  %v365 = vunpack.c.l.b16 %v361
  %v366 = vpack.c.b16 %v365, %v364
  %v368 = vshrl.u32 %v366, 16
  %v370 = vrot.slane %v368, 5
  %v371 = vshll.u32 %v366, 16
  %v373 = vrot.slane %v371, 6
  %v374 = vor.u32 %v370, %v373
  %376 = vst [vmem:[#allocation2 + $0x50] sm:$0xf0] %v374
  %v377 = vld [vmem:[%s0 + $0xc] sm:$0xc]
  %v378 = vld [vmem:[%s0 + $0x10] sm:$0x3]
  %v381 = vunpack.c.l.b16 %v377
  %v382 = vunpack.c.l.b16 %v378
  %v383 = vpack.c.b16 %v382, %v381
  %v384 = vrot.slane %v383, 6
  %386 = vst [vmem:[#allocation2 + $0x58] sm:$0xf0] %v384
  %v387 = vld [vmem:[%s36 + $0xc] sm:$0xe]
  %v388 = vld [vmem:[%s36 + $0x10] sm:$0x3]
  %v391 = vunpack.c.l.b16 %v387
  %v392 = vunpack.c.l.b16 %v388
  %v393 = vpack.c.b16 %v392, %v391
  %v395 = vshrl.u32 %v393, 16
  %v397 = vrot.slane %v395, 5
  %v398 = vshll.u32 %v393, 16
  %v400 = vrot.slane %v398, 6
  %v401 = vor.u32 %v397, %v400
  %403 = vst [vmem:[#allocation2 + $0x60] sm:$0xf0] %v401
  %v404 = vld [vmem:[%s39 + $0xc] sm:$0xe]
  %v405 = vld [vmem:[%s39 + $0x10] sm:$0x3]
  %v408 = vunpack.c.l.b16 %v404
  %v409 = vunpack.c.l.b16 %v405
  %v410 = vpack.c.b16 %v409, %v408
  %v412 = vshrl.u32 %v410, 16
  %v414 = vrot.slane %v412, 5
  %v415 = vshll.u32 %v410, 16
  %v417 = vrot.slane %v415, 6
  %v418 = vor.u32 %v414, %v417
  %420 = vst [vmem:[#allocation2 + $0x68] sm:$0xf0] %v418
  %v421 = vld [vmem:[%s36 + $0xc] sm:$0xc]
  %v422 = vld [vmem:[%s36 + $0x10] sm:$0x3]
  %v425 = vunpack.c.l.b16 %v421
  %v426 = vunpack.c.l.b16 %v422
  %v427 = vpack.c.b16 %v426, %v425
  %v428 = vrot.slane %v427, 6
  %430 = vst [vmem:[#allocation2 + $0x70] sm:$0xf0] %v428
  %v431 = vld [vmem:[%s0 + $0x10] sm:$0xc]
  %v432 = vld [vmem:[%s0 + $0x14] sm:$0x3]
  %v435 = vunpack.c.l.b16 %v431
  %v436 = vunpack.c.l.b16 %v432
  %v437 = vpack.c.b16 %v436, %v435
  %v438 = vrot.slane %v437, 6
  %440 = vst [vmem:[#allocation2 + $0x78] sm:$0xf0] %v438
  %v441 = vld [vmem:[%s17 + $0x10] sm:$0xc]
  %v442 = vld [vmem:[%s17 + $0x14] sm:$0x3]
  %v445 = vunpack.c.l.b16 %v441
  %v446 = vunpack.c.l.b16 %v442
  %v447 = vpack.c.b16 %v446, %v445
  %v448 = vrot.slane %v447, 6
  %450 = vst [vmem:[#allocation2 + $0x80] sm:$0xf0] %v448
  %v451 = vld [vmem:[%s0 + $0x10] sm:$0xc]
  %v452 = vld [vmem:[%s0 + $0x14] sm:$0x7]
  %v455 = vunpack.c.l.b16 %v451
  %v456 = vunpack.c.l.b16 %v452
  %v457 = vpack.c.b16 %v456, %v455
  %v459 = vshrl.u32 %v457, 16
  %v461 = vrot.slane %v459, 6
  %v462 = vshll.u32 %v457, 16
  %v464 = vrot.slane %v462, 7
  %v465 = vor.u32 %v461, %v464
  %467 = vst [vmem:[#allocation2 + $0x88] sm:$0xf0] %v465
  %v468 = vld [vmem:[%s0 + $0x10] sm:$0xc]
  %v469 = vld [vmem:[%s0 + $0x14] sm:$0x3]
  %v472 = vunpack.c.l.b16 %v468
  %v473 = vunpack.c.l.b16 %v469
  %v474 = vpack.c.b16 %v473, %v472
  %v475 = vrot.slane %v474, 2
  %477 = vst [vmem:[#allocation2 + $0x90] sm:$0xf] %v475
  %v478 = vld [vmem:[%s17 + $0x10] sm:$0xc]
  %v479 = vld [vmem:[%s17 + $0x14] sm:$0x3]
  %v482 = vunpack.c.l.b16 %v478
  %v483 = vunpack.c.l.b16 %v479
  %v484 = vpack.c.b16 %v483, %v482
  %v485 = vrot.slane %v484, 2
  %487 = vst [vmem:[#allocation2 + $0x98] sm:$0xf] %v485
  %v488 = vld [vmem:[%s0 + $0x10] sm:$0xc]
  %v489 = vld [vmem:[%s0 + $0x14] sm:$0x7]
  %v492 = vunpack.c.l.b16 %v488
  %v493 = vunpack.c.l.b16 %v489
  %v494 = vpack.c.b16 %v493, %v492
  %v496 = vshrl.u32 %v494, 16
  %v498 = vrot.slane %v496, 2
  %v499 = vshll.u32 %v494, 16
  %v501 = vrot.slane %v499, 3
  %v502 = vor.u32 %v498, %v501
  %504 = vst [vmem:[#allocation2 + $0xa0] sm:$0xf] %v502
  %v505 = vld [vmem:[%s36 + $0x10] sm:$0xc]
  %v506 = vld [vmem:[%s36 + $0x14] sm:$0x3]
  %v509 = vunpack.c.l.b16 %v505
  %v510 = vunpack.c.l.b16 %v506
  %v511 = vpack.c.b16 %v510, %v509
  %v512 = vrot.slane %v511, 2
  %514 = vst [vmem:[#allocation2 + $0xa8] sm:$0xf] %v512
  %v515 = vld [vmem:[%s39 + $0x10] sm:$0xc]
  %v516 = vld [vmem:[%s39 + $0x14] sm:$0x3]
  %v519 = vunpack.c.l.b16 %v515
  %v520 = vunpack.c.l.b16 %v516
  %v521 = vpack.c.b16 %v520, %v519
  %v522 = vrot.slane %v521, 2
  %524 = vst [vmem:[#allocation2 + $0xb0] sm:$0xf] %v522
  %v525 = vld [vmem:[%s36 + $0x10] sm:$0xc]
  %v526 = vld [vmem:[%s36 + $0x14] sm:$0x7]
  %v529 = vunpack.c.l.b16 %v525
  %v530 = vunpack.c.l.b16 %v526
  %v531 = vpack.c.b16 %v530, %v529
  %v533 = vshrl.u32 %v531, 16
  %v535 = vrot.slane %v533, 2
  %v536 = vshll.u32 %v531, 16
  %v538 = vrot.slane %v536, 3
  %v539 = vor.u32 %v535, %v538
  %541 = vst [vmem:[#allocation2 + $0xb8] sm:$0xf] %v539
  %v542 = vld [vmem:[%s0 + $0x14] sm:$0xc]
  %v543 = vld [vmem:[%s0 + $0x18] sm:$0x7]
  %v546 = vunpack.c.l.b16 %v542
  %v547 = vunpack.c.l.b16 %v543
  %v548 = vpack.c.b16 %v547, %v546
  %v550 = vshrl.u32 %v548, 16
  %v552 = vrot.slane %v550, 2
  %v553 = vshll.u32 %v548, 16
  %v555 = vrot.slane %v553, 3
  %v556 = vor.u32 %v552, %v555
  %558 = vst [vmem:[#allocation2 + $0xc0] sm:$0xf] %v556
  %v559 = vld [vmem:[%s17 + $0x14] sm:$0xc]
  %v560 = vld [vmem:[%s17 + $0x18] sm:$0x7]
  %v563 = vunpack.c.l.b16 %v559
  %v564 = vunpack.c.l.b16 %v560
  %v565 = vpack.c.b16 %v564, %v563
  %v567 = vshrl.u32 %v565, 16
  %v569 = vrot.slane %v567, 2
  %v570 = vshll.u32 %v565, 16
  %v572 = vrot.slane %v570, 3
  %v573 = vor.u32 %v569, %v572
  %575 = vst [vmem:[#allocation2 + $0xc8] sm:$0xf] %v573
  %v576 = vld [vmem:[%s0 + $0x14] sm:$0x8]
  %v577 = vld [vmem:[%s0 + $0x18] sm:$0x7]
  %v580 = vunpack.c.l.b16 %v576
  %v581 = vunpack.c.l.b16 %v577
  %v582 = vpack.c.b16 %v581, %v580
  %v583 = vrot.slane %v582, 3
  %585 = vst [vmem:[#allocation2 + $0xd0] sm:$0xf] %v583
  %v586 = vld [vmem:[%s0 + $0x14] sm:$0xc]
  %v587 = vld [vmem:[%s0 + $0x18] sm:$0x7]
  %v590 = vunpack.c.l.b16 %v586
  %v591 = vunpack.c.l.b16 %v587
  %v592 = vpack.c.b16 %v591, %v590
  %v594 = vshrl.u32 %v592, 16
  %v596 = vrot.slane %v594, 6
  %v597 = vshll.u32 %v592, 16
  %v599 = vrot.slane %v597, 7
  %v600 = vor.u32 %v596, %v599
  %602 = vst [vmem:[#allocation2 + $0x90] sm:$0xf0] %v600
  %v603 = vld [vmem:[%s17 + $0x14] sm:$0xc]
  %v604 = vld [vmem:[%s17 + $0x18] sm:$0x7]
  %v607 = vunpack.c.l.b16 %v603
  %v608 = vunpack.c.l.b16 %v604
  %v609 = vpack.c.b16 %v608, %v607
  %v611 = vshrl.u32 %v609, 16
  %v613 = vrot.slane %v611, 6
  %v614 = vshll.u32 %v609, 16
  %v616 = vrot.slane %v614, 7
  %v617 = vor.u32 %v613, %v616
  %619 = vst [vmem:[#allocation2 + $0x98] sm:$0xf0] %v617
  %v620 = vld [vmem:[%s0 + $0x14] sm:$0x8]
  %v621 = vld [vmem:[%s0 + $0x18] sm:$0x7]
  %v624 = vunpack.c.l.b16 %v620
  %v625 = vunpack.c.l.b16 %v621
  %v626 = vpack.c.b16 %v625, %v624
  %v627 = vrot.slane %v626, 7
  %629 = vst [vmem:[#allocation2 + $0xa0] sm:$0xf0] %v627
  %v630 = vld [vmem:[%s36 + $0x14] sm:$0xc]
  %v631 = vld [vmem:[%s36 + $0x18] sm:$0x7]
  %v634 = vunpack.c.l.b16 %v630
  %v635 = vunpack.c.l.b16 %v631
  %v636 = vpack.c.b16 %v635, %v634
  %v638 = vshrl.u32 %v636, 16
  %v640 = vrot.slane %v638, 6
  %v641 = vshll.u32 %v636, 16
  %v643 = vrot.slane %v641, 7
  %v644 = vor.u32 %v640, %v643
  %646 = vst [vmem:[#allocation2 + $0xa8] sm:$0xf0] %v644
  %v647 = vld [vmem:[%s39 + $0x14] sm:$0xc]
  %v648 = vld [vmem:[%s39 + $0x18] sm:$0x7]
  %v651 = vunpack.c.l.b16 %v647
  %v652 = vunpack.c.l.b16 %v648
  %v653 = vpack.c.b16 %v652, %v651
  %v655 = vshrl.u32 %v653, 16
  %v657 = vrot.slane %v655, 6
  %v658 = vshll.u32 %v653, 16
  %v660 = vrot.slane %v658, 7
  %v661 = vor.u32 %v657, %v660
  %663 = vst [vmem:[#allocation2 + $0xb0] sm:$0xf0] %v661
  %v664 = vld [vmem:[%s36 + $0x14] sm:$0x8]
  %v665 = vld [vmem:[%s36 + $0x18] sm:$0x7]
  %v668 = vunpack.c.l.b16 %v664
  %v669 = vunpack.c.l.b16 %v665
  %v670 = vpack.c.b16 %v669, %v668
  %v671 = vrot.slane %v670, 7
  %673 = vst [vmem:[#allocation2 + $0xb8] sm:$0xf0] %v671
  %v674 = vld [vmem:[%s0 + $0x18] sm:$0x8]
  %v675 = vld [vmem:[%s0 + $0x1c] sm:$0x7]
  %v678 = vunpack.c.l.b16 %v674
  %v679 = vunpack.c.l.b16 %v675
  %v680 = vpack.c.b16 %v679, %v678
  %v681 = vrot.slane %v680, 7
  %683 = vst [vmem:[#allocation2 + $0xc0] sm:$0xf0] %v681
  %v684 = vld [vmem:[%s17 + $0x18] sm:$0x8]
  %v685 = vld [vmem:[%s17 + $0x1c] sm:$0x7]
  %v688 = vunpack.c.l.b16 %v684
  %v689 = vunpack.c.l.b16 %v685
  %v690 = vpack.c.b16 %v689, %v688
  %v691 = vrot.slane %v690, 7
  %693 = vst [vmem:[#allocation2 + $0xc8] sm:$0xf0] %v691
  %v694 = vld [vmem:[%s0 + $0x18] sm:$0x8]
  %v695 = vld [vmem:[%s0 + $0x1c] sm:$0xf]
  %v698 = vunpack.c.l.b16 %v694
  %v699 = vunpack.c.l.b16 %v695
  %v700 = vpack.c.b16 %v699, %v698
  %v702 = vshrl.u32 %v700, 16
  %v704 = vrot.slane %v702, 7
  %v705 = vshll.u32 %v700, 16
  %v707 = vor.u32 %v704, %v705
  %709 = vst [vmem:[#allocation2 + $0xd0] sm:$0xf0] %v707
  %v710 = vld [vmem:[%s0 + $0x18] sm:$0x8]
  %v711 = vld [vmem:[%s0 + $0x1c] sm:$0x7]
  %v714 = vunpack.c.l.b16 %v710
  %v715 = vunpack.c.l.b16 %v711
  %v716 = vpack.c.b16 %v715, %v714
  %v717 = vrot.slane %v716, 3
  %719 = vst [vmem:[#allocation2 + $0xd8] sm:$0xf] %v717
  %v720 = vld [vmem:[%s17 + $0x18] sm:$0x8]
  %v721 = vld [vmem:[%s17 + $0x1c] sm:$0x7]
  %v724 = vunpack.c.l.b16 %v720
  %v725 = vunpack.c.l.b16 %v721
  %v726 = vpack.c.b16 %v725, %v724
  %v727 = vrot.slane %v726, 3
  %729 = vst [vmem:[#allocation2 + $0xe0] sm:$0xf] %v727
  %v730 = vld [vmem:[%s0 + $0x18] sm:$0x8]
  %v731 = vld [vmem:[%s0 + $0x1c] sm:$0xf]
  %v734 = vunpack.c.l.b16 %v730
  %v735 = vunpack.c.l.b16 %v731
  %v736 = vpack.c.b16 %v735, %v734
  %v738 = vshrl.u32 %v736, 16
  %v740 = vrot.slane %v738, 3
  %v741 = vshll.u32 %v736, 16
  %v743 = vrot.slane %v741, 4
  %v744 = vor.u32 %v740, %v743
  %746 = vst [vmem:[#allocation2 + $0xe8] sm:$0xf] %v744
  %v747 = vld [vmem:[%s36 + $0x18] sm:$0x8]
  %v748 = vld [vmem:[%s36 + $0x1c] sm:$0x7]
  %v751 = vunpack.c.l.b16 %v747
  %v752 = vunpack.c.l.b16 %v748
  %v753 = vpack.c.b16 %v752, %v751
  %v754 = vrot.slane %v753, 3
  %756 = vst [vmem:[#allocation2 + $0xf0] sm:$0xf] %v754
  %v757 = vld [vmem:[%s39 + $0x18] sm:$0x8]
  %v758 = vld [vmem:[%s39 + $0x1c] sm:$0x7]
  %v761 = vunpack.c.l.b16 %v757
  %v762 = vunpack.c.l.b16 %v758
  %v763 = vpack.c.b16 %v762, %v761
  %v764 = vrot.slane %v763, 3
  %766 = vst [vmem:[#allocation2 + $0xf8] sm:$0xf] %v764
  %v767 = vld [vmem:[%s36 + $0x18] sm:$0x8]
  %v768 = vld [vmem:[%s36 + $0x1c] sm:$0xf]
  %v771 = vunpack.c.l.b16 %v767
  %v772 = vunpack.c.l.b16 %v768
  %v773 = vpack.c.b16 %v772, %v771
  %v775 = vshrl.u32 %v773, 16
  %v777 = vrot.slane %v775, 3
  %v778 = vshll.u32 %v773, 16
  %v780 = vrot.slane %v778, 4
  %v781 = vor.u32 %v777, %v780
  %783 = vst [vmem:[#allocation2 + $0x100] sm:$0xf] %v781
  %v784 = vld [vmem:[%s0 + $0x1c] sm:$0x8]
  %v785 = vld [vmem:[%s0 + $0x20] sm:$0xf]
  %v788 = vunpack.c.l.b16 %v784
  %v789 = vunpack.c.l.b16 %v785
  %v790 = vpack.c.b16 %v789, %v788
  %v792 = vshrl.u32 %v790, 16
  %v794 = vrot.slane %v792, 3
  %v795 = vshll.u32 %v790, 16
  %v797 = vrot.slane %v795, 4
  %v798 = vor.u32 %v794, %v797
  %800 = vst [vmem:[#allocation2 + $0x108] sm:$0xf] %v798
  %v801 = vld [vmem:[%s17 + $0x1c] sm:$0x8]
  %v802 = vld [vmem:[%s17 + $0x20] sm:$0xf]
  %v805 = vunpack.c.l.b16 %v801
  %v806 = vunpack.c.l.b16 %v802
  %v807 = vpack.c.b16 %v806, %v805
  %v809 = vshrl.u32 %v807, 16
  %v811 = vrot.slane %v809, 3
  %v812 = vshll.u32 %v807, 16
  %v814 = vrot.slane %v812, 4
  %v815 = vor.u32 %v811, %v814
  %817 = vst [vmem:[#allocation2 + $0x110] sm:$0xf] %v815
  %v818 = vld [vmem:[%s0 + $0x20] sm:$0xf]
  %819 = vst [vmem:[#allocation2 + $0x118] sm:$0xf] %v818
  %v820 = vld [vmem:[%s0 + $0x1c] sm:$0x8]
  %v821 = vld [vmem:[%s0 + $0x20] sm:$0xf]
  %v824 = vunpack.c.l.b16 %v820
  %v825 = vunpack.c.l.b16 %v821
  %v826 = vpack.c.b16 %v825, %v824
  %v828 = vshrl.u32 %v826, 16
  %v830 = vrot.slane %v828, 7
  %v831 = vshll.u32 %v826, 16
  %v833 = vor.u32 %v830, %v831
  %835 = vst [vmem:[#allocation2 + $0xd8] sm:$0xf0] %v833
  %v836 = vld [vmem:[%s17 + $0x1c] sm:$0x8]
  %v837 = vld [vmem:[%s17 + $0x20] sm:$0xf]
  %v840 = vunpack.c.l.b16 %v836
  %v841 = vunpack.c.l.b16 %v837
  %v842 = vpack.c.b16 %v841, %v840
  %v844 = vshrl.u32 %v842, 16
  %v846 = vrot.slane %v844, 7
  %v847 = vshll.u32 %v842, 16
  %v849 = vor.u32 %v846, %v847
  %851 = vst [vmem:[#allocation2 + $0xe0] sm:$0xf0] %v849
  %v852 = vld [vmem:[%s0 + $0x20] sm:$0xf]
  %v854 = vunpack.c.l.b16 %v852
  %v855 = vpack.c.b16 %v854, %v854
  %857 = vst [vmem:[#allocation2 + $0xe8] sm:$0xf0] %v855
  %v858 = vld [vmem:[%s36 + $0x1c] sm:$0x8]
  %v859 = vld [vmem:[%s36 + $0x20] sm:$0xf]
  %v862 = vunpack.c.l.b16 %v858
  %v863 = vunpack.c.l.b16 %v859
  %v864 = vpack.c.b16 %v863, %v862
  %v866 = vshrl.u32 %v864, 16
  %v868 = vrot.slane %v866, 7
  %v869 = vshll.u32 %v864, 16
  %v871 = vor.u32 %v868, %v869
  %873 = vst [vmem:[#allocation2 + $0xf0] sm:$0xf0] %v871
  %v874 = vld [vmem:[%s39 + $0x1c] sm:$0x8]
  %v875 = vld [vmem:[%s39 + $0x20] sm:$0xf]
  %v878 = vunpack.c.l.b16 %v874
  %v879 = vunpack.c.l.b16 %v875
  %v880 = vpack.c.b16 %v879, %v878
  %v882 = vshrl.u32 %v880, 16
  %v884 = vrot.slane %v882, 7
  %v885 = vshll.u32 %v880, 16
  %v887 = vor.u32 %v884, %v885
  %889 = vst [vmem:[#allocation2 + $0xf8] sm:$0xf0] %v887
  %v890 = vld [vmem:[%s36 + $0x20] sm:$0xf]
  %v892 = vunpack.c.l.b16 %v890
  %v893 = vpack.c.b16 %v892, %v892
  %895 = vst [vmem:[#allocation2 + $0x100] sm:$0xf0] %v893
  %v896 = vld [vmem:[%s0 + $0x24] sm:$0xf]
  %v898 = vunpack.c.l.b16 %v896
  %v899 = vpack.c.b16 %v898, %v898
  %901 = vst [vmem:[#allocation2 + $0x108] sm:$0xf0] %v899
  %v902 = vld [vmem:[%s17 + $0x24] sm:$0xf]
  %v904 = vunpack.c.l.b16 %v902
  %v905 = vpack.c.b16 %v904, %v904
  %907 = vst [vmem:[#allocation2 + $0x110] sm:$0xf0] %v905
  %v908 = vld [vmem:[%s0 + $0x24] sm:$0xf]
  %v909 = vld [vmem:[%s0 + $0x28] sm:$0x1]
  %v912 = vunpack.c.l.b16 %v908
  %v913 = vunpack.c.l.b16 %v909
  %v914 = vpack.c.b16 %v913, %v912
  %v916 = vshrl.u32 %v914, 16
  %v918 = vrot.slane %v916, 4
  %v919 = vshll.u32 %v914, 16
  %v921 = vrot.slane %v919, 5
  %v922 = vor.u32 %v918, %v921
  %924 = vst [vmem:[#allocation2 + $0x118] sm:$0xf0] %v922
  %s925 = scalar_lea.vmem %s0, 176
  %v926 = vld [vmem:[%s925] sm:$0xf]
  %927 = vst [vmem:[#allocation2 + $0x120] sm:$0xf] %v926
  %s928 = scalar_lea.vmem %s0, 220
  %v929 = vld [vmem:[%s928] sm:$0xf]
  %930 = vst [vmem:[#allocation2 + $0x128] sm:$0xf] %v929
  %v931 = vld [vmem:[%s925] sm:$0xf]
  %v932 = vld [vmem:[%s925 + $0x4] sm:$0x1]
  %v935 = vunpack.c.l.b16 %v931
  %v936 = vunpack.c.l.b16 %v932
  %v937 = vpack.c.b16 %v936, %v935
  %v939 = vshrl.u32 %v937, 16
  %v941 = vshll.u32 %v937, 16
  %v943 = vrot.slane %v941, 1
  %v944 = vor.u32 %v939, %v943
  %946 = vst [vmem:[#allocation2 + $0x130] sm:$0xf] %v944
  %s947 = scalar_lea.vmem %s0, 264
  %v948 = vld [vmem:[%s947] sm:$0xf]
  %949 = vst [vmem:[#allocation2 + $0x138] sm:$0xf] %v948
  %s950 = scalar_lea.vmem %s0, 308
  %v951 = vld [vmem:[%s950] sm:$0xf]
  %952 = vst [vmem:[#allocation2 + $0x140] sm:$0xf] %v951
  %v953 = vld [vmem:[%s947] sm:$0xf]
  %v954 = vld [vmem:[%s947 + $0x4] sm:$0x1]
  %v957 = vunpack.c.l.b16 %v953
  %v958 = vunpack.c.l.b16 %v954
  %v959 = vpack.c.b16 %v958, %v957
  %v961 = vshrl.u32 %v959, 16
  %v963 = vshll.u32 %v959, 16
  %v965 = vrot.slane %v963, 1
  %v966 = vor.u32 %v961, %v965
  %968 = vst [vmem:[#allocation2 + $0x148] sm:$0xf] %v966
  %v969 = vld [vmem:[%s925 + $0x4] sm:$0xf]
  %v970 = vld [vmem:[%s925 + $0x8] sm:$0x1]
  %v973 = vunpack.c.l.b16 %v969
  %v974 = vunpack.c.l.b16 %v970
  %v975 = vpack.c.b16 %v974, %v973
  %v977 = vshrl.u32 %v975, 16
  %v979 = vshll.u32 %v975, 16
  %v981 = vrot.slane %v979, 1
  %v982 = vor.u32 %v977, %v981
  %984 = vst [vmem:[#allocation2 + $0x150] sm:$0xf] %v982
  %v985 = vld [vmem:[%s928 + $0x4] sm:$0xf]
  %v986 = vld [vmem:[%s928 + $0x8] sm:$0x1]
  %v989 = vunpack.c.l.b16 %v985
  %v990 = vunpack.c.l.b16 %v986
  %v991 = vpack.c.b16 %v990, %v989
  %v993 = vshrl.u32 %v991, 16
  %v995 = vshll.u32 %v991, 16
  %v997 = vrot.slane %v995, 1
  %v998 = vor.u32 %v993, %v997
  %1000 = vst [vmem:[#allocation2 + $0x158] sm:$0xf] %v998
  %v1001 = vld [vmem:[%s925 + $0x4] sm:$0xe]
  %v1002 = vld [vmem:[%s925 + $0x8] sm:$0x1]
  %v1005 = vunpack.c.l.b16 %v1001
  %v1006 = vunpack.c.l.b16 %v1002
  %v1007 = vpack.c.b16 %v1006, %v1005
  %v1008 = vrot.slane %v1007, 1
  %1010 = vst [vmem:[#allocation2 + $0x160] sm:$0xf] %v1008
  %v1011 = vld [vmem:[%s925 + $0x4] sm:$0xf]
  %v1012 = vld [vmem:[%s925 + $0x8] sm:$0x1]
  %v1015 = vunpack.c.l.b16 %v1011
  %v1016 = vunpack.c.l.b16 %v1012
  %v1017 = vpack.c.b16 %v1016, %v1015
  %v1019 = vshrl.u32 %v1017, 16
  %v1021 = vrot.slane %v1019, 4
  %v1022 = vshll.u32 %v1017, 16
  %v1024 = vrot.slane %v1022, 5
  %v1025 = vor.u32 %v1021, %v1024
  %1027 = vst [vmem:[#allocation2 + $0x120] sm:$0xf0] %v1025
  %v1028 = vld [vmem:[%s928 + $0x4] sm:$0xf]
  %v1029 = vld [vmem:[%s928 + $0x8] sm:$0x1]
  %v1032 = vunpack.c.l.b16 %v1028
  %v1033 = vunpack.c.l.b16 %v1029
  %v1034 = vpack.c.b16 %v1033, %v1032
  %v1036 = vshrl.u32 %v1034, 16
  %v1038 = vrot.slane %v1036, 4
  %v1039 = vshll.u32 %v1034, 16
  %v1041 = vrot.slane %v1039, 5
  %v1042 = vor.u32 %v1038, %v1041
  %1044 = vst [vmem:[#allocation2 + $0x128] sm:$0xf0] %v1042
  %v1045 = vld [vmem:[%s925 + $0x4] sm:$0xe]
  %v1046 = vld [vmem:[%s925 + $0x8] sm:$0x1]
  %v1049 = vunpack.c.l.b16 %v1045
  %v1050 = vunpack.c.l.b16 %v1046
  %v1051 = vpack.c.b16 %v1050, %v1049
  %v1052 = vrot.slane %v1051, 5
  %1054 = vst [vmem:[#allocation2 + $0x130] sm:$0xf0] %v1052
  %v1055 = vld [vmem:[%s947 + $0x4] sm:$0xf]
  %v1056 = vld [vmem:[%s947 + $0x8] sm:$0x1]
  %v1059 = vunpack.c.l.b16 %v1055
  %v1060 = vunpack.c.l.b16 %v1056
  %v1061 = vpack.c.b16 %v1060, %v1059
  %v1063 = vshrl.u32 %v1061, 16
  %v1065 = vrot.slane %v1063, 4
  %v1066 = vshll.u32 %v1061, 16
  %v1068 = vrot.slane %v1066, 5
  %v1069 = vor.u32 %v1065, %v1068
  %1071 = vst [vmem:[#allocation2 + $0x138] sm:$0xf0] %v1069
  %v1072 = vld [vmem:[%s950 + $0x4] sm:$0xf]
  %v1073 = vld [vmem:[%s950 + $0x8] sm:$0x1]
  %v1076 = vunpack.c.l.b16 %v1072
  %v1077 = vunpack.c.l.b16 %v1073
  %v1078 = vpack.c.b16 %v1077, %v1076
  %v1080 = vshrl.u32 %v1078, 16
  %v1082 = vrot.slane %v1080, 4
  %v1083 = vshll.u32 %v1078, 16
  %v1085 = vrot.slane %v1083, 5
  %v1086 = vor.u32 %v1082, %v1085
  %1088 = vst [vmem:[#allocation2 + $0x140] sm:$0xf0] %v1086
  %v1089 = vld [vmem:[%s947 + $0x4] sm:$0xe]
  %v1090 = vld [vmem:[%s947 + $0x8] sm:$0x1]
  %v1093 = vunpack.c.l.b16 %v1089
  %v1094 = vunpack.c.l.b16 %v1090
  %v1095 = vpack.c.b16 %v1094, %v1093
  %v1096 = vrot.slane %v1095, 5
  %1098 = vst [vmem:[#allocation2 + $0x148] sm:$0xf0] %v1096
  %v1099 = vld [vmem:[%s925 + $0x8] sm:$0xe]
  %v1100 = vld [vmem:[%s925 + $0xc] sm:$0x1]
  %v1103 = vunpack.c.l.b16 %v1099
  %v1104 = vunpack.c.l.b16 %v1100
  %v1105 = vpack.c.b16 %v1104, %v1103
  %v1106 = vrot.slane %v1105, 5
  %1108 = vst [vmem:[#allocation2 + $0x150] sm:$0xf0] %v1106
  %v1109 = vld [vmem:[%s928 + $0x8] sm:$0xe]
  %v1110 = vld [vmem:[%s928 + $0xc] sm:$0x1]
  %v1113 = vunpack.c.l.b16 %v1109
  %v1114 = vunpack.c.l.b16 %v1110
  %v1115 = vpack.c.b16 %v1114, %v1113
  %v1116 = vrot.slane %v1115, 5
  %1118 = vst [vmem:[#allocation2 + $0x158] sm:$0xf0] %v1116
  %v1119 = vld [vmem:[%s925 + $0x8] sm:$0xe]
  %v1120 = vld [vmem:[%s925 + $0xc] sm:$0x3]
  %v1123 = vunpack.c.l.b16 %v1119
  %v1124 = vunpack.c.l.b16 %v1120
  %v1125 = vpack.c.b16 %v1124, %v1123
  %v1127 = vshrl.u32 %v1125, 16
  %v1129 = vrot.slane %v1127, 5
  %v1130 = vshll.u32 %v1125, 16
  %v1132 = vrot.slane %v1130, 6
  %v1133 = vor.u32 %v1129, %v1132
  %1135 = vst [vmem:[#allocation2 + $0x160] sm:$0xf0] %v1133
  %v1136 = vld [vmem:[%s925 + $0x8] sm:$0xe]
  %v1137 = vld [vmem:[%s925 + $0xc] sm:$0x1]
  %v1140 = vunpack.c.l.b16 %v1136
  %v1141 = vunpack.c.l.b16 %v1137
  %v1142 = vpack.c.b16 %v1141, %v1140
  %v1143 = vrot.slane %v1142, 1
  %1145 = vst [vmem:[#allocation2 + $0x168] sm:$0xf] %v1143
  %v1146 = vld [vmem:[%s928 + $0x8] sm:$0xe]
  %v1147 = vld [vmem:[%s928 + $0xc] sm:$0x1]
  %v1150 = vunpack.c.l.b16 %v1146
  %v1151 = vunpack.c.l.b16 %v1147
  %v1152 = vpack.c.b16 %v1151, %v1150
  %v1153 = vrot.slane %v1152, 1
  %1155 = vst [vmem:[#allocation2 + $0x170] sm:$0xf] %v1153
  %v1156 = vld [vmem:[%s925 + $0x8] sm:$0xe]
  %v1157 = vld [vmem:[%s925 + $0xc] sm:$0x3]
  %v1160 = vunpack.c.l.b16 %v1156
  %v1161 = vunpack.c.l.b16 %v1157
  %v1162 = vpack.c.b16 %v1161, %v1160
  %v1164 = vshrl.u32 %v1162, 16
  %v1166 = vrot.slane %v1164, 1
  %v1167 = vshll.u32 %v1162, 16
  %v1169 = vrot.slane %v1167, 2
  %v1170 = vor.u32 %v1166, %v1169
  %1172 = vst [vmem:[#allocation2 + $0x178] sm:$0xf] %v1170
  %v1173 = vld [vmem:[%s947 + $0x8] sm:$0xe]
  %v1174 = vld [vmem:[%s947 + $0xc] sm:$0x1]
  %v1177 = vunpack.c.l.b16 %v1173
  %v1178 = vunpack.c.l.b16 %v1174
  %v1179 = vpack.c.b16 %v1178, %v1177
  %v1180 = vrot.slane %v1179, 1
  %1182 = vst [vmem:[#allocation2 + $0x180] sm:$0xf] %v1180
  %v1183 = vld [vmem:[%s950 + $0x8] sm:$0xe]
  %v1184 = vld [vmem:[%s950 + $0xc] sm:$0x1]
  %v1187 = vunpack.c.l.b16 %v1183
  %v1188 = vunpack.c.l.b16 %v1184
  %v1189 = vpack.c.b16 %v1188, %v1187
  %v1190 = vrot.slane %v1189, 1
  %1192 = vst [vmem:[#allocation2 + $0x188] sm:$0xf] %v1190
  %v1193 = vld [vmem:[%s947 + $0x8] sm:$0xe]
  %v1194 = vld [vmem:[%s947 + $0xc] sm:$0x3]
  %v1197 = vunpack.c.l.b16 %v1193
  %v1198 = vunpack.c.l.b16 %v1194
  %v1199 = vpack.c.b16 %v1198, %v1197
  %v1201 = vshrl.u32 %v1199, 16
  %v1203 = vrot.slane %v1201, 1
  %v1204 = vshll.u32 %v1199, 16
  %v1206 = vrot.slane %v1204, 2
  %v1207 = vor.u32 %v1203, %v1206
  %1209 = vst [vmem:[#allocation2 + $0x190] sm:$0xf] %v1207
  %v1210 = vld [vmem:[%s925 + $0xc] sm:$0xe]
  %v1211 = vld [vmem:[%s925 + $0x10] sm:$0x3]
  %v1214 = vunpack.c.l.b16 %v1210
  %v1215 = vunpack.c.l.b16 %v1211
  %v1216 = vpack.c.b16 %v1215, %v1214
  %v1218 = vshrl.u32 %v1216, 16
  %v1220 = vrot.slane %v1218, 1
  %v1221 = vshll.u32 %v1216, 16
  %v1223 = vrot.slane %v1221, 2
  %v1224 = vor.u32 %v1220, %v1223
  %1226 = vst [vmem:[#allocation2 + $0x198] sm:$0xf] %v1224
  %v1227 = vld [vmem:[%s928 + $0xc] sm:$0xe]
  %v1228 = vld [vmem:[%s928 + $0x10] sm:$0x3]
  %v1231 = vunpack.c.l.b16 %v1227
  %v1232 = vunpack.c.l.b16 %v1228
  %v1233 = vpack.c.b16 %v1232, %v1231
  %v1235 = vshrl.u32 %v1233, 16
  %v1237 = vrot.slane %v1235, 1
  %v1238 = vshll.u32 %v1233, 16
  %v1240 = vrot.slane %v1238, 2
  %v1241 = vor.u32 %v1237, %v1240
  %1243 = vst [vmem:[#allocation2 + $0x1a0] sm:$0xf] %v1241
  %v1244 = vld [vmem:[%s925 + $0xc] sm:$0xc]
  %v1245 = vld [vmem:[%s925 + $0x10] sm:$0x3]
  %v1248 = vunpack.c.l.b16 %v1244
  %v1249 = vunpack.c.l.b16 %v1245
  %v1250 = vpack.c.b16 %v1249, %v1248
  %v1251 = vrot.slane %v1250, 2
  %1253 = vst [vmem:[#allocation2 + $0x1a8] sm:$0xf] %v1251
  %v1254 = vld [vmem:[%s925 + $0xc] sm:$0xe]
  %v1255 = vld [vmem:[%s925 + $0x10] sm:$0x3]
  %v1258 = vunpack.c.l.b16 %v1254
  %v1259 = vunpack.c.l.b16 %v1255
  %v1260 = vpack.c.b16 %v1259, %v1258
  %v1262 = vshrl.u32 %v1260, 16
  %v1264 = vrot.slane %v1262, 5
  %v1265 = vshll.u32 %v1260, 16
  %v1267 = vrot.slane %v1265, 6
  %v1268 = vor.u32 %v1264, %v1267
  %1270 = vst [vmem:[#allocation2 + $0x168] sm:$0xf0] %v1268
  %v1271 = vld [vmem:[%s928 + $0xc] sm:$0xe]
  %v1272 = vld [vmem:[%s928 + $0x10] sm:$0x3]
  %v1275 = vunpack.c.l.b16 %v1271
  %v1276 = vunpack.c.l.b16 %v1272
  %v1277 = vpack.c.b16 %v1276, %v1275
  %v1279 = vshrl.u32 %v1277, 16
  %v1281 = vrot.slane %v1279, 5
  %v1282 = vshll.u32 %v1277, 16
  %v1284 = vrot.slane %v1282, 6
  %v1285 = vor.u32 %v1281, %v1284
  %1287 = vst [vmem:[#allocation2 + $0x170] sm:$0xf0] %v1285
  %v1288 = vld [vmem:[%s925 + $0xc] sm:$0xc]
  %v1289 = vld [vmem:[%s925 + $0x10] sm:$0x3]
  %v1292 = vunpack.c.l.b16 %v1288
  %v1293 = vunpack.c.l.b16 %v1289
  %v1294 = vpack.c.b16 %v1293, %v1292
  %v1295 = vrot.slane %v1294, 6
  %1297 = vst [vmem:[#allocation2 + $0x178] sm:$0xf0] %v1295
  %v1298 = vld [vmem:[%s947 + $0xc] sm:$0xe]
  %v1299 = vld [vmem:[%s947 + $0x10] sm:$0x3]
  %v1302 = vunpack.c.l.b16 %v1298
  %v1303 = vunpack.c.l.b16 %v1299
  %v1304 = vpack.c.b16 %v1303, %v1302
  %v1306 = vshrl.u32 %v1304, 16
  %v1308 = vrot.slane %v1306, 5
  %v1309 = vshll.u32 %v1304, 16
  %v1311 = vrot.slane %v1309, 6
  %v1312 = vor.u32 %v1308, %v1311
  %1314 = vst [vmem:[#allocation2 + $0x180] sm:$0xf0] %v1312
  %v1315 = vld [vmem:[%s950 + $0xc] sm:$0xe]
  %v1316 = vld [vmem:[%s950 + $0x10] sm:$0x3]
  %v1319 = vunpack.c.l.b16 %v1315
  %v1320 = vunpack.c.l.b16 %v1316
  %v1321 = vpack.c.b16 %v1320, %v1319
  %v1323 = vshrl.u32 %v1321, 16
  %v1325 = vrot.slane %v1323, 5
  %v1326 = vshll.u32 %v1321, 16
  %v1328 = vrot.slane %v1326, 6
  %v1329 = vor.u32 %v1325, %v1328
  %1331 = vst [vmem:[#allocation2 + $0x188] sm:$0xf0] %v1329
  %v1332 = vld [vmem:[%s947 + $0xc] sm:$0xc]
  %v1333 = vld [vmem:[%s947 + $0x10] sm:$0x3]
  %v1336 = vunpack.c.l.b16 %v1332
  %v1337 = vunpack.c.l.b16 %v1333
  %v1338 = vpack.c.b16 %v1337, %v1336
  %v1339 = vrot.slane %v1338, 6
  %1341 = vst [vmem:[#allocation2 + $0x190] sm:$0xf0] %v1339
  %v1342 = vld [vmem:[%s925 + $0x10] sm:$0xc]
  %v1343 = vld [vmem:[%s925 + $0x14] sm:$0x3]
  %v1346 = vunpack.c.l.b16 %v1342
  %v1347 = vunpack.c.l.b16 %v1343
  %v1348 = vpack.c.b16 %v1347, %v1346
  %v1349 = vrot.slane %v1348, 6
  %1351 = vst [vmem:[#allocation2 + $0x198] sm:$0xf0] %v1349
  %v1352 = vld [vmem:[%s928 + $0x10] sm:$0xc]
  %v1353 = vld [vmem:[%s928 + $0x14] sm:$0x3]
  %v1356 = vunpack.c.l.b16 %v1352
  %v1357 = vunpack.c.l.b16 %v1353
  %v1358 = vpack.c.b16 %v1357, %v1356
  %v1359 = vrot.slane %v1358, 6
  %1361 = vst [vmem:[#allocation2 + $0x1a0] sm:$0xf0] %v1359
  %v1362 = vld [vmem:[%s925 + $0x10] sm:$0xc]
  %v1363 = vld [vmem:[%s925 + $0x14] sm:$0x7]
  %v1366 = vunpack.c.l.b16 %v1362
  %v1367 = vunpack.c.l.b16 %v1363
  %v1368 = vpack.c.b16 %v1367, %v1366
  %v1370 = vshrl.u32 %v1368, 16
  %v1372 = vrot.slane %v1370, 6
  %v1373 = vshll.u32 %v1368, 16
  %v1375 = vrot.slane %v1373, 7
  %v1376 = vor.u32 %v1372, %v1375
  %1378 = vst [vmem:[#allocation2 + $0x1a8] sm:$0xf0] %v1376
  %v1379 = vld [vmem:[%s925 + $0x10] sm:$0xc]
  %v1380 = vld [vmem:[%s925 + $0x14] sm:$0x3]
  %v1383 = vunpack.c.l.b16 %v1379
  %v1384 = vunpack.c.l.b16 %v1380
  %v1385 = vpack.c.b16 %v1384, %v1383
  %v1386 = vrot.slane %v1385, 2
  %1388 = vst [vmem:[#allocation2 + $0x1b0] sm:$0xf] %v1386
  %v1389 = vld [vmem:[%s928 + $0x10] sm:$0xc]
  %v1390 = vld [vmem:[%s928 + $0x14] sm:$0x3]
  %v1393 = vunpack.c.l.b16 %v1389
  %v1394 = vunpack.c.l.b16 %v1390
  %v1395 = vpack.c.b16 %v1394, %v1393
  %v1396 = vrot.slane %v1395, 2
  %1398 = vst [vmem:[#allocation2 + $0x1b8] sm:$0xf] %v1396
  %v1399 = vld [vmem:[%s925 + $0x10] sm:$0xc]
  %v1400 = vld [vmem:[%s925 + $0x14] sm:$0x7]
  %v1403 = vunpack.c.l.b16 %v1399
  %v1404 = vunpack.c.l.b16 %v1400
  %v1405 = vpack.c.b16 %v1404, %v1403
  %v1407 = vshrl.u32 %v1405, 16
  %v1409 = vrot.slane %v1407, 2
  %v1410 = vshll.u32 %v1405, 16
  %v1412 = vrot.slane %v1410, 3
  %v1413 = vor.u32 %v1409, %v1412
  %1415 = vst [vmem:[#allocation2 + $0x1c0] sm:$0xf] %v1413
  %v1416 = vld [vmem:[%s947 + $0x10] sm:$0xc]
  %v1417 = vld [vmem:[%s947 + $0x14] sm:$0x3]
  %v1420 = vunpack.c.l.b16 %v1416
  %v1421 = vunpack.c.l.b16 %v1417
  %v1422 = vpack.c.b16 %v1421, %v1420
  %v1423 = vrot.slane %v1422, 2
  %1425 = vst [vmem:[#allocation2 + $0x1c8] sm:$0xf] %v1423
  %v1426 = vld [vmem:[%s950 + $0x10] sm:$0xc]
  %v1427 = vld [vmem:[%s950 + $0x14] sm:$0x3]
  %v1430 = vunpack.c.l.b16 %v1426
  %v1431 = vunpack.c.l.b16 %v1427
  %v1432 = vpack.c.b16 %v1431, %v1430
  %v1433 = vrot.slane %v1432, 2
  %1435 = vst [vmem:[#allocation2 + $0x1d0] sm:$0xf] %v1433
  %v1436 = vld [vmem:[%s947 + $0x10] sm:$0xc]
  %v1437 = vld [vmem:[%s947 + $0x14] sm:$0x7]
  %v1440 = vunpack.c.l.b16 %v1436
  %v1441 = vunpack.c.l.b16 %v1437
  %v1442 = vpack.c.b16 %v1441, %v1440
  %v1444 = vshrl.u32 %v1442, 16
  %v1446 = vrot.slane %v1444, 2
  %v1447 = vshll.u32 %v1442, 16
  %v1449 = vrot.slane %v1447, 3
  %v1450 = vor.u32 %v1446, %v1449
  %1452 = vst [vmem:[#allocation2 + $0x1d8] sm:$0xf] %v1450
  %v1453 = vld [vmem:[%s925 + $0x14] sm:$0xc]
  %v1454 = vld [vmem:[%s925 + $0x18] sm:$0x7]
  %v1457 = vunpack.c.l.b16 %v1453
  %v1458 = vunpack.c.l.b16 %v1454
  %v1459 = vpack.c.b16 %v1458, %v1457
  %v1461 = vshrl.u32 %v1459, 16
  %v1463 = vrot.slane %v1461, 2
  %v1464 = vshll.u32 %v1459, 16
  %v1466 = vrot.slane %v1464, 3
  %v1467 = vor.u32 %v1463, %v1466
  %1469 = vst [vmem:[#allocation2 + $0x1e0] sm:$0xf] %v1467
  %v1470 = vld [vmem:[%s928 + $0x14] sm:$0xc]
  %v1471 = vld [vmem:[%s928 + $0x18] sm:$0x7]
  %v1474 = vunpack.c.l.b16 %v1470
  %v1475 = vunpack.c.l.b16 %v1471
  %v1476 = vpack.c.b16 %v1475, %v1474
  %v1478 = vshrl.u32 %v1476, 16
  %v1480 = vrot.slane %v1478, 2
  %v1481 = vshll.u32 %v1476, 16
  %v1483 = vrot.slane %v1481, 3
  %v1484 = vor.u32 %v1480, %v1483
  %1486 = vst [vmem:[#allocation2 + $0x1e8] sm:$0xf] %v1484
  %v1487 = vld [vmem:[%s925 + $0x14] sm:$0x8]
  %v1488 = vld [vmem:[%s925 + $0x18] sm:$0x7]
  %v1491 = vunpack.c.l.b16 %v1487
  %v1492 = vunpack.c.l.b16 %v1488
  %v1493 = vpack.c.b16 %v1492, %v1491
  %v1494 = vrot.slane %v1493, 3
  %1496 = vst [vmem:[#allocation2 + $0x1f0] sm:$0xf] %v1494
  %v1497 = vld [vmem:[%s925 + $0x14] sm:$0xc]
  %v1498 = vld [vmem:[%s925 + $0x18] sm:$0x7]
  %v1501 = vunpack.c.l.b16 %v1497
  %v1502 = vunpack.c.l.b16 %v1498
  %v1503 = vpack.c.b16 %v1502, %v1501
  %v1505 = vshrl.u32 %v1503, 16
  %v1507 = vrot.slane %v1505, 6
  %v1508 = vshll.u32 %v1503, 16
  %v1510 = vrot.slane %v1508, 7
  %v1511 = vor.u32 %v1507, %v1510
  %1513 = vst [vmem:[#allocation2 + $0x1b0] sm:$0xf0] %v1511
  %v1514 = vld [vmem:[%s928 + $0x14] sm:$0xc]
  %v1515 = vld [vmem:[%s928 + $0x18] sm:$0x7]
  %v1518 = vunpack.c.l.b16 %v1514
  %v1519 = vunpack.c.l.b16 %v1515
  %v1520 = vpack.c.b16 %v1519, %v1518
  %v1522 = vshrl.u32 %v1520, 16
  %v1524 = vrot.slane %v1522, 6
  %v1525 = vshll.u32 %v1520, 16
  %v1527 = vrot.slane %v1525, 7
  %v1528 = vor.u32 %v1524, %v1527
  %1530 = vst [vmem:[#allocation2 + $0x1b8] sm:$0xf0] %v1528
  %v1531 = vld [vmem:[%s925 + $0x14] sm:$0x8]
  %v1532 = vld [vmem:[%s925 + $0x18] sm:$0x7]
  %v1535 = vunpack.c.l.b16 %v1531
  %v1536 = vunpack.c.l.b16 %v1532
  %v1537 = vpack.c.b16 %v1536, %v1535
  %v1538 = vrot.slane %v1537, 7
  %1540 = vst [vmem:[#allocation2 + $0x1c0] sm:$0xf0] %v1538
  %v1541 = vld [vmem:[%s947 + $0x14] sm:$0xc]
  %v1542 = vld [vmem:[%s947 + $0x18] sm:$0x7]
  %v1545 = vunpack.c.l.b16 %v1541
  %v1546 = vunpack.c.l.b16 %v1542
  %v1547 = vpack.c.b16 %v1546, %v1545
  %v1549 = vshrl.u32 %v1547, 16
  %v1551 = vrot.slane %v1549, 6
  %v1552 = vshll.u32 %v1547, 16
  %v1554 = vrot.slane %v1552, 7
  %v1555 = vor.u32 %v1551, %v1554
  %1557 = vst [vmem:[#allocation2 + $0x1c8] sm:$0xf0] %v1555
  %v1558 = vld [vmem:[%s950 + $0x14] sm:$0xc]
  %v1559 = vld [vmem:[%s950 + $0x18] sm:$0x7]
  %v1562 = vunpack.c.l.b16 %v1558
  %v1563 = vunpack.c.l.b16 %v1559
  %v1564 = vpack.c.b16 %v1563, %v1562
  %v1566 = vshrl.u32 %v1564, 16
  %v1568 = vrot.slane %v1566, 6
  %v1569 = vshll.u32 %v1564, 16
  %v1571 = vrot.slane %v1569, 7
  %v1572 = vor.u32 %v1568, %v1571
  %1574 = vst [vmem:[#allocation2 + $0x1d0] sm:$0xf0] %v1572
  %v1575 = vld [vmem:[%s947 + $0x14] sm:$0x8]
  %v1576 = vld [vmem:[%s947 + $0x18] sm:$0x7]
  %v1579 = vunpack.c.l.b16 %v1575
  %v1580 = vunpack.c.l.b16 %v1576
  %v1581 = vpack.c.b16 %v1580, %v1579
  %v1582 = vrot.slane %v1581, 7
  %1584 = vst [vmem:[#allocation2 + $0x1d8] sm:$0xf0] %v1582
  %v1585 = vld [vmem:[%s925 + $0x18] sm:$0x8]
  %v1586 = vld [vmem:[%s925 + $0x1c] sm:$0x7]
  %v1589 = vunpack.c.l.b16 %v1585
  %v1590 = vunpack.c.l.b16 %v1586
  %v1591 = vpack.c.b16 %v1590, %v1589
  %v1592 = vrot.slane %v1591, 7
  %1594 = vst [vmem:[#allocation2 + $0x1e0] sm:$0xf0] %v1592
  %v1595 = vld [vmem:[%s928 + $0x18] sm:$0x8]
  %v1596 = vld [vmem:[%s928 + $0x1c] sm:$0x7]
  %v1599 = vunpack.c.l.b16 %v1595
  %v1600 = vunpack.c.l.b16 %v1596
  %v1601 = vpack.c.b16 %v1600, %v1599
  %v1602 = vrot.slane %v1601, 7
  %1604 = vst [vmem:[#allocation2 + $0x1e8] sm:$0xf0] %v1602
  %v1605 = vld [vmem:[%s925 + $0x18] sm:$0x8]
  %v1606 = vld [vmem:[%s925 + $0x1c] sm:$0xf]
  %v1609 = vunpack.c.l.b16 %v1605
  %v1610 = vunpack.c.l.b16 %v1606
  %v1611 = vpack.c.b16 %v1610, %v1609
  %v1613 = vshrl.u32 %v1611, 16
  %v1615 = vrot.slane %v1613, 7
  %v1616 = vshll.u32 %v1611, 16
  %v1618 = vor.u32 %v1615, %v1616
  %1620 = vst [vmem:[#allocation2 + $0x1f0] sm:$0xf0] %v1618
  %v1621 = vld [vmem:[%s925 + $0x18] sm:$0x8]
  %v1622 = vld [vmem:[%s925 + $0x1c] sm:$0x7]
  %v1625 = vunpack.c.l.b16 %v1621
  %v1626 = vunpack.c.l.b16 %v1622
  %v1627 = vpack.c.b16 %v1626, %v1625
  %v1628 = vrot.slane %v1627, 3
  %1630 = vst [vmem:[#allocation2 + $0x1f8] sm:$0xf] %v1628
  %v1631 = vld [vmem:[%s928 + $0x18] sm:$0x8]
  %v1632 = vld [vmem:[%s928 + $0x1c] sm:$0x7]
  %v1635 = vunpack.c.l.b16 %v1631
  %v1636 = vunpack.c.l.b16 %v1632
  %v1637 = vpack.c.b16 %v1636, %v1635
  %v1638 = vrot.slane %v1637, 3
  %1640 = vst [vmem:[#allocation2 + $0x200] sm:$0xf] %v1638
  %v1641 = vld [vmem:[%s925 + $0x18] sm:$0x8]
  %v1642 = vld [vmem:[%s925 + $0x1c] sm:$0xf]
  %v1645 = vunpack.c.l.b16 %v1641
  %v1646 = vunpack.c.l.b16 %v1642
  %v1647 = vpack.c.b16 %v1646, %v1645
  %v1649 = vshrl.u32 %v1647, 16
  %v1651 = vrot.slane %v1649, 3
  %v1652 = vshll.u32 %v1647, 16
  %v1654 = vrot.slane %v1652, 4
  %v1655 = vor.u32 %v1651, %v1654
  %1657 = vst [vmem:[#allocation2 + $0x208] sm:$0xf] %v1655
  %v1658 = vld [vmem:[%s947 + $0x18] sm:$0x8]
  %v1659 = vld [vmem:[%s947 + $0x1c] sm:$0x7]
  %v1662 = vunpack.c.l.b16 %v1658
  %v1663 = vunpack.c.l.b16 %v1659
  %v1664 = vpack.c.b16 %v1663, %v1662
  %v1665 = vrot.slane %v1664, 3
  %1667 = vst [vmem:[#allocation2 + $0x210] sm:$0xf] %v1665
  %v1668 = vld [vmem:[%s950 + $0x18] sm:$0x8]
  %v1669 = vld [vmem:[%s950 + $0x1c] sm:$0x7]
  %v1672 = vunpack.c.l.b16 %v1668
  %v1673 = vunpack.c.l.b16 %v1669
  %v1674 = vpack.c.b16 %v1673, %v1672
  %v1675 = vrot.slane %v1674, 3
  %1677 = vst [vmem:[#allocation2 + $0x218] sm:$0xf] %v1675
  %v1678 = vld [vmem:[%s947 + $0x18] sm:$0x8]
  %v1679 = vld [vmem:[%s947 + $0x1c] sm:$0xf]
  %v1682 = vunpack.c.l.b16 %v1678
  %v1683 = vunpack.c.l.b16 %v1679
  %v1684 = vpack.c.b16 %v1683, %v1682
  %v1686 = vshrl.u32 %v1684, 16
  %v1688 = vrot.slane %v1686, 3
  %v1689 = vshll.u32 %v1684, 16
  %v1691 = vrot.slane %v1689, 4
  %v1692 = vor.u32 %v1688, %v1691
  %1694 = vst [vmem:[#allocation2 + $0x220] sm:$0xf] %v1692
  %v1695 = vld [vmem:[%s925 + $0x1c] sm:$0x8]
  %v1696 = vld [vmem:[%s925 + $0x20] sm:$0xf]
  %v1699 = vunpack.c.l.b16 %v1695
  %v1700 = vunpack.c.l.b16 %v1696
  %v1701 = vpack.c.b16 %v1700, %v1699
  %v1703 = vshrl.u32 %v1701, 16
  %v1705 = vrot.slane %v1703, 3
  %v1706 = vshll.u32 %v1701, 16
  %v1708 = vrot.slane %v1706, 4
  %v1709 = vor.u32 %v1705, %v1708
  %1711 = vst [vmem:[#allocation2 + $0x228] sm:$0xf] %v1709
  %v1712 = vld [vmem:[%s928 + $0x1c] sm:$0x8]
  %v1713 = vld [vmem:[%s928 + $0x20] sm:$0xf]
  %v1716 = vunpack.c.l.b16 %v1712
  %v1717 = vunpack.c.l.b16 %v1713
  %v1718 = vpack.c.b16 %v1717, %v1716
  %v1720 = vshrl.u32 %v1718, 16
  %v1722 = vrot.slane %v1720, 3
  %v1723 = vshll.u32 %v1718, 16
  %v1725 = vrot.slane %v1723, 4
  %v1726 = vor.u32 %v1722, %v1725
  %1728 = vst [vmem:[#allocation2 + $0x230] sm:$0xf] %v1726
  %v1729 = vld [vmem:[%s925 + $0x20] sm:$0xf]
  %1730 = vst [vmem:[#allocation2 + $0x238] sm:$0xf] %v1729
  %v1731 = vld [vmem:[%s925 + $0x1c] sm:$0x8]
  %v1732 = vld [vmem:[%s925 + $0x20] sm:$0xf]
  %v1735 = vunpack.c.l.b16 %v1731
  %v1736 = vunpack.c.l.b16 %v1732
  %v1737 = vpack.c.b16 %v1736, %v1735
  %v1739 = vshrl.u32 %v1737, 16
  %v1741 = vrot.slane %v1739, 7
  %v1742 = vshll.u32 %v1737, 16
  %v1744 = vor.u32 %v1741, %v1742
  %1746 = vst [vmem:[#allocation2 + $0x1f8] sm:$0xf0] %v1744
  %v1747 = vld [vmem:[%s928 + $0x1c] sm:$0x8]
  %v1748 = vld [vmem:[%s928 + $0x20] sm:$0xf]
  %v1751 = vunpack.c.l.b16 %v1747
  %v1752 = vunpack.c.l.b16 %v1748
  %v1753 = vpack.c.b16 %v1752, %v1751
  %v1755 = vshrl.u32 %v1753, 16
  %v1757 = vrot.slane %v1755, 7
  %v1758 = vshll.u32 %v1753, 16
  %v1760 = vor.u32 %v1757, %v1758
  %1762 = vst [vmem:[#allocation2 + $0x200] sm:$0xf0] %v1760
  %v1763 = vld [vmem:[%s925 + $0x20] sm:$0xf]
  %v1765 = vunpack.c.l.b16 %v1763
  %v1766 = vpack.c.b16 %v1765, %v1765
  %1768 = vst [vmem:[#allocation2 + $0x208] sm:$0xf0] %v1766
  %v1769 = vld [vmem:[%s947 + $0x1c] sm:$0x8]
  %v1770 = vld [vmem:[%s947 + $0x20] sm:$0xf]
  %v1773 = vunpack.c.l.b16 %v1769
  %v1774 = vunpack.c.l.b16 %v1770
  %v1775 = vpack.c.b16 %v1774, %v1773
  %v1777 = vshrl.u32 %v1775, 16
  %v1779 = vrot.slane %v1777, 7
  %v1780 = vshll.u32 %v1775, 16
  %v1782 = vor.u32 %v1779, %v1780
  %1784 = vst [vmem:[#allocation2 + $0x210] sm:$0xf0] %v1782
  %v1785 = vld [vmem:[%s950 + $0x1c] sm:$0x8]
  %v1786 = vld [vmem:[%s950 + $0x20] sm:$0xf]
  %v1789 = vunpack.c.l.b16 %v1785
  %v1790 = vunpack.c.l.b16 %v1786
  %v1791 = vpack.c.b16 %v1790, %v1789
  %v1793 = vshrl.u32 %v1791, 16
  %v1795 = vrot.slane %v1793, 7
  %v1796 = vshll.u32 %v1791, 16
  %v1798 = vor.u32 %v1795, %v1796
  %1800 = vst [vmem:[#allocation2 + $0x218] sm:$0xf0] %v1798
  %v1801 = vld [vmem:[%s947 + $0x20] sm:$0xf]
  %v1803 = vunpack.c.l.b16 %v1801
  %v1804 = vpack.c.b16 %v1803, %v1803
  %1806 = vst [vmem:[#allocation2 + $0x220] sm:$0xf0] %v1804
  %v1807 = vld [vmem:[%s925 + $0x24] sm:$0xf]
  %v1809 = vunpack.c.l.b16 %v1807
  %v1810 = vpack.c.b16 %v1809, %v1809
  %1812 = vst [vmem:[#allocation2 + $0x228] sm:$0xf0] %v1810
  %v1813 = vld [vmem:[%s928 + $0x24] sm:$0xf]
  %v1815 = vunpack.c.l.b16 %v1813
  %v1816 = vpack.c.b16 %v1815, %v1815
  %1818 = vst [vmem:[#allocation2 + $0x230] sm:$0xf0] %v1816
  %v1819 = vld [vmem:[%s925 + $0x24] sm:$0xf]
  %v1820 = vld [vmem:[%s925 + $0x28] sm:$0x1]
  %v1823 = vunpack.c.l.b16 %v1819
  %v1824 = vunpack.c.l.b16 %v1820
  %v1825 = vpack.c.b16 %v1824, %v1823
  %v1827 = vshrl.u32 %v1825, 16
  %v1829 = vrot.slane %v1827, 4
  %v1830 = vshll.u32 %v1825, 16
  %v1832 = vrot.slane %v1830, 5
  %v1833 = vor.u32 %v1829, %v1832
  %1835 = vst [vmem:[#allocation2 + $0x238] sm:$0xf0] %v1833
  %v1836 = vld [vmem:[#allocation2] sm:$0xff]
  %v1837 = vld [vmem:[#allocation2 + $0x8] sm:$0xff]
  %v1838 = vld [vmem:[#allocation2 + $0x10] sm:$0xff]
  %v1839 = vld [vmem:[#allocation2 + $0x18] sm:$0xff]
  %v1840 = vld [vmem:[#allocation2 + $0x20] sm:$0xff]
  %v1841 = vld [vmem:[#allocation2 + $0x28] sm:$0xff]
  %v1842 = vld [vmem:[#allocation2 + $0x30] sm:$0xff]
  %v1843 = vld [vmem:[#allocation2 + $0x38] sm:$0xff]
  %v1844 = vld [vmem:[#allocation2 + $0x40] sm:$0xff]
  %v1845 = vld [vmem:[#allocation2 + $0x48] sm:$0xff]
  %v1846 = vld [vmem:[#allocation2 + $0x50] sm:$0xff]
  %v1847 = vld [vmem:[#allocation2 + $0x58] sm:$0xff]
  %v1848 = vld [vmem:[#allocation2 + $0x60] sm:$0xff]
  %v1849 = vld [vmem:[#allocation2 + $0x68] sm:$0xff]
  %v1850 = vld [vmem:[#allocation2 + $0x70] sm:$0xff]
  %v1851 = vld [vmem:[#allocation2 + $0x78] sm:$0xff]
  %v1852 = vld [vmem:[#allocation2 + $0x80] sm:$0xff]
  %v1853 = vld [vmem:[#allocation2 + $0x88] sm:$0xff]
  %v1854 = vld [vmem:[#allocation2 + $0x90] sm:$0xff]
  %v1855 = vld [vmem:[#allocation2 + $0x98] sm:$0xff]
  %v1856 = vld [vmem:[#allocation2 + $0xa0] sm:$0xff]
  %v1857 = vld [vmem:[#allocation2 + $0xa8] sm:$0xff]
  %v1858 = vld [vmem:[#allocation2 + $0xb0] sm:$0xff]
  %v1859 = vld [vmem:[#allocation2 + $0xb8] sm:$0xff]
  %v1860 = vld [vmem:[#allocation2 + $0xc0] sm:$0xff]
  %v1861 = vld [vmem:[#allocation2 + $0xc8] sm:$0xff]
  %v1862 = vld [vmem:[#allocation2 + $0xd0] sm:$0xff]
  %v1863 = vld [vmem:[#allocation2 + $0xd8] sm:$0xff]
  %v1864 = vld [vmem:[#allocation2 + $0xe0] sm:$0xff]
  %v1865 = vld [vmem:[#allocation2 + $0xe8] sm:$0xff]
  %v1866 = vld [vmem:[#allocation2 + $0xf0] sm:$0xff]
  %v1867 = vld [vmem:[#allocation2 + $0xf8] sm:$0xff]
  %v1868 = vld [vmem:[#allocation2 + $0x100] sm:$0xff]
  %v1869 = vld [vmem:[#allocation2 + $0x108] sm:$0xff]
  %v1870 = vld [vmem:[#allocation2 + $0x110] sm:$0xff]
  %v1871 = vld [vmem:[#allocation2 + $0x118] sm:$0xff]
  %v1872 = vld [vmem:[#allocation2 + $0x120] sm:$0xff]
  %v1873 = vld [vmem:[#allocation2 + $0x128] sm:$0xff]
  %v1874 = vld [vmem:[#allocation2 + $0x130] sm:$0xff]
  %v1875 = vld [vmem:[#allocation2 + $0x138] sm:$0xff]
  %v1876 = vld [vmem:[#allocation2 + $0x140] sm:$0xff]
  %v1877 = vld [vmem:[#allocation2 + $0x148] sm:$0xff]
  %v1878 = vld [vmem:[#allocation2 + $0x150] sm:$0xff]
  %v1879 = vld [vmem:[#allocation2 + $0x158] sm:$0xff]
  %v1880 = vld [vmem:[#allocation2 + $0x160] sm:$0xff]
  %v1881 = vld [vmem:[#allocation2 + $0x168] sm:$0xff]
  %v1882 = vld [vmem:[#allocation2 + $0x170] sm:$0xff]
  %v1883 = vld [vmem:[#allocation2 + $0x178] sm:$0xff]
  %v1884 = vld [vmem:[#allocation2 + $0x180] sm:$0xff]
  %v1885 = vld [vmem:[#allocation2 + $0x188] sm:$0xff]
  %v1886 = vld [vmem:[#allocation2 + $0x190] sm:$0xff]
  %v1887 = vld [vmem:[#allocation2 + $0x198] sm:$0xff]
  %v1888 = vld [vmem:[#allocation2 + $0x1a0] sm:$0xff]
  %v1889 = vld [vmem:[#allocation2 + $0x1a8] sm:$0xff]
  %v1890 = vld [vmem:[#allocation2 + $0x1b0] sm:$0xff]
  %v1891 = vld [vmem:[#allocation2 + $0x1b8] sm:$0xff]
  %v1892 = vld [vmem:[#allocation2 + $0x1c0] sm:$0xff]
  %v1893 = vld [vmem:[#allocation2 + $0x1c8] sm:$0xff]
  %v1894 = vld [vmem:[#allocation2 + $0x1d0] sm:$0xff]
  %v1895 = vld [vmem:[#allocation2 + $0x1d8] sm:$0xff]
  %v1896 = vld [vmem:[#allocation2 + $0x1e0] sm:$0xff]
  %v1897 = vld [vmem:[#allocation2 + $0x1e8] sm:$0xff]
  %v1898 = vld [vmem:[#allocation2 + $0x1f0] sm:$0xff]
  %v1899 = vld [vmem:[#allocation2 + $0x1f8] sm:$0xff]
  %v1900 = vld [vmem:[#allocation2 + $0x200] sm:$0xff]
  %v1901 = vld [vmem:[#allocation2 + $0x208] sm:$0xff]
  %v1902 = vld [vmem:[#allocation2 + $0x210] sm:$0xff]
  %v1903 = vld [vmem:[#allocation2 + $0x218] sm:$0xff]
  %v1904 = vld [vmem:[#allocation2 + $0x220] sm:$0xff]
  %v1905 = vld [vmem:[#allocation2 + $0x228] sm:$0xff]
  %v1906 = vld [vmem:[#allocation2 + $0x230] sm:$0xff]
  %v1907 = vld [vmem:[#allocation2 + $0x238] sm:$0xff]
  %v1908 = vld [vmem:[%s1] sm:$0xf]
  %v1909 = vld [vmem:[%s1 + $0x4] sm:$0xf]
  %v1910 = vld [vmem:[%s1 + $0x8] sm:$0xf]
  %v1911 = vld [vmem:[%s1 + $0xc] sm:$0xf]
  %v1912 = vld [vmem:[%s1 + $0x10] sm:$0xf]
  %v1913 = vld [vmem:[%s1 + $0x14] sm:$0xf]
  %v1914 = vld [vmem:[%s1 + $0x18] sm:$0xf]
  %v1915 = vld [vmem:[%s1 + $0x1c] sm:$0xf]
  %v1916 = vld [vmem:[%s1 + $0x20] sm:$0xf]
  %v1917 = vld [vmem:[%s1 + $0x24] sm:$0xf]
  %v1918 = vld [vmem:[%s1 + $0x28] sm:$0xf]
  %v1919 = vld [vmem:[%s1 + $0x2c] sm:$0xf]
  %v1920 = vld [vmem:[%s1 + $0x30] sm:$0xf]
  %v1921 = vld [vmem:[%s1 + $0x34] sm:$0xf]
  %v1922 = vld [vmem:[%s1 + $0x38] sm:$0xf]
  %v1923 = vld [vmem:[%s1 + $0x3c] sm:$0xf]
  %v1924 = vld [vmem:[%s1 + $0x40] sm:$0xf]
  %v1925 = vld [vmem:[%s1 + $0x44] sm:$0xf]
  %v1926 = vld [vmem:[%s1 + $0x48] sm:$0xf]
  %v1927 = vld [vmem:[%s1 + $0x4c] sm:$0xf]
  %v1928 = vld [vmem:[%s1 + $0x50] sm:$0xf]
  %v1929 = vld [vmem:[%s1 + $0x54] sm:$0xf]
  %v1930 = vld [vmem:[%s1 + $0x58] sm:$0xf]
  %v1931 = vld [vmem:[%s1 + $0x5c] sm:$0xf]
  %v1932 = vld [vmem:[%s1 + $0x60] sm:$0xf]
  %v1933 = vld [vmem:[%s1 + $0x64] sm:$0xf]
  %v1934 = vld [vmem:[%s1 + $0x68] sm:$0xf]
  %v1935 = vld [vmem:[%s1 + $0x6c] sm:$0xf]
  %v1936 = vld [vmem:[%s1 + $0x70] sm:$0xf]
  %v1937 = vld [vmem:[%s1 + $0x74] sm:$0xf]
  %v1938 = vld [vmem:[%s1 + $0x78] sm:$0xf]
  %v1939 = vld [vmem:[%s1 + $0x7c] sm:$0xf]
  %v1940 = vld [vmem:[%s1 + $0x80] sm:$0xf]
  %v1941 = vld [vmem:[%s1 + $0x84] sm:$0xf]
  %v1942 = vld [vmem:[%s1 + $0x88] sm:$0xf]
  %v1943 = vld [vmem:[%s1 + $0x8c] sm:$0xf]
  %v1944 = vld [vmem:[%s1 + $0x90] sm:$0xf]
  %v1945 = vld [vmem:[%s1 + $0x94] sm:$0xf]
  %v1946 = vld [vmem:[%s1 + $0x98] sm:$0xf]
  %v1947 = vld [vmem:[%s1 + $0x9c] sm:$0xf]
  %v1948 = vld [vmem:[%s1 + $0xa0] sm:$0xf]
  %v1949 = vld [vmem:[%s1 + $0xa4] sm:$0xf]
  %v1950 = vld [vmem:[%s1 + $0xa8] sm:$0xf]
  %v1951 = vld [vmem:[%s1 + $0xac] sm:$0xf]
  %v1952 = vld [vmem:[%s1 + $0xb0] sm:$0xf]
  %v1953 = vld [vmem:[%s1 + $0xb4] sm:$0xf]
  %v1954 = vld [vmem:[%s1 + $0xb8] sm:$0xf]
  %v1955 = vld [vmem:[%s1 + $0xbc] sm:$0xf]
  %v1956 = vld [vmem:[%s1 + $0xc0] sm:$0xf]
  %v1957 = vld [vmem:[%s1 + $0xc4] sm:$0xf]
  %v1958 = vld [vmem:[%s1 + $0xc8] sm:$0xf]
  %v1959 = vld [vmem:[%s1 + $0xcc] sm:$0xf]
  %v1960 = vld [vmem:[%s1 + $0xd0] sm:$0xf]
  %v1961 = vld [vmem:[%s1 + $0xd4] sm:$0xf]
  %v1962 = vld [vmem:[%s1 + $0xd8] sm:$0xf]
  %v1963 = vld [vmem:[%s1 + $0xdc] sm:$0xf]
  %v1964 = vld [vmem:[%s1 + $0xe0] sm:$0xf]
  %v1965 = vld [vmem:[%s1 + $0xe4] sm:$0xf]
  %v1966 = vld [vmem:[%s1 + $0xe8] sm:$0xf]
  %v1967 = vld [vmem:[%s1 + $0xec] sm:$0xf]
  %v1968 = vld [vmem:[%s1 + $0xf0] sm:$0xf]
  %v1969 = vld [vmem:[%s1 + $0xf4] sm:$0xf]
  %v1970 = vld [vmem:[%s1 + $0xf8] sm:$0xf]
  %v1971 = vld [vmem:[%s1 + $0xfc] sm:$0xf]
  %v1972 = vld [vmem:[%s1 + $0x100] sm:$0xf]
  %v1973 = vld [vmem:[%s1 + $0x104] sm:$0xf]
  %v1974 = vld [vmem:[%s1 + $0x108] sm:$0xf]
  %v1975 = vld [vmem:[%s1 + $0x10c] sm:$0xf]
  %v1976 = vld [vmem:[%s1 + $0x110] sm:$0xf]
  %v1977 = vld [vmem:[%s1 + $0x114] sm:$0xf]
  %v1978 = vld [vmem:[%s1 + $0x118] sm:$0xf]
  %v1979 = vld [vmem:[%s1 + $0x11c] sm:$0xf]
  %v1980 = vld [vmem:[%s1 + $0x120] sm:$0xf]
  %v1981 = vld [vmem:[%s1 + $0x124] sm:$0xf]
  %v1982 = vld [vmem:[%s1 + $0x128] sm:$0xf]
  %v1983 = vld [vmem:[%s1 + $0x12c] sm:$0xf]
  %v1984 = vld [vmem:[%s1 + $0x130] sm:$0xf]
  %v1985 = vld [vmem:[%s1 + $0x134] sm:$0xf]
  %v1986 = vld [vmem:[%s1 + $0x138] sm:$0xf]
  %v1987 = vld [vmem:[%s1 + $0x13c] sm:$0xf]
  %v1988 = vld [vmem:[%s1 + $0x140] sm:$0xf]
  %v1989 = vld [vmem:[%s1 + $0x144] sm:$0xf]
  %v1990 = vld [vmem:[%s1 + $0x148] sm:$0xf]
  %v1991 = vld [vmem:[%s1 + $0x14c] sm:$0xf]
  %v1992 = vld [vmem:[%s1 + $0x150] sm:$0xf]
  %v1993 = vld [vmem:[%s1 + $0x154] sm:$0xf]
  %v1994 = vld [vmem:[%s1 + $0x158] sm:$0xf]
  %v1995 = vld [vmem:[%s1 + $0x15c] sm:$0xf]
  %v1996 = vld [vmem:[%s1 + $0x160] sm:$0xf]
  %v1997 = vld [vmem:[%s1 + $0x164] sm:$0xf]
  %v1998 = vld [vmem:[%s1 + $0x168] sm:$0xf]
  %v1999 = vld [vmem:[%s1 + $0x16c] sm:$0xf]
  %v2000 = vld [vmem:[%s1 + $0x170] sm:$0xf]
  %v2001 = vld [vmem:[%s1 + $0x174] sm:$0xf]
  %v2002 = vld [vmem:[%s1 + $0x178] sm:$0xf]
  %v2003 = vld [vmem:[%s1 + $0x17c] sm:$0xf]
  %v2004 = vld [vmem:[%s1 + $0x180] sm:$0xf]
  %v2005 = vld [vmem:[%s1 + $0x184] sm:$0xf]
  %v2006 = vld [vmem:[%s1 + $0x188] sm:$0xf]
  %v2007 = vld [vmem:[%s1 + $0x18c] sm:$0xf]
  %v2008 = vld [vmem:[%s1 + $0x190] sm:$0xf]
  %v2009 = vld [vmem:[%s1 + $0x194] sm:$0xf]
  %v2010 = vld [vmem:[%s1 + $0x198] sm:$0xf]
  %v2011 = vld [vmem:[%s1 + $0x19c] sm:$0xf]
  %v2012 = vld [vmem:[%s1 + $0x1a0] sm:$0xf]
  %v2013 = vld [vmem:[%s1 + $0x1a4] sm:$0xf]
  %v2014 = vld [vmem:[%s1 + $0x1a8] sm:$0xf]
  %v2015 = vld [vmem:[%s1 + $0x1ac] sm:$0xf]
  %v2016 = vld [vmem:[%s1 + $0x1b0] sm:$0xf]
  %v2017 = vld [vmem:[%s1 + $0x1b4] sm:$0xf]
  %v2018 = vld [vmem:[%s1 + $0x1b8] sm:$0xf]
  %v2019 = vld [vmem:[%s1 + $0x1bc] sm:$0xf]
  %v2020 = vld [vmem:[%s1 + $0x1c0] sm:$0xf]
  %v2021 = vld [vmem:[%s1 + $0x1c4] sm:$0xf]
  %v2022 = vld [vmem:[%s1 + $0x1c8] sm:$0xf]
  %v2023 = vld [vmem:[%s1 + $0x1cc] sm:$0xf]
  %v2024 = vld [vmem:[%s1 + $0x1d0] sm:$0xf]
  %v2025 = vld [vmem:[%s1 + $0x1d4] sm:$0xf]
  %v2026 = vld [vmem:[%s1 + $0x1d8] sm:$0xf]
  %v2027 = vld [vmem:[%s1 + $0x1dc] sm:$0xf]
  %v2028 = vld [vmem:[%s1 + $0x1e0] sm:$0xf]
  %v2029 = vld [vmem:[%s1 + $0x1e4] sm:$0xf]
  %v2030 = vld [vmem:[%s1 + $0x1e8] sm:$0xf]
  %v2031 = vld [vmem:[%s1 + $0x1ec] sm:$0xf]
  %v2032 = vld [vmem:[%s1 + $0x1f0] sm:$0xf]
  %v2033 = vld [vmem:[%s1 + $0x1f4] sm:$0xf]
  %v2034 = vld [vmem:[%s1 + $0x1f8] sm:$0xf]
  %v2035 = vld [vmem:[%s1 + $0x1fc] sm:$0xf]
  %v2036 = vld [vmem:[%s1 + $0x200] sm:$0xf]
  %v2037 = vld [vmem:[%s1 + $0x204] sm:$0xf]
  %v2038 = vld [vmem:[%s1 + $0x208] sm:$0xf]
  %v2039 = vld [vmem:[%s1 + $0x20c] sm:$0xf]
  %v2040 = vld [vmem:[%s1 + $0x210] sm:$0xf]
  %v2041 = vld [vmem:[%s1 + $0x214] sm:$0xf]
  %v2042 = vld [vmem:[%s1 + $0x218] sm:$0xf]
  %v2043 = vld [vmem:[%s1 + $0x21c] sm:$0xf]
  %v2044 = vld [vmem:[%s1 + $0x220] sm:$0xf]
  %v2045 = vld [vmem:[%s1 + $0x224] sm:$0xf]
  %v2046 = vld [vmem:[%s1 + $0x228] sm:$0xf]
  %v2047 = vld [vmem:[%s1 + $0x22c] sm:$0xf]
  %v2048 = vld [vmem:[%s1 + $0x230] sm:$0xf]
  %v2049 = vld [vmem:[%s1 + $0x234] sm:$0xf]
  %v2050 = vld [vmem:[%s1 + $0x238] sm:$0xf]
  %v2051 = vld [vmem:[%s1 + $0x23c] sm:$0xf]
  %v2052 = vld [vmem:[%s2] sm:$0x1]
  %v2054 = vlaneseq
  %v2055 = vshrl.u32 %v2054, 7
  %v2056 = vsub.s32 0, %v2055
  %v2057 = vrot.slane %v2052, %v2056
  %v2203 = vunpack.c.l.b16 %v1908
  %v2204 = vunpack.c.l.b16 %v1909
  %v2205 = vunpack.c.l.b16 %v1910
  %v2206 = vunpack.c.l.b16 %v1911
  %v2207 = vunpack.c.l.b16 %v1912
  %v2208 = vunpack.c.l.b16 %v1913
  %v2209 = vunpack.c.l.b16 %v1914
  %v2210 = vunpack.c.l.b16 %v1915
  %v2211 = vunpack.c.l.b16 %v1916
  %v2212 = vunpack.c.l.b16 %v1917
  %v2213 = vunpack.c.l.b16 %v1918
  %v2214 = vunpack.c.l.b16 %v1919
  %v2215 = vunpack.c.l.b16 %v1920
  %v2216 = vunpack.c.l.b16 %v1921
  %v2217 = vunpack.c.l.b16 %v1922
  %v2218 = vunpack.c.l.b16 %v1923
  %v2219 = vunpack.c.l.b16 %v1924
  %v2220 = vunpack.c.l.b16 %v1925
  %v2221 = vunpack.c.l.b16 %v1926
  %v2222 = vunpack.c.l.b16 %v1927
  %v2223 = vunpack.c.l.b16 %v1928
  %v2224 = vunpack.c.l.b16 %v1929
  %v2225 = vunpack.c.l.b16 %v1930
  %v2226 = vunpack.c.l.b16 %v1931
  %v2227 = vunpack.c.l.b16 %v1932
  %v2228 = vunpack.c.l.b16 %v1933
  %v2229 = vunpack.c.l.b16 %v1934
  %v2230 = vunpack.c.l.b16 %v1935
  %v2231 = vunpack.c.l.b16 %v1936
  %v2232 = vunpack.c.l.b16 %v1937
  %v2233 = vunpack.c.l.b16 %v1938
  %v2234 = vunpack.c.l.b16 %v1939
  %v2235 = vunpack.c.l.b16 %v1940
  %v2236 = vunpack.c.l.b16 %v1941
  %v2237 = vunpack.c.l.b16 %v1942
  %v2238 = vunpack.c.l.b16 %v1943
  %v2239 = vunpack.c.l.b16 %v1944
  %v2240 = vunpack.c.l.b16 %v1945
  %v2241 = vunpack.c.l.b16 %v1946
  %v2242 = vunpack.c.l.b16 %v1947
  %v2243 = vunpack.c.l.b16 %v1948
  %v2244 = vunpack.c.l.b16 %v1949
  %v2245 = vunpack.c.l.b16 %v1950
  %v2246 = vunpack.c.l.b16 %v1951
  %v2247 = vunpack.c.l.b16 %v1952
  %v2248 = vunpack.c.l.b16 %v1953
  %v2249 = vunpack.c.l.b16 %v1954
  %v2250 = vunpack.c.l.b16 %v1955
  %v2251 = vunpack.c.l.b16 %v1956
  %v2252 = vunpack.c.l.b16 %v1957
  %v2253 = vunpack.c.l.b16 %v1958
  %v2254 = vunpack.c.l.b16 %v1959
  %v2255 = vunpack.c.l.b16 %v1960
  %v2256 = vunpack.c.l.b16 %v1961
  %v2257 = vunpack.c.l.b16 %v1962
  %v2258 = vunpack.c.l.b16 %v1963
  %v2259 = vunpack.c.l.b16 %v1964
  %v2260 = vunpack.c.l.b16 %v1965
  %v2261 = vunpack.c.l.b16 %v1966
  %v2262 = vunpack.c.l.b16 %v1967
  %v2263 = vunpack.c.l.b16 %v1968
  %v2264 = vunpack.c.l.b16 %v1969
  %v2265 = vunpack.c.l.b16 %v1970
  %v2266 = vunpack.c.l.b16 %v1971
  %v2267 = vunpack.c.l.b16 %v1972
  %v2268 = vunpack.c.l.b16 %v1973
  %v2269 = vunpack.c.l.b16 %v1974
  %v2270 = vunpack.c.l.b16 %v1975
  %v2271 = vunpack.c.l.b16 %v1976
  %v2272 = vunpack.c.l.b16 %v1977
  %v2273 = vunpack.c.l.b16 %v1978
  %v2274 = vunpack.c.l.b16 %v1979
  %v2275 = vunpack.c.l.b16 %v1980
  %v2276 = vunpack.c.l.b16 %v1981
  %v2277 = vunpack.c.l.b16 %v1982
  %v2278 = vunpack.c.l.b16 %v1983
  %v2279 = vunpack.c.l.b16 %v1984
  %v2280 = vunpack.c.l.b16 %v1985
  %v2281 = vunpack.c.l.b16 %v1986
  %v2282 = vunpack.c.l.b16 %v1987
  %v2283 = vunpack.c.l.b16 %v1988
  %v2284 = vunpack.c.l.b16 %v1989
  %v2285 = vunpack.c.l.b16 %v1990
  %v2286 = vunpack.c.l.b16 %v1991
  %v2287 = vunpack.c.l.b16 %v1992
  %v2288 = vunpack.c.l.b16 %v1993
  %v2289 = vunpack.c.l.b16 %v1994
  %v2290 = vunpack.c.l.b16 %v1995
  %v2291 = vunpack.c.l.b16 %v1996
  %v2292 = vunpack.c.l.b16 %v1997
  %v2293 = vunpack.c.l.b16 %v1998
  %v2294 = vunpack.c.l.b16 %v1999
  %v2295 = vunpack.c.l.b16 %v2000
  %v2296 = vunpack.c.l.b16 %v2001
  %v2297 = vunpack.c.l.b16 %v2002
  %v2298 = vunpack.c.l.b16 %v2003
  %v2299 = vunpack.c.l.b16 %v2004
  %v2300 = vunpack.c.l.b16 %v2005
  %v2301 = vunpack.c.l.b16 %v2006
  %v2302 = vunpack.c.l.b16 %v2007
  %v2303 = vunpack.c.l.b16 %v2008
  %v2304 = vunpack.c.l.b16 %v2009
  %v2305 = vunpack.c.l.b16 %v2010
  %v2306 = vunpack.c.l.b16 %v2011
  %v2307 = vunpack.c.l.b16 %v2012
  %v2308 = vunpack.c.l.b16 %v2013
  %v2309 = vunpack.c.l.b16 %v2014
  %v2310 = vunpack.c.l.b16 %v2015
  %v2311 = vunpack.c.l.b16 %v2016
  %v2312 = vunpack.c.l.b16 %v2017
  %v2313 = vunpack.c.l.b16 %v2018
  %v2314 = vunpack.c.l.b16 %v2019
  %v2315 = vunpack.c.l.b16 %v2020
  %v2316 = vunpack.c.l.b16 %v2021
  %v2317 = vunpack.c.l.b16 %v2022
  %v2318 = vunpack.c.l.b16 %v2023
  %v2319 = vunpack.c.l.b16 %v2024
  %v2320 = vunpack.c.l.b16 %v2025
  %v2321 = vunpack.c.l.b16 %v2026
  %v2322 = vunpack.c.l.b16 %v2027
  %v2323 = vunpack.c.l.b16 %v2028
  %v2324 = vunpack.c.l.b16 %v2029
  %v2325 = vunpack.c.l.b16 %v2030
  %v2326 = vunpack.c.l.b16 %v2031
  %v2327 = vunpack.c.l.b16 %v2032
  %v2328 = vunpack.c.l.b16 %v2033
  %v2329 = vunpack.c.l.b16 %v2034
  %v2330 = vunpack.c.l.b16 %v2035
  %v2331 = vunpack.c.l.b16 %v2036
  %v2332 = vunpack.c.l.b16 %v2037
  %v2333 = vunpack.c.l.b16 %v2038
  %v2334 = vunpack.c.l.b16 %v2039
  %v2335 = vunpack.c.l.b16 %v2040
  %v2336 = vunpack.c.l.b16 %v2041
  %v2337 = vunpack.c.l.b16 %v2042
  %v2338 = vunpack.c.l.b16 %v2043
  %v2339 = vunpack.c.l.b16 %v2044
  %v2340 = vunpack.c.l.b16 %v2045
  %v2341 = vunpack.c.l.b16 %v2046
  %v2342 = vunpack.c.l.b16 %v2047
  %v2343 = vunpack.c.l.b16 %v2048
  %v2344 = vunpack.c.l.b16 %v2049
  %v2345 = vunpack.c.l.b16 %v2050
  %v2346 = vunpack.c.l.b16 %v2051
  %v2347 = vpack.c.b16 %v2204, %v2203
  %v2348 = vpack.c.b16 %v2206, %v2205
  %v2349 = vpack.c.b16 %v2208, %v2207
  %v2350 = vpack.c.b16 %v2210, %v2209
  %v2351 = vpack.c.b16 %v2212, %v2211
  %v2352 = vpack.c.b16 %v2214, %v2213
  %v2353 = vpack.c.b16 %v2216, %v2215
  %v2354 = vpack.c.b16 %v2218, %v2217
  %v2355 = vpack.c.b16 %v2220, %v2219
  %v2356 = vpack.c.b16 %v2222, %v2221
  %v2357 = vpack.c.b16 %v2224, %v2223
  %v2358 = vpack.c.b16 %v2226, %v2225
  %v2359 = vpack.c.b16 %v2228, %v2227
  %v2360 = vpack.c.b16 %v2230, %v2229
  %v2361 = vpack.c.b16 %v2232, %v2231
  %v2362 = vpack.c.b16 %v2234, %v2233
  %v2363 = vpack.c.b16 %v2236, %v2235
  %v2364 = vpack.c.b16 %v2238, %v2237
  %v2365 = vpack.c.b16 %v2240, %v2239
  %v2366 = vpack.c.b16 %v2242, %v2241
  %v2367 = vpack.c.b16 %v2244, %v2243
  %v2368 = vpack.c.b16 %v2246, %v2245
  %v2369 = vpack.c.b16 %v2248, %v2247
  %v2370 = vpack.c.b16 %v2250, %v2249
  %v2371 = vpack.c.b16 %v2252, %v2251
  %v2372 = vpack.c.b16 %v2254, %v2253
  %v2373 = vpack.c.b16 %v2256, %v2255
  %v2374 = vpack.c.b16 %v2258, %v2257
  %v2375 = vpack.c.b16 %v2260, %v2259
  %v2376 = vpack.c.b16 %v2262, %v2261
  %v2377 = vpack.c.b16 %v2264, %v2263
  %v2378 = vpack.c.b16 %v2266, %v2265
  %v2379 = vpack.c.b16 %v2268, %v2267
  %v2380 = vpack.c.b16 %v2270, %v2269
  %v2381 = vpack.c.b16 %v2272, %v2271
  %v2382 = vpack.c.b16 %v2274, %v2273
  %v2383 = vpack.c.b16 %v2276, %v2275
  %v2384 = vpack.c.b16 %v2278, %v2277
  %v2385 = vpack.c.b16 %v2280, %v2279
  %v2386 = vpack.c.b16 %v2282, %v2281
  %v2387 = vpack.c.b16 %v2284, %v2283
  %v2388 = vpack.c.b16 %v2286, %v2285
  %v2389 = vpack.c.b16 %v2288, %v2287
  %v2390 = vpack.c.b16 %v2290, %v2289
  %v2391 = vpack.c.b16 %v2292, %v2291
  %v2392 = vpack.c.b16 %v2294, %v2293
  %v2393 = vpack.c.b16 %v2296, %v2295
  %v2394 = vpack.c.b16 %v2298, %v2297
  %v2395 = vpack.c.b16 %v2300, %v2299
  %v2396 = vpack.c.b16 %v2302, %v2301
  %v2397 = vpack.c.b16 %v2304, %v2303
  %v2398 = vpack.c.b16 %v2306, %v2305
  %v2399 = vpack.c.b16 %v2308, %v2307
  %v2400 = vpack.c.b16 %v2310, %v2309
  %v2401 = vpack.c.b16 %v2312, %v2311
  %v2402 = vpack.c.b16 %v2314, %v2313
  %v2403 = vpack.c.b16 %v2316, %v2315
  %v2404 = vpack.c.b16 %v2318, %v2317
  %v2405 = vpack.c.b16 %v2320, %v2319
  %v2406 = vpack.c.b16 %v2322, %v2321
  %v2407 = vpack.c.b16 %v2324, %v2323
  %v2408 = vpack.c.b16 %v2326, %v2325
  %v2409 = vpack.c.b16 %v2328, %v2327
  %v2410 = vpack.c.b16 %v2330, %v2329
  %v2411 = vpack.c.b16 %v2332, %v2331
  %v2412 = vpack.c.b16 %v2334, %v2333
  %v2413 = vpack.c.b16 %v2336, %v2335
  %v2414 = vpack.c.b16 %v2338, %v2337
  %v2415 = vpack.c.b16 %v2340, %v2339
  %v2416 = vpack.c.b16 %v2342, %v2341
  %v2417 = vpack.c.b16 %v2344, %v2343
  %v2418 = vpack.c.b16 %v2346, %v2345
  %2491 = vmatprep.subr.bf16.mxu0 0
  %2492 = vmatpush1.bf16.msra.mxu0 %v2347
  %2493 = vmatprep.subr.bf16.mxu0 0
  %2494 = vmatpush1.bf16.msra.mxu0 %v2348
  %2495 = vmatprep.subr.bf16.mxu0 0
  %2496 = vmatpush1.bf16.msra.mxu0 %v2349
  %2497 = vmatprep.subr.bf16.mxu0 0
  %2498 = vmatpush1.bf16.msra.mxu0 %v2350
  %2499 = vmatprep.subr.bf16.mxu0 0
  %2500 = vmatpush1.bf16.msra.mxu0 %v2351
  %2501 = vmatprep.subr.bf16.mxu0 0
  %2502 = vmatpush1.bf16.msra.mxu0 %v2352
  %2503 = vmatprep.subr.bf16.mxu0 0
  %2504 = vmatpush1.bf16.msra.mxu0 %v2353
  %2505 = vmatprep.subr.bf16.mxu0 0
  %2506 = vmatpush1.bf16.msra.mxu0 %v2354
  %2507 = vmatprep.subr.bf16.mxu0 0
  %2508 = vmatpush1.bf16.msra.mxu0 %v2355
  %2509 = vmatprep.subr.bf16.mxu0 0
  %2510 = vmatpush1.bf16.msra.mxu0 %v2356
  %2511 = vmatprep.subr.bf16.mxu0 0
  %2512 = vmatpush1.bf16.msra.mxu0 %v2357
  %2513 = vmatprep.subr.bf16.mxu0 0
  %2514 = vmatpush1.bf16.msra.mxu0 %v2358
  %2515 = vmatprep.subr.bf16.mxu0 0
  %2516 = vmatpush1.bf16.msra.mxu0 %v2359
  %2517 = vmatprep.subr.bf16.mxu0 0
  %2518 = vmatpush1.bf16.msra.mxu0 %v2360
  %2519 = vmatprep.subr.bf16.mxu0 0
  %2520 = vmatpush1.bf16.msra.mxu0 %v2361
  %2521 = vmatprep.subr.bf16.mxu0 0
  %2522 = vmatpush1.bf16.msra.mxu0 %v2362
  %2523 = vmatprep.mubr.bf16.mxu0 %v1837
  %2524 = vmatmul.mubr.bf16.gmra.mrb[0].mxu0 %v1836
  %v2525 = vpop.f32.mrb[0].mxu0
  %v2526 = vadd.f32 %v2057, %v2525
  %v2527 = vpop.f32.mrb[0].mxu0
  %v2528 = vpop.f32.mrb[0].mxu0
  %v2529 = vadd.f32 %v2057, %v2528
  %v2530 = vpop.f32.mrb[0].mxu0
  %2531 = vmatprep.mubr.bf16.mxu0 %v1846
  %2532 = vmatmul.mubr.bf16.gmra.mrb[0].mxu0 %v1845
  %v2533 = vpop.f32.mrb[0].mxu0
  %v2534 = vadd.f32 %v2057, %v2533
  %v2535 = vpop.f32.mrb[0].mxu0
  %v2536 = vpop.f32.mrb[0].mxu0
  %v2537 = vadd.f32 %v2057, %v2536
  %v2538 = vpop.f32.mrb[0].mxu0
  %2539 = vmatprep.mubr.bf16.mxu0 %v1855
  %2540 = vmatmul.mubr.bf16.gmra.mrb[0].mxu0 %v1854
  %v2541 = vpop.f32.mrb[0].mxu0
  %v2542 = vadd.f32 %v2057, %v2541
  %v2543 = vpop.f32.mrb[0].mxu0
  %v2544 = vpop.f32.mrb[0].mxu0
  %v2545 = vadd.f32 %v2057, %v2544
  %v2546 = vpop.f32.mrb[0].mxu0
  %2547 = vmatprep.mubr.bf16.mxu0 %v1864
  %2548 = vmatmul.mubr.bf16.gmra.mrb[0].mxu0 %v1863
  %v2549 = vpop.f32.mrb[0].mxu0
  %v2550 = vadd.f32 %v2057, %v2549
  %v2551 = vpop.f32.mrb[0].mxu0
  %v2552 = vpop.f32.mrb[0].mxu0
  %v2553 = vadd.f32 %v2057, %v2552
  %v2554 = vpop.f32.mrb[0].mxu0
  %2555 = vmatprep.mubr.bf16.mxu0 %v1873
  %2556 = vmatmul.mubr.bf16.gmra.mrb[0].mxu0 %v1872
  %v2557 = vpop.f32.mrb[0].mxu0
  %v2558 = vadd.f32 %v2057, %v2557
  %v2559 = vpop.f32.mrb[0].mxu0
  %v2560 = vpop.f32.mrb[0].mxu0
  %v2561 = vadd.f32 %v2057, %v2560
  %v2562 = vpop.f32.mrb[0].mxu0
  %2563 = vmatprep.mubr.bf16.mxu0 %v1882
  %2564 = vmatmul.mubr.bf16.gmra.mrb[0].mxu0 %v1881
  %v2565 = vpop.f32.mrb[0].mxu0
  %v2566 = vadd.f32 %v2057, %v2565
  %v2567 = vpop.f32.mrb[0].mxu0
  %v2568 = vpop.f32.mrb[0].mxu0
  %v2569 = vadd.f32 %v2057, %v2568
  %v2570 = vpop.f32.mrb[0].mxu0
  %2571 = vmatprep.mubr.bf16.mxu0 %v1891
  %2572 = vmatmul.mubr.bf16.gmra.mrb[0].mxu0 %v1890
  %v2573 = vpop.f32.mrb[0].mxu0
  %v2574 = vadd.f32 %v2057, %v2573
  %v2575 = vpop.f32.mrb[0].mxu0
  %v2576 = vpop.f32.mrb[0].mxu0
  %v2577 = vadd.f32 %v2057, %v2576
  %v2578 = vpop.f32.mrb[0].mxu0
  %2579 = vmatprep.mubr.bf16.mxu0 %v1900
  %2580 = vmatmul.mubr.bf16.gmra.mrb[0].mxu0 %v1899
  %v2581 = vpop.f32.mrb[0].mxu0
  %v2582 = vadd.f32 %v2057, %v2581
  %v2583 = vpop.f32.mrb[0].mxu0
  %v2584 = vpop.f32.mrb[0].mxu0
  %v2585 = vadd.f32 %v2057, %v2584
  %v2586 = vpop.f32.mrb[0].mxu0
  %2587 = vdwg.mxu0
  %2588 = vmatprep.subr.bf16.mxu0 0
  %2589 = vmatpush1.bf16.msra.mxu0 %v2363
  %2590 = vmatprep.subr.bf16.mxu0 0
  %2591 = vmatpush1.bf16.msra.mxu0 %v2364
  %2592 = vmatprep.subr.bf16.mxu0 0
  %2593 = vmatpush1.bf16.msra.mxu0 %v2365
  %2594 = vmatprep.subr.bf16.mxu0 0
  %2595 = vmatpush1.bf16.msra.mxu0 %v2366
  %2596 = vmatprep.subr.bf16.mxu0 0
  %2597 = vmatpush1.bf16.msra.mxu0 %v2367
  %2598 = vmatprep.subr.bf16.mxu0 0
  %2599 = vmatpush1.bf16.msra.mxu0 %v2368
  %2600 = vmatprep.subr.bf16.mxu0 0
  %2601 = vmatpush1.bf16.msra.mxu0 %v2369
  %2602 = vmatprep.subr.bf16.mxu0 0
  %2603 = vmatpush1.bf16.msra.mxu0 %v2370
  %2604 = vmatprep.subr.bf16.mxu0 0
  %2605 = vmatpush1.bf16.msra.mxu0 %v2371
  %2606 = vmatprep.subr.bf16.mxu0 0
  %2607 = vmatpush1.bf16.msra.mxu0 %v2372
  %2608 = vmatprep.subr.bf16.mxu0 0
  %2609 = vmatpush1.bf16.msra.mxu0 %v2373
  %2610 = vmatprep.subr.bf16.mxu0 0
  %2611 = vmatpush1.bf16.msra.mxu0 %v2374
  %2612 = vmatprep.subr.bf16.mxu0 0
  %2613 = vmatpush1.bf16.msra.mxu0 %v2375
  %2614 = vmatprep.subr.bf16.mxu0 0
  %2615 = vmatpush1.bf16.msra.mxu0 %v2376
  %2616 = vmatprep.subr.bf16.mxu0 0
  %2617 = vmatpush1.bf16.msra.mxu0 %v2377
  %2618 = vmatprep.subr.bf16.mxu0 0
  %2619 = vmatpush1.bf16.msra.mxu0 %v2378
  %2620 = vmatprep.mubr.bf16.mxu0 %v1839
  %2621 = vmatmul.mubr.bf16.gmra.mrb[0].mxu0 %v1838
  %v2622 = vpop.f32.mrb[0].mxu0
  %v2623 = vadd.f32 %v2526, %v2622
  %v2624 = vpop.f32.mrb[0].mxu0
  %v2625 = vpop.f32.mrb[0].mxu0
  %v2626 = vadd.f32 %v2529, %v2625
  %v2627 = vpop.f32.mrb[0].mxu0
  %2628 = vmatprep.mubr.bf16.mxu0 %v1848
  %2629 = vmatmul.mubr.bf16.gmra.mrb[0].mxu0 %v1847
  %v2630 = vpop.f32.mrb[0].mxu0
  %v2631 = vadd.f32 %v2534, %v2630
  %v2632 = vpop.f32.mrb[0].mxu0
  %v2633 = vpop.f32.mrb[0].mxu0
  %v2634 = vadd.f32 %v2537, %v2633
  %v2635 = vpop.f32.mrb[0].mxu0
  %2636 = vmatprep.mubr.bf16.mxu0 %v1857
  %2637 = vmatmul.mubr.bf16.gmra.mrb[0].mxu0 %v1856
  %v2638 = vpop.f32.mrb[0].mxu0
  %v2639 = vadd.f32 %v2542, %v2638
  %v2640 = vpop.f32.mrb[0].mxu0
  %v2641 = vpop.f32.mrb[0].mxu0
  %v2642 = vadd.f32 %v2545, %v2641
  %v2643 = vpop.f32.mrb[0].mxu0
  %2644 = vmatprep.mubr.bf16.mxu0 %v1866
  %2645 = vmatmul.mubr.bf16.gmra.mrb[0].mxu0 %v1865
  %v2646 = vpop.f32.mrb[0].mxu0
  %v2647 = vadd.f32 %v2550, %v2646
  %v2648 = vpop.f32.mrb[0].mxu0
  %v2649 = vpop.f32.mrb[0].mxu0
  %v2650 = vadd.f32 %v2553, %v2649
  %v2651 = vpop.f32.mrb[0].mxu0
  %2652 = vmatprep.mubr.bf16.mxu0 %v1875
  %2653 = vmatmul.mubr.bf16.gmra.mrb[0].mxu0 %v1874
  %v2654 = vpop.f32.mrb[0].mxu0
  %v2655 = vadd.f32 %v2558, %v2654
  %v2656 = vpop.f32.mrb[0].mxu0
  %v2657 = vpop.f32.mrb[0].mxu0
  %v2658 = vadd.f32 %v2561, %v2657
  %v2659 = vpop.f32.mrb[0].mxu0
  %2660 = vmatprep.mubr.bf16.mxu0 %v1884
  %2661 = vmatmul.mubr.bf16.gmra.mrb[0].mxu0 %v1883
  %v2662 = vpop.f32.mrb[0].mxu0
  %v2663 = vadd.f32 %v2566, %v2662
  %v2664 = vpop.f32.mrb[0].mxu0
  %v2665 = vpop.f32.mrb[0].mxu0
  %v2666 = vadd.f32 %v2569, %v2665
  %v2667 = vpop.f32.mrb[0].mxu0
  %2668 = vmatprep.mubr.bf16.mxu0 %v1893
  %2669 = vmatmul.mubr.bf16.gmra.mrb[0].mxu0 %v1892
  %v2670 = vpop.f32.mrb[0].mxu0
  %v2671 = vadd.f32 %v2574, %v2670
  %v2672 = vpop.f32.mrb[0].mxu0
  %v2673 = vpop.f32.mrb[0].mxu0
  %v2674 = vadd.f32 %v2577, %v2673
  %v2675 = vpop.f32.mrb[0].mxu0
  %2676 = vmatprep.mubr.bf16.mxu0 %v1902
  %2677 = vmatmul.mubr.bf16.gmra.mrb[0].mxu0 %v1901
  %v2678 = vpop.f32.mrb[0].mxu0
  %v2679 = vadd.f32 %v2582, %v2678
  %v2680 = vpop.f32.mrb[0].mxu0
  %v2681 = vpop.f32.mrb[0].mxu0
  %v2682 = vadd.f32 %v2585, %v2681
  %v2683 = vpop.f32.mrb[0].mxu0
  %2684 = vdwg.mxu0
  %2685 = vmatprep.subr.bf16.mxu0 0
  %2686 = vmatpush1.bf16.msra.mxu0 %v2379
  %2687 = vmatprep.subr.bf16.mxu0 0
  %2688 = vmatpush1.bf16.msra.mxu0 %v2380
  %2689 = vmatprep.subr.bf16.mxu0 0
  %2690 = vmatpush1.bf16.msra.mxu0 %v2381
  %2691 = vmatprep.subr.bf16.mxu0 0
  %2692 = vmatpush1.bf16.msra.mxu0 %v2382
  %2693 = vmatprep.subr.bf16.mxu0 0
  %2694 = vmatpush1.bf16.msra.mxu0 %v2383
  %2695 = vmatprep.subr.bf16.mxu0 0
  %2696 = vmatpush1.bf16.msra.mxu0 %v2384
  %2697 = vmatprep.subr.bf16.mxu0 0
  %2698 = vmatpush1.bf16.msra.mxu0 %v2385
  %2699 = vmatprep.subr.bf16.mxu0 0
  %2700 = vmatpush1.bf16.msra.mxu0 %v2386
  %2701 = vmatprep.subr.bf16.mxu0 0
  %2702 = vmatpush1.bf16.msra.mxu0 %v2387
  %2703 = vmatprep.subr.bf16.mxu0 0
  %2704 = vmatpush1.bf16.msra.mxu0 %v2388
  %2705 = vmatprep.subr.bf16.mxu0 0
  %2706 = vmatpush1.bf16.msra.mxu0 %v2389
  %2707 = vmatprep.subr.bf16.mxu0 0
  %2708 = vmatpush1.bf16.msra.mxu0 %v2390
  %2709 = vmatprep.subr.bf16.mxu0 0
  %2710 = vmatpush1.bf16.msra.mxu0 %v2391
  %2711 = vmatprep.subr.bf16.mxu0 0
  %2712 = vmatpush1.bf16.msra.mxu0 %v2392
  %2713 = vmatprep.subr.bf16.mxu0 0
  %2714 = vmatpush1.bf16.msra.mxu0 %v2393
  %2715 = vmatprep.subr.bf16.mxu0 0
  %2716 = vmatpush1.bf16.msra.mxu0 %v2394
  %2717 = vmatprep.mubr.bf16.mxu0 %v1841
  %2718 = vmatmul.mubr.bf16.gmra.mrb[0].mxu0 %v1840
  %v2719 = vpop.f32.mrb[0].mxu0
  %v2720 = vadd.f32 %v2623, %v2719
  %v2721 = vpop.f32.mrb[0].mxu0
  %v2722 = vpop.f32.mrb[0].mxu0
  %v2723 = vadd.f32 %v2626, %v2722
  %v2724 = vpop.f32.mrb[0].mxu0
  %2725 = vmatprep.mubr.bf16.mxu0 %v1850
  %2726 = vmatmul.mubr.bf16.gmra.mrb[0].mxu0 %v1849
  %v2727 = vpop.f32.mrb[0].mxu0
  %v2728 = vadd.f32 %v2631, %v2727
  %v2729 = vpop.f32.mrb[0].mxu0
  %v2730 = vpop.f32.mrb[0].mxu0
  %v2731 = vadd.f32 %v2634, %v2730
  %v2732 = vpop.f32.mrb[0].mxu0
  %2733 = vmatprep.mubr.bf16.mxu0 %v1859
  %2734 = vmatmul.mubr.bf16.gmra.mrb[0].mxu0 %v1858
  %v2735 = vpop.f32.mrb[0].mxu0
  %v2736 = vadd.f32 %v2639, %v2735
  %v2737 = vpop.f32.mrb[0].mxu0
  %v2738 = vpop.f32.mrb[0].mxu0
  %v2739 = vadd.f32 %v2642, %v2738
  %v2740 = vpop.f32.mrb[0].mxu0
  %2741 = vmatprep.mubr.bf16.mxu0 %v1868
  %2742 = vmatmul.mubr.bf16.gmra.mrb[0].mxu0 %v1867
  %v2743 = vpop.f32.mrb[0].mxu0
  %v2744 = vadd.f32 %v2647, %v2743
  %v2745 = vpop.f32.mrb[0].mxu0
  %v2746 = vpop.f32.mrb[0].mxu0
  %v2747 = vadd.f32 %v2650, %v2746
  %v2748 = vpop.f32.mrb[0].mxu0
  %2749 = vmatprep.mubr.bf16.mxu0 %v1877
  %2750 = vmatmul.mubr.bf16.gmra.mrb[0].mxu0 %v1876
  %v2751 = vpop.f32.mrb[0].mxu0
  %v2752 = vadd.f32 %v2655, %v2751
  %v2753 = vpop.f32.mrb[0].mxu0
  %v2754 = vpop.f32.mrb[0].mxu0
  %v2755 = vadd.f32 %v2658, %v2754
  %v2756 = vpop.f32.mrb[0].mxu0
  %2757 = vmatprep.mubr.bf16.mxu0 %v1886
  %2758 = vmatmul.mubr.bf16.gmra.mrb[0].mxu0 %v1885
  %v2759 = vpop.f32.mrb[0].mxu0
  %v2760 = vadd.f32 %v2663, %v2759
  %v2761 = vpop.f32.mrb[0].mxu0
  %v2762 = vpop.f32.mrb[0].mxu0
  %v2763 = vadd.f32 %v2666, %v2762
  %v2764 = vpop.f32.mrb[0].mxu0
  %2765 = vmatprep.mubr.bf16.mxu0 %v1895
  %2766 = vmatmul.mubr.bf16.gmra.mrb[0].mxu0 %v1894
  %v2767 = vpop.f32.mrb[0].mxu0
  %v2768 = vadd.f32 %v2671, %v2767
  %v2769 = vpop.f32.mrb[0].mxu0
  %v2770 = vpop.f32.mrb[0].mxu0
  %v2771 = vadd.f32 %v2674, %v2770
  %v2772 = vpop.f32.mrb[0].mxu0
  %2773 = vmatprep.mubr.bf16.mxu0 %v1904
  %2774 = vmatmul.mubr.bf16.gmra.mrb[0].mxu0 %v1903
  %v2775 = vpop.f32.mrb[0].mxu0
  %v2776 = vadd.f32 %v2679, %v2775
  %v2777 = vpop.f32.mrb[0].mxu0
  %v2778 = vpop.f32.mrb[0].mxu0
  %v2779 = vadd.f32 %v2682, %v2778
  %v2780 = vpop.f32.mrb[0].mxu0
  %2781 = vdwg.mxu0
  %2782 = vmatprep.subr.bf16.mxu0 0
  %2783 = vmatpush1.bf16.msra.mxu0 %v2395
  %2784 = vmatprep.subr.bf16.mxu0 0
  %2785 = vmatpush1.bf16.msra.mxu0 %v2396
  %2786 = vmatprep.subr.bf16.mxu0 0
  %2787 = vmatpush1.bf16.msra.mxu0 %v2397
  %2788 = vmatprep.subr.bf16.mxu0 0
  %2789 = vmatpush1.bf16.msra.mxu0 %v2398
  %2790 = vmatprep.subr.bf16.mxu0 0
  %2791 = vmatpush1.bf16.msra.mxu0 %v2399
  %2792 = vmatprep.subr.bf16.mxu0 0
  %2793 = vmatpush1.bf16.msra.mxu0 %v2400
  %2794 = vmatprep.subr.bf16.mxu0 0
  %2795 = vmatpush1.bf16.msra.mxu0 %v2401
  %2796 = vmatprep.subr.bf16.mxu0 0
  %2797 = vmatpush1.bf16.msra.mxu0 %v2402
  %2798 = vmatprep.subr.bf16.mxu0 0
  %2799 = vmatpush1.bf16.msra.mxu0 %v2403
  %2800 = vmatprep.subr.bf16.mxu0 0
  %2801 = vmatpush1.bf16.msra.mxu0 %v2404
  %2802 = vmatprep.subr.bf16.mxu0 0
  %2803 = vmatpush1.bf16.msra.mxu0 %v2405
  %2804 = vmatprep.subr.bf16.mxu0 0
  %2805 = vmatpush1.bf16.msra.mxu0 %v2406
  %2806 = vmatprep.subr.bf16.mxu0 0
  %2807 = vmatpush1.bf16.msra.mxu0 %v2407
  %2808 = vmatprep.subr.bf16.mxu0 0
  %2809 = vmatpush1.bf16.msra.mxu0 %v2408
  %2810 = vmatprep.subr.bf16.mxu0 0
  %2811 = vmatpush1.bf16.msra.mxu0 %v2409
  %2812 = vmatprep.subr.bf16.mxu0 0
  %2813 = vmatpush1.bf16.msra.mxu0 %v2410
  %2814 = vmatprep.mubr.bf16.mxu0 %v1843
  %2815 = vmatmul.mubr.bf16.gmra.mrb[0].mxu0 %v1842
  %v2816 = vpop.f32.mrb[0].mxu0
  %v2817 = vadd.f32 %v2720, %v2816
  %v2818 = vpop.f32.mrb[0].mxu0
  %v2819 = vpop.f32.mrb[0].mxu0
  %v2820 = vadd.f32 %v2723, %v2819
  %v2821 = vpop.f32.mrb[0].mxu0
  %2822 = vmatprep.mubr.bf16.mxu0 %v1852
  %2823 = vmatmul.mubr.bf16.gmra.mrb[0].mxu0 %v1851
  %v2824 = vpop.f32.mrb[0].mxu0
  %v2825 = vadd.f32 %v2728, %v2824
  %v2826 = vpop.f32.mrb[0].mxu0
  %v2827 = vpop.f32.mrb[0].mxu0
  %v2828 = vadd.f32 %v2731, %v2827
  %v2829 = vpop.f32.mrb[0].mxu0
  %2830 = vmatprep.mubr.bf16.mxu0 %v1861
  %2831 = vmatmul.mubr.bf16.gmra.mrb[0].mxu0 %v1860
  %v2832 = vpop.f32.mrb[0].mxu0
  %v2833 = vadd.f32 %v2736, %v2832
  %v2834 = vpop.f32.mrb[0].mxu0
  %v2835 = vpop.f32.mrb[0].mxu0
  %v2836 = vadd.f32 %v2739, %v2835
  %v2837 = vpop.f32.mrb[0].mxu0
  %2838 = vmatprep.mubr.bf16.mxu0 %v1870
  %2839 = vmatmul.mubr.bf16.gmra.mrb[0].mxu0 %v1869
  %v2840 = vpop.f32.mrb[0].mxu0
  %v2841 = vadd.f32 %v2744, %v2840
  %v2842 = vpop.f32.mrb[0].mxu0
  %v2843 = vpop.f32.mrb[0].mxu0
  %v2844 = vadd.f32 %v2747, %v2843
  %v2845 = vpop.f32.mrb[0].mxu0
  %2846 = vmatprep.mubr.bf16.mxu0 %v1879
  %2847 = vmatmul.mubr.bf16.gmra.mrb[0].mxu0 %v1878
  %v2848 = vpop.f32.mrb[0].mxu0
  %v2849 = vadd.f32 %v2752, %v2848
  %v2850 = vpop.f32.mrb[0].mxu0
  %v2851 = vpop.f32.mrb[0].mxu0
  %v2852 = vadd.f32 %v2755, %v2851
  %v2853 = vpop.f32.mrb[0].mxu0
  %2854 = vmatprep.mubr.bf16.mxu0 %v1888
  %2855 = vmatmul.mubr.bf16.gmra.mrb[0].mxu0 %v1887
  %v2856 = vpop.f32.mrb[0].mxu0
  %v2857 = vadd.f32 %v2760, %v2856
  %v2858 = vpop.f32.mrb[0].mxu0
  %v2859 = vpop.f32.mrb[0].mxu0
  %v2860 = vadd.f32 %v2763, %v2859
  %v2861 = vpop.f32.mrb[0].mxu0
  %2862 = vmatprep.mubr.bf16.mxu0 %v1897
  %2863 = vmatmul.mubr.bf16.gmra.mrb[0].mxu0 %v1896
  %v2864 = vpop.f32.mrb[0].mxu0
  %v2865 = vadd.f32 %v2768, %v2864
  %v2866 = vpop.f32.mrb[0].mxu0
  %v2867 = vpop.f32.mrb[0].mxu0
  %v2868 = vadd.f32 %v2771, %v2867
  %v2869 = vpop.f32.mrb[0].mxu0
  %2870 = vmatprep.mubr.bf16.mxu0 %v1906
  %2871 = vmatmul.mubr.bf16.gmra.mrb[0].mxu0 %v1905
  %v2872 = vpop.f32.mrb[0].mxu0
  %v2873 = vadd.f32 %v2776, %v2872
  %v2874 = vpop.f32.mrb[0].mxu0
  %v2875 = vpop.f32.mrb[0].mxu0
  %v2876 = vadd.f32 %v2779, %v2875
  %v2877 = vpop.f32.mrb[0].mxu0
  %2878 = vdwg.mxu0
  %2879 = vmatprep.subr.bf16.mxu0 0
  %2880 = vmatpush1.bf16.msra.mxu0 %v2411
  %2881 = vmatprep.subr.bf16.mxu0 0
  %2882 = vmatpush1.bf16.msra.mxu0 %v2412
  %2883 = vmatprep.subr.bf16.mxu0 0
  %2884 = vmatpush1.bf16.msra.mxu0 %v2413
  %2885 = vmatprep.subr.bf16.mxu0 0
  %2886 = vmatpush1.bf16.msra.mxu0 %v2414
  %2887 = vmatprep.subr.bf16.mxu0 0
  %2888 = vmatpush1.bf16.msra.mxu0 %v2415
  %2889 = vmatprep.subr.bf16.mxu0 0
  %2890 = vmatpush1.bf16.msra.mxu0 %v2416
  %2891 = vmatprep.subr.bf16.mxu0 0
  %2892 = vmatpush1.bf16.msra.mxu0 %v2417
  %2893 = vmatprep.subr.bf16.mxu0 0
  %2894 = vmatpush1.bf16.msra.mxu0 %v2418
  %2895 = vmatprep.subr.bf16.mxu0 0
  %2896 = vmatpush1.bf16.msra.mxu0 0
  %2897 = vmatprep.subr.bf16.mxu0 0
  %2898 = vmatpush1.bf16.msra.mxu0 0
  %2899 = vmatprep.subr.bf16.mxu0 0
  %2900 = vmatpush1.bf16.msra.mxu0 0
  %2901 = vmatprep.subr.bf16.mxu0 0
  %2902 = vmatpush1.bf16.msra.mxu0 0
  %2903 = vmatprep.subr.bf16.mxu0 0
  %2904 = vmatpush1.bf16.msra.mxu0 0
  %2905 = vmatprep.subr.bf16.mxu0 0
  %2906 = vmatpush1.bf16.msra.mxu0 0
  %2907 = vmatprep.subr.bf16.mxu0 0
  %2908 = vmatpush1.bf16.msra.mxu0 0
  %2909 = vmatprep.subr.bf16.mxu0 0
  %2910 = vmatpush1.bf16.msra.mxu0 0
  %2911 = vmatprep.mubr.bf16.mxu0 0
  %2912 = vmatmul.mubr.bf16.gmra.mrb[0].mxu0 %v1844
  %v2913 = vpop.f32.mrb[0].mxu0
  %v2914 = vadd.f32 %v2817, %v2913
  %v2915 = vpop.f32.mrb[0].mxu0
  %v2916 = vpop.f32.mrb[0].mxu0
  %v2917 = vadd.f32 %v2820, %v2916
  %v2918 = vpop.f32.mrb[0].mxu0
  %2919 = vmatprep.mubr.bf16.mxu0 0
  %2920 = vmatmul.mubr.bf16.gmra.mrb[0].mxu0 %v1853
  %v2921 = vpop.f32.mrb[0].mxu0
  %v2922 = vadd.f32 %v2825, %v2921
  %v2923 = vpop.f32.mrb[0].mxu0
  %v2924 = vpop.f32.mrb[0].mxu0
  %v2925 = vadd.f32 %v2828, %v2924
  %v2926 = vpop.f32.mrb[0].mxu0
  %2927 = vmatprep.mubr.bf16.mxu0 0
  %2928 = vmatmul.mubr.bf16.gmra.mrb[0].mxu0 %v1862
  %v2929 = vpop.f32.mrb[0].mxu0
  %v2930 = vadd.f32 %v2833, %v2929
  %v2931 = vpop.f32.mrb[0].mxu0
  %v2932 = vpop.f32.mrb[0].mxu0
  %v2933 = vadd.f32 %v2836, %v2932
  %v2934 = vpop.f32.mrb[0].mxu0
  %2935 = vmatprep.mubr.bf16.mxu0 0
  %2936 = vmatmul.mubr.bf16.gmra.mrb[0].mxu0 %v1871
  %v2937 = vpop.f32.mrb[0].mxu0
  %v2938 = vadd.f32 %v2841, %v2937
  %v2939 = vpop.f32.mrb[0].mxu0
  %v2940 = vpop.f32.mrb[0].mxu0
  %v2941 = vadd.f32 %v2844, %v2940
  %v2942 = vpop.f32.mrb[0].mxu0
  %2943 = vmatprep.mubr.bf16.mxu0 0
  %2944 = vmatmul.mubr.bf16.gmra.mrb[0].mxu0 %v1880
  %v2945 = vpop.f32.mrb[0].mxu0
  %v2946 = vadd.f32 %v2849, %v2945
  %v2947 = vpop.f32.mrb[0].mxu0
  %v2948 = vpop.f32.mrb[0].mxu0
  %v2949 = vadd.f32 %v2852, %v2948
  %v2950 = vpop.f32.mrb[0].mxu0
  %2951 = vmatprep.mubr.bf16.mxu0 0
  %2952 = vmatmul.mubr.bf16.gmra.mrb[0].mxu0 %v1889
  %v2953 = vpop.f32.mrb[0].mxu0
  %v2954 = vadd.f32 %v2857, %v2953
  %v2955 = vpop.f32.mrb[0].mxu0
  %v2956 = vpop.f32.mrb[0].mxu0
  %v2957 = vadd.f32 %v2860, %v2956
  %v2958 = vpop.f32.mrb[0].mxu0
  %2959 = vmatprep.mubr.bf16.mxu0 0
  %2960 = vmatmul.mubr.bf16.gmra.mrb[0].mxu0 %v1898
  %v2961 = vpop.f32.mrb[0].mxu0
  %v2962 = vadd.f32 %v2865, %v2961
  %v2963 = vpop.f32.mrb[0].mxu0
  %v2964 = vpop.f32.mrb[0].mxu0
  %v2965 = vadd.f32 %v2868, %v2964
  %v2966 = vpop.f32.mrb[0].mxu0
  %2967 = vmatprep.mubr.bf16.mxu0 0
  %2968 = vmatmul.mubr.bf16.gmra.mrb[0].mxu0 %v1907
  %v2969 = vpop.f32.mrb[0].mxu0
  %v2970 = vadd.f32 %v2873, %v2969
  %v2971 = vpop.f32.mrb[0].mxu0
  %v2972 = vpop.f32.mrb[0].mxu0
  %v2973 = vadd.f32 %v2876, %v2972
  %v2974 = vpop.f32.mrb[0].mxu0
  %2975 = vdwg.mxu0
  %vm2976 = vcmp.ge.f32.partialorder %v2914, 0.0
  %vm2977 = vcmp.ge.f32.partialorder %v2917, 0.0
  %vm2978 = vcmp.ge.f32.partialorder %v2922, 0.0
  %vm2979 = vcmp.ge.f32.partialorder %v2925, 0.0
  %vm2980 = vcmp.ge.f32.partialorder %v2930, 0.0
  %vm2981 = vcmp.ge.f32.partialorder %v2933, 0.0
  %vm2982 = vcmp.ge.f32.partialorder %v2938, 0.0
  %vm2983 = vcmp.ge.f32.partialorder %v2941, 0.0
  %vm2984 = vcmp.ge.f32.partialorder %v2946, 0.0
  %vm2985 = vcmp.ge.f32.partialorder %v2949, 0.0
  %vm2986 = vcmp.ge.f32.partialorder %v2954, 0.0
  %vm2987 = vcmp.ge.f32.partialorder %v2957, 0.0
  %vm2988 = vcmp.ge.f32.partialorder %v2962, 0.0
  %vm2989 = vcmp.ge.f32.partialorder %v2965, 0.0
  %vm2990 = vcmp.ge.f32.partialorder %v2970, 0.0
  %vm2991 = vcmp.ge.f32.partialorder %v2973, 0.0
  %v2992 = vmul.f32 %v2914, 0.01
  %v2993 = vmul.f32 %v2917, 0.01
  %v2994 = vmul.f32 %v2922, 0.01
  %v2995 = vmul.f32 %v2925, 0.01
  %v2996 = vmul.f32 %v2930, 0.01
  %v2997 = vmul.f32 %v2933, 0.01
  %v2998 = vmul.f32 %v2938, 0.01
  %v2999 = vmul.f32 %v2941, 0.01
  %v3000 = vmul.f32 %v2946, 0.01
  %v3001 = vmul.f32 %v2949, 0.01
  %v3002 = vmul.f32 %v2954, 0.01
  %v3003 = vmul.f32 %v2957, 0.01
  %v3004 = vmul.f32 %v2962, 0.01
  %v3005 = vmul.f32 %v2965, 0.01
  %v3006 = vmul.f32 %v2970, 0.01
  %v3007 = vmul.f32 %v2973, 0.01
  %v3008 = vsel %vm2976, %v2914, %v2992
  %v3009 = vsel %vm2977, %v2917, %v2993
  %v3010 = vsel %vm2978, %v2922, %v2994
  %v3011 = vsel %vm2979, %v2925, %v2995
  %v3012 = vsel %vm2980, %v2930, %v2996
  %v3013 = vsel %vm2981, %v2933, %v2997
  %v3014 = vsel %vm2982, %v2938, %v2998
  %v3015 = vsel %vm2983, %v2941, %v2999
  %v3016 = vsel %vm2984, %v2946, %v3000
  %v3017 = vsel %vm2985, %v2949, %v3001
  %v3018 = vsel %vm2986, %v2954, %v3002
  %v3019 = vsel %vm2987, %v2957, %v3003
  %v3020 = vsel %vm2988, %v2962, %v3004
  %v3021 = vsel %vm2989, %v2965, %v3005
  %v3022 = vsel %vm2990, %v2970, %v3006
  %v3023 = vsel %vm2991, %v2973, %v3007
  %v3024 = vpack.c.bf16 %v3009, %v3008
  %v3025 = vpack.c.bf16 %v3011, %v3010
  %v3026 = vpack.c.bf16 %v3013, %v3012
  %v3027 = vpack.c.bf16 %v3015, %v3014
  %v3028 = vpack.c.bf16 %v3017, %v3016
  %v3029 = vpack.c.bf16 %v3019, %v3018
  %v3030 = vpack.c.bf16 %v3021, %v3020
  %v3031 = vpack.c.bf16 %v3023, %v3022
  %v3040 = vunpack.c.l.b16 %v3024
  %v3041 = vunpack.c.h.b16 %v3024
  %v3042 = vunpack.c.l.b16 %v3025
  %v3043 = vunpack.c.h.b16 %v3025
  %v3044 = vunpack.c.l.b16 %v3026
  %v3045 = vunpack.c.h.b16 %v3026
  %v3046 = vunpack.c.l.b16 %v3027
  %v3047 = vunpack.c.h.b16 %v3027
  %v3048 = vunpack.c.l.b16 %v3028
  %v3049 = vunpack.c.h.b16 %v3028
  %v3050 = vunpack.c.l.b16 %v3029
  %v3051 = vunpack.c.h.b16 %v3029
  %v3052 = vunpack.c.l.b16 %v3030
  %v3053 = vunpack.c.h.b16 %v3030
  %v3054 = vunpack.c.l.b16 %v3031
  %v3055 = vunpack.c.h.b16 %v3031
  %v3056 = vpack.c.b16 %v3040, %v3040
  %v3057 = vpack.c.b16 %v3041, %v3041
  %v3058 = vpack.c.b16 %v3042, %v3042
  %v3059 = vpack.c.b16 %v3043, %v3043
  %v3060 = vpack.c.b16 %v3044, %v3044
  %v3061 = vpack.c.b16 %v3045, %v3045
  %v3062 = vpack.c.b16 %v3046, %v3046
  %v3063 = vpack.c.b16 %v3047, %v3047
  %v3064 = vpack.c.b16 %v3048, %v3048
  %v3065 = vpack.c.b16 %v3049, %v3049
  %v3066 = vpack.c.b16 %v3050, %v3050
  %v3067 = vpack.c.b16 %v3051, %v3051
  %v3068 = vpack.c.b16 %v3052, %v3052
  %v3069 = vpack.c.b16 %v3053, %v3053
  %v3070 = vpack.c.b16 %v3054, %v3054
  %v3071 = vpack.c.b16 %v3055, %v3055
  %3088 = vst [vmem:[%s3] sm:$0xf] %v3056
  %3089 = vst [vmem:[%s3 + $0x4] sm:$0xf] %v3057
  %3090 = vst [vmem:[%s3 + $0x8] sm:$0xf] %v3058
  %3091 = vst [vmem:[%s3 + $0xc] sm:$0xf] %v3059
  %3092 = vst [vmem:[%s3 + $0x10] sm:$0xf] %v3060
  %3093 = vst [vmem:[%s3 + $0x14] sm:$0xf] %v3061
  %3094 = vst [vmem:[%s3 + $0x18] sm:$0xf] %v3062
  %3095 = vst [vmem:[%s3 + $0x1c] sm:$0xf] %v3063
  %3096 = vst [vmem:[%s3 + $0x20] sm:$0xf] %v3064
  %3097 = vst [vmem:[%s3 + $0x24] sm:$0xf] %v3065
  %3098 = vst [vmem:[%s3 + $0x28] sm:$0xf] %v3066
  %3099 = vst [vmem:[%s3 + $0x2c] sm:$0xf] %v3067
  %3100 = vst [vmem:[%s3 + $0x30] sm:$0xf] %v3068
  %3101 = vst [vmem:[%s3 + $0x34] sm:$0xf] %v3069
  %3102 = vst [vmem:[%s3 + $0x38] sm:$0xf] %v3070
  %3103 = vst [vmem:[%s3 + $0x3c] sm:$0xf] %v3071
  // Predicated region
  $region14: #{subblock_forward.4} parent=0 // pred_check
    _
  $region15: #{subblock_forward.4} parent=0 // pred_check_branch
    %3105 = sbr.rel (0) target = $region17
  $region16: #{subblock_forward.4} parent=0 // pred_region
    _
  $region17: #{subblock_forward.4} parent=0 // pred_fallthru
    _
  // Predicated region
  $region18: #{subblock_forward.4} parent=0 // pred_check
    _
  $region19: #{subblock_forward.4} parent=0 // pred_check_branch
    %3107 = sbr.rel (0) target = $region21
  $region20: #{subblock_forward.4} parent=0 // pred_region
    _
  $region21: #{subblock_forward.4} parent=0 // pred_fallthru
    _

// kernel: subblock_forward.6
$region0: #{subblock_forward.6}
  #allocation0 [shape = 'u32[]', space=smem, size = 0x4, offset = 0x4, fixed_abs, tag = 'smem constant byte address 0x4 - core index']
  #allocation1 [shape = 'u32[144,128]{1,0:T(1,128)}', space=vmem, size = 0x12000, scoped, tag = 'internal scratch']
  #allocation2 [shape = 'bf16[8,1152]{1,0:T(8,128)(2,1)}', space=vmem, size = 0x4800, scoped, tag = 'scratch operand']
  %s0 = inlined_call_operand.vmem [shape: bf16[2,4,9,128], index: 0, kind: input, shape index: {}]
  %s1 = inlined_call_operand.vmem [shape: bf16[1152,128], index: 1, kind: input, shape index: {}]
  %s2 = inlined_call_operand.vmem [shape: f32[1,128], index: 2, kind: input, shape index: {}]
  %s3 = inlined_call_operand.vmem [shape: bf16[8,128], index: 3, kind: output, shape index: {}]
  %s4 = sld [smem:[#allocation0]]
  $region22: #{subblock_forward.6} parent=0
    _
  %s6 = ssub.s32 1, %s4
  %s7 = scalar_select 0, %s6, %s4
  // Predicated region
  $region2: #{subblock_forward.6} parent=0 // pred_check
    _
  $region3: #{subblock_forward.6} parent=0 // pred_check_branch
    %9 = sbr.rel (0) target = $region5
  $region4: #{subblock_forward.6} parent=0 // pred_region
    _
  $region5: #{subblock_forward.6} parent=0 // pred_fallthru
    _
  // Predicated region
  $region6: #{subblock_forward.6} parent=0 // pred_check
    _
  $region7: #{subblock_forward.6} parent=0 // pred_check_branch
    %11 = sbr.rel (0) target = $region9
  $region8: #{subblock_forward.6} parent=0 // pred_region
    _
  $region9: #{subblock_forward.6} parent=0 // pred_fallthru
    _
  // Predicated region
  $region10: #{subblock_forward.6} parent=0 // pred_check
    _
  $region11: #{subblock_forward.6} parent=0 // pred_check_branch
    %13 = sbr.rel (0) target = $region13
  $region12: #{subblock_forward.6} parent=0 // pred_region
    _
  $region13: #{subblock_forward.6} parent=0 // pred_fallthru
    _
  %v15 = vld [vmem:[%s0] sm:$0x1]
  %16 = vst [vmem:[#allocation2] sm:$0x1] %v15
  %s17 = scalar_lea.vmem %s0, 8
  %v18 = vld [vmem:[%s17] sm:$0x1]
  %19 = vst [vmem:[#allocation2 + $0x4] sm:$0x1] %v18
  %v20 = vld [vmem:[%s0] sm:$0x3]
  %v22 = vshrl.u32 %v20, 16
  %v24 = vrot.slane %v22, 4
  %v25 = vshll.u32 %v20, 16
  %v27 = vrot.slane %v25, 5
  %v28 = vor.u32 %v24, %v27
  %v29 = vrot.slane %v28, 4
  %31 = vst [vmem:[#allocation2 + $0x8] sm:$0x1] %v29
  %s32 = scalar_lea.vmem %s0, 16
  %v33 = vld [vmem:[%s32] sm:$0x1]
  %34 = vst [vmem:[#allocation2 + $0xc] sm:$0x1] %v33
  %s35 = scalar_lea.vmem %s0, 24
  %v36 = vld [vmem:[%s35] sm:$0x1]
  %37 = vst [vmem:[#allocation2 + $0x10] sm:$0x1] %v36
  %v38 = vld [vmem:[%s32] sm:$0x3]
  %v40 = vshrl.u32 %v38, 16
  %v42 = vrot.slane %v40, 4
  %v43 = vshll.u32 %v38, 16
  %v45 = vrot.slane %v43, 5
  %v46 = vor.u32 %v42, %v45
  %v47 = vrot.slane %v46, 4
  %49 = vst [vmem:[#allocation2 + $0x14] sm:$0x1] %v47
  %v50 = vld [vmem:[%s0] sm:$0x6]
  %v52 = vshrl.u32 %v50, 16
  %v54 = vrot.slane %v52, 5
  %v55 = vshll.u32 %v50, 16
  %v57 = vrot.slane %v55, 6
  %v58 = vor.u32 %v54, %v57
  %v59 = vrot.slane %v58, 4
  %61 = vst [vmem:[#allocation2 + $0x18] sm:$0x1] %v59
  %v62 = vld [vmem:[%s17] sm:$0x6]
  %v64 = vshrl.u32 %v62, 16
  %v66 = vrot.slane %v64, 5
  %v67 = vshll.u32 %v62, 16
  %v69 = vrot.slane %v67, 6
  %v70 = vor.u32 %v66, %v69
  %v71 = vrot.slane %v70, 4
  %73 = vst [vmem:[#allocation2 + $0x1c] sm:$0x1] %v71
  %v74 = vld [vmem:[%s0] sm:$0x4]
  %v76 = vrot.slane %v74, 6
  %v77 = vrot.slane %v76, 4
  %79 = vst [vmem:[#allocation2 + $0x20] sm:$0x1] %v77
  %v80 = vld [vmem:[%s0] sm:$0x6]
  %v82 = vshrl.u32 %v80, 16
  %v84 = vrot.slane %v82, 4
  %v85 = vshll.u32 %v80, 16
  %v87 = vrot.slane %v85, 5
  %v88 = vor.u32 %v84, %v87
  %v89 = vrot.slane %v88, 4
  %91 = vst [vmem:[#allocation2] sm:$0x2] %v89
  %v92 = vld [vmem:[%s17] sm:$0x6]
  %v94 = vshrl.u32 %v92, 16
  %v96 = vrot.slane %v94, 4
  %v97 = vshll.u32 %v92, 16
  %v99 = vrot.slane %v97, 5
  %v100 = vor.u32 %v96, %v99
  %v101 = vrot.slane %v100, 4
  %103 = vst [vmem:[#allocation2 + $0x4] sm:$0x2] %v101
  %v104 = vld [vmem:[%s0] sm:$0x4]
  %v106 = vrot.slane %v104, 5
  %v107 = vrot.slane %v106, 4
  %109 = vst [vmem:[#allocation2 + $0x8] sm:$0x2] %v107
  %v110 = vld [vmem:[%s32] sm:$0x6]
  %v112 = vshrl.u32 %v110, 16
  %v114 = vrot.slane %v112, 4
  %v115 = vshll.u32 %v110, 16
  %v117 = vrot.slane %v115, 5
  %v118 = vor.u32 %v114, %v117
  %v119 = vrot.slane %v118, 4
  %121 = vst [vmem:[#allocation2 + $0xc] sm:$0x2] %v119
  %v122 = vld [vmem:[%s35] sm:$0x6]
  %v124 = vshrl.u32 %v122, 16
  %v126 = vrot.slane %v124, 4
  %v127 = vshll.u32 %v122, 16
  %v129 = vrot.slane %v127, 5
  %v130 = vor.u32 %v126, %v129
  %v131 = vrot.slane %v130, 4
  %133 = vst [vmem:[#allocation2 + $0x10] sm:$0x2] %v131
  %v134 = vld [vmem:[%s32] sm:$0x4]
  %v136 = vrot.slane %v134, 5
  %v137 = vrot.slane %v136, 4
  %139 = vst [vmem:[#allocation2 + $0x14] sm:$0x2] %v137
  %v140 = vld [vmem:[%s0] sm:$0x8]
  %v142 = vrot.slane %v140, 6
  %v143 = vrot.slane %v142, 4
  %145 = vst [vmem:[#allocation2 + $0x18] sm:$0x2] %v143
  %v146 = vld [vmem:[%s17] sm:$0x8]
  %v148 = vrot.slane %v146, 6
  %v149 = vrot.slane %v148, 4
  %151 = vst [vmem:[#allocation2 + $0x1c] sm:$0x2] %v149
  %v152 = vld [vmem:[%s0] sm:$0x8]
  %v153 = vld [vmem:[%s0 + $0x4] sm:$0x1]
  %vm154 = vsmask.f32 1280
  %vm155 = vsmask.f32 5392
  %vm156 = vmor %vm154, %vm155
  %v158 = vshrl.u32 %v152, 16
  %v160 = vrot.slane %v158, 6
  %v161 = vrot.slane %v160, 4
  %v163 = vshll.u32 %v153, 16
  %v165 = vrot.slane %v163, 7
  %v166 = vsel %vm156, %v161, %v165
  %168 = vst [vmem:[#allocation2 + $0x20] sm:$0x2] %v166
  %s169 = scalar_lea.vmem %s0, 32
  %v170 = vld [vmem:[%s169] sm:$0x1]
  %v172 = vrot.slane %v170, 6
  %174 = vst [vmem:[#allocation2] sm:$0x4] %v172
  %s175 = scalar_lea.vmem %s0, 40
  %v176 = vld [vmem:[%s175] sm:$0x1]
  %v178 = vrot.slane %v176, 6
  %180 = vst [vmem:[#allocation2 + $0x4] sm:$0x4] %v178
  %v181 = vld [vmem:[%s169] sm:$0x3]
  %v183 = vshrl.u32 %v181, 16
  %v185 = vrot.slane %v183, 6
  %v186 = vshll.u32 %v181, 16
  %v188 = vrot.slane %v186, 7
  %v189 = vor.u32 %v185, %v188
  %191 = vst [vmem:[#allocation2 + $0x8] sm:$0x4] %v189
  %s192 = scalar_lea.vmem %s0, 48
  %v193 = vld [vmem:[%s192] sm:$0x1]
  %v195 = vrot.slane %v193, 6
  %197 = vst [vmem:[#allocation2 + $0xc] sm:$0x4] %v195
  %s198 = scalar_lea.vmem %s0, 56
  %v199 = vld [vmem:[%s198] sm:$0x1]
  %v201 = vrot.slane %v199, 6
  %203 = vst [vmem:[#allocation2 + $0x10] sm:$0x4] %v201
  %v204 = vld [vmem:[%s192] sm:$0x3]
  %v206 = vshrl.u32 %v204, 16
  %v208 = vrot.slane %v206, 6
  %v209 = vshll.u32 %v204, 16
  %v211 = vrot.slane %v209, 7
  %v212 = vor.u32 %v208, %v211
  %214 = vst [vmem:[#allocation2 + $0x14] sm:$0x4] %v212
  %v215 = vld [vmem:[%s169] sm:$0x6]
  %v217 = vshrl.u32 %v215, 16
  %v219 = vrot.slane %v217, 7
  %v220 = vshll.u32 %v215, 16
  %v222 = vor.u32 %v219, %v220
  %224 = vst [vmem:[#allocation2 + $0x18] sm:$0x4] %v222
  %v225 = vld [vmem:[%s175] sm:$0x6]
  %v227 = vshrl.u32 %v225, 16
  %v229 = vrot.slane %v227, 7
  %v230 = vshll.u32 %v225, 16
  %v232 = vor.u32 %v229, %v230
  %234 = vst [vmem:[#allocation2 + $0x1c] sm:$0x4] %v232
  %v235 = vld [vmem:[%s169] sm:$0x4]
  %236 = vst [vmem:[#allocation2 + $0x20] sm:$0x4] %v235
  %v237 = vld [vmem:[%s169] sm:$0x6]
  %v239 = vshrl.u32 %v237, 16
  %v241 = vrot.slane %v239, 6
  %v242 = vshll.u32 %v237, 16
  %v244 = vrot.slane %v242, 7
  %v245 = vor.u32 %v241, %v244
  %247 = vst [vmem:[#allocation2] sm:$0x8] %v245
  %v248 = vld [vmem:[%s175] sm:$0x6]
  %v250 = vshrl.u32 %v248, 16
  %v252 = vrot.slane %v250, 6
  %v253 = vshll.u32 %v248, 16
  %v255 = vrot.slane %v253, 7
  %v256 = vor.u32 %v252, %v255
  %258 = vst [vmem:[#allocation2 + $0x4] sm:$0x8] %v256
  %v259 = vld [vmem:[%s169] sm:$0x4]
  %v261 = vrot.slane %v259, 7
  %263 = vst [vmem:[#allocation2 + $0x8] sm:$0x8] %v261
  %v264 = vld [vmem:[%s192] sm:$0x6]
  %v266 = vshrl.u32 %v264, 16
  %v268 = vrot.slane %v266, 6
  %v269 = vshll.u32 %v264, 16
  %v271 = vrot.slane %v269, 7
  %v272 = vor.u32 %v268, %v271
  %274 = vst [vmem:[#allocation2 + $0xc] sm:$0x8] %v272
  %v275 = vld [vmem:[%s198] sm:$0x6]
  %v277 = vshrl.u32 %v275, 16
  %v279 = vrot.slane %v277, 6
  %v280 = vshll.u32 %v275, 16
  %v282 = vrot.slane %v280, 7
  %v283 = vor.u32 %v279, %v282
  %285 = vst [vmem:[#allocation2 + $0x10] sm:$0x8] %v283
  %v286 = vld [vmem:[%s192] sm:$0x4]
  %v288 = vrot.slane %v286, 7
  %290 = vst [vmem:[#allocation2 + $0x14] sm:$0x8] %v288
  %v291 = vld [vmem:[%s169] sm:$0x8]
  %292 = vst [vmem:[#allocation2 + $0x18] sm:$0x8] %v291
  %v293 = vld [vmem:[%s175] sm:$0x8]
  %294 = vst [vmem:[#allocation2 + $0x1c] sm:$0x8] %v293
  %v295 = vld [vmem:[%s169] sm:$0x8]
  %v296 = vld [vmem:[%s169 + $0x4] sm:$0x1]
  %vm297 = vsmask.f32 3328
  %vm298 = vsmask.f32 7440
  %vm299 = vmor %vm297, %vm298
  %v301 = vshrl.u32 %v295, 16
  %v303 = vrot.slane %v301, 4
  %v304 = vrot.slane %v303, 4
  %v306 = vshll.u32 %v296, 16
  %v308 = vrot.slane %v306, 5
  %v309 = vsel %vm299, %v304, %v308
  %311 = vst [vmem:[#allocation2 + $0x20] sm:$0x8] %v309
  %v312 = vld [vmem:[#allocation2] sm:$0xff]
  %v313 = vld [vmem:[#allocation2 + $0x8] sm:$0xff]
  %v314 = vld [vmem:[#allocation2 + $0x10] sm:$0xff]
  %v315 = vld [vmem:[#allocation2 + $0x18] sm:$0xff]
  %v316 = vld [vmem:[#allocation2 + $0x20] sm:$0xf]
  %v317 = vld [vmem:[%s1] sm:$0xf]
  %v318 = vld [vmem:[%s1 + $0x4] sm:$0xf]
  %v319 = vld [vmem:[%s1 + $0x8] sm:$0xf]
  %v320 = vld [vmem:[%s1 + $0xc] sm:$0xf]
  %v321 = vld [vmem:[%s1 + $0x10] sm:$0xf]
  %v322 = vld [vmem:[%s1 + $0x14] sm:$0xf]
  %v323 = vld [vmem:[%s1 + $0x18] sm:$0xf]
  %v324 = vld [vmem:[%s1 + $0x1c] sm:$0xf]
  %v325 = vld [vmem:[%s1 + $0x20] sm:$0xf]
  %v326 = vld [vmem:[%s1 + $0x24] sm:$0xf]
  %v327 = vld [vmem:[%s1 + $0x28] sm:$0xf]
  %v328 = vld [vmem:[%s1 + $0x2c] sm:$0xf]
  %v329 = vld [vmem:[%s1 + $0x30] sm:$0xf]
  %v330 = vld [vmem:[%s1 + $0x34] sm:$0xf]
  %v331 = vld [vmem:[%s1 + $0x38] sm:$0xf]
  %v332 = vld [vmem:[%s1 + $0x3c] sm:$0xf]
  %v333 = vld [vmem:[%s1 + $0x40] sm:$0xf]
  %v334 = vld [vmem:[%s1 + $0x44] sm:$0xf]
  %v335 = vld [vmem:[%s1 + $0x48] sm:$0xf]
  %v336 = vld [vmem:[%s1 + $0x4c] sm:$0xf]
  %v337 = vld [vmem:[%s1 + $0x50] sm:$0xf]
  %v338 = vld [vmem:[%s1 + $0x54] sm:$0xf]
  %v339 = vld [vmem:[%s1 + $0x58] sm:$0xf]
  %v340 = vld [vmem:[%s1 + $0x5c] sm:$0xf]
  %v341 = vld [vmem:[%s1 + $0x60] sm:$0xf]
  %v342 = vld [vmem:[%s1 + $0x64] sm:$0xf]
  %v343 = vld [vmem:[%s1 + $0x68] sm:$0xf]
  %v344 = vld [vmem:[%s1 + $0x6c] sm:$0xf]
  %v345 = vld [vmem:[%s1 + $0x70] sm:$0xf]
  %v346 = vld [vmem:[%s1 + $0x74] sm:$0xf]
  %v347 = vld [vmem:[%s1 + $0x78] sm:$0xf]
  %v348 = vld [vmem:[%s1 + $0x7c] sm:$0xf]
  %v349 = vld [vmem:[%s1 + $0x80] sm:$0xf]
  %v350 = vld [vmem:[%s1 + $0x84] sm:$0xf]
  %v351 = vld [vmem:[%s1 + $0x88] sm:$0xf]
  %v352 = vld [vmem:[%s1 + $0x8c] sm:$0xf]
  %v353 = vld [vmem:[%s1 + $0x90] sm:$0xf]
  %v354 = vld [vmem:[%s1 + $0x94] sm:$0xf]
  %v355 = vld [vmem:[%s1 + $0x98] sm:$0xf]
  %v356 = vld [vmem:[%s1 + $0x9c] sm:$0xf]
  %v357 = vld [vmem:[%s1 + $0xa0] sm:$0xf]
  %v358 = vld [vmem:[%s1 + $0xa4] sm:$0xf]
  %v359 = vld [vmem:[%s1 + $0xa8] sm:$0xf]
  %v360 = vld [vmem:[%s1 + $0xac] sm:$0xf]
  %v361 = vld [vmem:[%s1 + $0xb0] sm:$0xf]
  %v362 = vld [vmem:[%s1 + $0xb4] sm:$0xf]
  %v363 = vld [vmem:[%s1 + $0xb8] sm:$0xf]
  %v364 = vld [vmem:[%s1 + $0xbc] sm:$0xf]
  %v365 = vld [vmem:[%s1 + $0xc0] sm:$0xf]
  %v366 = vld [vmem:[%s1 + $0xc4] sm:$0xf]
  %v367 = vld [vmem:[%s1 + $0xc8] sm:$0xf]
  %v368 = vld [vmem:[%s1 + $0xcc] sm:$0xf]
  %v369 = vld [vmem:[%s1 + $0xd0] sm:$0xf]
  %v370 = vld [vmem:[%s1 + $0xd4] sm:$0xf]
  %v371 = vld [vmem:[%s1 + $0xd8] sm:$0xf]
  %v372 = vld [vmem:[%s1 + $0xdc] sm:$0xf]
  %v373 = vld [vmem:[%s1 + $0xe0] sm:$0xf]
  %v374 = vld [vmem:[%s1 + $0xe4] sm:$0xf]
  %v375 = vld [vmem:[%s1 + $0xe8] sm:$0xf]
  %v376 = vld [vmem:[%s1 + $0xec] sm:$0xf]
  %v377 = vld [vmem:[%s1 + $0xf0] sm:$0xf]
  %v378 = vld [vmem:[%s1 + $0xf4] sm:$0xf]
  %v379 = vld [vmem:[%s1 + $0xf8] sm:$0xf]
  %v380 = vld [vmem:[%s1 + $0xfc] sm:$0xf]
  %v381 = vld [vmem:[%s1 + $0x100] sm:$0xf]
  %v382 = vld [vmem:[%s1 + $0x104] sm:$0xf]
  %v383 = vld [vmem:[%s1 + $0x108] sm:$0xf]
  %v384 = vld [vmem:[%s1 + $0x10c] sm:$0xf]
  %v385 = vld [vmem:[%s1 + $0x110] sm:$0xf]
  %v386 = vld [vmem:[%s1 + $0x114] sm:$0xf]
  %v387 = vld [vmem:[%s1 + $0x118] sm:$0xf]
  %v388 = vld [vmem:[%s1 + $0x11c] sm:$0xf]
  %v389 = vld [vmem:[%s1 + $0x120] sm:$0xf]
  %v390 = vld [vmem:[%s1 + $0x124] sm:$0xf]
  %v391 = vld [vmem:[%s1 + $0x128] sm:$0xf]
  %v392 = vld [vmem:[%s1 + $0x12c] sm:$0xf]
  %v393 = vld [vmem:[%s1 + $0x130] sm:$0xf]
  %v394 = vld [vmem:[%s1 + $0x134] sm:$0xf]
  %v395 = vld [vmem:[%s1 + $0x138] sm:$0xf]
  %v396 = vld [vmem:[%s1 + $0x13c] sm:$0xf]
  %v397 = vld [vmem:[%s1 + $0x140] sm:$0xf]
  %v398 = vld [vmem:[%s1 + $0x144] sm:$0xf]
  %v399 = vld [vmem:[%s1 + $0x148] sm:$0xf]
  %v400 = vld [vmem:[%s1 + $0x14c] sm:$0xf]
  %v401 = vld [vmem:[%s1 + $0x150] sm:$0xf]
  %v402 = vld [vmem:[%s1 + $0x154] sm:$0xf]
  %v403 = vld [vmem:[%s1 + $0x158] sm:$0xf]
  %v404 = vld [vmem:[%s1 + $0x15c] sm:$0xf]
  %v405 = vld [vmem:[%s1 + $0x160] sm:$0xf]
  %v406 = vld [vmem:[%s1 + $0x164] sm:$0xf]
  %v407 = vld [vmem:[%s1 + $0x168] sm:$0xf]
  %v408 = vld [vmem:[%s1 + $0x16c] sm:$0xf]
  %v409 = vld [vmem:[%s1 + $0x170] sm:$0xf]
  %v410 = vld [vmem:[%s1 + $0x174] sm:$0xf]
  %v411 = vld [vmem:[%s1 + $0x178] sm:$0xf]
  %v412 = vld [vmem:[%s1 + $0x17c] sm:$0xf]
  %v413 = vld [vmem:[%s1 + $0x180] sm:$0xf]
  %v414 = vld [vmem:[%s1 + $0x184] sm:$0xf]
  %v415 = vld [vmem:[%s1 + $0x188] sm:$0xf]
  %v416 = vld [vmem:[%s1 + $0x18c] sm:$0xf]
  %v417 = vld [vmem:[%s1 + $0x190] sm:$0xf]
  %v418 = vld [vmem:[%s1 + $0x194] sm:$0xf]
  %v419 = vld [vmem:[%s1 + $0x198] sm:$0xf]
  %v420 = vld [vmem:[%s1 + $0x19c] sm:$0xf]
  %v421 = vld [vmem:[%s1 + $0x1a0] sm:$0xf]
  %v422 = vld [vmem:[%s1 + $0x1a4] sm:$0xf]
  %v423 = vld [vmem:[%s1 + $0x1a8] sm:$0xf]
  %v424 = vld [vmem:[%s1 + $0x1ac] sm:$0xf]
  %v425 = vld [vmem:[%s1 + $0x1b0] sm:$0xf]
  %v426 = vld [vmem:[%s1 + $0x1b4] sm:$0xf]
  %v427 = vld [vmem:[%s1 + $0x1b8] sm:$0xf]
  %v428 = vld [vmem:[%s1 + $0x1bc] sm:$0xf]
  %v429 = vld [vmem:[%s1 + $0x1c0] sm:$0xf]
  %v430 = vld [vmem:[%s1 + $0x1c4] sm:$0xf]
  %v431 = vld [vmem:[%s1 + $0x1c8] sm:$0xf]
  %v432 = vld [vmem:[%s1 + $0x1cc] sm:$0xf]
  %v433 = vld [vmem:[%s1 + $0x1d0] sm:$0xf]
  %v434 = vld [vmem:[%s1 + $0x1d4] sm:$0xf]
  %v435 = vld [vmem:[%s1 + $0x1d8] sm:$0xf]
  %v436 = vld [vmem:[%s1 + $0x1dc] sm:$0xf]
  %v437 = vld [vmem:[%s1 + $0x1e0] sm:$0xf]
  %v438 = vld [vmem:[%s1 + $0x1e4] sm:$0xf]
  %v439 = vld [vmem:[%s1 + $0x1e8] sm:$0xf]
  %v440 = vld [vmem:[%s1 + $0x1ec] sm:$0xf]
  %v441 = vld [vmem:[%s1 + $0x1f0] sm:$0xf]
  %v442 = vld [vmem:[%s1 + $0x1f4] sm:$0xf]
  %v443 = vld [vmem:[%s1 + $0x1f8] sm:$0xf]
  %v444 = vld [vmem:[%s1 + $0x1fc] sm:$0xf]
  %v445 = vld [vmem:[%s1 + $0x200] sm:$0xf]
  %v446 = vld [vmem:[%s1 + $0x204] sm:$0xf]
  %v447 = vld [vmem:[%s1 + $0x208] sm:$0xf]
  %v448 = vld [vmem:[%s1 + $0x20c] sm:$0xf]
  %v449 = vld [vmem:[%s1 + $0x210] sm:$0xf]
  %v450 = vld [vmem:[%s1 + $0x214] sm:$0xf]
  %v451 = vld [vmem:[%s1 + $0x218] sm:$0xf]
  %v452 = vld [vmem:[%s1 + $0x21c] sm:$0xf]
  %v453 = vld [vmem:[%s1 + $0x220] sm:$0xf]
  %v454 = vld [vmem:[%s1 + $0x224] sm:$0xf]
  %v455 = vld [vmem:[%s1 + $0x228] sm:$0xf]
  %v456 = vld [vmem:[%s1 + $0x22c] sm:$0xf]
  %v457 = vld [vmem:[%s1 + $0x230] sm:$0xf]
  %v458 = vld [vmem:[%s1 + $0x234] sm:$0xf]
  %v459 = vld [vmem:[%s1 + $0x238] sm:$0xf]
  %v460 = vld [vmem:[%s1 + $0x23c] sm:$0xf]
  %v461 = vld [vmem:[%s2] sm:$0x1]
  %v463 = vlaneseq
  %v464 = vshrl.u32 %v463, 7
  %v465 = vsub.s32 0, %v464
  %v466 = vrot.slane %v461, %v465
  %v473 = vunpack.c.l.b16 %v312
  %v474 = vunpack.c.h.b16 %v312
  %v475 = vunpack.c.l.b16 %v313
  %v476 = vunpack.c.h.b16 %v313
  %v477 = vunpack.c.l.b16 %v314
  %v478 = vunpack.c.h.b16 %v314
  %v479 = vunpack.c.l.b16 %v315
  %v480 = vunpack.c.h.b16 %v315
  %v481 = vunpack.c.l.b16 %v316
  %v482 = vpack.c.b16 %v473, %v473
  %v483 = vpack.c.b16 %v474, %v474
  %v484 = vpack.c.b16 %v475, %v475
  %v485 = vpack.c.b16 %v476, %v476
  %v486 = vpack.c.b16 %v477, %v477
  %v487 = vpack.c.b16 %v478, %v478
  %v488 = vpack.c.b16 %v479, %v479
  %v489 = vpack.c.b16 %v480, %v480
  %v490 = vpack.c.b16 %v481, %v481
  %v644 = vunpack.c.l.b16 %v317
  %v645 = vunpack.c.l.b16 %v318
  %v646 = vunpack.c.l.b16 %v319
  %v647 = vunpack.c.l.b16 %v320
  %v648 = vunpack.c.l.b16 %v321
  %v649 = vunpack.c.l.b16 %v322
  %v650 = vunpack.c.l.b16 %v323
  %v651 = vunpack.c.l.b16 %v324
  %v652 = vunpack.c.l.b16 %v325
  %v653 = vunpack.c.l.b16 %v326
  %v654 = vunpack.c.l.b16 %v327
  %v655 = vunpack.c.l.b16 %v328
  %v656 = vunpack.c.l.b16 %v329
  %v657 = vunpack.c.l.b16 %v330
  %v658 = vunpack.c.l.b16 %v331
  %v659 = vunpack.c.l.b16 %v332
  %v660 = vunpack.c.l.b16 %v333
  %v661 = vunpack.c.l.b16 %v334
  %v662 = vunpack.c.l.b16 %v335
  %v663 = vunpack.c.l.b16 %v336
  %v664 = vunpack.c.l.b16 %v337
  %v665 = vunpack.c.l.b16 %v338
  %v666 = vunpack.c.l.b16 %v339
  %v667 = vunpack.c.l.b16 %v340
  %v668 = vunpack.c.l.b16 %v341
  %v669 = vunpack.c.l.b16 %v342
  %v670 = vunpack.c.l.b16 %v343
  %v671 = vunpack.c.l.b16 %v344
  %v672 = vunpack.c.l.b16 %v345
  %v673 = vunpack.c.l.b16 %v346
  %v674 = vunpack.c.l.b16 %v347
  %v675 = vunpack.c.l.b16 %v348
  %v676 = vunpack.c.l.b16 %v349
  %v677 = vunpack.c.l.b16 %v350
  %v678 = vunpack.c.l.b16 %v351
  %v679 = vunpack.c.l.b16 %v352
  %v680 = vunpack.c.l.b16 %v353
  %v681 = vunpack.c.l.b16 %v354
  %v682 = vunpack.c.l.b16 %v355
  %v683 = vunpack.c.l.b16 %v356
  %v684 = vunpack.c.l.b16 %v357
  %v685 = vunpack.c.l.b16 %v358
  %v686 = vunpack.c.l.b16 %v359
  %v687 = vunpack.c.l.b16 %v360
  %v688 = vunpack.c.l.b16 %v361
  %v689 = vunpack.c.l.b16 %v362
  %v690 = vunpack.c.l.b16 %v363
  %v691 = vunpack.c.l.b16 %v364
  %v692 = vunpack.c.l.b16 %v365
  %v693 = vunpack.c.l.b16 %v366
  %v694 = vunpack.c.l.b16 %v367
  %v695 = vunpack.c.l.b16 %v368
  %v696 = vunpack.c.l.b16 %v369
  %v697 = vunpack.c.l.b16 %v370
  %v698 = vunpack.c.l.b16 %v371
  %v699 = vunpack.c.l.b16 %v372
  %v700 = vunpack.c.l.b16 %v373
  %v701 = vunpack.c.l.b16 %v374
  %v702 = vunpack.c.l.b16 %v375
  %v703 = vunpack.c.l.b16 %v376
  %v704 = vunpack.c.l.b16 %v377
  %v705 = vunpack.c.l.b16 %v378
  %v706 = vunpack.c.l.b16 %v379
  %v707 = vunpack.c.l.b16 %v380
  %v708 = vunpack.c.l.b16 %v381
  %v709 = vunpack.c.l.b16 %v382
  %v710 = vunpack.c.l.b16 %v383
  %v711 = vunpack.c.l.b16 %v384
  %v712 = vunpack.c.l.b16 %v385
  %v713 = vunpack.c.l.b16 %v386
  %v714 = vunpack.c.l.b16 %v387
  %v715 = vunpack.c.l.b16 %v388
  %v716 = vunpack.c.l.b16 %v389
  %v717 = vunpack.c.l.b16 %v390
  %v718 = vunpack.c.l.b16 %v391
  %v719 = vunpack.c.l.b16 %v392
  %v720 = vunpack.c.l.b16 %v393
  %v721 = vunpack.c.l.b16 %v394
  %v722 = vunpack.c.l.b16 %v395
  %v723 = vunpack.c.l.b16 %v396
  %v724 = vunpack.c.l.b16 %v397
  %v725 = vunpack.c.l.b16 %v398
  %v726 = vunpack.c.l.b16 %v399
  %v727 = vunpack.c.l.b16 %v400
  %v728 = vunpack.c.l.b16 %v401
  %v729 = vunpack.c.l.b16 %v402
  %v730 = vunpack.c.l.b16 %v403
  %v731 = vunpack.c.l.b16 %v404
  %v732 = vunpack.c.l.b16 %v405
  %v733 = vunpack.c.l.b16 %v406
  %v734 = vunpack.c.l.b16 %v407
  %v735 = vunpack.c.l.b16 %v408
  %v736 = vunpack.c.l.b16 %v409
  %v737 = vunpack.c.l.b16 %v410
  %v738 = vunpack.c.l.b16 %v411
  %v739 = vunpack.c.l.b16 %v412
  %v740 = vunpack.c.l.b16 %v413
  %v741 = vunpack.c.l.b16 %v414
  %v742 = vunpack.c.l.b16 %v415
  %v743 = vunpack.c.l.b16 %v416
  %v744 = vunpack.c.l.b16 %v417
  %v745 = vunpack.c.l.b16 %v418
  %v746 = vunpack.c.l.b16 %v419
  %v747 = vunpack.c.l.b16 %v420
  %v748 = vunpack.c.l.b16 %v421
  %v749 = vunpack.c.l.b16 %v422
  %v750 = vunpack.c.l.b16 %v423
  %v751 = vunpack.c.l.b16 %v424
  %v752 = vunpack.c.l.b16 %v425
  %v753 = vunpack.c.l.b16 %v426
  %v754 = vunpack.c.l.b16 %v427
  %v755 = vunpack.c.l.b16 %v428
  %v756 = vunpack.c.l.b16 %v429
  %v757 = vunpack.c.l.b16 %v430
  %v758 = vunpack.c.l.b16 %v431
  %v759 = vunpack.c.l.b16 %v432
  %v760 = vunpack.c.l.b16 %v433
  %v761 = vunpack.c.l.b16 %v434
  %v762 = vunpack.c.l.b16 %v435
  %v763 = vunpack.c.l.b16 %v436
  %v764 = vunpack.c.l.b16 %v437
  %v765 = vunpack.c.l.b16 %v438
  %v766 = vunpack.c.l.b16 %v439
  %v767 = vunpack.c.l.b16 %v440
  %v768 = vunpack.c.l.b16 %v441
  %v769 = vunpack.c.l.b16 %v442
  %v770 = vunpack.c.l.b16 %v443
  %v771 = vunpack.c.l.b16 %v444
  %v772 = vunpack.c.l.b16 %v445
  %v773 = vunpack.c.l.b16 %v446
  %v774 = vunpack.c.l.b16 %v447
  %v775 = vunpack.c.l.b16 %v448
  %v776 = vunpack.c.l.b16 %v449
  %v777 = vunpack.c.l.b16 %v450
  %v778 = vunpack.c.l.b16 %v451
  %v779 = vunpack.c.l.b16 %v452
  %v780 = vunpack.c.l.b16 %v453
  %v781 = vunpack.c.l.b16 %v454
  %v782 = vunpack.c.l.b16 %v455
  %v783 = vunpack.c.l.b16 %v456
  %v784 = vunpack.c.l.b16 %v457
  %v785 = vunpack.c.l.b16 %v458
  %v786 = vunpack.c.l.b16 %v459
  %v787 = vunpack.c.l.b16 %v460
  %v788 = vpack.c.b16 %v645, %v644
  %v789 = vpack.c.b16 %v647, %v646
  %v790 = vpack.c.b16 %v649, %v648
  %v791 = vpack.c.b16 %v651, %v650
  %v792 = vpack.c.b16 %v653, %v652
  %v793 = vpack.c.b16 %v655, %v654
  %v794 = vpack.c.b16 %v657, %v656
  %v795 = vpack.c.b16 %v659, %v658
  %v796 = vpack.c.b16 %v661, %v660
  %v797 = vpack.c.b16 %v663, %v662
  %v798 = vpack.c.b16 %v665, %v664
  %v799 = vpack.c.b16 %v667, %v666
  %v800 = vpack.c.b16 %v669, %v668
  %v801 = vpack.c.b16 %v671, %v670
  %v802 = vpack.c.b16 %v673, %v672
  %v803 = vpack.c.b16 %v675, %v674
  %v804 = vpack.c.b16 %v677, %v676
  %v805 = vpack.c.b16 %v679, %v678
  %v806 = vpack.c.b16 %v681, %v680
  %v807 = vpack.c.b16 %v683, %v682
  %v808 = vpack.c.b16 %v685, %v684
  %v809 = vpack.c.b16 %v687, %v686
  %v810 = vpack.c.b16 %v689, %v688
  %v811 = vpack.c.b16 %v691, %v690
  %v812 = vpack.c.b16 %v693, %v692
  %v813 = vpack.c.b16 %v695, %v694
  %v814 = vpack.c.b16 %v697, %v696
  %v815 = vpack.c.b16 %v699, %v698
  %v816 = vpack.c.b16 %v701, %v700
  %v817 = vpack.c.b16 %v703, %v702
  %v818 = vpack.c.b16 %v705, %v704
  %v819 = vpack.c.b16 %v707, %v706
  %v820 = vpack.c.b16 %v709, %v708
  %v821 = vpack.c.b16 %v711, %v710
  %v822 = vpack.c.b16 %v713, %v712
  %v823 = vpack.c.b16 %v715, %v714
  %v824 = vpack.c.b16 %v717, %v716
  %v825 = vpack.c.b16 %v719, %v718
  %v826 = vpack.c.b16 %v721, %v720
  %v827 = vpack.c.b16 %v723, %v722
  %v828 = vpack.c.b16 %v725, %v724
  %v829 = vpack.c.b16 %v727, %v726
  %v830 = vpack.c.b16 %v729, %v728
  %v831 = vpack.c.b16 %v731, %v730
  %v832 = vpack.c.b16 %v733, %v732
  %v833 = vpack.c.b16 %v735, %v734
  %v834 = vpack.c.b16 %v737, %v736
  %v835 = vpack.c.b16 %v739, %v738
  %v836 = vpack.c.b16 %v741, %v740
  %v837 = vpack.c.b16 %v743, %v742
  %v838 = vpack.c.b16 %v745, %v744
  %v839 = vpack.c.b16 %v747, %v746
  %v840 = vpack.c.b16 %v749, %v748
  %v841 = vpack.c.b16 %v751, %v750
  %v842 = vpack.c.b16 %v753, %v752
  %v843 = vpack.c.b16 %v755, %v754
  %v844 = vpack.c.b16 %v757, %v756
  %v845 = vpack.c.b16 %v759, %v758
  %v846 = vpack.c.b16 %v761, %v760
  %v847 = vpack.c.b16 %v763, %v762
  %v848 = vpack.c.b16 %v765, %v764
  %v849 = vpack.c.b16 %v767, %v766
  %v850 = vpack.c.b16 %v769, %v768
  %v851 = vpack.c.b16 %v771, %v770
  %v852 = vpack.c.b16 %v773, %v772
  %v853 = vpack.c.b16 %v775, %v774
  %v854 = vpack.c.b16 %v777, %v776
  %v855 = vpack.c.b16 %v779, %v778
  %v856 = vpack.c.b16 %v781, %v780
  %v857 = vpack.c.b16 %v783, %v782
  %v858 = vpack.c.b16 %v785, %v784
  %v859 = vpack.c.b16 %v787, %v786
  %932 = vmatprep.subr.bf16.mxu0 0
  %933 = vmatpush1.bf16.msra.mxu0 %v788
  %934 = vmatprep.subr.bf16.mxu0 0
  %935 = vmatpush1.bf16.msra.mxu0 %v789
  %936 = vmatprep.subr.bf16.mxu0 0
  %937 = vmatpush1.bf16.msra.mxu0 %v790
  %938 = vmatprep.subr.bf16.mxu0 0
  %939 = vmatpush1.bf16.msra.mxu0 %v791
  %940 = vmatprep.subr.bf16.mxu0 0
  %941 = vmatpush1.bf16.msra.mxu0 %v792
  %942 = vmatprep.subr.bf16.mxu0 0
  %943 = vmatpush1.bf16.msra.mxu0 %v793
  %944 = vmatprep.subr.bf16.mxu0 0
  %945 = vmatpush1.bf16.msra.mxu0 %v794
  %946 = vmatprep.subr.bf16.mxu0 0
  %947 = vmatpush1.bf16.msra.mxu0 %v795
  %948 = vmatprep.subr.bf16.mxu0 0
  %949 = vmatpush1.bf16.msra.mxu0 %v796
  %950 = vmatprep.subr.bf16.mxu0 0
  %951 = vmatpush1.bf16.msra.mxu0 %v797
  %952 = vmatprep.subr.bf16.mxu0 0
  %953 = vmatpush1.bf16.msra.mxu0 %v798
  %954 = vmatprep.subr.bf16.mxu0 0
  %955 = vmatpush1.bf16.msra.mxu0 %v799
  %956 = vmatprep.subr.bf16.mxu0 0
  %957 = vmatpush1.bf16.msra.mxu0 %v800
  %958 = vmatprep.subr.bf16.mxu0 0
  %959 = vmatpush1.bf16.msra.mxu0 %v801
  %960 = vmatprep.subr.bf16.mxu0 0
  %961 = vmatpush1.bf16.msra.mxu0 %v802
  %962 = vmatprep.subr.bf16.mxu0 0
  %963 = vmatpush1.bf16.msra.mxu0 %v803
  %964 = vmatprep.mubr.bf16.mxu0 %v483
  %965 = vmatmul.mubr.bf16.gmra.mrb[0].mxu0 %v482
  %v966 = vpop.f32.mrb[0].mxu0
  %v967 = vadd.f32 %v466, %v966
  %v968 = vpop.f32.mrb[0].mxu0
  %v969 = vpop.f32.mrb[0].mxu0
  %v970 = vpop.f32.mrb[0].mxu0
  %971 = vdwg.mxu0
  %972 = vmatprep.subr.bf16.mxu0 0
  %973 = vmatpush1.bf16.msra.mxu0 %v804
  %974 = vmatprep.subr.bf16.mxu0 0
  %975 = vmatpush1.bf16.msra.mxu0 %v805
  %976 = vmatprep.subr.bf16.mxu0 0
  %977 = vmatpush1.bf16.msra.mxu0 %v806
  %978 = vmatprep.subr.bf16.mxu0 0
  %979 = vmatpush1.bf16.msra.mxu0 %v807
  %980 = vmatprep.subr.bf16.mxu0 0
  %981 = vmatpush1.bf16.msra.mxu0 %v808
  %982 = vmatprep.subr.bf16.mxu0 0
  %983 = vmatpush1.bf16.msra.mxu0 %v809
  %984 = vmatprep.subr.bf16.mxu0 0
  %985 = vmatpush1.bf16.msra.mxu0 %v810
  %986 = vmatprep.subr.bf16.mxu0 0
  %987 = vmatpush1.bf16.msra.mxu0 %v811
  %988 = vmatprep.subr.bf16.mxu0 0
  %989 = vmatpush1.bf16.msra.mxu0 %v812
  %990 = vmatprep.subr.bf16.mxu0 0
  %991 = vmatpush1.bf16.msra.mxu0 %v813
  %992 = vmatprep.subr.bf16.mxu0 0
  %993 = vmatpush1.bf16.msra.mxu0 %v814
  %994 = vmatprep.subr.bf16.mxu0 0
  %995 = vmatpush1.bf16.msra.mxu0 %v815
  %996 = vmatprep.subr.bf16.mxu0 0
  %997 = vmatpush1.bf16.msra.mxu0 %v816
  %998 = vmatprep.subr.bf16.mxu0 0
  %999 = vmatpush1.bf16.msra.mxu0 %v817
  %1000 = vmatprep.subr.bf16.mxu0 0
  %1001 = vmatpush1.bf16.msra.mxu0 %v818
  %1002 = vmatprep.subr.bf16.mxu0 0
  %1003 = vmatpush1.bf16.msra.mxu0 %v819
  %1004 = vmatprep.mubr.bf16.mxu0 %v485
  %1005 = vmatmul.mubr.bf16.gmra.mrb[0].mxu0 %v484
  %v1006 = vpop.f32.mrb[0].mxu0
  %v1007 = vadd.f32 %v967, %v1006
  %v1008 = vpop.f32.mrb[0].mxu0
  %v1009 = vpop.f32.mrb[0].mxu0
  %v1010 = vpop.f32.mrb[0].mxu0
  %1011 = vdwg.mxu0
  %1012 = vmatprep.subr.bf16.mxu0 0
  %1013 = vmatpush1.bf16.msra.mxu0 %v820
  %1014 = vmatprep.subr.bf16.mxu0 0
  %1015 = vmatpush1.bf16.msra.mxu0 %v821
  %1016 = vmatprep.subr.bf16.mxu0 0
  %1017 = vmatpush1.bf16.msra.mxu0 %v822
  %1018 = vmatprep.subr.bf16.mxu0 0
  %1019 = vmatpush1.bf16.msra.mxu0 %v823
  %1020 = vmatprep.subr.bf16.mxu0 0
  %1021 = vmatpush1.bf16.msra.mxu0 %v824
  %1022 = vmatprep.subr.bf16.mxu0 0
  %1023 = vmatpush1.bf16.msra.mxu0 %v825
  %1024 = vmatprep.subr.bf16.mxu0 0
  %1025 = vmatpush1.bf16.msra.mxu0 %v826
  %1026 = vmatprep.subr.bf16.mxu0 0
  %1027 = vmatpush1.bf16.msra.mxu0 %v827
  %1028 = vmatprep.subr.bf16.mxu0 0
  %1029 = vmatpush1.bf16.msra.mxu0 %v828
  %1030 = vmatprep.subr.bf16.mxu0 0
  %1031 = vmatpush1.bf16.msra.mxu0 %v829
  %1032 = vmatprep.subr.bf16.mxu0 0
  %1033 = vmatpush1.bf16.msra.mxu0 %v830
  %1034 = vmatprep.subr.bf16.mxu0 0
  %1035 = vmatpush1.bf16.msra.mxu0 %v831
  %1036 = vmatprep.subr.bf16.mxu0 0
  %1037 = vmatpush1.bf16.msra.mxu0 %v832
  %1038 = vmatprep.subr.bf16.mxu0 0
  %1039 = vmatpush1.bf16.msra.mxu0 %v833
  %1040 = vmatprep.subr.bf16.mxu0 0
  %1041 = vmatpush1.bf16.msra.mxu0 %v834
  %1042 = vmatprep.subr.bf16.mxu0 0
  %1043 = vmatpush1.bf16.msra.mxu0 %v835
  %1044 = vmatprep.mubr.bf16.mxu0 %v487
  %1045 = vmatmul.mubr.bf16.gmra.mrb[0].mxu0 %v486
  %v1046 = vpop.f32.mrb[0].mxu0
  %v1047 = vadd.f32 %v1007, %v1046
  %v1048 = vpop.f32.mrb[0].mxu0
  %v1049 = vpop.f32.mrb[0].mxu0
  %v1050 = vpop.f32.mrb[0].mxu0
  %1051 = vdwg.mxu0
  %1052 = vmatprep.subr.bf16.mxu0 0
  %1053 = vmatpush1.bf16.msra.mxu0 %v836
  %1054 = vmatprep.subr.bf16.mxu0 0
  %1055 = vmatpush1.bf16.msra.mxu0 %v837
  %1056 = vmatprep.subr.bf16.mxu0 0
  %1057 = vmatpush1.bf16.msra.mxu0 %v838
  %1058 = vmatprep.subr.bf16.mxu0 0
  %1059 = vmatpush1.bf16.msra.mxu0 %v839
  %1060 = vmatprep.subr.bf16.mxu0 0
  %1061 = vmatpush1.bf16.msra.mxu0 %v840
  %1062 = vmatprep.subr.bf16.mxu0 0
  %1063 = vmatpush1.bf16.msra.mxu0 %v841
  %1064 = vmatprep.subr.bf16.mxu0 0
  %1065 = vmatpush1.bf16.msra.mxu0 %v842
  %1066 = vmatprep.subr.bf16.mxu0 0
  %1067 = vmatpush1.bf16.msra.mxu0 %v843
  %1068 = vmatprep.subr.bf16.mxu0 0
  %1069 = vmatpush1.bf16.msra.mxu0 %v844
  %1070 = vmatprep.subr.bf16.mxu0 0
  %1071 = vmatpush1.bf16.msra.mxu0 %v845
  %1072 = vmatprep.subr.bf16.mxu0 0
  %1073 = vmatpush1.bf16.msra.mxu0 %v846
  %1074 = vmatprep.subr.bf16.mxu0 0
  %1075 = vmatpush1.bf16.msra.mxu0 %v847
  %1076 = vmatprep.subr.bf16.mxu0 0
  %1077 = vmatpush1.bf16.msra.mxu0 %v848
  %1078 = vmatprep.subr.bf16.mxu0 0
  %1079 = vmatpush1.bf16.msra.mxu0 %v849
  %1080 = vmatprep.subr.bf16.mxu0 0
  %1081 = vmatpush1.bf16.msra.mxu0 %v850
  %1082 = vmatprep.subr.bf16.mxu0 0
  %1083 = vmatpush1.bf16.msra.mxu0 %v851
  %1084 = vmatprep.mubr.bf16.mxu0 %v489
  %1085 = vmatmul.mubr.bf16.gmra.mrb[0].mxu0 %v488
  %v1086 = vpop.f32.mrb[0].mxu0
  %v1087 = vadd.f32 %v1047, %v1086
  %v1088 = vpop.f32.mrb[0].mxu0
  %v1089 = vpop.f32.mrb[0].mxu0
  %v1090 = vpop.f32.mrb[0].mxu0
  %1091 = vdwg.mxu0
  %1092 = vmatprep.subr.bf16.mxu0 0
  %1093 = vmatpush1.bf16.msra.mxu0 %v852
  %1094 = vmatprep.subr.bf16.mxu0 0
  %1095 = vmatpush1.bf16.msra.mxu0 %v853
  %1096 = vmatprep.subr.bf16.mxu0 0
  %1097 = vmatpush1.bf16.msra.mxu0 %v854
  %1098 = vmatprep.subr.bf16.mxu0 0
  %1099 = vmatpush1.bf16.msra.mxu0 %v855
  %1100 = vmatprep.subr.bf16.mxu0 0
  %1101 = vmatpush1.bf16.msra.mxu0 %v856
  %1102 = vmatprep.subr.bf16.mxu0 0
  %1103 = vmatpush1.bf16.msra.mxu0 %v857
  %1104 = vmatprep.subr.bf16.mxu0 0
  %1105 = vmatpush1.bf16.msra.mxu0 %v858
  %1106 = vmatprep.subr.bf16.mxu0 0
  %1107 = vmatpush1.bf16.msra.mxu0 %v859
  %1108 = vmatprep.subr.bf16.mxu0 0
  %1109 = vmatpush1.bf16.msra.mxu0 0
  %1110 = vmatprep.subr.bf16.mxu0 0
  %1111 = vmatpush1.bf16.msra.mxu0 0
  %1112 = vmatprep.subr.bf16.mxu0 0
  %1113 = vmatpush1.bf16.msra.mxu0 0
  %1114 = vmatprep.subr.bf16.mxu0 0
  %1115 = vmatpush1.bf16.msra.mxu0 0
  %1116 = vmatprep.subr.bf16.mxu0 0
  %1117 = vmatpush1.bf16.msra.mxu0 0
  %1118 = vmatprep.subr.bf16.mxu0 0
  %1119 = vmatpush1.bf16.msra.mxu0 0
  %1120 = vmatprep.subr.bf16.mxu0 0
  %1121 = vmatpush1.bf16.msra.mxu0 0
  %1122 = vmatprep.subr.bf16.mxu0 0
  %1123 = vmatpush1.bf16.msra.mxu0 0
  %1124 = vmatprep.mubr.bf16.mxu0 0
  %1125 = vmatmul.mubr.bf16.gmra.mrb[0].mxu0 %v490
  %v1126 = vpop.f32.mrb[0].mxu0
  %v1127 = vadd.f32 %v1087, %v1126
  %v1128 = vpop.f32.mrb[0].mxu0
  %v1129 = vpop.f32.mrb[0].mxu0
  %v1130 = vpop.f32.mrb[0].mxu0
  %1131 = vdwg.mxu0
  %vm1132 = vcmp.ge.f32.partialorder %v1127, 0.0
  %v1133 = vmul.f32 %v1127, 0.01
  %v1134 = vsel %vm1132, %v1127, %v1133
  %v1135 = vpack.c.bf16 %v1134, %v1134
  %1136 = vst [vmem:[%s3] sm:$0xf] %v1135
  // Predicated region
  $region14: #{subblock_forward.6} parent=0 // pred_check
    _
  $region15: #{subblock_forward.6} parent=0 // pred_check_branch
    %1138 = sbr.rel (0) target = $region17
  $region16: #{subblock_forward.6} parent=0 // pred_region
    _
  $region17: #{subblock_forward.6} parent=0 // pred_fallthru
    _
  // Predicated region
  $region18: #{subblock_forward.6} parent=0 // pred_check
    _
  $region19: #{subblock_forward.6} parent=0 // pred_check_branch
    %1140 = sbr.rel (0) target = $region21
  $region20: #{subblock_forward.6} parent=0 // pred_region
    _
  $region21: #{subblock_forward.6} parent=0 // pred_fallthru
    _

// kernel: subblock_forward.7
$region0: #{subblock_forward.7}
  #allocation0 [shape = 'u32[]', space=smem, size = 0x4, offset = 0x4, fixed_abs, tag = 'smem constant byte address 0x4 - core index']
  #allocation1 [shape = 'u32[144,128]{1,0:T(1,128)}', space=vmem, size = 0x12000, scoped, tag = 'internal scratch']
  %s0 = inlined_call_operand.vmem [shape: bf16[2,512], index: 0, kind: input, shape index: {}]
  %s1 = inlined_call_operand.vmem [shape: bf16[512,128], index: 1, kind: input, shape index: {}]
  %s2 = inlined_call_operand.vmem [shape: f32[1,128], index: 2, kind: input, shape index: {}]
  %s3 = inlined_call_operand.vmem [shape: bf16[128,128], index: 3, kind: input, shape index: {}]
  %s4 = inlined_call_operand.vmem [shape: f32[1,128], index: 4, kind: input, shape index: {}]
  %s5 = inlined_call_operand.hbm [shape: f32[2,128], index: 5, kind: output, shape index: {}]
  %s6 = sld [smem:[#allocation0]]
  $region30: #{subblock_forward.7} parent=0
    _
  %s8 = ssub.s32 1, %s6
  %s9 = scalar_select 0, %s8, %s6
  $region1: #{subblock_forward.7} parent=0
    #allocation2 [shape = 'u8[1024]{0}', space=vmem, size = 0x400, scoped, tag = 'output window, operand 0, single buffered']
    #allocation3 [shape = 's32[1]{0}', space=sflag, size = 0x4, scoped, tag = 'scoped memory for subblock_forward.7']
    %10 = vsyncpa [#allocation3], 0
    // Predicated region
    $region2: #{subblock_forward.7} parent=1 // pred_check
      _
    $region3: #{subblock_forward.7} parent=1 // pred_check_branch
      %12 = sbr.rel (0) target = $region5
    $region4: #{subblock_forward.7} parent=1 // pred_region
      _
    $region5: #{subblock_forward.7} parent=1 // pred_fallthru
      _
    // Predicated region
    $region6: #{subblock_forward.7} parent=1 // pred_check
      _
    $region7: #{subblock_forward.7} parent=1 // pred_check_branch
      %14 = sbr.rel (0) target = $region9
    $region8: #{subblock_forward.7} parent=1 // pred_region
      _
    $region9: #{subblock_forward.7} parent=1 // pred_fallthru
      _
    // Predicated region
    $region10: #{subblock_forward.7} parent=1 // pred_check
      _
    $region11: #{subblock_forward.7} parent=1 // pred_check_branch
      %16 = sbr.rel (0) target = $region13
    $region12: #{subblock_forward.7} parent=1 // pred_region
      _
    $region13: #{subblock_forward.7} parent=1 // pred_fallthru
      _
    // Predicated region
    $region14: #{subblock_forward.7} parent=1 // pred_check
      _
    $region15: #{subblock_forward.7} parent=1 // pred_check_branch
      %18 = sbr.rel (0) target = $region17
    $region16: #{subblock_forward.7} parent=1 // pred_region
      _
    $region17: #{subblock_forward.7} parent=1 // pred_fallthru
      _
    // Predicated region
    $region18: #{subblock_forward.7} parent=1 // pred_check
      _
    $region19: #{subblock_forward.7} parent=1 // pred_check_branch
      %20 = sbr.rel (0) target = $region21
    $region20: #{subblock_forward.7} parent=1 // pred_region
      _
    $region21: #{subblock_forward.7} parent=1 // pred_fallthru
      _
    %v22 = vld [vmem:[%s0] sm:$0xf]
    %v23 = vld [vmem:[%s1] sm:$0xf]
    %v24 = vld [vmem:[%s1 + $0x4] sm:$0xf]
    %v25 = vld [vmem:[%s1 + $0x8] sm:$0xf]
    %v26 = vld [vmem:[%s1 + $0xc] sm:$0xf]
    %v27 = vld [vmem:[%s1 + $0x10] sm:$0xf]
    %v28 = vld [vmem:[%s1 + $0x14] sm:$0xf]
    %v29 = vld [vmem:[%s1 + $0x18] sm:$0xf]
    %v30 = vld [vmem:[%s1 + $0x1c] sm:$0xf]
    %v31 = vld [vmem:[%s1 + $0x20] sm:$0xf]
    %v32 = vld [vmem:[%s1 + $0x24] sm:$0xf]
    %v33 = vld [vmem:[%s1 + $0x28] sm:$0xf]
    %v34 = vld [vmem:[%s1 + $0x2c] sm:$0xf]
    %v35 = vld [vmem:[%s1 + $0x30] sm:$0xf]
    %v36 = vld [vmem:[%s1 + $0x34] sm:$0xf]
    %v37 = vld [vmem:[%s1 + $0x38] sm:$0xf]
    %v38 = vld [vmem:[%s1 + $0x3c] sm:$0xf]
    %v39 = vld [vmem:[%s1 + $0x40] sm:$0xf]
    %v40 = vld [vmem:[%s1 + $0x44] sm:$0xf]
    %v41 = vld [vmem:[%s1 + $0x48] sm:$0xf]
    %v42 = vld [vmem:[%s1 + $0x4c] sm:$0xf]
    %v43 = vld [vmem:[%s1 + $0x50] sm:$0xf]
    %v44 = vld [vmem:[%s1 + $0x54] sm:$0xf]
    %v45 = vld [vmem:[%s1 + $0x58] sm:$0xf]
    %v46 = vld [vmem:[%s1 + $0x5c] sm:$0xf]
    %v47 = vld [vmem:[%s1 + $0x60] sm:$0xf]
    %v48 = vld [vmem:[%s1 + $0x64] sm:$0xf]
    %v49 = vld [vmem:[%s1 + $0x68] sm:$0xf]
    %v50 = vld [vmem:[%s1 + $0x6c] sm:$0xf]
    %v51 = vld [vmem:[%s1 + $0x70] sm:$0xf]
    %v52 = vld [vmem:[%s1 + $0x74] sm:$0xf]
    %v53 = vld [vmem:[%s1 + $0x78] sm:$0xf]
    %v54 = vld [vmem:[%s1 + $0x7c] sm:$0xf]
    %v55 = vld [vmem:[%s1 + $0x80] sm:$0xf]
    %v56 = vld [vmem:[%s1 + $0x84] sm:$0xf]
    %v57 = vld [vmem:[%s1 + $0x88] sm:$0xf]
    %v58 = vld [vmem:[%s1 + $0x8c] sm:$0xf]
    %v59 = vld [vmem:[%s1 + $0x90] sm:$0xf]
    %v60 = vld [vmem:[%s1 + $0x94] sm:$0xf]
    %v61 = vld [vmem:[%s1 + $0x98] sm:$0xf]
    %v62 = vld [vmem:[%s1 + $0x9c] sm:$0xf]
    %v63 = vld [vmem:[%s1 + $0xa0] sm:$0xf]
    %v64 = vld [vmem:[%s1 + $0xa4] sm:$0xf]
    %v65 = vld [vmem:[%s1 + $0xa8] sm:$0xf]
    %v66 = vld [vmem:[%s1 + $0xac] sm:$0xf]
    %v67 = vld [vmem:[%s1 + $0xb0] sm:$0xf]
    %v68 = vld [vmem:[%s1 + $0xb4] sm:$0xf]
    %v69 = vld [vmem:[%s1 + $0xb8] sm:$0xf]
    %v70 = vld [vmem:[%s1 + $0xbc] sm:$0xf]
    %v71 = vld [vmem:[%s1 + $0xc0] sm:$0xf]
    %v72 = vld [vmem:[%s1 + $0xc4] sm:$0xf]
    %v73 = vld [vmem:[%s1 + $0xc8] sm:$0xf]
    %v74 = vld [vmem:[%s1 + $0xcc] sm:$0xf]
    %v75 = vld [vmem:[%s1 + $0xd0] sm:$0xf]
    %v76 = vld [vmem:[%s1 + $0xd4] sm:$0xf]
    %v77 = vld [vmem:[%s1 + $0xd8] sm:$0xf]
    %v78 = vld [vmem:[%s1 + $0xdc] sm:$0xf]
    %v79 = vld [vmem:[%s1 + $0xe0] sm:$0xf]
    %v80 = vld [vmem:[%s1 + $0xe4] sm:$0xf]
    %v81 = vld [vmem:[%s1 + $0xe8] sm:$0xf]
    %v82 = vld [vmem:[%s1 + $0xec] sm:$0xf]
    %v83 = vld [vmem:[%s1 + $0xf0] sm:$0xf]
    %v84 = vld [vmem:[%s1 + $0xf4] sm:$0xf]
    %v85 = vld [vmem:[%s1 + $0xf8] sm:$0xf]
    %v86 = vld [vmem:[%s1 + $0xfc] sm:$0xf]
    %v87 = vld [vmem:[%s2] sm:$0x1]
    %v89 = vlaneseq
    %v90 = vshrl.u32 %v89, 7
    %v91 = vsub.s32 0, %v90
    %v92 = vrot.slane %v87, %v91
    %v96 = vunpack.c.l.s4 1966171168
    %v97 = vunpack.c.0.s8 %v96
    %v98 = vlaneseq
    %v99 = vshrl.u32 %v98, 7
    %v100 = vsub.s32 %v97, %v99
    %v101 = vrot.slane %v22, %v100
    %v102 = vcombine.high %v101, %v101
    %v104 = vunpack.c.l.s4 1966171168
    %v105 = vunpack.c.0.s8 %v104
    %v106 = vlaneseq
    %v107 = vshrl.u32 %v106, 7
    %v108 = vsub.s32 %v105, %v107
    %v109 = vrot.slane %v101, %v108
    %v111 = vunpack.c.l.s4 1966171168
    %v112 = vunpack.c.0.s8 %v111
    %v113 = vlaneseq
    %v114 = vshrl.u32 %v113, 7
    %v115 = vsub.s32 %v112, %v114
    %v116 = vrot.slane %v102, %v115
    %v117 = vcombine.high %v109, %v109
    %v118 = vcombine.high %v116, %v116
    %v187 = vunpack.c.l.b16 %v23
    %v188 = vunpack.c.l.b16 %v24
    %v189 = vunpack.c.l.b16 %v25
    %v190 = vunpack.c.l.b16 %v26
    %v191 = vunpack.c.l.b16 %v27
    %v192 = vunpack.c.l.b16 %v28
    %v193 = vunpack.c.l.b16 %v29
    %v194 = vunpack.c.l.b16 %v30
    %v195 = vunpack.c.l.b16 %v31
    %v196 = vunpack.c.l.b16 %v32
    %v197 = vunpack.c.l.b16 %v33
    %v198 = vunpack.c.l.b16 %v34
    %v199 = vunpack.c.l.b16 %v35
    %v200 = vunpack.c.l.b16 %v36
    %v201 = vunpack.c.l.b16 %v37
    %v202 = vunpack.c.l.b16 %v38
    %v203 = vunpack.c.l.b16 %v39
    %v204 = vunpack.c.l.b16 %v40
    %v205 = vunpack.c.l.b16 %v41
    %v206 = vunpack.c.l.b16 %v42
    %v207 = vunpack.c.l.b16 %v43
    %v208 = vunpack.c.l.b16 %v44
    %v209 = vunpack.c.l.b16 %v45
    %v210 = vunpack.c.l.b16 %v46
    %v211 = vunpack.c.l.b16 %v47
    %v212 = vunpack.c.l.b16 %v48
    %v213 = vunpack.c.l.b16 %v49
    %v214 = vunpack.c.l.b16 %v50
    %v215 = vunpack.c.l.b16 %v51
    %v216 = vunpack.c.l.b16 %v52
    %v217 = vunpack.c.l.b16 %v53
    %v218 = vunpack.c.l.b16 %v54
    %v219 = vunpack.c.l.b16 %v55
    %v220 = vunpack.c.l.b16 %v56
    %v221 = vunpack.c.l.b16 %v57
    %v222 = vunpack.c.l.b16 %v58
    %v223 = vunpack.c.l.b16 %v59
    %v224 = vunpack.c.l.b16 %v60
    %v225 = vunpack.c.l.b16 %v61
    %v226 = vunpack.c.l.b16 %v62
    %v227 = vunpack.c.l.b16 %v63
    %v228 = vunpack.c.l.b16 %v64
    %v229 = vunpack.c.l.b16 %v65
    %v230 = vunpack.c.l.b16 %v66
    %v231 = vunpack.c.l.b16 %v67
    %v232 = vunpack.c.l.b16 %v68
    %v233 = vunpack.c.l.b16 %v69
    %v234 = vunpack.c.l.b16 %v70
    %v235 = vunpack.c.l.b16 %v71
    %v236 = vunpack.c.l.b16 %v72
    %v237 = vunpack.c.l.b16 %v73
    %v238 = vunpack.c.l.b16 %v74
    %v239 = vunpack.c.l.b16 %v75
    %v240 = vunpack.c.l.b16 %v76
    %v241 = vunpack.c.l.b16 %v77
    %v242 = vunpack.c.l.b16 %v78
    %v243 = vunpack.c.l.b16 %v79
    %v244 = vunpack.c.l.b16 %v80
    %v245 = vunpack.c.l.b16 %v81
    %v246 = vunpack.c.l.b16 %v82
    %v247 = vunpack.c.l.b16 %v83
    %v248 = vunpack.c.l.b16 %v84
    %v249 = vunpack.c.l.b16 %v85
    %v250 = vunpack.c.l.b16 %v86
    %v251 = vpack.c.b16 %v188, %v187
    %v252 = vpack.c.b16 %v190, %v189
    %v253 = vpack.c.b16 %v192, %v191
    %v254 = vpack.c.b16 %v194, %v193
    %v255 = vpack.c.b16 %v196, %v195
    %v256 = vpack.c.b16 %v198, %v197
    %v257 = vpack.c.b16 %v200, %v199
    %v258 = vpack.c.b16 %v202, %v201
    %v259 = vpack.c.b16 %v204, %v203
    %v260 = vpack.c.b16 %v206, %v205
    %v261 = vpack.c.b16 %v208, %v207
    %v262 = vpack.c.b16 %v210, %v209
    %v263 = vpack.c.b16 %v212, %v211
    %v264 = vpack.c.b16 %v214, %v213
    %v265 = vpack.c.b16 %v216, %v215
    %v266 = vpack.c.b16 %v218, %v217
    %v267 = vpack.c.b16 %v220, %v219
    %v268 = vpack.c.b16 %v222, %v221
    %v269 = vpack.c.b16 %v224, %v223
    %v270 = vpack.c.b16 %v226, %v225
    %v271 = vpack.c.b16 %v228, %v227
    %v272 = vpack.c.b16 %v230, %v229
    %v273 = vpack.c.b16 %v232, %v231
    %v274 = vpack.c.b16 %v234, %v233
    %v275 = vpack.c.b16 %v236, %v235
    %v276 = vpack.c.b16 %v238, %v237
    %v277 = vpack.c.b16 %v240, %v239
    %v278 = vpack.c.b16 %v242, %v241
    %v279 = vpack.c.b16 %v244, %v243
    %v280 = vpack.c.b16 %v246, %v245
    %v281 = vpack.c.b16 %v248, %v247
    %v282 = vpack.c.b16 %v250, %v249
    %315 = vmatprep.subr.bf16.mxu0 0
    %316 = vmatpush1.bf16.msra.mxu0 %v251
    %317 = vmatprep.subr.bf16.mxu0 0
    %318 = vmatpush1.bf16.msra.mxu0 %v252
    %319 = vmatprep.subr.bf16.mxu0 0
    %320 = vmatpush1.bf16.msra.mxu0 %v253
    %321 = vmatprep.subr.bf16.mxu0 0
    %322 = vmatpush1.bf16.msra.mxu0 %v254
    %323 = vmatprep.subr.bf16.mxu0 0
    %324 = vmatpush1.bf16.msra.mxu0 %v255
    %325 = vmatprep.subr.bf16.mxu0 0
    %326 = vmatpush1.bf16.msra.mxu0 %v256
    %327 = vmatprep.subr.bf16.mxu0 0
    %328 = vmatpush1.bf16.msra.mxu0 %v257
    %329 = vmatprep.subr.bf16.mxu0 0
    %330 = vmatpush1.bf16.msra.mxu0 %v258
    %331 = vmatprep.subr.bf16.mxu0 0
    %332 = vmatpush1.bf16.msra.mxu0 %v259
    %333 = vmatprep.subr.bf16.mxu0 0
    %334 = vmatpush1.bf16.msra.mxu0 %v260
    %335 = vmatprep.subr.bf16.mxu0 0
    %336 = vmatpush1.bf16.msra.mxu0 %v261
    %337 = vmatprep.subr.bf16.mxu0 0
    %338 = vmatpush1.bf16.msra.mxu0 %v262
    %339 = vmatprep.subr.bf16.mxu0 0
    %340 = vmatpush1.bf16.msra.mxu0 %v263
    %341 = vmatprep.subr.bf16.mxu0 0
    %342 = vmatpush1.bf16.msra.mxu0 %v264
    %343 = vmatprep.subr.bf16.mxu0 0
    %344 = vmatpush1.bf16.msra.mxu0 %v265
    %345 = vmatprep.subr.bf16.mxu0 0
    %346 = vmatpush1.bf16.msra.mxu0 %v266
    %347 = vmatprep.mubr.bf16.mxu0 %v116
    %348 = vmatmul.mubr.bf16.gmra.mrb[0].mxu0 %v109
    %v349 = vpop.f32.mrb[0].mxu0
    %v350 = vadd.f32 %v92, %v349
    %v351 = vpop.f32.mrb[0].mxu0
    %v352 = vpop.f32.mrb[0].mxu0
    %v353 = vpop.f32.mrb[0].mxu0
    %354 = vdwg.mxu0
    %355 = vmatprep.subr.bf16.mxu0 0
    %356 = vmatpush1.bf16.msra.mxu0 %v267
    %357 = vmatprep.subr.bf16.mxu0 0
    %358 = vmatpush1.bf16.msra.mxu0 %v268
    %359 = vmatprep.subr.bf16.mxu0 0
    %360 = vmatpush1.bf16.msra.mxu0 %v269
    %361 = vmatprep.subr.bf16.mxu0 0
    %362 = vmatpush1.bf16.msra.mxu0 %v270
    %363 = vmatprep.subr.bf16.mxu0 0
    %364 = vmatpush1.bf16.msra.mxu0 %v271
    %365 = vmatprep.subr.bf16.mxu0 0
    %366 = vmatpush1.bf16.msra.mxu0 %v272
    %367 = vmatprep.subr.bf16.mxu0 0
    %368 = vmatpush1.bf16.msra.mxu0 %v273
    %369 = vmatprep.subr.bf16.mxu0 0
    %370 = vmatpush1.bf16.msra.mxu0 %v274
    %371 = vmatprep.subr.bf16.mxu0 0
    %372 = vmatpush1.bf16.msra.mxu0 %v275
    %373 = vmatprep.subr.bf16.mxu0 0
    %374 = vmatpush1.bf16.msra.mxu0 %v276
    %375 = vmatprep.subr.bf16.mxu0 0
    %376 = vmatpush1.bf16.msra.mxu0 %v277
    %377 = vmatprep.subr.bf16.mxu0 0
    %378 = vmatpush1.bf16.msra.mxu0 %v278
    %379 = vmatprep.subr.bf16.mxu0 0
    %380 = vmatpush1.bf16.msra.mxu0 %v279
    %381 = vmatprep.subr.bf16.mxu0 0
    %382 = vmatpush1.bf16.msra.mxu0 %v280
    %383 = vmatprep.subr.bf16.mxu0 0
    %384 = vmatpush1.bf16.msra.mxu0 %v281
    %385 = vmatprep.subr.bf16.mxu0 0
    %386 = vmatpush1.bf16.msra.mxu0 %v282
    %387 = vmatprep.mubr.bf16.mxu0 %v118
    %388 = vmatmul.mubr.bf16.gmra.mrb[0].mxu0 %v117
    %v389 = vpop.f32.mrb[0].mxu0
    %v390 = vadd.f32 %v350, %v389
    %v391 = vpop.f32.mrb[0].mxu0
    %v392 = vpop.f32.mrb[0].mxu0
    %v393 = vpop.f32.mrb[0].mxu0
    %394 = vdwg.mxu0
    %vm395 = vcmp.ge.f32.partialorder %v390, 0.0
    %v396 = vmul.f32 %v390, 0.01
    %v397 = vsel %vm395, %v390, %v396
    %v398 = vpack.c.bf16 %v397, %v397
    %v399 = vld [vmem:[%s3] sm:$0xf]
    %v400 = vld [vmem:[%s3 + $0x4] sm:$0xf]
    %v401 = vld [vmem:[%s3 + $0x8] sm:$0xf]
    %v402 = vld [vmem:[%s3 + $0xc] sm:$0xf]
    %v403 = vld [vmem:[%s3 + $0x10] sm:$0xf]
    %v404 = vld [vmem:[%s3 + $0x14] sm:$0xf]
    %v405 = vld [vmem:[%s3 + $0x18] sm:$0xf]
    %v406 = vld [vmem:[%s3 + $0x1c] sm:$0xf]
    %v407 = vld [vmem:[%s3 + $0x20] sm:$0xf]
    %v408 = vld [vmem:[%s3 + $0x24] sm:$0xf]
    %v409 = vld [vmem:[%s3 + $0x28] sm:$0xf]
    %v410 = vld [vmem:[%s3 + $0x2c] sm:$0xf]
    %v411 = vld [vmem:[%s3 + $0x30] sm:$0xf]
    %v412 = vld [vmem:[%s3 + $0x34] sm:$0xf]
    %v413 = vld [vmem:[%s3 + $0x38] sm:$0xf]
    %v414 = vld [vmem:[%s3 + $0x3c] sm:$0xf]
    %v415 = vld [vmem:[%s4] sm:$0x1]
    %v417 = vlaneseq
    %v418 = vshrl.u32 %v417, 7
    %v419 = vsub.s32 0, %v418
    %v420 = vrot.slane %v415, %v419
    %v438 = vunpack.c.l.b16 %v399
    %v439 = vunpack.c.l.b16 %v400
    %v440 = vunpack.c.l.b16 %v401
    %v441 = vunpack.c.l.b16 %v402
    %v442 = vunpack.c.l.b16 %v403
    %v443 = vunpack.c.l.b16 %v404
    %v444 = vunpack.c.l.b16 %v405
    %v445 = vunpack.c.l.b16 %v406
    %v446 = vunpack.c.l.b16 %v407
    %v447 = vunpack.c.l.b16 %v408
    %v448 = vunpack.c.l.b16 %v409
    %v449 = vunpack.c.l.b16 %v410
    %v450 = vunpack.c.l.b16 %v411
    %v451 = vunpack.c.l.b16 %v412
    %v452 = vunpack.c.l.b16 %v413
    %v453 = vunpack.c.l.b16 %v414
    %v454 = vpack.c.b16 %v439, %v438
    %v455 = vpack.c.b16 %v441, %v440
    %v456 = vpack.c.b16 %v443, %v442
    %v457 = vpack.c.b16 %v445, %v444
    %v458 = vpack.c.b16 %v447, %v446
    %v459 = vpack.c.b16 %v449, %v448
    %v460 = vpack.c.b16 %v451, %v450
    %v461 = vpack.c.b16 %v453, %v452
    %470 = vmatprep.subr.bf16.mxu0 0
    %471 = vmatpush1.bf16.msra.mxu0 %v454
    %472 = vmatprep.subr.bf16.mxu0 0
    %473 = vmatpush1.bf16.msra.mxu0 %v455
    %474 = vmatprep.subr.bf16.mxu0 0
    %475 = vmatpush1.bf16.msra.mxu0 %v456
    %476 = vmatprep.subr.bf16.mxu0 0
    %477 = vmatpush1.bf16.msra.mxu0 %v457
    %478 = vmatprep.subr.bf16.mxu0 0
    %479 = vmatpush1.bf16.msra.mxu0 %v458
    %480 = vmatprep.subr.bf16.mxu0 0
    %481 = vmatpush1.bf16.msra.mxu0 %v459
    %482 = vmatprep.subr.bf16.mxu0 0
    %483 = vmatpush1.bf16.msra.mxu0 %v460
    %484 = vmatprep.subr.bf16.mxu0 0
    %485 = vmatpush1.bf16.msra.mxu0 %v461
    %486 = vmatprep.subr.bf16.mxu0 0
    %487 = vmatpush1.bf16.msra.mxu0 0
    %488 = vmatprep.subr.bf16.mxu0 0
    %489 = vmatpush1.bf16.msra.mxu0 0
    %490 = vmatprep.subr.bf16.mxu0 0
    %491 = vmatpush1.bf16.msra.mxu0 0
    %492 = vmatprep.subr.bf16.mxu0 0
    %493 = vmatpush1.bf16.msra.mxu0 0
    %494 = vmatprep.subr.bf16.mxu0 0
    %495 = vmatpush1.bf16.msra.mxu0 0
    %496 = vmatprep.subr.bf16.mxu0 0
    %497 = vmatpush1.bf16.msra.mxu0 0
    %498 = vmatprep.subr.bf16.mxu0 0
    %499 = vmatpush1.bf16.msra.mxu0 0
    %500 = vmatprep.subr.bf16.mxu0 0
    %501 = vmatpush1.bf16.msra.mxu0 0
    %502 = vmatprep.mubr.bf16.mxu0 0
    %503 = vmatmul.mubr.bf16.gmra.mrb[0].mxu0 %v398
    %v504 = vpop.f32.mrb[0].mxu0
    %v505 = vadd.f32 %v420, %v504
    %v506 = vpop.f32.mrb[0].mxu0
    %v507 = vpop.f32.mrb[0].mxu0
    %v508 = vpop.f32.mrb[0].mxu0
    %509 = vdwg.mxu0
    %510 = vst [vmem:[#allocation2] sm:$0x3] %v505
    // Predicated region
    $region22: #{subblock_forward.7} parent=1 // pred_check
      _
    $region23: #{subblock_forward.7} parent=1 // pred_check_branch
      %512 = sbr.rel (0) target = $region25
    $region24: #{subblock_forward.7} parent=1 // pred_region
      %s514 = ssub.s32 32, 32
      %515 = vsyncadd [#allocation3], %s514
      %s517 = sshll.u32 [#allocation2], 4
      %s518 = int_to_ptr.vmem [resolvable:$true] %s517
      %520 = dma.vmem_to_hbm [thread:$0]  %s518, 32, %s5, [#allocation3]
    $region25: #{subblock_forward.7} parent=1 // pred_fallthru
      _
    // Predicated region
    $region26: #{subblock_forward.7} parent=1 // pred_check
      _
    $region27: #{subblock_forward.7} parent=1 // pred_check_branch
      %522 = sbr.rel (0) target = $region29
    $region28: #{subblock_forward.7} parent=1 // pred_region
      %523 = dma.done [#allocation3], 32
    $region29: #{subblock_forward.7} parent=1 // pred_fallthru
      _
    %524 = vsyncpa [#allocation3], 1

</llo_original>
